<compile_context>
chip_gen: v5e
topology: v5e:2x2
jax: 0.10.0
libtpu: 0.0.40
codegen_flags: <defaults>
</compile_context>

<pallas_src>
import math

import jax
import jax.numpy as jnp
from jax import lax
from jax.experimental import pallas as pl
from jax.experimental.pallas import tpu as pltpu

N_EMBD = 384
N_HEADS = 6
HEAD_SIZE = N_EMBD // N_HEADS        # 64
FF_HIDDEN = 4 * N_EMBD               # 1536
BLOCK_SIZE = 256
LN_EPS = 1e-5


def _layernorm(v, g, b):
    mu = jnp.mean(v, axis=-1, keepdims=True)
    d = v - mu
    var = jnp.mean(d * d, axis=-1, keepdims=True)
    return d * lax.rsqrt(var + LN_EPS) * g + b


def _block_kernel(x_ref, ln1_g_ref, ln1_b_ref,
                  wq_ref, wk_ref, wv_ref, wproj_ref, bproj_ref,
                  ln2_g_ref, ln2_b_ref, w1_ref, b1_ref, w2_ref, b2_ref,
                  out_ref):
    # x_ref / out_ref: (T, C)  (batch dim squeezed out by the BlockSpec)
    x = x_ref[...].astype(jnp.float32)
    T, C = x.shape
    H, _, D = wq_ref.shape

    # ---------------- LayerNorm 1 ----------------
    hn = _layernorm(x, ln1_g_ref[...], ln1_b_ref[...])

    # ---------------- causal multi-head self-attention ----------------
    scale = 1.0 / math.sqrt(C)   # source scales by n_embd ** -0.5, not head_size
    row = lax.broadcasted_iota(jnp.int32, (T, T), 0)
    col = lax.broadcasted_iota(jnp.int32, (T, T), 1)
    causal = row >= col

    sa = jnp.zeros((T, C), jnp.float32)
    for h in range(H):   # static unroll over the 6 heads
        q = jnp.dot(hn, wq_ref[h], preferred_element_type=jnp.float32)   # (T, D)
        k = jnp.dot(hn, wk_ref[h], preferred_element_type=jnp.float32)   # (T, D)
        v = jnp.dot(hn, wv_ref[h], preferred_element_type=jnp.float32)   # (T, D)
        # q @ k^T without materializing a transpose.
        s = lax.dot_general(q, k, (((1,), (1,)), ((), ())),
                            preferred_element_type=jnp.float32) * scale  # (T, T)
        s = jnp.where(causal, s, -jnp.inf)
        m = jnp.max(s, axis=-1, keepdims=True)
        p = jnp.exp(s - m)
        p = p / jnp.sum(p, axis=-1, keepdims=True)
        o = jnp.dot(p, v, preferred_element_type=jnp.float32)            # (T, D)
        # Head-concat + output projection folded into per-head (D, C) matmuls.
        sa = sa + jnp.dot(o, wproj_ref[h], preferred_element_type=jnp.float32)
    sa = sa + bproj_ref[...]
    # TODO(synk): nn.Dropout(p=0.25) (on attn weights, proj out, ffwd out) is the
    # identity here (eval-mode forward); training-mode dropout would need pltpu PRNG.

    x1 = x + sa

    # ---------------- LayerNorm 2 + feed-forward ----------------
    hn2 = _layernorm(x1, ln2_g_ref[...], ln2_b_ref[...])
    hidden = jnp.dot(hn2, w1_ref[...], preferred_element_type=jnp.float32) + b1_ref[...]
    hidden = jnp.maximum(hidden, 0.0)
    ff = jnp.dot(hidden, w2_ref[...], preferred_element_type=jnp.float32) + b2_ref[...]

    out_ref[...] = (x1 + ff).astype(out_ref.dtype)


def _replicated(shape):
    n = len(shape)
    return pl.BlockSpec(shape, lambda b, n=n: (0,) * n)


@jax.jit
def block_forward(x, params):
    """Forward pass of `Block` (eval mode). x: (B, T, C) float32."""
    (ln1_g, ln1_b, wq, wk, wv, wproj, bproj,
     ln2_g, ln2_b, w1, b1, w2, b2) = params
    B, T, C = x.shape
    H, _, D = wq.shape
    F = w1.shape[1]
    assert T % 8 == 0 and C % 128 == 0 and T <= BLOCK_SIZE

    # Advisory cost hint: kernel is small-matmul / DMA bound, not FLOP bound.
    flops = B * (24 * T * C * C + 4 * T * T * C)
    transcendentals = B * (H * T * T + 2 * T)
    bytes_accessed = (2 * B * T * C * 4
                      + (3 * H * C * D + 2 * C * C + 2 * C * F) * 4)

    return pl.pallas_call(
        _block_kernel,
        out_shape=jax.ShapeDtypeStruct((B, T, C), x.dtype),
        grid_spec=pltpu.PrefetchScalarGridSpec(
            num_scalar_prefetch=0,
            grid=(B,),
            in_specs=[
                pl.BlockSpec((None, T, C), lambda b: (b, 0, 0)),   # x
                _replicated((1, C)), _replicated((1, C)),          # ln1 gamma/beta
                _replicated((H, C, D)),                            # wq
                _replicated((H, C, D)),                            # wk
                _replicated((H, C, D)),                            # wv
                _replicated((H, D, C)),                            # wproj (per-head rows)
                _replicated((1, C)),                               # bproj
                _replicated((1, C)), _replicated((1, C)),          # ln2 gamma/beta
                _replicated((C, F)), _replicated((1, F)),          # ffn w1 / b1
                _replicated((F, C)), _replicated((1, C)),          # ffn w2 / b2
            ],
            out_specs=pl.BlockSpec((None, T, C), lambda b: (b, 0, 0)),
        ),
        compiler_params=pltpu.CompilerParams(
            dimension_semantics=("parallel",),            # batch axis -> both v7x TCs
            vmem_limit_bytes=48 * 1024 * 1024,            # fits v7x 64MiB, raises v5e default
        ),
        cost_estimate=pl.CostEstimate(flops=flops,
                                      transcendentals=transcendentals,
                                      bytes_accessed=bytes_accessed),
    )(x, ln1_g, ln1_b, wq, wk, wv, wproj, bproj,
      ln2_g, ln2_b, w1, b1, w2, b2)


def _reference(x, params):
    """Pure-JAX reference (eval-mode forward of Block)."""
    (ln1_g, ln1_b, wq, wk, wv, wproj, bproj,
     ln2_g, ln2_b, w1, b1, w2, b2) = params
    B, T, C = x.shape
    H, _, D = wq.shape
    scale = 1.0 / math.sqrt(C)
    mask = jnp.tril(jnp.ones((T, T), dtype=bool))

    hn = _layernorm(x, ln1_g, ln1_b)
    sa = jnp.zeros_like(x)
    for h in range(H):
        q = hn @ wq[h]
        k = hn @ wk[h]
        v = hn @ wv[h]
        s = jnp.einsum('btd,bsd->bts', q, k) * scale
        s = jnp.where(mask, s, -jnp.inf)
        p = jax.nn.softmax(s, axis=-1)
        o = jnp.einsum('bts,bsd->btd', p, v)
        sa = sa + o @ wproj[h]
    sa = sa + bproj
    x1 = x + sa
    hn2 = _layernorm(x1, ln2_g, ln2_b)
    ff = jnp.maximum(hn2 @ w1 + b1, 0.0) @ w2 + b2
    return x1 + ff


if __name__ == "__main__":
    B, T = 2, 16
    C, H, D, F = N_EMBD, N_HEADS, HEAD_SIZE, FF_HIDDEN

    key = jax.random.PRNGKey(0)
    ks = jax.random.split(key, 12)
    x = jax.random.normal(ks[0], (B, T, C), dtype=jnp.float32)

    def lin(k, fan_in, shape):
        return jax.random.normal(k, shape, dtype=jnp.float32) / math.sqrt(fan_in)

    params = (
        1.0 + 0.1 * jax.random.normal(ks[1], (1, C), jnp.float32),   # ln1 gamma
        0.1 * jax.random.normal(ks[2], (1, C), jnp.float32),         # ln1 beta
        lin(ks[3], C, (H, C, D)),                                    # wq (per head)
        lin(ks[4], C, (H, C, D)),                                    # wk
        lin(ks[5], C, (H, C, D)),                                    # wv
        lin(ks[6], C, (H, D, C)),                                    # wproj (per-head rows)
        0.02 * jax.random.normal(ks[7], (1, C), jnp.float32),        # bproj
        1.0 + 0.1 * jax.random.normal(ks[8], (1, C), jnp.float32),   # ln2 gamma
        0.1 * jax.random.normal(ks[9], (1, C), jnp.float32),         # ln2 beta
        lin(ks[10], C, (C, F)),                                      # ffn w1
        jnp.zeros((1, F), jnp.float32),                              # ffn b1
        lin(ks[11], F, (F, C)),                                      # ffn w2
        jnp.zeros((1, C), jnp.float32),                              # ffn b2
    )

    out = block_forward(x, params)
    out = jax.block_until_ready(out)

    ref = _reference(x, params)
    assert out.shape == (B, T, C)
    max_err = float(jnp.max(jnp.abs(out - ref)))
    assert jnp.allclose(out, ref, atol=1e-3, rtol=1e-3), f"max abs err {max_err}"

    print("KERNEL_OK")
</pallas_src>

<mosaic_0001>
module attributes {stable_mosaic.version = 11 : i64} {
  func.func @_block_kernel(%arg0: i32, %arg1: memref<1x16x384xf32, #tpu.memory_space<vmem>>, %arg2: memref<1x384xf32, #tpu.memory_space<vmem>>, %arg3: memref<1x384xf32, #tpu.memory_space<vmem>>, %arg4: memref<6x384x64xf32, #tpu.memory_space<vmem>>, %arg5: memref<6x384x64xf32, #tpu.memory_space<vmem>>, %arg6: memref<6x384x64xf32, #tpu.memory_space<vmem>>, %arg7: memref<6x64x384xf32, #tpu.memory_space<vmem>>, %arg8: memref<1x384xf32, #tpu.memory_space<vmem>>, %arg9: memref<1x384xf32, #tpu.memory_space<vmem>>, %arg10: memref<1x384xf32, #tpu.memory_space<vmem>>, %arg11: memref<384x1536xf32, #tpu.memory_space<vmem>>, %arg12: memref<1x1536xf32, #tpu.memory_space<vmem>>, %arg13: memref<1536x384xf32, #tpu.memory_space<vmem>>, %arg14: memref<1x384xf32, #tpu.memory_space<vmem>>, %arg15: memref<1x16x384xf32, #tpu.memory_space<vmem>>) attributes {dimension_semantics = [#tpu.dimension_semantics<parallel>], iteration_bounds = array<i64: 2>, scalar_prefetch = 0 : i64, scratch_operands = 0 : i64, tpu.core_type = #tpu.core_type<tc>, window_params = [{transform_indices = @transform_0, window_bounds = array<i64: 1, 16, 384>}, {pipeline_mode = #tpu.pipeline_mode<synchronous>, transform_indices = @transform_1, window_bounds = array<i64: 1, 384>}, {pipeline_mode = #tpu.pipeline_mode<synchronous>, transform_indices = @transform_2, window_bounds = array<i64: 1, 384>}, {pipeline_mode = #tpu.pipeline_mode<synchronous>, transform_indices = @transform_3, window_bounds = array<i64: 6, 384, 64>}, {pipeline_mode = #tpu.pipeline_mode<synchronous>, transform_indices = @transform_4, window_bounds = array<i64: 6, 384, 64>}, {pipeline_mode = #tpu.pipeline_mode<synchronous>, transform_indices = @transform_5, window_bounds = array<i64: 6, 384, 64>}, {pipeline_mode = #tpu.pipeline_mode<synchronous>, transform_indices = @transform_6, window_bounds = array<i64: 6, 64, 384>}, {pipeline_mode = #tpu.pipeline_mode<synchronous>, transform_indices = @transform_7, window_bounds = array<i64: 1, 384>}, {pipeline_mode = #tpu.pipeline_mode<synchronous>, transform_indices = @transform_8, window_bounds = array<i64: 1, 384>}, {pipeline_mode = #tpu.pipeline_mode<synchronous>, transform_indices = @transform_9, window_bounds = array<i64: 1, 384>}, {pipeline_mode = #tpu.pipeline_mode<synchronous>, transform_indices = @transform_10, window_bounds = array<i64: 384, 1536>}, {pipeline_mode = #tpu.pipeline_mode<synchronous>, transform_indices = @transform_11, window_bounds = array<i64: 1, 1536>}, {pipeline_mode = #tpu.pipeline_mode<synchronous>, transform_indices = @transform_12, window_bounds = array<i64: 1536, 384>}, {pipeline_mode = #tpu.pipeline_mode<synchronous>, transform_indices = @transform_13, window_bounds = array<i64: 1, 384>}, {transform_indices = @transform_14, window_bounds = array<i64: 1, 16, 384>}]} {
    %c0 = arith.constant 0 : index
    %c0_0 = arith.constant 0 : index
    %c0_1 = arith.constant 0 : index
    %0 = vector.load %arg1[%c0, %c0_0, %c0_1] : memref<1x16x384xf32, #tpu.memory_space<vmem>>, vector<1x16x384xf32>
    %1 = vector.shape_cast %0 : vector<1x16x384xf32> to vector<16x384xf32>
    %c0_2 = arith.constant 0 : index
    %c0_3 = arith.constant 0 : index
    %2 = vector.load %arg2[%c0_2, %c0_3] : memref<1x384xf32, #tpu.memory_space<vmem>>, vector<1x384xf32>
    %c0_4 = arith.constant 0 : index
    %c0_5 = arith.constant 0 : index
    %3 = vector.load %arg3[%c0_4, %c0_5] : memref<1x384xf32, #tpu.memory_space<vmem>>, vector<1x384xf32>
    %cst = arith.constant dense<0.000000e+00> : vector<16xf32>
    %4 = vector.multi_reduction <add>, %1, %cst [1] : vector<16x384xf32> to vector<16xf32>
    %5 = vector.shape_cast %4 : vector<16xf32> to vector<16x1xf32>
    %cst_6 = arith.constant 3.840000e+02 : f32
    %6 = vector.broadcast %cst_6 : f32 to vector<16x1xf32>
    %7 = arith.divf %5, %6 : vector<16x1xf32>
    %8 = vector.broadcast %7 : vector<16x1xf32> to vector<16x384xf32>
    %9 = arith.subf %1, %8 : vector<16x384xf32>
    %10 = arith.mulf %9, %9 : vector<16x384xf32>
    %cst_7 = arith.constant dense<0.000000e+00> : vector<16xf32>
    %11 = vector.multi_reduction <add>, %10, %cst_7 [1] : vector<16x384xf32> to vector<16xf32>
    %12 = vector.shape_cast %11 : vector<16xf32> to vector<16x1xf32>
    %cst_8 = arith.constant 3.840000e+02 : f32
    %13 = vector.broadcast %cst_8 : f32 to vector<16x1xf32>
    %14 = arith.divf %12, %13 : vector<16x1xf32>
    %cst_9 = arith.constant 9.99999974E-6 : f32
    %15 = vector.broadcast %cst_9 : f32 to vector<16x1xf32>
    %16 = arith.addf %14, %15 : vector<16x1xf32>
    %17 = math.rsqrt %16 : vector<16x1xf32>
    %18 = vector.broadcast %17 : vector<16x1xf32> to vector<16x384xf32>
    %19 = arith.mulf %9, %18 : vector<16x384xf32>
    %20 = vector.broadcast %2 : vector<1x384xf32> to vector<16x384xf32>
    %21 = arith.mulf %19, %20 : vector<16x384xf32>
    %22 = vector.broadcast %3 : vector<1x384xf32> to vector<16x384xf32>
    %23 = arith.addf %21, %22 : vector<16x384xf32>
    %24 = tpu.iota {dimensions = array<i32: 0>} : vector<16x16xi32>
    %25 = tpu.iota {dimensions = array<i32: 1>} : vector<16x16xi32>
    %26 = arith.cmpi sge, %24, %25 : vector<16x16xi32>
    %cst_10 = arith.constant 0.000000e+00 : f32
    %27 = vector.broadcast %cst_10 : f32 to vector<16x384xf32>
    %c0_11 = arith.constant 0 : index
    %c0_12 = arith.constant 0 : index
    %c0_13 = arith.constant 0 : index
    %28 = vector.load %arg4[%c0_11, %c0_12, %c0_13] : memref<6x384x64xf32, #tpu.memory_space<vmem>>, vector<1x384x64xf32>
    %29 = vector.shape_cast %28 : vector<1x384x64xf32> to vector<384x64xf32>
    %cst_14 = arith.constant dense<0.000000e+00> : vector<16x64xf32>
    %30 = tpu.matmul %23, %29, %cst_14 {dimension_numbers = #tpu.dot_dimension_numbers<[1], [0], [0], [1], [0, 0, 1, 1], [], []>} : vector<16x384xf32>, vector<384x64xf32>, vector<16x64xf32> -> vector<16x64xf32>
    %c0_15 = arith.constant 0 : index
    %c0_16 = arith.constant 0 : index
    %c0_17 = arith.constant 0 : index
    %31 = vector.load %arg5[%c0_15, %c0_16, %c0_17] : memref<6x384x64xf32, #tpu.memory_space<vmem>>, vector<1x384x64xf32>
    %32 = vector.shape_cast %31 : vector<1x384x64xf32> to vector<384x64xf32>
    %cst_18 = arith.constant dense<0.000000e+00> : vector<16x64xf32>
    %33 = tpu.matmul %23, %32, %cst_18 {dimension_numbers = #tpu.dot_dimension_numbers<[1], [0], [0], [1], [0, 0, 1, 1], [], []>} : vector<16x384xf32>, vector<384x64xf32>, vector<16x64xf32> -> vector<16x64xf32>
    %c0_19 = arith.constant 0 : index
    %c0_20 = arith.constant 0 : index
    %c0_21 = arith.constant 0 : index
    %34 = vector.load %arg6[%c0_19, %c0_20, %c0_21] : memref<6x384x64xf32, #tpu.memory_space<vmem>>, vector<1x384x64xf32>
    %35 = vector.shape_cast %34 : vector<1x384x64xf32> to vector<384x64xf32>
    %cst_22 = arith.constant dense<0.000000e+00> : vector<16x64xf32>
    %36 = tpu.matmul %23, %35, %cst_22 {dimension_numbers = #tpu.dot_dimension_numbers<[1], [0], [0], [1], [0, 0, 1, 1], [], []>} : vector<16x384xf32>, vector<384x64xf32>, vector<16x64xf32> -> vector<16x64xf32>
    %cst_23 = arith.constant dense<0.000000e+00> : vector<16x16xf32>
    %37 = tpu.matmul %30, %33, %cst_23 {dimension_numbers = #tpu.dot_dimension_numbers<[1], [1], [0], [0], [0, 0, 1, 0], [], []>} : vector<16x64xf32>, vector<16x64xf32>, vector<16x16xf32> -> vector<16x16xf32>
    %cst_24 = arith.constant 0.0510310382 : f32
    %38 = vector.broadcast %cst_24 : f32 to vector<16x16xf32>
    %39 = arith.mulf %37, %38 : vector<16x16xf32>
    %cst_25 = arith.constant 0xFF800000 : f32
    %40 = vector.broadcast %cst_25 : f32 to vector<16x16xf32>
    %41 = arith.select %26, %39, %40 : vector<16x16xi1>, vector<16x16xf32>
    %cst_26 = arith.constant dense<0xFF800000> : vector<16xf32>
    %42 = vector.multi_reduction <maximumf>, %41, %cst_26 [1] : vector<16x16xf32> to vector<16xf32>
    %43 = vector.shape_cast %42 : vector<16xf32> to vector<16x1xf32>
    %44 = vector.broadcast %43 : vector<16x1xf32> to vector<16x16xf32>
    %45 = arith.subf %41, %44 : vector<16x16xf32>
    %46 = math.exp %45 : vector<16x16xf32>
    %cst_27 = arith.constant dense<0.000000e+00> : vector<16xf32>
    %47 = vector.multi_reduction <add>, %46, %cst_27 [1] : vector<16x16xf32> to vector<16xf32>
    %48 = vector.shape_cast %47 : vector<16xf32> to vector<16x1xf32>
    %49 = vector.broadcast %48 : vector<16x1xf32> to vector<16x16xf32>
    %50 = arith.divf %46, %49 : vector<16x16xf32>
    %cst_28 = arith.constant dense<0.000000e+00> : vector<16x64xf32>
    %51 = tpu.matmul %50, %36, %cst_28 {dimension_numbers = #tpu.dot_dimension_numbers<[1], [0], [0], [1], [0, 0, 1, 1], [], []>} : vector<16x16xf32>, vector<16x64xf32>, vector<16x64xf32> -> vector<16x64xf32>
    %c0_29 = arith.constant 0 : index
    %c0_30 = arith.constant 0 : index
    %c0_31 = arith.constant 0 : index
    %52 = vector.load %arg7[%c0_29, %c0_30, %c0_31] : memref<6x64x384xf32, #tpu.memory_space<vmem>>, vector<1x64x384xf32>
    %53 = vector.shape_cast %52 : vector<1x64x384xf32> to vector<64x384xf32>
    %cst_32 = arith.constant dense<0.000000e+00> : vector<16x384xf32>
    %54 = tpu.matmul %51, %53, %cst_32 {dimension_numbers = #tpu.dot_dimension_numbers<[1], [0], [0], [1], [0, 0, 1, 1], [], []>} : vector<16x64xf32>, vector<64x384xf32>, vector<16x384xf32> -> vector<16x384xf32>
    %55 = arith.addf %27, %54 : vector<16x384xf32>
    %c1 = arith.constant 1 : index
    %c0_33 = arith.constant 0 : index
    %c0_34 = arith.constant 0 : index
    %56 = vector.load %arg4[%c1, %c0_33, %c0_34] : memref<6x384x64xf32, #tpu.memory_space<vmem>>, vector<1x384x64xf32>
    %57 = vector.shape_cast %56 : vector<1x384x64xf32> to vector<384x64xf32>
    %cst_35 = arith.constant dense<0.000000e+00> : vector<16x64xf32>
    %58 = tpu.matmul %23, %57, %cst_35 {dimension_numbers = #tpu.dot_dimension_numbers<[1], [0], [0], [1], [0, 0, 1, 1], [], []>} : vector<16x384xf32>, vector<384x64xf32>, vector<16x64xf32> -> vector<16x64xf32>
    %c1_36 = arith.constant 1 : index
    %c0_37 = arith.constant 0 : index
    %c0_38 = arith.constant 0 : index
    %59 = vector.load %arg5[%c1_36, %c0_37, %c0_38] : memref<6x384x64xf32, #tpu.memory_space<vmem>>, vector<1x384x64xf32>
    %60 = vector.shape_cast %59 : vector<1x384x64xf32> to vector<384x64xf32>
    %cst_39 = arith.constant dense<0.000000e+00> : vector<16x64xf32>
    %61 = tpu.matmul %23, %60, %cst_39 {dimension_numbers = #tpu.dot_dimension_numbers<[1], [0], [0], [1], [0, 0, 1, 1], [], []>} : vector<16x384xf32>, vector<384x64xf32>, vector<16x64xf32> -> vector<16x64xf32>
    %c1_40 = arith.constant 1 : index
    %c0_41 = arith.constant 0 : index
    %c0_42 = arith.constant 0 : index
    %62 = vector.load %arg6[%c1_40, %c0_41, %c0_42] : memref<6x384x64xf32, #tpu.memory_space<vmem>>, vector<1x384x64xf32>
    %63 = vector.shape_cast %62 : vector<1x384x64xf32> to vector<384x64xf32>
    %cst_43 = arith.constant dense<0.000000e+00> : vector<16x64xf32>
    %64 = tpu.matmul %23, %63, %cst_43 {dimension_numbers = #tpu.dot_dimension_numbers<[1], [0], [0], [1], [0, 0, 1, 1], [], []>} : vector<16x384xf32>, vector<384x64xf32>, vector<16x64xf32> -> vector<16x64xf32>
    %cst_44 = arith.constant dense<0.000000e+00> : vector<16x16xf32>
    %65 = tpu.matmul %58, %61, %cst_44 {dimension_numbers = #tpu.dot_dimension_numbers<[1], [1], [0], [0], [0, 0, 1, 0], [], []>} : vector<16x64xf32>, vector<16x64xf32>, vector<16x16xf32> -> vector<16x16xf32>
    %cst_45 = arith.constant 0.0510310382 : f32
    %66 = vector.broadcast %cst_45 : f32 to vector<16x16xf32>
    %67 = arith.mulf %65, %66 : vector<16x16xf32>
    %cst_46 = arith.constant 0xFF800000 : f32
    %68 = vector.broadcast %cst_46 : f32 to vector<16x16xf32>
    %69 = arith.select %26, %67, %68 : vector<16x16xi1>, vector<16x16xf32>
    %cst_47 = arith.constant dense<0xFF800000> : vector<16xf32>
    %70 = vector.multi_reduction <maximumf>, %69, %cst_47 [1] : vector<16x16xf32> to vector<16xf32>
    %71 = vector.shape_cast %70 : vector<16xf32> to vector<16x1xf32>
    %72 = vector.broadcast %71 : vector<16x1xf32> to vector<16x16xf32>
    %73 = arith.subf %69, %72 : vector<16x16xf32>
    %74 = math.exp %73 : vector<16x16xf32>
    %cst_48 = arith.constant dense<0.000000e+00> : vector<16xf32>
    %75 = vector.multi_reduction <add>, %74, %cst_48 [1] : vector<16x16xf32> to vector<16xf32>
    %76 = vector.shape_cast %75 : vector<16xf32> to vector<16x1xf32>
    %77 = vector.broadcast %76 : vector<16x1xf32> to vector<16x16xf32>
    %78 = arith.divf %74, %77 : vector<16x16xf32>
    %cst_49 = arith.constant dense<0.000000e+00> : vector<16x64xf32>
    %79 = tpu.matmul %78, %64, %cst_49 {dimension_numbers = #tpu.dot_dimension_numbers<[1], [0], [0], [1], [0, 0, 1, 1], [], []>} : vector<16x16xf32>, vector<16x64xf32>, vector<16x64xf32> -> vector<16x64xf32>
    %c1_50 = arith.constant 1 : index
    %c0_51 = arith.constant 0 : index
    %c0_52 = arith.constant 0 : index
    %80 = vector.load %arg7[%c1_50, %c0_51, %c0_52] : memref<6x64x384xf32, #tpu.memory_space<vmem>>, vector<1x64x384xf32>
    %81 = vector.shape_cast %80 : vector<1x64x384xf32> to vector<64x384xf32>
    %cst_53 = arith.constant dense<0.000000e+00> : vector<16x384xf32>
    %82 = tpu.matmul %79, %81, %cst_53 {dimension_numbers = #tpu.dot_dimension_numbers<[1], [0], [0], [1], [0, 0, 1, 1], [], []>} : vector<16x64xf32>, vector<64x384xf32>, vector<16x384xf32> -> vector<16x384xf32>
    %83 = arith.addf %55, %82 : vector<16x384xf32>
    %c2 = arith.constant 2 : index
    %c0_54 = arith.constant 0 : index
    %c0_55 = arith.constant 0 : index
    %84 = vector.load %arg4[%c2, %c0_54, %c0_55] : memref<6x384x64xf32, #tpu.memory_space<vmem>>, vector<1x384x64xf32>
    %85 = vector.shape_cast %84 : vector<1x384x64xf32> to vector<384x64xf32>
    %cst_56 = arith.constant dense<0.000000e+00> : vector<16x64xf32>
    %86 = tpu.matmul %23, %85, %cst_56 {dimension_numbers = #tpu.dot_dimension_numbers<[1], [0], [0], [1], [0, 0, 1, 1], [], []>} : vector<16x384xf32>, vector<384x64xf32>, vector<16x64xf32> -> vector<16x64xf32>
    %c2_57 = arith.constant 2 : index
    %c0_58 = arith.constant 0 : index
    %c0_59 = arith.constant 0 : index
    %87 = vector.load %arg5[%c2_57, %c0_58, %c0_59] : memref<6x384x64xf32, #tpu.memory_space<vmem>>, vector<1x384x64xf32>
    %88 = vector.shape_cast %87 : vector<1x384x64xf32> to vector<384x64xf32>
    %cst_60 = arith.constant dense<0.000000e+00> : vector<16x64xf32>
    %89 = tpu.matmul %23, %88, %cst_60 {dimension_numbers = #tpu.dot_dimension_numbers<[1], [0], [0], [1], [0, 0, 1, 1], [], []>} : vector<16x384xf32>, vector<384x64xf32>, vector<16x64xf32> -> vector<16x64xf32>
    %c2_61 = arith.constant 2 : index
    %c0_62 = arith.constant 0 : index
    %c0_63 = arith.constant 0 : index
    %90 = vector.load %arg6[%c2_61, %c0_62, %c0_63] : memref<6x384x64xf32, #tpu.memory_space<vmem>>, vector<1x384x64xf32>
    %91 = vector.shape_cast %90 : vector<1x384x64xf32> to vector<384x64xf32>
    %cst_64 = arith.constant dense<0.000000e+00> : vector<16x64xf32>
    %92 = tpu.matmul %23, %91, %cst_64 {dimension_numbers = #tpu.dot_dimension_numbers<[1], [0], [0], [1], [0, 0, 1, 1], [], []>} : vector<16x384xf32>, vector<384x64xf32>, vector<16x64xf32> -> vector<16x64xf32>
    %cst_65 = arith.constant dense<0.000000e+00> : vector<16x16xf32>
    %93 = tpu.matmul %86, %89, %cst_65 {dimension_numbers = #tpu.dot_dimension_numbers<[1], [1], [0], [0], [0, 0, 1, 0], [], []>} : vector<16x64xf32>, vector<16x64xf32>, vector<16x16xf32> -> vector<16x16xf32>
    %cst_66 = arith.constant 0.0510310382 : f32
    %94 = vector.broadcast %cst_66 : f32 to vector<16x16xf32>
    %95 = arith.mulf %93, %94 : vector<16x16xf32>
    %cst_67 = arith.constant 0xFF800000 : f32
    %96 = vector.broadcast %cst_67 : f32 to vector<16x16xf32>
    %97 = arith.select %26, %95, %96 : vector<16x16xi1>, vector<16x16xf32>
    %cst_68 = arith.constant dense<0xFF800000> : vector<16xf32>
    %98 = vector.multi_reduction <maximumf>, %97, %cst_68 [1] : vector<16x16xf32> to vector<16xf32>
    %99 = vector.shape_cast %98 : vector<16xf32> to vector<16x1xf32>
    %100 = vector.broadcast %99 : vector<16x1xf32> to vector<16x16xf32>
    %101 = arith.subf %97, %100 : vector<16x16xf32>
    %102 = math.exp %101 : vector<16x16xf32>
    %cst_69 = arith.constant dense<0.000000e+00> : vector<16xf32>
    %103 = vector.multi_reduction <add>, %102, %cst_69 [1] : vector<16x16xf32> to vector<16xf32>
    %104 = vector.shape_cast %103 : vector<16xf32> to vector<16x1xf32>
    %105 = vector.broadcast %104 : vector<16x1xf32> to vector<16x16xf32>
    %106 = arith.divf %102, %105 : vector<16x16xf32>
    %cst_70 = arith.constant dense<0.000000e+00> : vector<16x64xf32>
    %107 = tpu.matmul %106, %92, %cst_70 {dimension_numbers = #tpu.dot_dimension_numbers<[1], [0], [0], [1], [0, 0, 1, 1], [], []>} : vector<16x16xf32>, vector<16x64xf32>, vector<16x64xf32> -> vector<16x64xf32>
    %c2_71 = arith.constant 2 : index
    %c0_72 = arith.constant 0 : index
    %c0_73 = arith.constant 0 : index
    %108 = vector.load %arg7[%c2_71, %c0_72, %c0_73] : memref<6x64x384xf32, #tpu.memory_space<vmem>>, vector<1x64x384xf32>
    %109 = vector.shape_cast %108 : vector<1x64x384xf32> to vector<64x384xf32>
    %cst_74 = arith.constant dense<0.000000e+00> : vector<16x384xf32>
    %110 = tpu.matmul %107, %109, %cst_74 {dimension_numbers = #tpu.dot_dimension_numbers<[1], [0], [0], [1], [0, 0, 1, 1], [], []>} : vector<16x64xf32>, vector<64x384xf32>, vector<16x384xf32> -> vector<16x384xf32>
    %111 = arith.addf %83, %110 : vector<16x384xf32>
    %c3 = arith.constant 3 : index
    %c0_75 = arith.constant 0 : index
    %c0_76 = arith.constant 0 : index
    %112 = vector.load %arg4[%c3, %c0_75, %c0_76] : memref<6x384x64xf32, #tpu.memory_space<vmem>>, vector<1x384x64xf32>
    %113 = vector.shape_cast %112 : vector<1x384x64xf32> to vector<384x64xf32>
    %cst_77 = arith.constant dense<0.000000e+00> : vector<16x64xf32>
    %114 = tpu.matmul %23, %113, %cst_77 {dimension_numbers = #tpu.dot_dimension_numbers<[1], [0], [0], [1], [0, 0, 1, 1], [], []>} : vector<16x384xf32>, vector<384x64xf32>, vector<16x64xf32> -> vector<16x64xf32>
    %c3_78 = arith.constant 3 : index
    %c0_79 = arith.constant 0 : index
    %c0_80 = arith.constant 0 : index
    %115 = vector.load %arg5[%c3_78, %c0_79, %c0_80] : memref<6x384x64xf32, #tpu.memory_space<vmem>>, vector<1x384x64xf32>
    %116 = vector.shape_cast %115 : vector<1x384x64xf32> to vector<384x64xf32>
    %cst_81 = arith.constant dense<0.000000e+00> : vector<16x64xf32>
    %117 = tpu.matmul %23, %116, %cst_81 {dimension_numbers = #tpu.dot_dimension_numbers<[1], [0], [0], [1], [0, 0, 1, 1], [], []>} : vector<16x384xf32>, vector<384x64xf32>, vector<16x64xf32> -> vector<16x64xf32>
    %c3_82 = arith.constant 3 : index
    %c0_83 = arith.constant 0 : index
    %c0_84 = arith.constant 0 : index
    %118 = vector.load %arg6[%c3_82, %c0_83, %c0_84] : memref<6x384x64xf32, #tpu.memory_space<vmem>>, vector<1x384x64xf32>
    %119 = vector.shape_cast %118 : vector<1x384x64xf32> to vector<384x64xf32>
    %cst_85 = arith.constant dense<0.000000e+00> : vector<16x64xf32>
    %120 = tpu.matmul %23, %119, %cst_85 {dimension_numbers = #tpu.dot_dimension_numbers<[1], [0], [0], [1], [0, 0, 1, 1], [], []>} : vector<16x384xf32>, vector<384x64xf32>, vector<16x64xf32> -> vector<16x64xf32>
    %cst_86 = arith.constant dense<0.000000e+00> : vector<16x16xf32>
    %121 = tpu.matmul %114, %117, %cst_86 {dimension_numbers = #tpu.dot_dimension_numbers<[1], [1], [0], [0], [0, 0, 1, 0], [], []>} : vector<16x64xf32>, vector<16x64xf32>, vector<16x16xf32> -> vector<16x16xf32>
    %cst_87 = arith.constant 0.0510310382 : f32
    %122 = vector.broadcast %cst_87 : f32 to vector<16x16xf32>
    %123 = arith.mulf %121, %122 : vector<16x16xf32>
    %cst_88 = arith.constant 0xFF800000 : f32
    %124 = vector.broadcast %cst_88 : f32 to vector<16x16xf32>
    %125 = arith.select %26, %123, %124 : vector<16x16xi1>, vector<16x16xf32>
    %cst_89 = arith.constant dense<0xFF800000> : vector<16xf32>
    %126 = vector.multi_reduction <maximumf>, %125, %cst_89 [1] : vector<16x16xf32> to vector<16xf32>
    %127 = vector.shape_cast %126 : vector<16xf32> to vector<16x1xf32>
    %128 = vector.broadcast %127 : vector<16x1xf32> to vector<16x16xf32>
    %129 = arith.subf %125, %128 : vector<16x16xf32>
    %130 = math.exp %129 : vector<16x16xf32>
    %cst_90 = arith.constant dense<0.000000e+00> : vector<16xf32>
    %131 = vector.multi_reduction <add>, %130, %cst_90 [1] : vector<16x16xf32> to vector<16xf32>
    %132 = vector.shape_cast %131 : vector<16xf32> to vector<16x1xf32>
    %133 = vector.broadcast %132 : vector<16x1xf32> to vector<16x16xf32>
    %134 = arith.divf %130, %133 : vector<16x16xf32>
    %cst_91 = arith.constant dense<0.000000e+00> : vector<16x64xf32>
    %135 = tpu.matmul %134, %120, %cst_91 {dimension_numbers = #tpu.dot_dimension_numbers<[1], [0], [0], [1], [0, 0, 1, 1], [], []>} : vector<16x16xf32>, vector<16x64xf32>, vector<16x64xf32> -> vector<16x64xf32>
    %c3_92 = arith.constant 3 : index
    %c0_93 = arith.constant 0 : index
    %c0_94 = arith.constant 0 : index
    %136 = vector.load %arg7[%c3_92, %c0_93, %c0_94] : memref<6x64x384xf32, #tpu.memory_space<vmem>>, vector<1x64x384xf32>
    %137 = vector.shape_cast %136 : vector<1x64x384xf32> to vector<64x384xf32>
    %cst_95 = arith.constant dense<0.000000e+00> : vector<16x384xf32>
    %138 = tpu.matmul %135, %137, %cst_95 {dimension_numbers = #tpu.dot_dimension_numbers<[1], [0], [0], [1], [0, 0, 1, 1], [], []>} : vector<16x64xf32>, vector<64x384xf32>, vector<16x384xf32> -> vector<16x384xf32>
    %139 = arith.addf %111, %138 : vector<16x384xf32>
    %c4 = arith.constant 4 : index
    %c0_96 = arith.constant 0 : index
    %c0_97 = arith.constant 0 : index
    %140 = vector.load %arg4[%c4, %c0_96, %c0_97] : memref<6x384x64xf32, #tpu.memory_space<vmem>>, vector<1x384x64xf32>
    %141 = vector.shape_cast %140 : vector<1x384x64xf32> to vector<384x64xf32>
    %cst_98 = arith.constant dense<0.000000e+00> : vector<16x64xf32>
    %142 = tpu.matmul %23, %141, %cst_98 {dimension_numbers = #tpu.dot_dimension_numbers<[1], [0], [0], [1], [0, 0, 1, 1], [], []>} : vector<16x384xf32>, vector<384x64xf32>, vector<16x64xf32> -> vector<16x64xf32>
    %c4_99 = arith.constant 4 : index
    %c0_100 = arith.constant 0 : index
    %c0_101 = arith.constant 0 : index
    %143 = vector.load %arg5[%c4_99, %c0_100, %c0_101] : memref<6x384x64xf32, #tpu.memory_space<vmem>>, vector<1x384x64xf32>
    %144 = vector.shape_cast %143 : vector<1x384x64xf32> to vector<384x64xf32>
    %cst_102 = arith.constant dense<0.000000e+00> : vector<16x64xf32>
    %145 = tpu.matmul %23, %144, %cst_102 {dimension_numbers = #tpu.dot_dimension_numbers<[1], [0], [0], [1], [0, 0, 1, 1], [], []>} : vector<16x384xf32>, vector<384x64xf32>, vector<16x64xf32> -> vector<16x64xf32>
    %c4_103 = arith.constant 4 : index
    %c0_104 = arith.constant 0 : index
    %c0_105 = arith.constant 0 : index
    %146 = vector.load %arg6[%c4_103, %c0_104, %c0_105] : memref<6x384x64xf32, #tpu.memory_space<vmem>>, vector<1x384x64xf32>
    %147 = vector.shape_cast %146 : vector<1x384x64xf32> to vector<384x64xf32>
    %cst_106 = arith.constant dense<0.000000e+00> : vector<16x64xf32>
    %148 = tpu.matmul %23, %147, %cst_106 {dimension_numbers = #tpu.dot_dimension_numbers<[1], [0], [0], [1], [0, 0, 1, 1], [], []>} : vector<16x384xf32>, vector<384x64xf32>, vector<16x64xf32> -> vector<16x64xf32>
    %cst_107 = arith.constant dense<0.000000e+00> : vector<16x16xf32>
    %149 = tpu.matmul %142, %145, %cst_107 {dimension_numbers = #tpu.dot_dimension_numbers<[1], [1], [0], [0], [0, 0, 1, 0], [], []>} : vector<16x64xf32>, vector<16x64xf32>, vector<16x16xf32> -> vector<16x16xf32>
    %cst_108 = arith.constant 0.0510310382 : f32
    %150 = vector.broadcast %cst_108 : f32 to vector<16x16xf32>
    %151 = arith.mulf %149, %150 : vector<16x16xf32>
    %cst_109 = arith.constant 0xFF800000 : f32
    %152 = vector.broadcast %cst_109 : f32 to vector<16x16xf32>
    %153 = arith.select %26, %151, %152 : vector<16x16xi1>, vector<16x16xf32>
    %cst_110 = arith.constant dense<0xFF800000> : vector<16xf32>
    %154 = vector.multi_reduction <maximumf>, %153, %cst_110 [1] : vector<16x16xf32> to vector<16xf32>
    %155 = vector.shape_cast %154 : vector<16xf32> to vector<16x1xf32>
    %156 = vector.broadcast %155 : vector<16x1xf32> to vector<16x16xf32>
    %157 = arith.subf %153, %156 : vector<16x16xf32>
    %158 = math.exp %157 : vector<16x16xf32>
    %cst_111 = arith.constant dense<0.000000e+00> : vector<16xf32>
    %159 = vector.multi_reduction <add>, %158, %cst_111 [1] : vector<16x16xf32> to vector<16xf32>
    %160 = vector.shape_cast %159 : vector<16xf32> to vector<16x1xf32>
    %161 = vector.broadcast %160 : vector<16x1xf32> to vector<16x16xf32>
    %162 = arith.divf %158, %161 : vector<16x16xf32>
    %cst_112 = arith.constant dense<0.000000e+00> : vector<16x64xf32>
    %163 = tpu.matmul %162, %148, %cst_112 {dimension_numbers = #tpu.dot_dimension_numbers<[1], [0], [0], [1], [0, 0, 1, 1], [], []>} : vector<16x16xf32>, vector<16x64xf32>, vector<16x64xf32> -> vector<16x64xf32>
    %c4_113 = arith.constant 4 : index
    %c0_114 = arith.constant 0 : index
    %c0_115 = arith.constant 0 : index
    %164 = vector.load %arg7[%c4_113, %c0_114, %c0_115] : memref<6x64x384xf32, #tpu.memory_space<vmem>>, vector<1x64x384xf32>
    %165 = vector.shape_cast %164 : vector<1x64x384xf32> to vector<64x384xf32>
    %cst_116 = arith.constant dense<0.000000e+00> : vector<16x384xf32>
    %166 = tpu.matmul %163, %165, %cst_116 {dimension_numbers = #tpu.dot_dimension_numbers<[1], [0], [0], [1], [0, 0, 1, 1], [], []>} : vector<16x64xf32>, vector<64x384xf32>, vector<16x384xf32> -> vector<16x384xf32>
    %167 = arith.addf %139, %166 : vector<16x384xf32>
    %c5 = arith.constant 5 : index
    %c0_117 = arith.constant 0 : index
    %c0_118 = arith.constant 0 : index
    %168 = vector.load %arg4[%c5, %c0_117, %c0_118] : memref<6x384x64xf32, #tpu.memory_space<vmem>>, vector<1x384x64xf32>
    %169 = vector.shape_cast %168 : vector<1x384x64xf32> to vector<384x64xf32>
    %cst_119 = arith.constant dense<0.000000e+00> : vector<16x64xf32>
    %170 = tpu.matmul %23, %169, %cst_119 {dimension_numbers = #tpu.dot_dimension_numbers<[1], [0], [0], [1], [0, 0, 1, 1], [], []>} : vector<16x384xf32>, vector<384x64xf32>, vector<16x64xf32> -> vector<16x64xf32>
    %c5_120 = arith.constant 5 : index
    %c0_121 = arith.constant 0 : index
    %c0_122 = arith.constant 0 : index
    %171 = vector.load %arg5[%c5_120, %c0_121, %c0_122] : memref<6x384x64xf32, #tpu.memory_space<vmem>>, vector<1x384x64xf32>
    %172 = vector.shape_cast %171 : vector<1x384x64xf32> to vector<384x64xf32>
    %cst_123 = arith.constant dense<0.000000e+00> : vector<16x64xf32>
    %173 = tpu.matmul %23, %172, %cst_123 {dimension_numbers = #tpu.dot_dimension_numbers<[1], [0], [0], [1], [0, 0, 1, 1], [], []>} : vector<16x384xf32>, vector<384x64xf32>, vector<16x64xf32> -> vector<16x64xf32>
    %c5_124 = arith.constant 5 : index
    %c0_125 = arith.constant 0 : index
    %c0_126 = arith.constant 0 : index
    %174 = vector.load %arg6[%c5_124, %c0_125, %c0_126] : memref<6x384x64xf32, #tpu.memory_space<vmem>>, vector<1x384x64xf32>
    %175 = vector.shape_cast %174 : vector<1x384x64xf32> to vector<384x64xf32>
    %cst_127 = arith.constant dense<0.000000e+00> : vector<16x64xf32>
    %176 = tpu.matmul %23, %175, %cst_127 {dimension_numbers = #tpu.dot_dimension_numbers<[1], [0], [0], [1], [0, 0, 1, 1], [], []>} : vector<16x384xf32>, vector<384x64xf32>, vector<16x64xf32> -> vector<16x64xf32>
    %cst_128 = arith.constant dense<0.000000e+00> : vector<16x16xf32>
    %177 = tpu.matmul %170, %173, %cst_128 {dimension_numbers = #tpu.dot_dimension_numbers<[1], [1], [0], [0], [0, 0, 1, 0], [], []>} : vector<16x64xf32>, vector<16x64xf32>, vector<16x16xf32> -> vector<16x16xf32>
    %cst_129 = arith.constant 0.0510310382 : f32
    %178 = vector.broadcast %cst_129 : f32 to vector<16x16xf32>
    %179 = arith.mulf %177, %178 : vector<16x16xf32>
    %cst_130 = arith.constant 0xFF800000 : f32
    %180 = vector.broadcast %cst_130 : f32 to vector<16x16xf32>
    %181 = arith.select %26, %179, %180 : vector<16x16xi1>, vector<16x16xf32>
    %cst_131 = arith.constant dense<0xFF800000> : vector<16xf32>
    %182 = vector.multi_reduction <maximumf>, %181, %cst_131 [1] : vector<16x16xf32> to vector<16xf32>
    %183 = vector.shape_cast %182 : vector<16xf32> to vector<16x1xf32>
    %184 = vector.broadcast %183 : vector<16x1xf32> to vector<16x16xf32>
    %185 = arith.subf %181, %184 : vector<16x16xf32>
    %186 = math.exp %185 : vector<16x16xf32>
    %cst_132 = arith.constant dense<0.000000e+00> : vector<16xf32>
    %187 = vector.multi_reduction <add>, %186, %cst_132 [1] : vector<16x16xf32> to vector<16xf32>
    %188 = vector.shape_cast %187 : vector<16xf32> to vector<16x1xf32>
    %189 = vector.broadcast %188 : vector<16x1xf32> to vector<16x16xf32>
    %190 = arith.divf %186, %189 : vector<16x16xf32>
    %cst_133 = arith.constant dense<0.000000e+00> : vector<16x64xf32>
    %191 = tpu.matmul %190, %176, %cst_133 {dimension_numbers = #tpu.dot_dimension_numbers<[1], [0], [0], [1], [0, 0, 1, 1], [], []>} : vector<16x16xf32>, vector<16x64xf32>, vector<16x64xf32> -> vector<16x64xf32>
    %c5_134 = arith.constant 5 : index
    %c0_135 = arith.constant 0 : index
    %c0_136 = arith.constant 0 : index
    %192 = vector.load %arg7[%c5_134, %c0_135, %c0_136] : memref<6x64x384xf32, #tpu.memory_space<vmem>>, vector<1x64x384xf32>
    %193 = vector.shape_cast %192 : vector<1x64x384xf32> to vector<64x384xf32>
    %cst_137 = arith.constant dense<0.000000e+00> : vector<16x384xf32>
    %194 = tpu.matmul %191, %193, %cst_137 {dimension_numbers = #tpu.dot_dimension_numbers<[1], [0], [0], [1], [0, 0, 1, 1], [], []>} : vector<16x64xf32>, vector<64x384xf32>, vector<16x384xf32> -> vector<16x384xf32>
    %195 = arith.addf %167, %194 : vector<16x384xf32>
    %c0_138 = arith.constant 0 : index
    %c0_139 = arith.constant 0 : index
    %196 = vector.load %arg8[%c0_138, %c0_139] : memref<1x384xf32, #tpu.memory_space<vmem>>, vector<1x384xf32>
    %197 = vector.broadcast %196 : vector<1x384xf32> to vector<16x384xf32>
    %198 = arith.addf %195, %197 : vector<16x384xf32>
    %199 = arith.addf %1, %198 : vector<16x384xf32>
    %c0_140 = arith.constant 0 : index
    %c0_141 = arith.constant 0 : index
    %200 = vector.load %arg9[%c0_140, %c0_141] : memref<1x384xf32, #tpu.memory_space<vmem>>, vector<1x384xf32>
    %c0_142 = arith.constant 0 : index
    %c0_143 = arith.constant 0 : index
    %201 = vector.load %arg10[%c0_142, %c0_143] : memref<1x384xf32, #tpu.memory_space<vmem>>, vector<1x384xf32>
    %cst_144 = arith.constant dense<0.000000e+00> : vector<16xf32>
    %202 = vector.multi_reduction <add>, %199, %cst_144 [1] : vector<16x384xf32> to vector<16xf32>
    %203 = vector.shape_cast %202 : vector<16xf32> to vector<16x1xf32>
    %cst_145 = arith.constant 3.840000e+02 : f32
    %204 = vector.broadcast %cst_145 : f32 to vector<16x1xf32>
    %205 = arith.divf %203, %204 : vector<16x1xf32>
    %206 = vector.broadcast %205 : vector<16x1xf32> to vector<16x384xf32>
    %207 = arith.subf %199, %206 : vector<16x384xf32>
    %208 = arith.mulf %207, %207 : vector<16x384xf32>
    %cst_146 = arith.constant dense<0.000000e+00> : vector<16xf32>
    %209 = vector.multi_reduction <add>, %208, %cst_146 [1] : vector<16x384xf32> to vector<16xf32>
    %210 = vector.shape_cast %209 : vector<16xf32> to vector<16x1xf32>
    %cst_147 = arith.constant 3.840000e+02 : f32
    %211 = vector.broadcast %cst_147 : f32 to vector<16x1xf32>
    %212 = arith.divf %210, %211 : vector<16x1xf32>
    %cst_148 = arith.constant 9.99999974E-6 : f32
    %213 = vector.broadcast %cst_148 : f32 to vector<16x1xf32>
    %214 = arith.addf %212, %213 : vector<16x1xf32>
    %215 = math.rsqrt %214 : vector<16x1xf32>
    %216 = vector.broadcast %215 : vector<16x1xf32> to vector<16x384xf32>
    %217 = arith.mulf %207, %216 : vector<16x384xf32>
    %218 = vector.broadcast %200 : vector<1x384xf32> to vector<16x384xf32>
    %219 = arith.mulf %217, %218 : vector<16x384xf32>
    %220 = vector.broadcast %201 : vector<1x384xf32> to vector<16x384xf32>
    %221 = arith.addf %219, %220 : vector<16x384xf32>
    %c0_149 = arith.constant 0 : index
    %c0_150 = arith.constant 0 : index
    %222 = vector.load %arg11[%c0_149, %c0_150] : memref<384x1536xf32, #tpu.memory_space<vmem>>, vector<384x1536xf32>
    %cst_151 = arith.constant dense<0.000000e+00> : vector<16x1536xf32>
    %223 = tpu.matmul %221, %222, %cst_151 {dimension_numbers = #tpu.dot_dimension_numbers<[1], [0], [0], [1], [0, 0, 1, 1], [], []>} : vector<16x384xf32>, vector<384x1536xf32>, vector<16x1536xf32> -> vector<16x1536xf32>
    %c0_152 = arith.constant 0 : index
    %c0_153 = arith.constant 0 : index
    %224 = vector.load %arg12[%c0_152, %c0_153] : memref<1x1536xf32, #tpu.memory_space<vmem>>, vector<1x1536xf32>
    %225 = vector.broadcast %224 : vector<1x1536xf32> to vector<16x1536xf32>
    %226 = arith.addf %223, %225 : vector<16x1536xf32>
    %cst_154 = arith.constant 0.000000e+00 : f32
    %227 = vector.broadcast %cst_154 : f32 to vector<16x1536xf32>
    %228 = arith.maximumf %226, %227 : vector<16x1536xf32>
    %c0_155 = arith.constant 0 : index
    %c0_156 = arith.constant 0 : index
    %229 = vector.load %arg13[%c0_155, %c0_156] : memref<1536x384xf32, #tpu.memory_space<vmem>>, vector<1536x384xf32>
    %cst_157 = arith.constant dense<0.000000e+00> : vector<16x384xf32>
    %230 = tpu.matmul %228, %229, %cst_157 {dimension_numbers = #tpu.dot_dimension_numbers<[1], [0], [0], [1], [0, 0, 1, 1], [], []>} : vector<16x1536xf32>, vector<1536x384xf32>, vector<16x384xf32> -> vector<16x384xf32>
    %c0_158 = arith.constant 0 : index
    %c0_159 = arith.constant 0 : index
    %231 = vector.load %arg14[%c0_158, %c0_159] : memref<1x384xf32, #tpu.memory_space<vmem>>, vector<1x384xf32>
    %232 = vector.broadcast %231 : vector<1x384xf32> to vector<16x384xf32>
    %233 = arith.addf %230, %232 : vector<16x384xf32>
    %234 = arith.addf %199, %233 : vector<16x384xf32>
    %c0_160 = arith.constant 0 : index
    %c0_161 = arith.constant 0 : index
    %c0_162 = arith.constant 0 : index
    %235 = vector.load %arg15[%c0_160, %c0_161, %c0_162] : memref<1x16x384xf32, #tpu.memory_space<vmem>>, vector<1x16x384xf32>
    %236 = vector.shape_cast %235 : vector<1x16x384xf32> to vector<16x384xf32>
    %237 = vector.shape_cast %234 : vector<16x384xf32> to vector<1x16x384xf32>
    tpu.vector_store %arg15[%c0_160, %c0_161, %c0_162], %237 {strides = array<i32>} : memref<1x16x384xf32, #tpu.memory_space<vmem>>, vector<1x16x384xf32>,
    return
  }
  func.func @transform_0(%arg0: i32) -> (i32, i32, i32) {
    %c0_i32 = arith.constant 0 : i32
    %c0_i32_0 = arith.constant 0 : i32
    %c0_i32_1 = arith.constant 0 : i32
    return %arg0, %c0_i32, %c0_i32_0 : i32, i32, i32
  }
  func.func @transform_1(%arg0: i32) -> (i32, i32) {
    %c0_i32 = arith.constant 0 : i32
    %c0_i32_0 = arith.constant 0 : i32
    %c0_i32_1 = arith.constant 0 : i32
    return %c0_i32, %c0_i32_0 : i32, i32
  }
  func.func @transform_2(%arg0: i32) -> (i32, i32) {
    %c0_i32 = arith.constant 0 : i32
    %c0_i32_0 = arith.constant 0 : i32
    %c0_i32_1 = arith.constant 0 : i32
    return %c0_i32, %c0_i32_0 : i32, i32
  }
  func.func @transform_3(%arg0: i32) -> (i32, i32, i32) {
    %c0_i32 = arith.constant 0 : i32
    %c0_i32_0 = arith.constant 0 : i32
    %c0_i32_1 = arith.constant 0 : i32
    %c0_i32_2 = arith.constant 0 : i32
    return %c0_i32, %c0_i32_0, %c0_i32_1 : i32, i32, i32
  }
  func.func @transform_4(%arg0: i32) -> (i32, i32, i32) {
    %c0_i32 = arith.constant 0 : i32
    %c0_i32_0 = arith.constant 0 : i32
    %c0_i32_1 = arith.constant 0 : i32
    %c0_i32_2 = arith.constant 0 : i32
    return %c0_i32, %c0_i32_0, %c0_i32_1 : i32, i32, i32
  }
  func.func @transform_5(%arg0: i32) -> (i32, i32, i32) {
    %c0_i32 = arith.constant 0 : i32
    %c0_i32_0 = arith.constant 0 : i32
    %c0_i32_1 = arith.constant 0 : i32
    %c0_i32_2 = arith.constant 0 : i32
    return %c0_i32, %c0_i32_0, %c0_i32_1 : i32, i32, i32
  }
  func.func @transform_6(%arg0: i32) -> (i32, i32, i32) {
    %c0_i32 = arith.constant 0 : i32
    %c0_i32_0 = arith.constant 0 : i32
    %c0_i32_1 = arith.constant 0 : i32
    %c0_i32_2 = arith.constant 0 : i32
    return %c0_i32, %c0_i32_0, %c0_i32_1 : i32, i32, i32
  }
  func.func @transform_7(%arg0: i32) -> (i32, i32) {
    %c0_i32 = arith.constant 0 : i32
    %c0_i32_0 = arith.constant 0 : i32
    %c0_i32_1 = arith.constant 0 : i32
    return %c0_i32, %c0_i32_0 : i32, i32
  }
  func.func @transform_8(%arg0: i32) -> (i32, i32) {
    %c0_i32 = arith.constant 0 : i32
    %c0_i32_0 = arith.constant 0 : i32
    %c0_i32_1 = arith.constant 0 : i32
    return %c0_i32, %c0_i32_0 : i32, i32
  }
  func.func @transform_9(%arg0: i32) -> (i32, i32) {
    %c0_i32 = arith.constant 0 : i32
    %c0_i32_0 = arith.constant 0 : i32
    %c0_i32_1 = arith.constant 0 : i32
    return %c0_i32, %c0_i32_0 : i32, i32
  }
  func.func @transform_10(%arg0: i32) -> (i32, i32) {
    %c0_i32 = arith.constant 0 : i32
    %c0_i32_0 = arith.constant 0 : i32
    %c0_i32_1 = arith.constant 0 : i32
    return %c0_i32, %c0_i32_0 : i32, i32
  }
  func.func @transform_11(%arg0: i32) -> (i32, i32) {
    %c0_i32 = arith.constant 0 : i32
    %c0_i32_0 = arith.constant 0 : i32
    %c0_i32_1 = arith.constant 0 : i32
    return %c0_i32, %c0_i32_0 : i32, i32
  }
  func.func @transform_12(%arg0: i32) -> (i32, i32) {
    %c0_i32 = arith.constant 0 : i32
    %c0_i32_0 = arith.constant 0 : i32
    %c0_i32_1 = arith.constant 0 : i32
    return %c0_i32, %c0_i32_0 : i32, i32
  }
  func.func @transform_13(%arg0: i32) -> (i32, i32) {
    %c0_i32 = arith.constant 0 : i32
    %c0_i32_0 = arith.constant 0 : i32
    %c0_i32_1 = arith.constant 0 : i32
    return %c0_i32, %c0_i32_0 : i32, i32
  }
  func.func @transform_14(%arg0: i32) -> (i32, i32, i32) {
    %c0_i32 = arith.constant 0 : i32
    %c0_i32_0 = arith.constant 0 : i32
    %c0_i32_1 = arith.constant 0 : i32
    return %arg0, %c0_i32, %c0_i32_0 : i32, i32, i32
  }
}

</mosaic_0001>

<llo_original>
// kernel: block_forward.1
$region0: #{block_forward.1}
  #allocation0 [shape = 'u32[]', space=smem, size = 0x4, offset = 0x4, fixed_abs, tag = 'smem constant byte address 0x4 - core index']
  #allocation1 [shape = 'u32[72,128]{1,0:T(1,128)}', space=vmem, size = 0x9000, scoped, tag = 'internal scratch']
  %s0 = inlined_call_operand.hbm [shape: f32[2,16,384], index: 0, kind: input, shape index: {}]
  %s1 = inlined_call_operand.vmem [shape: f32[1,384], index: 1, kind: input, shape index: {}]
  %s2 = inlined_call_operand.hbm [shape: f32[1,384], index: 2, kind: input, shape index: {}]
  %s3 = inlined_call_operand.vmem [shape: f32[6,384,64], index: 3, kind: input, shape index: {}]
  %s4 = inlined_call_operand.vmem [shape: f32[6,384,64], index: 4, kind: input, shape index: {}]
  %s5 = inlined_call_operand.vmem [shape: f32[6,384,64], index: 5, kind: input, shape index: {}]
  %s6 = inlined_call_operand.hbm [shape: f32[6,64,384], index: 6, kind: input, shape index: {}]
  %s7 = inlined_call_operand.hbm [shape: f32[1,384], index: 7, kind: input, shape index: {}]
  %s8 = inlined_call_operand.hbm [shape: f32[1,384], index: 8, kind: input, shape index: {}]
  %s9 = inlined_call_operand.hbm [shape: f32[1,384], index: 9, kind: input, shape index: {}]
  %s10 = inlined_call_operand.vmem [shape: f32[384,1536], index: 10, kind: input, shape index: {}]
  %s11 = inlined_call_operand.hbm [shape: f32[1,1536], index: 11, kind: input, shape index: {}]
  %s12 = inlined_call_operand.vmem [shape: f32[1536,384], index: 12, kind: input, shape index: {}]
  %s13 = inlined_call_operand.hbm [shape: f32[1,384], index: 13, kind: input, shape index: {}]
  %s14 = inlined_call_operand.hbm [shape: f32[2,16,384], index: 14, kind: output, shape index: {}]
  %s15 = sld [smem:[#allocation0]]
  $region121: #{block_forward.1} parent=0
    _
  %s17 = ssub.s32 1, %s15
  %s18 = scalar_select 0, %s17, %s15
  $region1: #{block_forward.1} parent=0
    #allocation2 [shape = 'u8[49152]{0}', space=vmem, size = 0xc000, scoped, tag = 'input window, operand 0']
    #allocation3 [shape = 's32[2]{0}', space=sflag, size = 0x8, scoped, tag = 'scoped memory for block_forward.1']
    #allocation4 [shape = 's32[2]{0}', space=sflag, size = 0x8, scoped, tag = 'scoped memory for block_forward.1']
    #allocation5 [shape = 'u8[1536]{0}', space=vmem, size = 0x800, scoped, tag = 'input window, operand 2, single buffered']
    #allocation6 [shape = 's32[1]{0}', space=sflag, size = 0x4, scoped, tag = 'scoped memory for block_forward.1']
    #allocation7 [shape = 'u8[589824]{0}', space=vmem, size = 0x90000, scoped, tag = 'input window, operand 6, single buffered']
    #allocation8 [shape = 'u8[1536]{0}', space=vmem, size = 0x800, scoped, tag = 'input window, operand 7, single buffered']
    #allocation9 [shape = 's32[1]{0}', space=sflag, size = 0x4, scoped, tag = 'scoped memory for block_forward.1']
    #allocation10 [shape = 'u8[1536]{0}', space=vmem, size = 0x800, scoped, tag = 'input window, operand 8, single buffered']
    #allocation11 [shape = 'u8[1536]{0}', space=vmem, size = 0x800, scoped, tag = 'input window, operand 9, single buffered']
    #allocation12 [shape = 's32[1]{0}', space=sflag, size = 0x4, scoped, tag = 'scoped memory for block_forward.1']
    #allocation13 [shape = 'u8[6144]{0}', space=vmem, size = 0x1800, scoped, tag = 'input window, operand 11, single buffered']
    #allocation14 [shape = 'u8[1536]{0}', space=vmem, size = 0x800, scoped, tag = 'input window, operand 13, single buffered']
    #allocation15 [shape = 's32[1]{0}', space=sflag, size = 0x4, scoped, tag = 'scoped memory for block_forward.1']
    #allocation16 [shape = 'u8[49152]{0}', space=vmem, size = 0xc000, scoped, tag = 'output window, operand 0']
    %19 = vsyncpa [#allocation3], 0
    %s20 = scalar_lea.sflag [#allocation3], 1
    %21 = vsyncpa %s20, 0
    %22 = vsyncpa [#allocation6], 0
    %23 = vsyncpa [#allocation9], 0
    %24 = vsyncpa [#allocation12], 0
    %25 = vsyncpa [#allocation15], 0
    %26 = vsyncpa [#allocation4], 0
    %s27 = scalar_lea.sflag [#allocation4], 1
    %28 = vsyncpa %s27, 0
    loop: start=0, step=1, limit=4
    $region2: #{block_forward.1} parent=1 // loop_pre_header
      _
    $region3: #{block_forward.1} parent=1 // loop_header
      %s30 = sphi 0, %s34
      %p31 = scmp.ge.s32.totalorder %s30, 4
      %s40 = sphi 0, %s42
      %s43 = sphi 0, %s40
      %s44 = sphi 0, %s43
      %s60 = sphi 0, %s44
      %s64 = sphi 0, %s64
      %s66 = sphi 0, %s64
      %s67 = sphi 0, %s66
      %s81 = sphi 0, %s67
      %s85 = sphi 0, %s85
      %s87 = sphi 0, %s85
      %s88 = sphi 0, %s87
      %s102 = sphi 0, %s88
      %s106 = sphi 0, %s106
      %s108 = sphi 0, %s106
      %s109 = sphi 0, %s108
      %s123 = sphi 0, %s109
      %s127 = sphi 0, %s127
      %s129 = sphi 0, %s127
      %s130 = sphi 0, %s129
      %s144 = sphi 0, %s130
      %s148 = sphi 0, %s148
      %s150 = sphi 0, %s148
      %s151 = sphi 0, %s150
      %s165 = sphi 0, %s151
      %s169 = sphi 0, %s169
      %s171 = sphi 0, %s169
      %s172 = sphi 0, %s171
      %s186 = sphi 0, %s172
      %s190 = sphi 0, %s190
      %s192 = sphi 0, %s190
      %s193 = sphi 0, %s192
      %s207 = sphi 0, %s193
      %s211 = sphi 0, %s211
      %s213 = sphi 0, %s211
      %s214 = sphi 0, %s213
      %s228 = sphi 0, %s214
      %s232 = sphi 0, %s232
      %s234 = sphi 0, %s232
      %s235 = sphi 0, %s234
      %s249 = sphi 0, %s235
      %s253 = sphi 0, %s253
      %s255 = sphi 0, %s253
      %s256 = sphi 0, %s255
      %s270 = sphi 0, %s256
      %s274 = sphi 0, %s274
      %s276 = sphi 0, %s274
      %s277 = sphi 0, %s276
      %s291 = sphi 0, %s277
      %s295 = sphi 0, %s295
      %s297 = sphi 0, %s295
      %s298 = sphi 0, %s297
      %s312 = sphi 0, %s298
      %s316 = sphi 0, %s316
      %s318 = sphi 0, %s316
      %s319 = sphi 0, %s318
      %s333 = sphi 0, %s319
      %s339 = sphi 0, %s341
      %s342 = sphi 0, %s339
      %s343 = sphi 0, %s342
      %s359 = sphi 0, %s343
    $region4: #{block_forward.1} parent=1 // loop_header_branch
      %33 = sbr.rel (%p31) target = $region8
    $region5: #{block_forward.1} parent=1 // loop_body
      %s35 = ssub.s32 %s30, 1
      %s36 = ssub.s32 %s30, 2
      %s37 = sadd.s32 %s30, 1
      %s38 = ssub.s32 %s30, %s37
      %p39 = scmp.eq.s32.totalorder %s38, 0
      %s41 = sadd.s32 %s40, 1
      %s42 = scalar_select %p39, %s40, %s41
      %p45 = pneg %p39
      %p46 = scmp.eq.s32.totalorder %s30, 1
      %p47 = por %p45, %p46
      %p48 = scmp.ne.s32.totalorder %s40, %s43
      %p49 = scmp.eq.s32.totalorder %s30, 0
      %p50 = por %p48, %p49
      %p51 = scmp.ne.s32.totalorder %s40, %s43
      %p52 = scmp.eq.s32.totalorder %s35, 1
      %p53 = por %p51, %p52
      %p54 = scmp.ne.s32.totalorder %s43, %s44
      %p55 = scmp.eq.s32.totalorder %s35, 0
      %p56 = por %p54, %p55
      %p57 = scmp.ne.s32.totalorder %s43, %s44
      %p58 = scmp.eq.s32.totalorder %s36, 1
      %p59 = por %p57, %p58
      %p61 = scmp.ne.s32.totalorder %s44, %s60
      %p62 = scmp.eq.s32.totalorder %s36, 0
      %p63 = por %p61, %p62
      %s65 = sadd.s32 %s64, 1
      %p68 = scmp.eq.s32.totalorder %s30, 1
      %p69 = scmp.ne.s32.totalorder %s64, %s66
      %p70 = scmp.eq.s32.totalorder %s30, 0
      %p71 = por %p69, %p70
      %p72 = scmp.ne.s32.totalorder %s64, %s66
      %p73 = scmp.eq.s32.totalorder %s35, 1
      %p74 = por %p72, %p73
      %p75 = scmp.ne.s32.totalorder %s66, %s67
      %p76 = scmp.eq.s32.totalorder %s35, 0
      %p77 = por %p75, %p76
      %p78 = scmp.ne.s32.totalorder %s66, %s67
      %p79 = scmp.eq.s32.totalorder %s36, 1
      %p80 = por %p78, %p79
      %p82 = scmp.ne.s32.totalorder %s67, %s81
      %p83 = scmp.eq.s32.totalorder %s36, 0
      %p84 = por %p82, %p83
      %s86 = sadd.s32 %s85, 1
      %p89 = scmp.eq.s32.totalorder %s30, 1
      %p90 = scmp.ne.s32.totalorder %s85, %s87
      %p91 = scmp.eq.s32.totalorder %s30, 0
      %p92 = por %p90, %p91
      %p93 = scmp.ne.s32.totalorder %s85, %s87
      %p94 = scmp.eq.s32.totalorder %s35, 1
      %p95 = por %p93, %p94
      %p96 = scmp.ne.s32.totalorder %s87, %s88
      %p97 = scmp.eq.s32.totalorder %s35, 0
      %p98 = por %p96, %p97
      %p99 = scmp.ne.s32.totalorder %s87, %s88
      %p100 = scmp.eq.s32.totalorder %s36, 1
      %p101 = por %p99, %p100
      %p103 = scmp.ne.s32.totalorder %s88, %s102
      %p104 = scmp.eq.s32.totalorder %s36, 0
      %p105 = por %p103, %p104
      %s107 = sadd.s32 %s106, 1
      %p110 = scmp.eq.s32.totalorder %s30, 1
      %p111 = scmp.ne.s32.totalorder %s106, %s108
      %p112 = scmp.eq.s32.totalorder %s30, 0
      %p113 = por %p111, %p112
      %p114 = scmp.ne.s32.totalorder %s106, %s108
      %p115 = scmp.eq.s32.totalorder %s35, 1
      %p116 = por %p114, %p115
      %p117 = scmp.ne.s32.totalorder %s108, %s109
      %p118 = scmp.eq.s32.totalorder %s35, 0
      %p119 = por %p117, %p118
      %p120 = scmp.ne.s32.totalorder %s108, %s109
      %p121 = scmp.eq.s32.totalorder %s36, 1
      %p122 = por %p120, %p121
      %p124 = scmp.ne.s32.totalorder %s109, %s123
      %p125 = scmp.eq.s32.totalorder %s36, 0
      %p126 = por %p124, %p125
      %s128 = sadd.s32 %s127, 1
      %p131 = scmp.eq.s32.totalorder %s30, 1
      %p132 = scmp.ne.s32.totalorder %s127, %s129
      %p133 = scmp.eq.s32.totalorder %s30, 0
      %p134 = por %p132, %p133
      %p135 = scmp.ne.s32.totalorder %s127, %s129
      %p136 = scmp.eq.s32.totalorder %s35, 1
      %p137 = por %p135, %p136
      %p138 = scmp.ne.s32.totalorder %s129, %s130
      %p139 = scmp.eq.s32.totalorder %s35, 0
      %p140 = por %p138, %p139
      %p141 = scmp.ne.s32.totalorder %s129, %s130
      %p142 = scmp.eq.s32.totalorder %s36, 1
      %p143 = por %p141, %p142
      %p145 = scmp.ne.s32.totalorder %s130, %s144
      %p146 = scmp.eq.s32.totalorder %s36, 0
      %p147 = por %p145, %p146
      %s149 = sadd.s32 %s148, 1
      %p152 = scmp.eq.s32.totalorder %s30, 1
      %p153 = scmp.ne.s32.totalorder %s148, %s150
      %p154 = scmp.eq.s32.totalorder %s30, 0
      %p155 = por %p153, %p154
      %p156 = scmp.ne.s32.totalorder %s148, %s150
      %p157 = scmp.eq.s32.totalorder %s35, 1
      %p158 = por %p156, %p157
      %p159 = scmp.ne.s32.totalorder %s150, %s151
      %p160 = scmp.eq.s32.totalorder %s35, 0
      %p161 = por %p159, %p160
      %p162 = scmp.ne.s32.totalorder %s150, %s151
      %p163 = scmp.eq.s32.totalorder %s36, 1
      %p164 = por %p162, %p163
      %p166 = scmp.ne.s32.totalorder %s151, %s165
      %p167 = scmp.eq.s32.totalorder %s36, 0
      %p168 = por %p166, %p167
      %s170 = sadd.s32 %s169, 1
      %p173 = scmp.eq.s32.totalorder %s30, 1
      %p174 = scmp.ne.s32.totalorder %s169, %s171
      %p175 = scmp.eq.s32.totalorder %s30, 0
      %p176 = por %p174, %p175
      %p177 = scmp.ne.s32.totalorder %s169, %s171
      %p178 = scmp.eq.s32.totalorder %s35, 1
      %p179 = por %p177, %p178
      %p180 = scmp.ne.s32.totalorder %s171, %s172
      %p181 = scmp.eq.s32.totalorder %s35, 0
      %p182 = por %p180, %p181
      %p183 = scmp.ne.s32.totalorder %s171, %s172
      %p184 = scmp.eq.s32.totalorder %s36, 1
      %p185 = por %p183, %p184
      %p187 = scmp.ne.s32.totalorder %s172, %s186
      %p188 = scmp.eq.s32.totalorder %s36, 0
      %p189 = por %p187, %p188
      %s191 = sadd.s32 %s190, 1
      %p194 = scmp.eq.s32.totalorder %s30, 1
      %p195 = scmp.ne.s32.totalorder %s190, %s192
      %p196 = scmp.eq.s32.totalorder %s30, 0
      %p197 = por %p195, %p196
      %p198 = scmp.ne.s32.totalorder %s190, %s192
      %p199 = scmp.eq.s32.totalorder %s35, 1
      %p200 = por %p198, %p199
      %p201 = scmp.ne.s32.totalorder %s192, %s193
      %p202 = scmp.eq.s32.totalorder %s35, 0
      %p203 = por %p201, %p202
      %p204 = scmp.ne.s32.totalorder %s192, %s193
      %p205 = scmp.eq.s32.totalorder %s36, 1
      %p206 = por %p204, %p205
      %p208 = scmp.ne.s32.totalorder %s193, %s207
      %p209 = scmp.eq.s32.totalorder %s36, 0
      %p210 = por %p208, %p209
      %s212 = sadd.s32 %s211, 1
      %p215 = scmp.eq.s32.totalorder %s30, 1
      %p216 = scmp.ne.s32.totalorder %s211, %s213
      %p217 = scmp.eq.s32.totalorder %s30, 0
      %p218 = por %p216, %p217
      %p219 = scmp.ne.s32.totalorder %s211, %s213
      %p220 = scmp.eq.s32.totalorder %s35, 1
      %p221 = por %p219, %p220
      %p222 = scmp.ne.s32.totalorder %s213, %s214
      %p223 = scmp.eq.s32.totalorder %s35, 0
      %p224 = por %p222, %p223
      %p225 = scmp.ne.s32.totalorder %s213, %s214
      %p226 = scmp.eq.s32.totalorder %s36, 1
      %p227 = por %p225, %p226
      %p229 = scmp.ne.s32.totalorder %s214, %s228
      %p230 = scmp.eq.s32.totalorder %s36, 0
      %p231 = por %p229, %p230
      %s233 = sadd.s32 %s232, 1
      %p236 = scmp.eq.s32.totalorder %s30, 1
      %p237 = scmp.ne.s32.totalorder %s232, %s234
      %p238 = scmp.eq.s32.totalorder %s30, 0
      %p239 = por %p237, %p238
      %p240 = scmp.ne.s32.totalorder %s232, %s234
      %p241 = scmp.eq.s32.totalorder %s35, 1
      %p242 = por %p240, %p241
      %p243 = scmp.ne.s32.totalorder %s234, %s235
      %p244 = scmp.eq.s32.totalorder %s35, 0
      %p245 = por %p243, %p244
      %p246 = scmp.ne.s32.totalorder %s234, %s235
      %p247 = scmp.eq.s32.totalorder %s36, 1
      %p248 = por %p246, %p247
      %p250 = scmp.ne.s32.totalorder %s235, %s249
      %p251 = scmp.eq.s32.totalorder %s36, 0
      %p252 = por %p250, %p251
      %s254 = sadd.s32 %s253, 1
      %p257 = scmp.eq.s32.totalorder %s30, 1
      %p258 = scmp.ne.s32.totalorder %s253, %s255
      %p259 = scmp.eq.s32.totalorder %s30, 0
      %p260 = por %p258, %p259
      %p261 = scmp.ne.s32.totalorder %s253, %s255
      %p262 = scmp.eq.s32.totalorder %s35, 1
      %p263 = por %p261, %p262
      %p264 = scmp.ne.s32.totalorder %s255, %s256
      %p265 = scmp.eq.s32.totalorder %s35, 0
      %p266 = por %p264, %p265
      %p267 = scmp.ne.s32.totalorder %s255, %s256
      %p268 = scmp.eq.s32.totalorder %s36, 1
      %p269 = por %p267, %p268
      %p271 = scmp.ne.s32.totalorder %s256, %s270
      %p272 = scmp.eq.s32.totalorder %s36, 0
      %p273 = por %p271, %p272
      %s275 = sadd.s32 %s274, 1
      %p278 = scmp.eq.s32.totalorder %s30, 1
      %p279 = scmp.ne.s32.totalorder %s274, %s276
      %p280 = scmp.eq.s32.totalorder %s30, 0
      %p281 = por %p279, %p280
      %p282 = scmp.ne.s32.totalorder %s274, %s276
      %p283 = scmp.eq.s32.totalorder %s35, 1
      %p284 = por %p282, %p283
      %p285 = scmp.ne.s32.totalorder %s276, %s277
      %p286 = scmp.eq.s32.totalorder %s35, 0
      %p287 = por %p285, %p286
      %p288 = scmp.ne.s32.totalorder %s276, %s277
      %p289 = scmp.eq.s32.totalorder %s36, 1
      %p290 = por %p288, %p289
      %p292 = scmp.ne.s32.totalorder %s277, %s291
      %p293 = scmp.eq.s32.totalorder %s36, 0
      %p294 = por %p292, %p293
      %s296 = sadd.s32 %s295, 1
      %p299 = scmp.eq.s32.totalorder %s30, 1
      %p300 = scmp.ne.s32.totalorder %s295, %s297
      %p301 = scmp.eq.s32.totalorder %s30, 0
      %p302 = por %p300, %p301
      %p303 = scmp.ne.s32.totalorder %s295, %s297
      %p304 = scmp.eq.s32.totalorder %s35, 1
      %p305 = por %p303, %p304
      %p306 = scmp.ne.s32.totalorder %s297, %s298
      %p307 = scmp.eq.s32.totalorder %s35, 0
      %p308 = por %p306, %p307
      %p309 = scmp.ne.s32.totalorder %s297, %s298
      %p310 = scmp.eq.s32.totalorder %s36, 1
      %p311 = por %p309, %p310
      %p313 = scmp.ne.s32.totalorder %s298, %s312
      %p314 = scmp.eq.s32.totalorder %s36, 0
      %p315 = por %p313, %p314
      %s317 = sadd.s32 %s316, 1
      %p320 = scmp.eq.s32.totalorder %s30, 1
      %p321 = scmp.ne.s32.totalorder %s316, %s318
      %p322 = scmp.eq.s32.totalorder %s30, 0
      %p323 = por %p321, %p322
      %p324 = scmp.ne.s32.totalorder %s316, %s318
      %p325 = scmp.eq.s32.totalorder %s35, 1
      %p326 = por %p324, %p325
      %p327 = scmp.ne.s32.totalorder %s318, %s319
      %p328 = scmp.eq.s32.totalorder %s35, 0
      %p329 = por %p327, %p328
      %p330 = scmp.ne.s32.totalorder %s318, %s319
      %p331 = scmp.eq.s32.totalorder %s36, 1
      %p332 = por %p330, %p331
      %p334 = scmp.ne.s32.totalorder %s319, %s333
      %p335 = scmp.eq.s32.totalorder %s36, 0
      %p336 = por %p334, %p335
      %s337 = ssub.s32 %s30, %s37
      %p338 = scmp.eq.s32.totalorder %s337, 0
      %s340 = sadd.s32 %s339, 1
      %s341 = scalar_select %p338, %s339, %s340
      %p344 = pneg %p338
      %p345 = scmp.eq.s32.totalorder %s30, 1
      %p346 = por %p344, %p345
      %p347 = scmp.ne.s32.totalorder %s339, %s342
      %p348 = scmp.eq.s32.totalorder %s30, 0
      %p349 = por %p347, %p348
      %p350 = scmp.ne.s32.totalorder %s339, %s342
      %p351 = scmp.eq.s32.totalorder %s35, 1
      %p352 = por %p350, %p351
      %p353 = scmp.ne.s32.totalorder %s342, %s343
      %p354 = scmp.eq.s32.totalorder %s35, 0
      %p355 = por %p353, %p354
      %p356 = scmp.ne.s32.totalorder %s342, %s343
      %p357 = scmp.eq.s32.totalorder %s36, 1
      %p358 = por %p356, %p357
      %p360 = scmp.ne.s32.totalorder %s343, %s359
      %p361 = scmp.eq.s32.totalorder %s36, 0
      %p362 = por %p360, %p361
      %p363 = scmp.le.s32.totalorder 1, %s30
      %p364 = scmp.lt.s32.totalorder %s30, 3
      %p365 = pnand %p363, %p364
      %p366 = pneg %p365
      // Predicated region
      $region9: #{block_forward.1} parent=5 // pred_check
        _
      $region10: #{block_forward.1} parent=5 // pred_check_branch
        %368 = sbr.rel (%p365) target = $region12
      $region11: #{block_forward.1} parent=5 // pred_region
        %s369 = ssub.s32 %s30, 1
        // Predicated region
        $region13: #{block_forward.1} parent=11 // pred_check
          %p370 = pneg %p77
        $region14: #{block_forward.1} parent=11 // pred_check_branch
          %372 = sbr.rel (%p370) target = $region16
        $region15: #{block_forward.1} parent=11 // pred_region
          _
        $region16: #{block_forward.1} parent=11 // pred_fallthru
          _
        // Predicated region
        $region17: #{block_forward.1} parent=11 // pred_check
          %p373 = pneg %p98
        $region18: #{block_forward.1} parent=11 // pred_check_branch
          %375 = sbr.rel (%p373) target = $region20
        $region19: #{block_forward.1} parent=11 // pred_region
          %377 = vsyncadd [#allocation6], 0
          %s379 = sshll.u32 %s2, 4
          %s380 = int_to_ptr.hbm [resolvable:$true] %s379
          %s381 = sshll.u32 [#allocation5], 4
          %s382 = int_to_ptr.vmem [resolvable:$true] %s381
          %384 = dma.hbm_to_vmem [thread:$0]  %s380, 48, %s382, [#allocation6]
        $region20: #{block_forward.1} parent=11 // pred_fallthru
          _
        // Predicated region
        $region21: #{block_forward.1} parent=11 // pred_check
          %p385 = pneg %p119
        $region22: #{block_forward.1} parent=11 // pred_check_branch
          %387 = sbr.rel (%p385) target = $region24
        $region23: #{block_forward.1} parent=11 // pred_region
          _
        $region24: #{block_forward.1} parent=11 // pred_fallthru
          _
        // Predicated region
        $region25: #{block_forward.1} parent=11 // pred_check
          %p388 = pneg %p140
        $region26: #{block_forward.1} parent=11 // pred_check_branch
          %390 = sbr.rel (%p388) target = $region28
        $region27: #{block_forward.1} parent=11 // pred_region
          _
        $region28: #{block_forward.1} parent=11 // pred_fallthru
          _
        // Predicated region
        $region29: #{block_forward.1} parent=11 // pred_check
          %p391 = pneg %p161
        $region30: #{block_forward.1} parent=11 // pred_check_branch
          %393 = sbr.rel (%p391) target = $region32
        $region31: #{block_forward.1} parent=11 // pred_region
          _
        $region32: #{block_forward.1} parent=11 // pred_fallthru
          _
        // Predicated region
        $region33: #{block_forward.1} parent=11 // pred_check
          %p394 = pneg %p182
        $region34: #{block_forward.1} parent=11 // pred_check_branch
          %396 = sbr.rel (%p394) target = $region36
        $region35: #{block_forward.1} parent=11 // pred_region
          %398 = vsyncadd [#allocation6], 0
          %s399 = sshll.u32 %s6, 4
          %s400 = int_to_ptr.hbm [resolvable:$true] %s399
          %s401 = sshll.u32 [#allocation7], 4
          %s402 = int_to_ptr.vmem [resolvable:$true] %s401
          %407 = dma.hbm_to_vmem [thread:$0]  %s400, 18432, %s402, [#allocation6], 384, 384, 24
        $region36: #{block_forward.1} parent=11 // pred_fallthru
          _
        // Predicated region
        $region37: #{block_forward.1} parent=11 // pred_check
          %p408 = pneg %p203
        $region38: #{block_forward.1} parent=11 // pred_check_branch
          %410 = sbr.rel (%p408) target = $region40
        $region39: #{block_forward.1} parent=11 // pred_region
          %412 = vsyncadd [#allocation9], 0
          %s414 = sshll.u32 %s7, 4
          %s415 = int_to_ptr.hbm [resolvable:$true] %s414
          %s416 = sshll.u32 [#allocation8], 4
          %s417 = int_to_ptr.vmem [resolvable:$true] %s416
          %419 = dma.hbm_to_vmem [thread:$0]  %s415, 48, %s417, [#allocation9]
        $region40: #{block_forward.1} parent=11 // pred_fallthru
          _
        // Predicated region
        $region41: #{block_forward.1} parent=11 // pred_check
          %p420 = pneg %p224
        $region42: #{block_forward.1} parent=11 // pred_check_branch
          %422 = sbr.rel (%p420) target = $region44
        $region43: #{block_forward.1} parent=11 // pred_region
          %424 = vsyncadd [#allocation9], 0
          %s426 = sshll.u32 %s8, 4
          %s427 = int_to_ptr.hbm [resolvable:$true] %s426
          %s428 = sshll.u32 [#allocation10], 4
          %s429 = int_to_ptr.vmem [resolvable:$true] %s428
          %431 = dma.hbm_to_vmem [thread:$0]  %s427, 48, %s429, [#allocation9]
        $region44: #{block_forward.1} parent=11 // pred_fallthru
          _
        // Predicated region
        $region45: #{block_forward.1} parent=11 // pred_check
          %p432 = pneg %p245
        $region46: #{block_forward.1} parent=11 // pred_check_branch
          %434 = sbr.rel (%p432) target = $region48
        $region47: #{block_forward.1} parent=11 // pred_region
          %436 = vsyncadd [#allocation12], 0
          %s438 = sshll.u32 %s9, 4
          %s439 = int_to_ptr.hbm [resolvable:$true] %s438
          %s440 = sshll.u32 [#allocation11], 4
          %s441 = int_to_ptr.vmem [resolvable:$true] %s440
          %443 = dma.hbm_to_vmem [thread:$0]  %s439, 48, %s441, [#allocation12]
        $region48: #{block_forward.1} parent=11 // pred_fallthru
          _
        // Predicated region
        $region49: #{block_forward.1} parent=11 // pred_check
          %p444 = pneg %p266
        $region50: #{block_forward.1} parent=11 // pred_check_branch
          %446 = sbr.rel (%p444) target = $region52
        $region51: #{block_forward.1} parent=11 // pred_region
          _
        $region52: #{block_forward.1} parent=11 // pred_fallthru
          _
        // Predicated region
        $region53: #{block_forward.1} parent=11 // pred_check
          %p447 = pneg %p287
        $region54: #{block_forward.1} parent=11 // pred_check_branch
          %449 = sbr.rel (%p447) target = $region56
        $region55: #{block_forward.1} parent=11 // pred_region
          %451 = vsyncadd [#allocation12], 0
          %s453 = sshll.u32 %s11, 4
          %s454 = int_to_ptr.hbm [resolvable:$true] %s453
          %s455 = sshll.u32 [#allocation13], 4
          %s456 = int_to_ptr.vmem [resolvable:$true] %s455
          %458 = dma.hbm_to_vmem [thread:$0]  %s454, 192, %s456, [#allocation12]
        $region56: #{block_forward.1} parent=11 // pred_fallthru
          _
        // Predicated region
        $region57: #{block_forward.1} parent=11 // pred_check
          %p459 = pneg %p308
        $region58: #{block_forward.1} parent=11 // pred_check_branch
          %461 = sbr.rel (%p459) target = $region60
        $region59: #{block_forward.1} parent=11 // pred_region
          _
        $region60: #{block_forward.1} parent=11 // pred_fallthru
          _
        // Predicated region
        $region61: #{block_forward.1} parent=11 // pred_check
          %p462 = pneg %p329
        $region62: #{block_forward.1} parent=11 // pred_check_branch
          %464 = sbr.rel (%p462) target = $region64
        $region63: #{block_forward.1} parent=11 // pred_region
          %466 = vsyncadd [#allocation15], 0
          %s468 = sshll.u32 %s13, 4
          %s469 = int_to_ptr.hbm [resolvable:$true] %s468
          %s470 = sshll.u32 [#allocation14], 4
          %s471 = int_to_ptr.vmem [resolvable:$true] %s470
          %473 = dma.hbm_to_vmem [thread:$0]  %s469, 48, %s471, [#allocation15]
        $region64: #{block_forward.1} parent=11 // pred_fallthru
          _
      $region12: #{block_forward.1} parent=5 // pred_fallthru
        _
      %p474 = scmp.lt.s32.totalorder %s30, 2
      // Predicated region
      $region65: #{block_forward.1} parent=5 // pred_check
        %p475 = pneg %p474
      $region66: #{block_forward.1} parent=5 // pred_check_branch
        %477 = sbr.rel (%p475) target = $region68
      $region67: #{block_forward.1} parent=5 // pred_region
        // Predicated region
        $region69: #{block_forward.1} parent=67 // pred_check
          %p478 = pneg %p50
        $region70: #{block_forward.1} parent=67 // pred_check_branch
          %480 = sbr.rel (%p478) target = $region72
        $region71: #{block_forward.1} parent=67 // pred_region
          %s481 = sand.u32 %s40, 1
          %s482 = scalar_lea.sflag [#allocation3], %s481
          %s483 = sand.u32 %s40, 1
          %s484 = smul.addr %s483, 48
          %s485 = scalar_lea.vmem [#allocation2], %s484
          %487 = vsyncadd %s482, 0
          %s488 = smul.addr %s30, 6
          %s489 = smul.addr %s488, 8
          %s490 = scalar_lea.hbm %s0, %s489
          %s491 = sshll.u32 %s490, 4
          %s492 = int_to_ptr.hbm [resolvable:$true] %s491
          %s493 = sshll.u32 %s485, 4
          %s494 = int_to_ptr.vmem [resolvable:$true] %s493
          %499 = dma.hbm_to_vmem [thread:$0]  %s492, 768, %s494, %s482, 384, 384, 24
        $region72: #{block_forward.1} parent=67 // pred_fallthru
          _
      $region68: #{block_forward.1} parent=5 // pred_fallthru
        _
      %p500 = scmp.le.s32.totalorder 1, %s30
      %p501 = scmp.lt.s32.totalorder %s30, 3
      %p502 = pnand %p500, %p501
      %p503 = pneg %p502
      // Predicated region
      $region73: #{block_forward.1} parent=5 // pred_check
        _
      $region74: #{block_forward.1} parent=5 // pred_check_branch
        %505 = sbr.rel (%p502) target = $region76
      $region75: #{block_forward.1} parent=5 // pred_region
        %s506 = ssub.s32 %s30, 1
        %s507 = sand.u32 %s43, 1
        %s508 = scalar_lea.sflag [#allocation3], %s507
        %s509 = sand.u32 %s43, 1
        %s510 = smul.addr %s509, 48
        %s511 = scalar_lea.vmem [#allocation2], %s510
        // Predicated region
        $region77: #{block_forward.1} parent=75 // pred_check
          %p512 = pneg %p56
        $region78: #{block_forward.1} parent=75 // pred_check_branch
          %514 = sbr.rel (%p512) target = $region80
        $region79: #{block_forward.1} parent=75 // pred_region
          %516 = dma.done %s508, 768
        $region80: #{block_forward.1} parent=75 // pred_fallthru
          _
        // Predicated region
        $region81: #{block_forward.1} parent=75 // pred_check
          %p517 = pneg %p98
        $region82: #{block_forward.1} parent=75 // pred_check_branch
          %519 = sbr.rel (%p517) target = $region84
        $region83: #{block_forward.1} parent=75 // pred_region
          %521 = dma.done [#allocation6], 48
        $region84: #{block_forward.1} parent=75 // pred_fallthru
          _
        // Predicated region
        $region85: #{block_forward.1} parent=75 // pred_check
          %p522 = pneg %p182
        $region86: #{block_forward.1} parent=75 // pred_check_branch
          %524 = sbr.rel (%p522) target = $region88
        $region87: #{block_forward.1} parent=75 // pred_region
          %526 = dma.done [#allocation6], 18432
        $region88: #{block_forward.1} parent=75 // pred_fallthru
          _
        // Predicated region
        $region89: #{block_forward.1} parent=75 // pred_check
          %p527 = pneg %p203
        $region90: #{block_forward.1} parent=75 // pred_check_branch
          %529 = sbr.rel (%p527) target = $region92
        $region91: #{block_forward.1} parent=75 // pred_region
          %531 = dma.done [#allocation9], 48
        $region92: #{block_forward.1} parent=75 // pred_fallthru
          _
        // Predicated region
        $region93: #{block_forward.1} parent=75 // pred_check
          %p532 = pneg %p224
        $region94: #{block_forward.1} parent=75 // pred_check_branch
          %534 = sbr.rel (%p532) target = $region96
        $region95: #{block_forward.1} parent=75 // pred_region
          %536 = dma.done [#allocation9], 48
        $region96: #{block_forward.1} parent=75 // pred_fallthru
          _
        // Predicated region
        $region97: #{block_forward.1} parent=75 // pred_check
          %p537 = pneg %p245
        $region98: #{block_forward.1} parent=75 // pred_check_branch
          %539 = sbr.rel (%p537) target = $region100
        $region99: #{block_forward.1} parent=75 // pred_region
          %541 = dma.done [#allocation12], 48
        $region100: #{block_forward.1} parent=75 // pred_fallthru
          _
        // Predicated region
        $region101: #{block_forward.1} parent=75 // pred_check
          %p542 = pneg %p287
        $region102: #{block_forward.1} parent=75 // pred_check_branch
          %544 = sbr.rel (%p542) target = $region104
        $region103: #{block_forward.1} parent=75 // pred_region
          %546 = dma.done [#allocation12], 192
        $region104: #{block_forward.1} parent=75 // pred_fallthru
          _
        // Predicated region
        $region105: #{block_forward.1} parent=75 // pred_check
          %p547 = pneg %p329
        $region106: #{block_forward.1} parent=75 // pred_check_branch
          %549 = sbr.rel (%p547) target = $region108
        $region107: #{block_forward.1} parent=75 // pred_region
          %551 = dma.done [#allocation15], 48
        $region108: #{block_forward.1} parent=75 // pred_fallthru
          _
        %s552 = sand.u32 %s43, 1
        %s553 = scalar_lea.sflag [#allocation3], %s552
        %s554 = sand.u32 %s43, 1
        %s555 = smul.addr %s554, 48
        %s556 = scalar_lea.vmem [#allocation2], %s555
        %p557 = pneg %p56
        %p558 = pneg %p53
        %p559 = pneg %p77
        %p560 = pneg %p74
        %p561 = pneg %p98
        %p562 = pneg %p95
        %p563 = pneg %p119
        %p564 = pneg %p116
        %p565 = pneg %p140
        %p566 = pneg %p137
        %p567 = pneg %p161
        %p568 = pneg %p158
        %p569 = pneg %p182
        %p570 = pneg %p179
        %p571 = pneg %p203
        %p572 = pneg %p200
        %p573 = pneg %p224
        %p574 = pneg %p221
        %p575 = pneg %p245
        %p576 = pneg %p242
        %p577 = pneg %p266
        %p578 = pneg %p263
        %p579 = pneg %p287
        %p580 = pneg %p284
        %p581 = pneg %p308
        %p582 = pneg %p305
        %p583 = pneg %p329
        %p584 = pneg %p326
        %p585 = pneg %p355
        %p586 = pneg %p352
        %s587 = sand.u32 %s342, 1
        %s588 = scalar_lea.sflag [#allocation4], %s587
        %s589 = sand.u32 %s342, 1
        %s590 = smul.addr %s589, 48
        %s591 = scalar_lea.vmem [#allocation16], %s590
        %v592 = vld [vmem:[%s511] sm:$0xff]
        %v593 = vld [vmem:[%s511 + $0x8] sm:$0xff]
        %v594 = vld [vmem:[%s511 + $0x10] sm:$0xff]
        %v595 = vld [vmem:[%s511 + $0x18] sm:$0xff]
        %v596 = vld [vmem:[%s511 + $0x20] sm:$0xff]
        %v597 = vld [vmem:[%s511 + $0x28] sm:$0xff]
        %v598 = vld [vmem:[%s1] sm:$0x7]
        %v599 = vld [vmem:[#allocation5] sm:$0x7]
        %v600 = vadd.f32 %v592, %v593
        %v601 = vadd.f32 %v600, %v594
        %602 = vadd.xlane.f32.xlu0 %v601
        %v603 = vpop.xlane.xlu0 %602
        %v604 = vadd.f32 %v595, %v596
        %v605 = vadd.f32 %v604, %v597
        %606 = vadd.xlane.f32.xlu0 %v605
        %v607 = vpop.xlane.xlu0 %606
        %v608 = vrcp.pop 384.0
        %v609 = vmul.f32 384.0, %v608
        %v610 = vsub.f32 1.0, %v609
        %v611 = vmul.f32 %v608, %v610
        %v612 = vadd.f32 %v608, %v611
        %vm613 = vweird.f32 %v608
        %v614 = vsel %vm613, %v608, %v612
        %v615 = vmul.f32 %v603, %v614
        %v616 = vmul.f32 %v607, %v614
        %v617 = vsub.f32 %v592, %v615
        %v618 = vsub.f32 %v593, %v615
        %v619 = vsub.f32 %v594, %v615
        %v620 = vsub.f32 %v595, %v616
        %v621 = vsub.f32 %v596, %v616
        %v622 = vsub.f32 %v597, %v616
        %v623 = vmul.f32 %v617, %v617
        %v624 = vmul.f32 %v618, %v618
        %v625 = vmul.f32 %v619, %v619
        %v626 = vmul.f32 %v620, %v620
        %v627 = vmul.f32 %v621, %v621
        %v628 = vmul.f32 %v622, %v622
        %v629 = vadd.f32 %v623, %v624
        %v630 = vadd.f32 %v629, %v625
        %631 = vadd.xlane.f32.xlu0 %v630
        %v632 = vpop.xlane.xlu0 %631
        %v633 = vadd.f32 %v626, %v627
        %v634 = vadd.f32 %v633, %v628
        %635 = vadd.xlane.f32.xlu0 %v634
        %v636 = vpop.xlane.xlu0 %635
        %v637 = vmul.f32 %v632, %v614
        %v638 = vmul.f32 %v636, %v614
        %v639 = vadd.f32 %v637, 1e-05
        %v640 = vadd.f32 %v638, 1e-05
        %v641 = vrsqrt.pop %v639
        %v642 = vmul.f32 %v641, %v639
        %v643 = vmul.f32 %v642, %v641
        %v644 = vmul.f32 0.5, %v643
        %v645 = vsub.f32 1.5, %v644
        %v646 = vmul.f32 %v641, %v645
        %vm647 = vweird.f32 %v639
        %vm648 = vweird.f32 %v641
        %vm649 = vmor %vm647, %vm648
        %v650 = vsel %vm649, %v641, %v646
        %v651 = vrsqrt.pop %v640
        %v652 = vmul.f32 %v651, %v640
        %v653 = vmul.f32 %v652, %v651
        %v654 = vmul.f32 0.5, %v653
        %v655 = vsub.f32 1.5, %v654
        %v656 = vmul.f32 %v651, %v655
        %vm657 = vweird.f32 %v640
        %vm658 = vweird.f32 %v651
        %vm659 = vmor %vm657, %vm658
        %v660 = vsel %vm659, %v651, %v656
        %v661 = vmul.f32 %v617, %v650
        %v662 = vmul.f32 %v618, %v650
        %v663 = vmul.f32 %v619, %v650
        %v664 = vmul.f32 %v620, %v660
        %v665 = vmul.f32 %v621, %v660
        %v666 = vmul.f32 %v622, %v660
        %v668 = vperm.slane %v598, 0
        %v669 = vperm.slane %v598, 1
        %v670 = vperm.slane %v598, 2
        %v674 = vmul.f32 %v661, %v668
        %v675 = vmul.f32 %v662, %v669
        %v676 = vmul.f32 %v663, %v670
        %v677 = vmul.f32 %v664, %v668
        %v678 = vmul.f32 %v665, %v669
        %v679 = vmul.f32 %v666, %v670
        %v681 = vperm.slane %v599, 0
        %v682 = vperm.slane %v599, 1
        %v683 = vperm.slane %v599, 2
        %v687 = vadd.f32 %v674, %v681
        %v688 = vadd.f32 %v675, %v682
        %v689 = vadd.f32 %v676, %v683
        %v690 = vadd.f32 %v677, %v681
        %v691 = vadd.f32 %v678, %v682
        %v692 = vadd.f32 %v679, %v683
        %v693 = vlaneseq
        %v694 = vshrl.u32 %v693, 7
        %v695 = vadd.s32 %v694, 8
        %v696 = vlaneseq
        %v697 = vand.u32 %v696, 127
        %vm698 = vcmp.ge.s32.totalorder %v694, %v697
        %vm699 = vcmp.ge.s32.totalorder %v695, %v697
        %v700 = vld [vmem:[%s3] sm:$0xff]
        %v701 = vld [vmem:[%s3 + $0x8] sm:$0xff]
        %v702 = vld [vmem:[%s3 + $0x10] sm:$0xff]
        %v703 = vld [vmem:[%s3 + $0x18] sm:$0xff]
        %v704 = vld [vmem:[%s3 + $0x20] sm:$0xff]
        %v705 = vld [vmem:[%s3 + $0x28] sm:$0xff]
        %v706 = vld [vmem:[%s3 + $0x30] sm:$0xff]
        %v707 = vld [vmem:[%s3 + $0x38] sm:$0xff]
        %v708 = vld [vmem:[%s3 + $0x40] sm:$0xff]
        %v709 = vld [vmem:[%s3 + $0x48] sm:$0xff]
        %v710 = vld [vmem:[%s3 + $0x50] sm:$0xff]
        %v711 = vld [vmem:[%s3 + $0x58] sm:$0xff]
        %v712 = vld [vmem:[%s3 + $0x60] sm:$0xff]
        %v713 = vld [vmem:[%s3 + $0x68] sm:$0xff]
        %v714 = vld [vmem:[%s3 + $0x70] sm:$0xff]
        %v715 = vld [vmem:[%s3 + $0x78] sm:$0xff]
        %v716 = vld [vmem:[%s3 + $0x80] sm:$0xff]
        %v717 = vld [vmem:[%s3 + $0x88] sm:$0xff]
        %v718 = vld [vmem:[%s3 + $0x90] sm:$0xff]
        %v719 = vld [vmem:[%s3 + $0x98] sm:$0xff]
        %v720 = vld [vmem:[%s3 + $0xa0] sm:$0xff]
        %v721 = vld [vmem:[%s3 + $0xa8] sm:$0xff]
        %v722 = vld [vmem:[%s3 + $0xb0] sm:$0xff]
        %v723 = vld [vmem:[%s3 + $0xb8] sm:$0xff]
        %v724 = vld [vmem:[%s3 + $0xc0] sm:$0xff]
        %v725 = vld [vmem:[%s3 + $0xc8] sm:$0xff]
        %v726 = vld [vmem:[%s3 + $0xd0] sm:$0xff]
        %v727 = vld [vmem:[%s3 + $0xd8] sm:$0xff]
        %v728 = vld [vmem:[%s3 + $0xe0] sm:$0xff]
        %v729 = vld [vmem:[%s3 + $0xe8] sm:$0xff]
        %v730 = vld [vmem:[%s3 + $0xf0] sm:$0xff]
        %v731 = vld [vmem:[%s3 + $0xf8] sm:$0xff]
        %v732 = vld [vmem:[%s3 + $0x100] sm:$0xff]
        %v733 = vld [vmem:[%s3 + $0x108] sm:$0xff]
        %v734 = vld [vmem:[%s3 + $0x110] sm:$0xff]
        %v735 = vld [vmem:[%s3 + $0x118] sm:$0xff]
        %v736 = vld [vmem:[%s3 + $0x120] sm:$0xff]
        %v737 = vld [vmem:[%s3 + $0x128] sm:$0xff]
        %v738 = vld [vmem:[%s3 + $0x130] sm:$0xff]
        %v739 = vld [vmem:[%s3 + $0x138] sm:$0xff]
        %v740 = vld [vmem:[%s3 + $0x140] sm:$0xff]
        %v741 = vld [vmem:[%s3 + $0x148] sm:$0xff]
        %v742 = vld [vmem:[%s3 + $0x150] sm:$0xff]
        %v743 = vld [vmem:[%s3 + $0x158] sm:$0xff]
        %v744 = vld [vmem:[%s3 + $0x160] sm:$0xff]
        %v745 = vld [vmem:[%s3 + $0x168] sm:$0xff]
        %v746 = vld [vmem:[%s3 + $0x170] sm:$0xff]
        %v747 = vld [vmem:[%s3 + $0x178] sm:$0xff]
        %748 = vmatpush.msra.mxu0 %v715
        %749 = vmatpush.msra.mxu0 %v714
        %750 = vmatpush.msra.mxu0 %v713
        %751 = vmatpush.msra.mxu0 %v712
        %752 = vmatpush.msra.mxu0 %v711
        %753 = vmatpush.msra.mxu0 %v710
        %754 = vmatpush.msra.mxu0 %v709
        %755 = vmatpush.msra.mxu0 %v708
        %756 = vmatpush.msra.mxu0 %v707
        %757 = vmatpush.msra.mxu0 %v706
        %758 = vmatpush.msra.mxu0 %v705
        %759 = vmatpush.msra.mxu0 %v704
        %760 = vmatpush.msra.mxu0 %v703
        %761 = vmatpush.msra.mxu0 %v702
        %762 = vmatpush.msra.mxu0 %v701
        %763 = vmatpush.msra.mxu0 %v700
        %764 = vmatmul.f32.gmra.mxu0 %v687
        %v765 = vpop.f32.mrf.mxu0
        %v766 = vadd.f32 0.0, %v765
        %767 = vmatmul.f32.gmra.mxu0 %v690
        %v768 = vpop.f32.mrf.mxu0
        %v769 = vadd.f32 0.0, %v768
        %770 = vdwg.mxu0
        %771 = vmatpush.msra.mxu0 %v731
        %772 = vmatpush.msra.mxu0 %v730
        %773 = vmatpush.msra.mxu0 %v729
        %774 = vmatpush.msra.mxu0 %v728
        %775 = vmatpush.msra.mxu0 %v727
        %776 = vmatpush.msra.mxu0 %v726
        %777 = vmatpush.msra.mxu0 %v725
        %778 = vmatpush.msra.mxu0 %v724
        %779 = vmatpush.msra.mxu0 %v723
        %780 = vmatpush.msra.mxu0 %v722
        %781 = vmatpush.msra.mxu0 %v721
        %782 = vmatpush.msra.mxu0 %v720
        %783 = vmatpush.msra.mxu0 %v719
        %784 = vmatpush.msra.mxu0 %v718
        %785 = vmatpush.msra.mxu0 %v717
        %786 = vmatpush.msra.mxu0 %v716
        %787 = vmatmul.f32.gmra.mxu0 %v688
        %v788 = vpop.f32.mrf.mxu0
        %v789 = vadd.f32 %v766, %v788
        %790 = vmatmul.f32.gmra.mxu0 %v691
        %v791 = vpop.f32.mrf.mxu0
        %v792 = vadd.f32 %v769, %v791
        %793 = vdwg.mxu0
        %794 = vmatpush.msra.mxu0 %v747
        %795 = vmatpush.msra.mxu0 %v746
        %796 = vmatpush.msra.mxu0 %v745
        %797 = vmatpush.msra.mxu0 %v744
        %798 = vmatpush.msra.mxu0 %v743
        %799 = vmatpush.msra.mxu0 %v742
        %800 = vmatpush.msra.mxu0 %v741
        %801 = vmatpush.msra.mxu0 %v740
        %802 = vmatpush.msra.mxu0 %v739
        %803 = vmatpush.msra.mxu0 %v738
        %804 = vmatpush.msra.mxu0 %v737
        %805 = vmatpush.msra.mxu0 %v736
        %806 = vmatpush.msra.mxu0 %v735
        %807 = vmatpush.msra.mxu0 %v734
        %808 = vmatpush.msra.mxu0 %v733
        %809 = vmatpush.msra.mxu0 %v732
        %810 = vmatmul.f32.gmra.mxu0 %v689
        %v811 = vpop.f32.mrf.mxu0
        %v812 = vadd.f32 %v789, %v811
        %813 = vmatmul.f32.gmra.mxu0 %v692
        %v814 = vpop.f32.mrf.mxu0
        %v815 = vadd.f32 %v792, %v814
        %816 = vdwg.mxu0
        %v817 = vld [vmem:[%s4] sm:$0xff]
        %v818 = vld [vmem:[%s4 + $0x8] sm:$0xff]
        %v819 = vld [vmem:[%s4 + $0x10] sm:$0xff]
        %v820 = vld [vmem:[%s4 + $0x18] sm:$0xff]
        %v821 = vld [vmem:[%s4 + $0x20] sm:$0xff]
        %v822 = vld [vmem:[%s4 + $0x28] sm:$0xff]
        %v823 = vld [vmem:[%s4 + $0x30] sm:$0xff]
        %v824 = vld [vmem:[%s4 + $0x38] sm:$0xff]
        %v825 = vld [vmem:[%s4 + $0x40] sm:$0xff]
        %v826 = vld [vmem:[%s4 + $0x48] sm:$0xff]
        %v827 = vld [vmem:[%s4 + $0x50] sm:$0xff]
        %v828 = vld [vmem:[%s4 + $0x58] sm:$0xff]
        %v829 = vld [vmem:[%s4 + $0x60] sm:$0xff]
        %v830 = vld [vmem:[%s4 + $0x68] sm:$0xff]
        %v831 = vld [vmem:[%s4 + $0x70] sm:$0xff]
        %v832 = vld [vmem:[%s4 + $0x78] sm:$0xff]
        %v833 = vld [vmem:[%s4 + $0x80] sm:$0xff]
        %v834 = vld [vmem:[%s4 + $0x88] sm:$0xff]
        %v835 = vld [vmem:[%s4 + $0x90] sm:$0xff]
        %v836 = vld [vmem:[%s4 + $0x98] sm:$0xff]
        %v837 = vld [vmem:[%s4 + $0xa0] sm:$0xff]
        %v838 = vld [vmem:[%s4 + $0xa8] sm:$0xff]
        %v839 = vld [vmem:[%s4 + $0xb0] sm:$0xff]
        %v840 = vld [vmem:[%s4 + $0xb8] sm:$0xff]
        %v841 = vld [vmem:[%s4 + $0xc0] sm:$0xff]
        %v842 = vld [vmem:[%s4 + $0xc8] sm:$0xff]
        %v843 = vld [vmem:[%s4 + $0xd0] sm:$0xff]
        %v844 = vld [vmem:[%s4 + $0xd8] sm:$0xff]
        %v845 = vld [vmem:[%s4 + $0xe0] sm:$0xff]
        %v846 = vld [vmem:[%s4 + $0xe8] sm:$0xff]
        %v847 = vld [vmem:[%s4 + $0xf0] sm:$0xff]
        %v848 = vld [vmem:[%s4 + $0xf8] sm:$0xff]
        %v849 = vld [vmem:[%s4 + $0x100] sm:$0xff]
        %v850 = vld [vmem:[%s4 + $0x108] sm:$0xff]
        %v851 = vld [vmem:[%s4 + $0x110] sm:$0xff]
        %v852 = vld [vmem:[%s4 + $0x118] sm:$0xff]
        %v853 = vld [vmem:[%s4 + $0x120] sm:$0xff]
        %v854 = vld [vmem:[%s4 + $0x128] sm:$0xff]
        %v855 = vld [vmem:[%s4 + $0x130] sm:$0xff]
        %v856 = vld [vmem:[%s4 + $0x138] sm:$0xff]
        %v857 = vld [vmem:[%s4 + $0x140] sm:$0xff]
        %v858 = vld [vmem:[%s4 + $0x148] sm:$0xff]
        %v859 = vld [vmem:[%s4 + $0x150] sm:$0xff]
        %v860 = vld [vmem:[%s4 + $0x158] sm:$0xff]
        %v861 = vld [vmem:[%s4 + $0x160] sm:$0xff]
        %v862 = vld [vmem:[%s4 + $0x168] sm:$0xff]
        %v863 = vld [vmem:[%s4 + $0x170] sm:$0xff]
        %v864 = vld [vmem:[%s4 + $0x178] sm:$0xff]
        %865 = vmatpush.msra.mxu0 %v832
        %866 = vmatpush.msra.mxu0 %v831
        %867 = vmatpush.msra.mxu0 %v830
        %868 = vmatpush.msra.mxu0 %v829
        %869 = vmatpush.msra.mxu0 %v828
        %870 = vmatpush.msra.mxu0 %v827
        %871 = vmatpush.msra.mxu0 %v826
        %872 = vmatpush.msra.mxu0 %v825
        %873 = vmatpush.msra.mxu0 %v824
        %874 = vmatpush.msra.mxu0 %v823
        %875 = vmatpush.msra.mxu0 %v822
        %876 = vmatpush.msra.mxu0 %v821
        %877 = vmatpush.msra.mxu0 %v820
        %878 = vmatpush.msra.mxu0 %v819
        %879 = vmatpush.msra.mxu0 %v818
        %880 = vmatpush.msra.mxu0 %v817
        %881 = vmatmul.f32.gmra.mxu0 %v687
        %v882 = vpop.f32.mrf.mxu0
        %v883 = vadd.f32 0.0, %v882
        %884 = vmatmul.f32.gmra.mxu0 %v690
        %v885 = vpop.f32.mrf.mxu0
        %v886 = vadd.f32 0.0, %v885
        %887 = vdwg.mxu0
        %888 = vmatpush.msra.mxu0 %v848
        %889 = vmatpush.msra.mxu0 %v847
        %890 = vmatpush.msra.mxu0 %v846
        %891 = vmatpush.msra.mxu0 %v845
        %892 = vmatpush.msra.mxu0 %v844
        %893 = vmatpush.msra.mxu0 %v843
        %894 = vmatpush.msra.mxu0 %v842
        %895 = vmatpush.msra.mxu0 %v841
        %896 = vmatpush.msra.mxu0 %v840
        %897 = vmatpush.msra.mxu0 %v839
        %898 = vmatpush.msra.mxu0 %v838
        %899 = vmatpush.msra.mxu0 %v837
        %900 = vmatpush.msra.mxu0 %v836
        %901 = vmatpush.msra.mxu0 %v835
        %902 = vmatpush.msra.mxu0 %v834
        %903 = vmatpush.msra.mxu0 %v833
        %904 = vmatmul.f32.gmra.mxu0 %v688
        %v905 = vpop.f32.mrf.mxu0
        %v906 = vadd.f32 %v883, %v905
        %907 = vmatmul.f32.gmra.mxu0 %v691
        %v908 = vpop.f32.mrf.mxu0
        %v909 = vadd.f32 %v886, %v908
        %910 = vdwg.mxu0
        %911 = vmatpush.msra.mxu0 %v864
        %912 = vmatpush.msra.mxu0 %v863
        %913 = vmatpush.msra.mxu0 %v862
        %914 = vmatpush.msra.mxu0 %v861
        %915 = vmatpush.msra.mxu0 %v860
        %916 = vmatpush.msra.mxu0 %v859
        %917 = vmatpush.msra.mxu0 %v858
        %918 = vmatpush.msra.mxu0 %v857
        %919 = vmatpush.msra.mxu0 %v856
        %920 = vmatpush.msra.mxu0 %v855
        %921 = vmatpush.msra.mxu0 %v854
        %922 = vmatpush.msra.mxu0 %v853
        %923 = vmatpush.msra.mxu0 %v852
        %924 = vmatpush.msra.mxu0 %v851
        %925 = vmatpush.msra.mxu0 %v850
        %926 = vmatpush.msra.mxu0 %v849
        %927 = vmatmul.f32.gmra.mxu0 %v689
        %v928 = vpop.f32.mrf.mxu0
        %v929 = vadd.f32 %v906, %v928
        %930 = vmatmul.f32.gmra.mxu0 %v692
        %v931 = vpop.f32.mrf.mxu0
        %v932 = vadd.f32 %v909, %v931
        %933 = vdwg.mxu0
        %v934 = vld [vmem:[%s5] sm:$0xff]
        %v935 = vld [vmem:[%s5 + $0x8] sm:$0xff]
        %v936 = vld [vmem:[%s5 + $0x10] sm:$0xff]
        %v937 = vld [vmem:[%s5 + $0x18] sm:$0xff]
        %v938 = vld [vmem:[%s5 + $0x20] sm:$0xff]
        %v939 = vld [vmem:[%s5 + $0x28] sm:$0xff]
        %v940 = vld [vmem:[%s5 + $0x30] sm:$0xff]
        %v941 = vld [vmem:[%s5 + $0x38] sm:$0xff]
        %v942 = vld [vmem:[%s5 + $0x40] sm:$0xff]
        %v943 = vld [vmem:[%s5 + $0x48] sm:$0xff]
        %v944 = vld [vmem:[%s5 + $0x50] sm:$0xff]
        %v945 = vld [vmem:[%s5 + $0x58] sm:$0xff]
        %v946 = vld [vmem:[%s5 + $0x60] sm:$0xff]
        %v947 = vld [vmem:[%s5 + $0x68] sm:$0xff]
        %v948 = vld [vmem:[%s5 + $0x70] sm:$0xff]
        %v949 = vld [vmem:[%s5 + $0x78] sm:$0xff]
        %v950 = vld [vmem:[%s5 + $0x80] sm:$0xff]
        %v951 = vld [vmem:[%s5 + $0x88] sm:$0xff]
        %v952 = vld [vmem:[%s5 + $0x90] sm:$0xff]
        %v953 = vld [vmem:[%s5 + $0x98] sm:$0xff]
        %v954 = vld [vmem:[%s5 + $0xa0] sm:$0xff]
        %v955 = vld [vmem:[%s5 + $0xa8] sm:$0xff]
        %v956 = vld [vmem:[%s5 + $0xb0] sm:$0xff]
        %v957 = vld [vmem:[%s5 + $0xb8] sm:$0xff]
        %v958 = vld [vmem:[%s5 + $0xc0] sm:$0xff]
        %v959 = vld [vmem:[%s5 + $0xc8] sm:$0xff]
        %v960 = vld [vmem:[%s5 + $0xd0] sm:$0xff]
        %v961 = vld [vmem:[%s5 + $0xd8] sm:$0xff]
        %v962 = vld [vmem:[%s5 + $0xe0] sm:$0xff]
        %v963 = vld [vmem:[%s5 + $0xe8] sm:$0xff]
        %v964 = vld [vmem:[%s5 + $0xf0] sm:$0xff]
        %v965 = vld [vmem:[%s5 + $0xf8] sm:$0xff]
        %v966 = vld [vmem:[%s5 + $0x100] sm:$0xff]
        %v967 = vld [vmem:[%s5 + $0x108] sm:$0xff]
        %v968 = vld [vmem:[%s5 + $0x110] sm:$0xff]
        %v969 = vld [vmem:[%s5 + $0x118] sm:$0xff]
        %v970 = vld [vmem:[%s5 + $0x120] sm:$0xff]
        %v971 = vld [vmem:[%s5 + $0x128] sm:$0xff]
        %v972 = vld [vmem:[%s5 + $0x130] sm:$0xff]
        %v973 = vld [vmem:[%s5 + $0x138] sm:$0xff]
        %v974 = vld [vmem:[%s5 + $0x140] sm:$0xff]
        %v975 = vld [vmem:[%s5 + $0x148] sm:$0xff]
        %v976 = vld [vmem:[%s5 + $0x150] sm:$0xff]
        %v977 = vld [vmem:[%s5 + $0x158] sm:$0xff]
        %v978 = vld [vmem:[%s5 + $0x160] sm:$0xff]
        %v979 = vld [vmem:[%s5 + $0x168] sm:$0xff]
        %v980 = vld [vmem:[%s5 + $0x170] sm:$0xff]
        %v981 = vld [vmem:[%s5 + $0x178] sm:$0xff]
        %982 = vmatpush.msra.mxu0 %v949
        %983 = vmatpush.msra.mxu0 %v948
        %984 = vmatpush.msra.mxu0 %v947
        %985 = vmatpush.msra.mxu0 %v946
        %986 = vmatpush.msra.mxu0 %v945
        %987 = vmatpush.msra.mxu0 %v944
        %988 = vmatpush.msra.mxu0 %v943
        %989 = vmatpush.msra.mxu0 %v942
        %990 = vmatpush.msra.mxu0 %v941
        %991 = vmatpush.msra.mxu0 %v940
        %992 = vmatpush.msra.mxu0 %v939
        %993 = vmatpush.msra.mxu0 %v938
        %994 = vmatpush.msra.mxu0 %v937
        %995 = vmatpush.msra.mxu0 %v936
        %996 = vmatpush.msra.mxu0 %v935
        %997 = vmatpush.msra.mxu0 %v934
        %998 = vmatmul.f32.gmra.mxu0 %v687
        %v999 = vpop.f32.mrf.mxu0
        %v1000 = vadd.f32 0.0, %v999
        %1001 = vmatmul.f32.gmra.mxu0 %v690
        %v1002 = vpop.f32.mrf.mxu0
        %v1003 = vadd.f32 0.0, %v1002
        %1004 = vdwg.mxu0
        %1005 = vmatpush.msra.mxu0 %v965
        %1006 = vmatpush.msra.mxu0 %v964
        %1007 = vmatpush.msra.mxu0 %v963
        %1008 = vmatpush.msra.mxu0 %v962
        %1009 = vmatpush.msra.mxu0 %v961
        %1010 = vmatpush.msra.mxu0 %v960
        %1011 = vmatpush.msra.mxu0 %v959
        %1012 = vmatpush.msra.mxu0 %v958
        %1013 = vmatpush.msra.mxu0 %v957
        %1014 = vmatpush.msra.mxu0 %v956
        %1015 = vmatpush.msra.mxu0 %v955
        %1016 = vmatpush.msra.mxu0 %v954
        %1017 = vmatpush.msra.mxu0 %v953
        %1018 = vmatpush.msra.mxu0 %v952
        %1019 = vmatpush.msra.mxu0 %v951
        %1020 = vmatpush.msra.mxu0 %v950
        %1021 = vmatmul.f32.gmra.mxu0 %v688
        %v1022 = vpop.f32.mrf.mxu0
        %v1023 = vadd.f32 %v1000, %v1022
        %1024 = vmatmul.f32.gmra.mxu0 %v691
        %v1025 = vpop.f32.mrf.mxu0
        %v1026 = vadd.f32 %v1003, %v1025
        %1027 = vdwg.mxu0
        %1028 = vmatpush.msra.mxu0 %v981
        %1029 = vmatpush.msra.mxu0 %v980
        %1030 = vmatpush.msra.mxu0 %v979
        %1031 = vmatpush.msra.mxu0 %v978
        %1032 = vmatpush.msra.mxu0 %v977
        %1033 = vmatpush.msra.mxu0 %v976
        %1034 = vmatpush.msra.mxu0 %v975
        %1035 = vmatpush.msra.mxu0 %v974
        %1036 = vmatpush.msra.mxu0 %v973
        %1037 = vmatpush.msra.mxu0 %v972
        %1038 = vmatpush.msra.mxu0 %v971
        %1039 = vmatpush.msra.mxu0 %v970
        %1040 = vmatpush.msra.mxu0 %v969
        %1041 = vmatpush.msra.mxu0 %v968
        %1042 = vmatpush.msra.mxu0 %v967
        %1043 = vmatpush.msra.mxu0 %v966
        %1044 = vmatmul.f32.gmra.mxu0 %v689
        %v1045 = vpop.f32.mrf.mxu0
        %v1046 = vadd.f32 %v1023, %v1045
        %1047 = vmatmul.f32.gmra.mxu0 %v692
        %v1048 = vpop.f32.mrf.mxu0
        %v1049 = vadd.f32 %v1026, %v1048
        %1050 = vdwg.mxu0
        %vm1051 = vcmask 523264
        %v1053 = vsel %vm1051, %v812, 0
        %v1056 = vsel %vm1051, %v815, 0
        %v1059 = vsel %vm1051, %v929, 0
        %v1062 = vsel %vm1051, %v932, 0
        %1064 = vmatpush.xpose.msra.mxu0 0.0
        %1065 = vmatpush.xpose.msra.mxu0 0.0
        %1066 = vmatpush.xpose.msra.mxu0 0.0
        %1067 = vmatpush.xpose.msra.mxu0 0.0
        %1068 = vmatpush.xpose.msra.mxu0 0.0
        %1069 = vmatpush.xpose.msra.mxu0 0.0
        %1070 = vmatpush.xpose.msra.mxu0 0.0
        %1071 = vmatpush.xpose.msra.mxu0 0.0
        %1072 = vmatpush.xpose.msra.mxu0 0.0
        %1073 = vmatpush.xpose.msra.mxu0 0.0
        %1074 = vmatpush.xpose.msra.mxu0 0.0
        %1075 = vmatpush.xpose.msra.mxu0 0.0
        %1076 = vmatpush.xpose.msra.mxu0 0.0
        %1077 = vmatpush.xpose.msra.mxu0 0.0
        %1078 = vmatpush.xpose.msra.mxu0 %v1062
        %1079 = vmatpush.xpose.msra.mxu0 %v1059
        %1080 = vmatmul.f32.gmra.mxu0 %v1053
        %v1081 = vpop.f32.mrf.mxu0
        %v1082 = vadd.f32 0.0, %v1081
        %1083 = vmatmul.f32.gmra.mxu0 %v1056
        %v1084 = vpop.f32.mrf.mxu0
        %v1085 = vadd.f32 0.0, %v1084
        %1086 = vdwg.mxu0
        %v1087 = vmul.f32 %v1082, 0.05103104
        %v1088 = vmul.f32 %v1085, 0.05103104
        %v1089 = vsel %vm698, %v1087, -inf
        %v1090 = vsel %vm699, %v1088, -inf
        %vm1091 = vcmask 130048
        %v1092 = vsel %vm1091, %v1089, -inf
        %1093 = vmax.xlane.f32.xlu0 %v1092
        %v1094 = vpop.xlane.xlu0 %1093
        %v1095 = vsel %vm1091, %v1090, -inf
        %1096 = vmax.xlane.f32.xlu0 %v1095
        %v1097 = vpop.xlane.xlu0 %1096
        %v1098 = vsub.f32 %v1089, %v1094
        %v1099 = vsub.f32 %v1090, %v1097
        %v1100 = vmul.f32 %v1098, 1.442695
        %v1101 = vpow.pop %v1100
        %v1102 = vmul.f32 %v1099, 1.442695
        %v1103 = vpow.pop %v1102
        %v1104 = vsel %vm1091, %v1101, 0.0
        %1105 = vadd.xlane.f32.xlu0 %v1104
        %v1106 = vpop.xlane.xlu0 %1105
        %v1107 = vsel %vm1091, %v1103, 0.0
        %1108 = vadd.xlane.f32.xlu0 %v1107
        %v1109 = vpop.xlane.xlu0 %1108
        %v1110 = vrcp.pop %v1106
        %v1111 = vmul.f32 %v1106, %v1110
        %v1112 = vsub.f32 1.0, %v1111
        %v1113 = vmul.f32 %v1110, %v1112
        %v1114 = vadd.f32 %v1110, %v1113
        %vm1115 = vweird.f32 %v1106
        %vm1116 = vweird.f32 %v1110
        %vm1117 = vmor %vm1115, %vm1116
        %v1118 = vsel %vm1117, %v1110, %v1114
        %v1119 = vand.u32 2147483647, %v1106
        %vm1120 = vcmp.eq.f32.partialorder %v1119, 8.507059e+37
        %v1121 = vand.u32 %v1106, 2147483648
        %v1122 = vor.u32 1.1754944e-38, %v1121
        %v1123 = vsel %vm1120, %v1122, %v1118
        %v1124 = vmul.f32 %v1101, %v1123
        %v1125 = vrcp.pop %v1109
        %v1126 = vmul.f32 %v1109, %v1125
        %v1127 = vsub.f32 1.0, %v1126
        %v1128 = vmul.f32 %v1125, %v1127
        %v1129 = vadd.f32 %v1125, %v1128
        %vm1130 = vweird.f32 %v1109
        %vm1131 = vweird.f32 %v1125
        %vm1132 = vmor %vm1130, %vm1131
        %v1133 = vsel %vm1132, %v1125, %v1129
        %v1134 = vand.u32 2147483647, %v1109
        %vm1135 = vcmp.eq.f32.partialorder %v1134, 8.507059e+37
        %v1136 = vand.u32 %v1109, 2147483648
        %v1137 = vor.u32 1.1754944e-38, %v1136
        %v1138 = vsel %vm1135, %v1137, %v1133
        %v1139 = vmul.f32 %v1103, %v1138
        %v1141 = vsel %vm1091, %v1124, 0
        %v1144 = vsel %vm1091, %v1139, 0
        %1146 = vmatpush.msra.mxu0 0.0
        %1147 = vmatpush.msra.mxu0 0.0
        %1148 = vmatpush.msra.mxu0 0.0
        %1149 = vmatpush.msra.mxu0 0.0
        %1150 = vmatpush.msra.mxu0 0.0
        %1151 = vmatpush.msra.mxu0 0.0
        %1152 = vmatpush.msra.mxu0 0.0
        %1153 = vmatpush.msra.mxu0 0.0
        %1154 = vmatpush.msra.mxu0 0.0
        %1155 = vmatpush.msra.mxu0 0.0
        %1156 = vmatpush.msra.mxu0 0.0
        %1157 = vmatpush.msra.mxu0 0.0
        %1158 = vmatpush.msra.mxu0 0.0
        %1159 = vmatpush.msra.mxu0 0.0
        %1160 = vmatpush.msra.mxu0 %v1049
        %1161 = vmatpush.msra.mxu0 %v1046
        %1162 = vmatmul.f32.gmra.mxu0 %v1141
        %v1163 = vpop.f32.mrf.mxu0
        %v1164 = vadd.f32 0.0, %v1163
        %1165 = vmatmul.f32.gmra.mxu0 %v1144
        %v1166 = vpop.f32.mrf.mxu0
        %v1167 = vadd.f32 0.0, %v1166
        %1168 = vdwg.mxu0
        %v1169 = vld [vmem:[#allocation7] sm:$0xff]
        %v1170 = vld [vmem:[#allocation7 + $0x8] sm:$0xff]
        %v1171 = vld [vmem:[#allocation7 + $0x10] sm:$0xff]
        %v1172 = vld [vmem:[#allocation7 + $0x18] sm:$0xff]
        %v1173 = vld [vmem:[#allocation7 + $0x20] sm:$0xff]
        %v1174 = vld [vmem:[#allocation7 + $0x28] sm:$0xff]
        %v1175 = vld [vmem:[#allocation7 + $0x30] sm:$0xff]
        %v1176 = vld [vmem:[#allocation7 + $0x38] sm:$0xff]
        %v1177 = vld [vmem:[#allocation7 + $0x40] sm:$0xff]
        %v1178 = vld [vmem:[#allocation7 + $0x48] sm:$0xff]
        %v1179 = vld [vmem:[#allocation7 + $0x50] sm:$0xff]
        %v1180 = vld [vmem:[#allocation7 + $0x58] sm:$0xff]
        %v1181 = vld [vmem:[#allocation7 + $0x60] sm:$0xff]
        %v1182 = vld [vmem:[#allocation7 + $0x68] sm:$0xff]
        %v1183 = vld [vmem:[#allocation7 + $0x70] sm:$0xff]
        %v1184 = vld [vmem:[#allocation7 + $0x78] sm:$0xff]
        %v1185 = vld [vmem:[#allocation7 + $0x80] sm:$0xff]
        %v1186 = vld [vmem:[#allocation7 + $0x88] sm:$0xff]
        %v1187 = vld [vmem:[#allocation7 + $0x90] sm:$0xff]
        %v1188 = vld [vmem:[#allocation7 + $0x98] sm:$0xff]
        %v1189 = vld [vmem:[#allocation7 + $0xa0] sm:$0xff]
        %v1190 = vld [vmem:[#allocation7 + $0xa8] sm:$0xff]
        %v1191 = vld [vmem:[#allocation7 + $0xb0] sm:$0xff]
        %v1192 = vld [vmem:[#allocation7 + $0xb8] sm:$0xff]
        %s1193 = scalar_lea.vmem %s3, 384
        %v1194 = vld [vmem:[%s1193] sm:$0xff]
        %v1195 = vld [vmem:[%s1193 + $0x8] sm:$0xff]
        %v1196 = vld [vmem:[%s1193 + $0x10] sm:$0xff]
        %v1197 = vld [vmem:[%s1193 + $0x18] sm:$0xff]
        %v1198 = vld [vmem:[%s1193 + $0x20] sm:$0xff]
        %v1199 = vld [vmem:[%s1193 + $0x28] sm:$0xff]
        %v1200 = vld [vmem:[%s1193 + $0x30] sm:$0xff]
        %v1201 = vld [vmem:[%s1193 + $0x38] sm:$0xff]
        %v1202 = vld [vmem:[%s1193 + $0x40] sm:$0xff]
        %v1203 = vld [vmem:[%s1193 + $0x48] sm:$0xff]
        %v1204 = vld [vmem:[%s1193 + $0x50] sm:$0xff]
        %v1205 = vld [vmem:[%s1193 + $0x58] sm:$0xff]
        %v1206 = vld [vmem:[%s1193 + $0x60] sm:$0xff]
        %v1207 = vld [vmem:[%s1193 + $0x68] sm:$0xff]
        %v1208 = vld [vmem:[%s1193 + $0x70] sm:$0xff]
        %v1209 = vld [vmem:[%s1193 + $0x78] sm:$0xff]
        %v1210 = vld [vmem:[%s1193 + $0x80] sm:$0xff]
        %v1211 = vld [vmem:[%s1193 + $0x88] sm:$0xff]
        %v1212 = vld [vmem:[%s1193 + $0x90] sm:$0xff]
        %v1213 = vld [vmem:[%s1193 + $0x98] sm:$0xff]
        %v1214 = vld [vmem:[%s1193 + $0xa0] sm:$0xff]
        %v1215 = vld [vmem:[%s1193 + $0xa8] sm:$0xff]
        %v1216 = vld [vmem:[%s1193 + $0xb0] sm:$0xff]
        %v1217 = vld [vmem:[%s1193 + $0xb8] sm:$0xff]
        %v1218 = vld [vmem:[%s1193 + $0xc0] sm:$0xff]
        %v1219 = vld [vmem:[%s1193 + $0xc8] sm:$0xff]
        %v1220 = vld [vmem:[%s1193 + $0xd0] sm:$0xff]
        %v1221 = vld [vmem:[%s1193 + $0xd8] sm:$0xff]
        %v1222 = vld [vmem:[%s1193 + $0xe0] sm:$0xff]
        %v1223 = vld [vmem:[%s1193 + $0xe8] sm:$0xff]
        %v1224 = vld [vmem:[%s1193 + $0xf0] sm:$0xff]
        %v1225 = vld [vmem:[%s1193 + $0xf8] sm:$0xff]
        %v1226 = vld [vmem:[%s1193 + $0x100] sm:$0xff]
        %v1227 = vld [vmem:[%s1193 + $0x108] sm:$0xff]
        %v1228 = vld [vmem:[%s1193 + $0x110] sm:$0xff]
        %v1229 = vld [vmem:[%s1193 + $0x118] sm:$0xff]
        %v1230 = vld [vmem:[%s1193 + $0x120] sm:$0xff]
        %v1231 = vld [vmem:[%s1193 + $0x128] sm:$0xff]
        %v1232 = vld [vmem:[%s1193 + $0x130] sm:$0xff]
        %v1233 = vld [vmem:[%s1193 + $0x138] sm:$0xff]
        %v1234 = vld [vmem:[%s1193 + $0x140] sm:$0xff]
        %v1235 = vld [vmem:[%s1193 + $0x148] sm:$0xff]
        %v1236 = vld [vmem:[%s1193 + $0x150] sm:$0xff]
        %v1237 = vld [vmem:[%s1193 + $0x158] sm:$0xff]
        %v1238 = vld [vmem:[%s1193 + $0x160] sm:$0xff]
        %v1239 = vld [vmem:[%s1193 + $0x168] sm:$0xff]
        %v1240 = vld [vmem:[%s1193 + $0x170] sm:$0xff]
        %v1241 = vld [vmem:[%s1193 + $0x178] sm:$0xff]
        %1242 = vmatpush.msra.mxu0 %v1209
        %1243 = vmatpush.msra.mxu0 %v1208
        %1244 = vmatpush.msra.mxu0 %v1207
        %1245 = vmatpush.msra.mxu0 %v1206
        %1246 = vmatpush.msra.mxu0 %v1205
        %1247 = vmatpush.msra.mxu0 %v1204
        %1248 = vmatpush.msra.mxu0 %v1203
        %1249 = vmatpush.msra.mxu0 %v1202
        %1250 = vmatpush.msra.mxu0 %v1201
        %1251 = vmatpush.msra.mxu0 %v1200
        %1252 = vmatpush.msra.mxu0 %v1199
        %1253 = vmatpush.msra.mxu0 %v1198
        %1254 = vmatpush.msra.mxu0 %v1197
        %1255 = vmatpush.msra.mxu0 %v1196
        %1256 = vmatpush.msra.mxu0 %v1195
        %1257 = vmatpush.msra.mxu0 %v1194
        %1258 = vmatmul.f32.gmra.mxu0 %v687
        %v1259 = vpop.f32.mrf.mxu0
        %v1260 = vadd.f32 0.0, %v1259
        %1261 = vmatmul.f32.gmra.mxu0 %v690
        %v1262 = vpop.f32.mrf.mxu0
        %v1263 = vadd.f32 0.0, %v1262
        %1264 = vdwg.mxu0
        %1265 = vmatpush.msra.mxu0 %v1225
        %1266 = vmatpush.msra.mxu0 %v1224
        %1267 = vmatpush.msra.mxu0 %v1223
        %1268 = vmatpush.msra.mxu0 %v1222
        %1269 = vmatpush.msra.mxu0 %v1221
        %1270 = vmatpush.msra.mxu0 %v1220
        %1271 = vmatpush.msra.mxu0 %v1219
        %1272 = vmatpush.msra.mxu0 %v1218
        %1273 = vmatpush.msra.mxu0 %v1217
        %1274 = vmatpush.msra.mxu0 %v1216
        %1275 = vmatpush.msra.mxu0 %v1215
        %1276 = vmatpush.msra.mxu0 %v1214
        %1277 = vmatpush.msra.mxu0 %v1213
        %1278 = vmatpush.msra.mxu0 %v1212
        %1279 = vmatpush.msra.mxu0 %v1211
        %1280 = vmatpush.msra.mxu0 %v1210
        %1281 = vmatmul.f32.gmra.mxu0 %v688
        %v1282 = vpop.f32.mrf.mxu0
        %v1283 = vadd.f32 %v1260, %v1282
        %1284 = vmatmul.f32.gmra.mxu0 %v691
        %v1285 = vpop.f32.mrf.mxu0
        %v1286 = vadd.f32 %v1263, %v1285
        %1287 = vdwg.mxu0
        %1288 = vmatpush.msra.mxu0 %v1241
        %1289 = vmatpush.msra.mxu0 %v1240
        %1290 = vmatpush.msra.mxu0 %v1239
        %1291 = vmatpush.msra.mxu0 %v1238
        %1292 = vmatpush.msra.mxu0 %v1237
        %1293 = vmatpush.msra.mxu0 %v1236
        %1294 = vmatpush.msra.mxu0 %v1235
        %1295 = vmatpush.msra.mxu0 %v1234
        %1296 = vmatpush.msra.mxu0 %v1233
        %1297 = vmatpush.msra.mxu0 %v1232
        %1298 = vmatpush.msra.mxu0 %v1231
        %1299 = vmatpush.msra.mxu0 %v1230
        %1300 = vmatpush.msra.mxu0 %v1229
        %1301 = vmatpush.msra.mxu0 %v1228
        %1302 = vmatpush.msra.mxu0 %v1227
        %1303 = vmatpush.msra.mxu0 %v1226
        %1304 = vmatmul.f32.gmra.mxu0 %v689
        %v1305 = vpop.f32.mrf.mxu0
        %v1306 = vadd.f32 %v1283, %v1305
        %1307 = vmatmul.f32.gmra.mxu0 %v692
        %v1308 = vpop.f32.mrf.mxu0
        %v1309 = vadd.f32 %v1286, %v1308
        %1310 = vdwg.mxu0
        %s1311 = scalar_lea.vmem %s4, 384
        %v1312 = vld [vmem:[%s1311] sm:$0xff]
        %v1313 = vld [vmem:[%s1311 + $0x8] sm:$0xff]
        %v1314 = vld [vmem:[%s1311 + $0x10] sm:$0xff]
        %v1315 = vld [vmem:[%s1311 + $0x18] sm:$0xff]
        %v1316 = vld [vmem:[%s1311 + $0x20] sm:$0xff]
        %v1317 = vld [vmem:[%s1311 + $0x28] sm:$0xff]
        %v1318 = vld [vmem:[%s1311 + $0x30] sm:$0xff]
        %v1319 = vld [vmem:[%s1311 + $0x38] sm:$0xff]
        %v1320 = vld [vmem:[%s1311 + $0x40] sm:$0xff]
        %v1321 = vld [vmem:[%s1311 + $0x48] sm:$0xff]
        %v1322 = vld [vmem:[%s1311 + $0x50] sm:$0xff]
        %v1323 = vld [vmem:[%s1311 + $0x58] sm:$0xff]
        %v1324 = vld [vmem:[%s1311 + $0x60] sm:$0xff]
        %v1325 = vld [vmem:[%s1311 + $0x68] sm:$0xff]
        %v1326 = vld [vmem:[%s1311 + $0x70] sm:$0xff]
        %v1327 = vld [vmem:[%s1311 + $0x78] sm:$0xff]
        %v1328 = vld [vmem:[%s1311 + $0x80] sm:$0xff]
        %v1329 = vld [vmem:[%s1311 + $0x88] sm:$0xff]
        %v1330 = vld [vmem:[%s1311 + $0x90] sm:$0xff]
        %v1331 = vld [vmem:[%s1311 + $0x98] sm:$0xff]
        %v1332 = vld [vmem:[%s1311 + $0xa0] sm:$0xff]
        %v1333 = vld [vmem:[%s1311 + $0xa8] sm:$0xff]
        %v1334 = vld [vmem:[%s1311 + $0xb0] sm:$0xff]
        %v1335 = vld [vmem:[%s1311 + $0xb8] sm:$0xff]
        %v1336 = vld [vmem:[%s1311 + $0xc0] sm:$0xff]
        %v1337 = vld [vmem:[%s1311 + $0xc8] sm:$0xff]
        %v1338 = vld [vmem:[%s1311 + $0xd0] sm:$0xff]
        %v1339 = vld [vmem:[%s1311 + $0xd8] sm:$0xff]
        %v1340 = vld [vmem:[%s1311 + $0xe0] sm:$0xff]
        %v1341 = vld [vmem:[%s1311 + $0xe8] sm:$0xff]
        %v1342 = vld [vmem:[%s1311 + $0xf0] sm:$0xff]
        %v1343 = vld [vmem:[%s1311 + $0xf8] sm:$0xff]
        %v1344 = vld [vmem:[%s1311 + $0x100] sm:$0xff]
        %v1345 = vld [vmem:[%s1311 + $0x108] sm:$0xff]
        %v1346 = vld [vmem:[%s1311 + $0x110] sm:$0xff]
        %v1347 = vld [vmem:[%s1311 + $0x118] sm:$0xff]
        %v1348 = vld [vmem:[%s1311 + $0x120] sm:$0xff]
        %v1349 = vld [vmem:[%s1311 + $0x128] sm:$0xff]
        %v1350 = vld [vmem:[%s1311 + $0x130] sm:$0xff]
        %v1351 = vld [vmem:[%s1311 + $0x138] sm:$0xff]
        %v1352 = vld [vmem:[%s1311 + $0x140] sm:$0xff]
        %v1353 = vld [vmem:[%s1311 + $0x148] sm:$0xff]
        %v1354 = vld [vmem:[%s1311 + $0x150] sm:$0xff]
        %v1355 = vld [vmem:[%s1311 + $0x158] sm:$0xff]
        %v1356 = vld [vmem:[%s1311 + $0x160] sm:$0xff]
        %v1357 = vld [vmem:[%s1311 + $0x168] sm:$0xff]
        %v1358 = vld [vmem:[%s1311 + $0x170] sm:$0xff]
        %v1359 = vld [vmem:[%s1311 + $0x178] sm:$0xff]
        %1360 = vmatpush.msra.mxu0 %v1327
        %1361 = vmatpush.msra.mxu0 %v1326
        %1362 = vmatpush.msra.mxu0 %v1325
        %1363 = vmatpush.msra.mxu0 %v1324
        %1364 = vmatpush.msra.mxu0 %v1323
        %1365 = vmatpush.msra.mxu0 %v1322
        %1366 = vmatpush.msra.mxu0 %v1321
        %1367 = vmatpush.msra.mxu0 %v1320
        %1368 = vmatpush.msra.mxu0 %v1319
        %1369 = vmatpush.msra.mxu0 %v1318
        %1370 = vmatpush.msra.mxu0 %v1317
        %1371 = vmatpush.msra.mxu0 %v1316
        %1372 = vmatpush.msra.mxu0 %v1315
        %1373 = vmatpush.msra.mxu0 %v1314
        %1374 = vmatpush.msra.mxu0 %v1313
        %1375 = vmatpush.msra.mxu0 %v1312
        %1376 = vmatmul.f32.gmra.mxu0 %v687
        %v1377 = vpop.f32.mrf.mxu0
        %v1378 = vadd.f32 0.0, %v1377
        %1379 = vmatmul.f32.gmra.mxu0 %v690
        %v1380 = vpop.f32.mrf.mxu0
        %v1381 = vadd.f32 0.0, %v1380
        %1382 = vdwg.mxu0
        %1383 = vmatpush.msra.mxu0 %v1343
        %1384 = vmatpush.msra.mxu0 %v1342
        %1385 = vmatpush.msra.mxu0 %v1341
        %1386 = vmatpush.msra.mxu0 %v1340
        %1387 = vmatpush.msra.mxu0 %v1339
        %1388 = vmatpush.msra.mxu0 %v1338
        %1389 = vmatpush.msra.mxu0 %v1337
        %1390 = vmatpush.msra.mxu0 %v1336
        %1391 = vmatpush.msra.mxu0 %v1335
        %1392 = vmatpush.msra.mxu0 %v1334
        %1393 = vmatpush.msra.mxu0 %v1333
        %1394 = vmatpush.msra.mxu0 %v1332
        %1395 = vmatpush.msra.mxu0 %v1331
        %1396 = vmatpush.msra.mxu0 %v1330
        %1397 = vmatpush.msra.mxu0 %v1329
        %1398 = vmatpush.msra.mxu0 %v1328
        %1399 = vmatmul.f32.gmra.mxu0 %v688
        %v1400 = vpop.f32.mrf.mxu0
        %v1401 = vadd.f32 %v1378, %v1400
        %1402 = vmatmul.f32.gmra.mxu0 %v691
        %v1403 = vpop.f32.mrf.mxu0
        %v1404 = vadd.f32 %v1381, %v1403
        %1405 = vdwg.mxu0
        %1406 = vmatpush.msra.mxu0 %v1359
        %1407 = vmatpush.msra.mxu0 %v1358
        %1408 = vmatpush.msra.mxu0 %v1357
        %1409 = vmatpush.msra.mxu0 %v1356
        %1410 = vmatpush.msra.mxu0 %v1355
        %1411 = vmatpush.msra.mxu0 %v1354
        %1412 = vmatpush.msra.mxu0 %v1353
        %1413 = vmatpush.msra.mxu0 %v1352
        %1414 = vmatpush.msra.mxu0 %v1351
        %1415 = vmatpush.msra.mxu0 %v1350
        %1416 = vmatpush.msra.mxu0 %v1349
        %1417 = vmatpush.msra.mxu0 %v1348
        %1418 = vmatpush.msra.mxu0 %v1347
        %1419 = vmatpush.msra.mxu0 %v1346
        %1420 = vmatpush.msra.mxu0 %v1345
        %1421 = vmatpush.msra.mxu0 %v1344
        %1422 = vmatmul.f32.gmra.mxu0 %v689
        %v1423 = vpop.f32.mrf.mxu0
        %v1424 = vadd.f32 %v1401, %v1423
        %1425 = vmatmul.f32.gmra.mxu0 %v692
        %v1426 = vpop.f32.mrf.mxu0
        %v1427 = vadd.f32 %v1404, %v1426
        %1428 = vdwg.mxu0
        %s1429 = scalar_lea.vmem %s5, 384
        %v1430 = vld [vmem:[%s1429] sm:$0xff]
        %v1431 = vld [vmem:[%s1429 + $0x8] sm:$0xff]
        %v1432 = vld [vmem:[%s1429 + $0x10] sm:$0xff]
        %v1433 = vld [vmem:[%s1429 + $0x18] sm:$0xff]
        %v1434 = vld [vmem:[%s1429 + $0x20] sm:$0xff]
        %v1435 = vld [vmem:[%s1429 + $0x28] sm:$0xff]
        %v1436 = vld [vmem:[%s1429 + $0x30] sm:$0xff]
        %v1437 = vld [vmem:[%s1429 + $0x38] sm:$0xff]
        %v1438 = vld [vmem:[%s1429 + $0x40] sm:$0xff]
        %v1439 = vld [vmem:[%s1429 + $0x48] sm:$0xff]
        %v1440 = vld [vmem:[%s1429 + $0x50] sm:$0xff]
        %v1441 = vld [vmem:[%s1429 + $0x58] sm:$0xff]
        %v1442 = vld [vmem:[%s1429 + $0x60] sm:$0xff]
        %v1443 = vld [vmem:[%s1429 + $0x68] sm:$0xff]
        %v1444 = vld [vmem:[%s1429 + $0x70] sm:$0xff]
        %v1445 = vld [vmem:[%s1429 + $0x78] sm:$0xff]
        %v1446 = vld [vmem:[%s1429 + $0x80] sm:$0xff]
        %v1447 = vld [vmem:[%s1429 + $0x88] sm:$0xff]
        %v1448 = vld [vmem:[%s1429 + $0x90] sm:$0xff]
        %v1449 = vld [vmem:[%s1429 + $0x98] sm:$0xff]
        %v1450 = vld [vmem:[%s1429 + $0xa0] sm:$0xff]
        %v1451 = vld [vmem:[%s1429 + $0xa8] sm:$0xff]
        %v1452 = vld [vmem:[%s1429 + $0xb0] sm:$0xff]
        %v1453 = vld [vmem:[%s1429 + $0xb8] sm:$0xff]
        %v1454 = vld [vmem:[%s1429 + $0xc0] sm:$0xff]
        %v1455 = vld [vmem:[%s1429 + $0xc8] sm:$0xff]
        %v1456 = vld [vmem:[%s1429 + $0xd0] sm:$0xff]
        %v1457 = vld [vmem:[%s1429 + $0xd8] sm:$0xff]
        %v1458 = vld [vmem:[%s1429 + $0xe0] sm:$0xff]
        %v1459 = vld [vmem:[%s1429 + $0xe8] sm:$0xff]
        %v1460 = vld [vmem:[%s1429 + $0xf0] sm:$0xff]
        %v1461 = vld [vmem:[%s1429 + $0xf8] sm:$0xff]
        %v1462 = vld [vmem:[%s1429 + $0x100] sm:$0xff]
        %v1463 = vld [vmem:[%s1429 + $0x108] sm:$0xff]
        %v1464 = vld [vmem:[%s1429 + $0x110] sm:$0xff]
        %v1465 = vld [vmem:[%s1429 + $0x118] sm:$0xff]
        %v1466 = vld [vmem:[%s1429 + $0x120] sm:$0xff]
        %v1467 = vld [vmem:[%s1429 + $0x128] sm:$0xff]
        %v1468 = vld [vmem:[%s1429 + $0x130] sm:$0xff]
        %v1469 = vld [vmem:[%s1429 + $0x138] sm:$0xff]
        %v1470 = vld [vmem:[%s1429 + $0x140] sm:$0xff]
        %v1471 = vld [vmem:[%s1429 + $0x148] sm:$0xff]
        %v1472 = vld [vmem:[%s1429 + $0x150] sm:$0xff]
        %v1473 = vld [vmem:[%s1429 + $0x158] sm:$0xff]
        %v1474 = vld [vmem:[%s1429 + $0x160] sm:$0xff]
        %v1475 = vld [vmem:[%s1429 + $0x168] sm:$0xff]
        %v1476 = vld [vmem:[%s1429 + $0x170] sm:$0xff]
        %v1477 = vld [vmem:[%s1429 + $0x178] sm:$0xff]
        %1478 = vmatpush.msra.mxu0 %v1445
        %1479 = vmatpush.msra.mxu0 %v1444
        %1480 = vmatpush.msra.mxu0 %v1443
        %1481 = vmatpush.msra.mxu0 %v1442
        %1482 = vmatpush.msra.mxu0 %v1441
        %1483 = vmatpush.msra.mxu0 %v1440
        %1484 = vmatpush.msra.mxu0 %v1439
        %1485 = vmatpush.msra.mxu0 %v1438
        %1486 = vmatpush.msra.mxu0 %v1437
        %1487 = vmatpush.msra.mxu0 %v1436
        %1488 = vmatpush.msra.mxu0 %v1435
        %1489 = vmatpush.msra.mxu0 %v1434
        %1490 = vmatpush.msra.mxu0 %v1433
        %1491 = vmatpush.msra.mxu0 %v1432
        %1492 = vmatpush.msra.mxu0 %v1431
        %1493 = vmatpush.msra.mxu0 %v1430
        %1494 = vmatmul.f32.gmra.mxu0 %v687
        %v1495 = vpop.f32.mrf.mxu0
        %v1496 = vadd.f32 0.0, %v1495
        %1497 = vmatmul.f32.gmra.mxu0 %v690
        %v1498 = vpop.f32.mrf.mxu0
        %v1499 = vadd.f32 0.0, %v1498
        %1500 = vdwg.mxu0
        %1501 = vmatpush.msra.mxu0 %v1461
        %1502 = vmatpush.msra.mxu0 %v1460
        %1503 = vmatpush.msra.mxu0 %v1459
        %1504 = vmatpush.msra.mxu0 %v1458
        %1505 = vmatpush.msra.mxu0 %v1457
        %1506 = vmatpush.msra.mxu0 %v1456
        %1507 = vmatpush.msra.mxu0 %v1455
        %1508 = vmatpush.msra.mxu0 %v1454
        %1509 = vmatpush.msra.mxu0 %v1453
        %1510 = vmatpush.msra.mxu0 %v1452
        %1511 = vmatpush.msra.mxu0 %v1451
        %1512 = vmatpush.msra.mxu0 %v1450
        %1513 = vmatpush.msra.mxu0 %v1449
        %1514 = vmatpush.msra.mxu0 %v1448
        %1515 = vmatpush.msra.mxu0 %v1447
        %1516 = vmatpush.msra.mxu0 %v1446
        %1517 = vmatmul.f32.gmra.mxu0 %v688
        %v1518 = vpop.f32.mrf.mxu0
        %v1519 = vadd.f32 %v1496, %v1518
        %1520 = vmatmul.f32.gmra.mxu0 %v691
        %v1521 = vpop.f32.mrf.mxu0
        %v1522 = vadd.f32 %v1499, %v1521
        %1523 = vdwg.mxu0
        %1524 = vmatpush.msra.mxu0 %v1477
        %1525 = vmatpush.msra.mxu0 %v1476
        %1526 = vmatpush.msra.mxu0 %v1475
        %1527 = vmatpush.msra.mxu0 %v1474
        %1528 = vmatpush.msra.mxu0 %v1473
        %1529 = vmatpush.msra.mxu0 %v1472
        %1530 = vmatpush.msra.mxu0 %v1471
        %1531 = vmatpush.msra.mxu0 %v1470
        %1532 = vmatpush.msra.mxu0 %v1469
        %1533 = vmatpush.msra.mxu0 %v1468
        %1534 = vmatpush.msra.mxu0 %v1467
        %1535 = vmatpush.msra.mxu0 %v1466
        %1536 = vmatpush.msra.mxu0 %v1465
        %1537 = vmatpush.msra.mxu0 %v1464
        %1538 = vmatpush.msra.mxu0 %v1463
        %1539 = vmatpush.msra.mxu0 %v1462
        %1540 = vmatmul.f32.gmra.mxu0 %v689
        %v1541 = vpop.f32.mrf.mxu0
        %v1542 = vadd.f32 %v1519, %v1541
        %1543 = vmatmul.f32.gmra.mxu0 %v692
        %v1544 = vpop.f32.mrf.mxu0
        %v1545 = vadd.f32 %v1522, %v1544
        %1546 = vdwg.mxu0
        %v1548 = vsel %vm1051, %v1306, 0
        %v1551 = vsel %vm1051, %v1309, 0
        %v1554 = vsel %vm1051, %v1424, 0
        %v1557 = vsel %vm1051, %v1427, 0
        %1559 = vmatpush.xpose.msra.mxu0 0.0
        %1560 = vmatpush.xpose.msra.mxu0 0.0
        %1561 = vmatpush.xpose.msra.mxu0 0.0
        %1562 = vmatpush.xpose.msra.mxu0 0.0
        %1563 = vmatpush.xpose.msra.mxu0 0.0
        %1564 = vmatpush.xpose.msra.mxu0 0.0
        %1565 = vmatpush.xpose.msra.mxu0 0.0
        %1566 = vmatpush.xpose.msra.mxu0 0.0
        %1567 = vmatpush.xpose.msra.mxu0 0.0
        %1568 = vmatpush.xpose.msra.mxu0 0.0
        %1569 = vmatpush.xpose.msra.mxu0 0.0
        %1570 = vmatpush.xpose.msra.mxu0 0.0
        %1571 = vmatpush.xpose.msra.mxu0 0.0
        %1572 = vmatpush.xpose.msra.mxu0 0.0
        %1573 = vmatpush.xpose.msra.mxu0 %v1557
        %1574 = vmatpush.xpose.msra.mxu0 %v1554
        %1575 = vmatmul.f32.gmra.mxu0 %v1548
        %v1576 = vpop.f32.mrf.mxu0
        %v1577 = vadd.f32 0.0, %v1576
        %1578 = vmatmul.f32.gmra.mxu0 %v1551
        %v1579 = vpop.f32.mrf.mxu0
        %v1580 = vadd.f32 0.0, %v1579
        %1581 = vdwg.mxu0
        %v1582 = vmul.f32 %v1577, 0.05103104
        %v1583 = vmul.f32 %v1580, 0.05103104
        %v1584 = vsel %vm698, %v1582, -inf
        %v1585 = vsel %vm699, %v1583, -inf
        %v1586 = vsel %vm1091, %v1584, -inf
        %1587 = vmax.xlane.f32.xlu0 %v1586
        %v1588 = vpop.xlane.xlu0 %1587
        %v1589 = vsel %vm1091, %v1585, -inf
        %1590 = vmax.xlane.f32.xlu0 %v1589
        %v1591 = vpop.xlane.xlu0 %1590
        %v1592 = vsub.f32 %v1584, %v1588
        %v1593 = vsub.f32 %v1585, %v1591
        %v1594 = vmul.f32 %v1592, 1.442695
        %v1595 = vpow.pop %v1594
        %v1596 = vmul.f32 %v1593, 1.442695
        %v1597 = vpow.pop %v1596
        %v1598 = vsel %vm1091, %v1595, 0.0
        %1599 = vadd.xlane.f32.xlu0 %v1598
        %v1600 = vpop.xlane.xlu0 %1599
        %v1601 = vsel %vm1091, %v1597, 0.0
        %1602 = vadd.xlane.f32.xlu0 %v1601
        %v1603 = vpop.xlane.xlu0 %1602
        %v1604 = vrcp.pop %v1600
        %v1605 = vmul.f32 %v1600, %v1604
        %v1606 = vsub.f32 1.0, %v1605
        %v1607 = vmul.f32 %v1604, %v1606
        %v1608 = vadd.f32 %v1604, %v1607
        %vm1609 = vweird.f32 %v1600
        %vm1610 = vweird.f32 %v1604
        %vm1611 = vmor %vm1609, %vm1610
        %v1612 = vsel %vm1611, %v1604, %v1608
        %v1613 = vand.u32 2147483647, %v1600
        %vm1614 = vcmp.eq.f32.partialorder %v1613, 8.507059e+37
        %v1615 = vand.u32 %v1600, 2147483648
        %v1616 = vor.u32 1.1754944e-38, %v1615
        %v1617 = vsel %vm1614, %v1616, %v1612
        %v1618 = vmul.f32 %v1595, %v1617
        %v1619 = vrcp.pop %v1603
        %v1620 = vmul.f32 %v1603, %v1619
        %v1621 = vsub.f32 1.0, %v1620
        %v1622 = vmul.f32 %v1619, %v1621
        %v1623 = vadd.f32 %v1619, %v1622
        %vm1624 = vweird.f32 %v1603
        %vm1625 = vweird.f32 %v1619
        %vm1626 = vmor %vm1624, %vm1625
        %v1627 = vsel %vm1626, %v1619, %v1623
        %v1628 = vand.u32 2147483647, %v1603
        %vm1629 = vcmp.eq.f32.partialorder %v1628, 8.507059e+37
        %v1630 = vand.u32 %v1603, 2147483648
        %v1631 = vor.u32 1.1754944e-38, %v1630
        %v1632 = vsel %vm1629, %v1631, %v1627
        %v1633 = vmul.f32 %v1597, %v1632
        %v1635 = vsel %vm1091, %v1618, 0
        %v1638 = vsel %vm1091, %v1633, 0
        %1640 = vmatpush.msra.mxu0 0.0
        %1641 = vmatpush.msra.mxu0 0.0
        %1642 = vmatpush.msra.mxu0 0.0
        %1643 = vmatpush.msra.mxu0 0.0
        %1644 = vmatpush.msra.mxu0 0.0
        %1645 = vmatpush.msra.mxu0 0.0
        %1646 = vmatpush.msra.mxu0 0.0
        %1647 = vmatpush.msra.mxu0 0.0
        %1648 = vmatpush.msra.mxu0 0.0
        %1649 = vmatpush.msra.mxu0 0.0
        %1650 = vmatpush.msra.mxu0 0.0
        %1651 = vmatpush.msra.mxu0 0.0
        %1652 = vmatpush.msra.mxu0 0.0
        %1653 = vmatpush.msra.mxu0 0.0
        %1654 = vmatpush.msra.mxu0 %v1545
        %1655 = vmatpush.msra.mxu0 %v1542
        %1656 = vmatmul.f32.gmra.mxu0 %v1635
        %v1657 = vpop.f32.mrf.mxu0
        %v1658 = vadd.f32 0.0, %v1657
        %1659 = vmatmul.f32.gmra.mxu0 %v1638
        %v1660 = vpop.f32.mrf.mxu0
        %v1661 = vadd.f32 0.0, %v1660
        %1662 = vdwg.mxu0
        %s1663 = scalar_lea.vmem [#allocation7], 192
        %v1664 = vld [vmem:[%s1663] sm:$0xff]
        %v1665 = vld [vmem:[%s1663 + $0x8] sm:$0xff]
        %v1666 = vld [vmem:[%s1663 + $0x10] sm:$0xff]
        %v1667 = vld [vmem:[%s1663 + $0x18] sm:$0xff]
        %v1668 = vld [vmem:[%s1663 + $0x20] sm:$0xff]
        %v1669 = vld [vmem:[%s1663 + $0x28] sm:$0xff]
        %v1670 = vld [vmem:[%s1663 + $0x30] sm:$0xff]
        %v1671 = vld [vmem:[%s1663 + $0x38] sm:$0xff]
        %v1672 = vld [vmem:[%s1663 + $0x40] sm:$0xff]
        %v1673 = vld [vmem:[%s1663 + $0x48] sm:$0xff]
        %v1674 = vld [vmem:[%s1663 + $0x50] sm:$0xff]
        %v1675 = vld [vmem:[%s1663 + $0x58] sm:$0xff]
        %v1676 = vld [vmem:[%s1663 + $0x60] sm:$0xff]
        %v1677 = vld [vmem:[%s1663 + $0x68] sm:$0xff]
        %v1678 = vld [vmem:[%s1663 + $0x70] sm:$0xff]
        %v1679 = vld [vmem:[%s1663 + $0x78] sm:$0xff]
        %v1680 = vld [vmem:[%s1663 + $0x80] sm:$0xff]
        %v1681 = vld [vmem:[%s1663 + $0x88] sm:$0xff]
        %v1682 = vld [vmem:[%s1663 + $0x90] sm:$0xff]
        %v1683 = vld [vmem:[%s1663 + $0x98] sm:$0xff]
        %v1684 = vld [vmem:[%s1663 + $0xa0] sm:$0xff]
        %v1685 = vld [vmem:[%s1663 + $0xa8] sm:$0xff]
        %v1686 = vld [vmem:[%s1663 + $0xb0] sm:$0xff]
        %v1687 = vld [vmem:[%s1663 + $0xb8] sm:$0xff]
        %v1689 = vsel %vm1051, %v1658, 0
        %v1692 = vsel %vm1051, %v1661, 0
        %1694 = vmatpush.msra.mxu0 0.0
        %1695 = vmatpush.msra.mxu0 0.0
        %1696 = vmatpush.msra.mxu0 0.0
        %1697 = vmatpush.msra.mxu0 0.0
        %1698 = vmatpush.msra.mxu0 0.0
        %1699 = vmatpush.msra.mxu0 0.0
        %1700 = vmatpush.msra.mxu0 0.0
        %1701 = vmatpush.msra.mxu0 0.0
        %1702 = vmatpush.msra.mxu0 %v1685
        %1703 = vmatpush.msra.mxu0 %v1682
        %1704 = vmatpush.msra.mxu0 %v1679
        %1705 = vmatpush.msra.mxu0 %v1676
        %1706 = vmatpush.msra.mxu0 %v1673
        %1707 = vmatpush.msra.mxu0 %v1670
        %1708 = vmatpush.msra.mxu0 %v1667
        %1709 = vmatpush.msra.mxu0 %v1664
        %1710 = vmatmul.f32.gmra.mxu0 %v1689
        %v1711 = vpop.f32.mrf.mxu0
        %v1712 = vadd.f32 0.0, %v1711
        %1713 = vmatmul.f32.gmra.mxu0 %v1692
        %v1714 = vpop.f32.mrf.mxu0
        %v1715 = vadd.f32 0.0, %v1714
        %1716 = vdwg.mxu0
        %1717 = vmatpush.msra.mxu0 0.0
        %1718 = vmatpush.msra.mxu0 0.0
        %1719 = vmatpush.msra.mxu0 0.0
        %1720 = vmatpush.msra.mxu0 0.0
        %1721 = vmatpush.msra.mxu0 0.0
        %1722 = vmatpush.msra.mxu0 0.0
        %1723 = vmatpush.msra.mxu0 0.0
        %1724 = vmatpush.msra.mxu0 0.0
        %1725 = vmatpush.msra.mxu0 %v1686
        %1726 = vmatpush.msra.mxu0 %v1683
        %1727 = vmatpush.msra.mxu0 %v1680
        %1728 = vmatpush.msra.mxu0 %v1677
        %1729 = vmatpush.msra.mxu0 %v1674
        %1730 = vmatpush.msra.mxu0 %v1671
        %1731 = vmatpush.msra.mxu0 %v1668
        %1732 = vmatpush.msra.mxu0 %v1665
        %1733 = vmatmul.f32.gmra.mxu0 %v1689
        %v1734 = vpop.f32.mrf.mxu0
        %v1735 = vadd.f32 0.0, %v1734
        %1736 = vmatmul.f32.gmra.mxu0 %v1692
        %v1737 = vpop.f32.mrf.mxu0
        %v1738 = vadd.f32 0.0, %v1737
        %1739 = vdwg.mxu0
        %1740 = vmatpush.msra.mxu0 0.0
        %1741 = vmatpush.msra.mxu0 0.0
        %1742 = vmatpush.msra.mxu0 0.0
        %1743 = vmatpush.msra.mxu0 0.0
        %1744 = vmatpush.msra.mxu0 0.0
        %1745 = vmatpush.msra.mxu0 0.0
        %1746 = vmatpush.msra.mxu0 0.0
        %1747 = vmatpush.msra.mxu0 0.0
        %1748 = vmatpush.msra.mxu0 %v1687
        %1749 = vmatpush.msra.mxu0 %v1684
        %1750 = vmatpush.msra.mxu0 %v1681
        %1751 = vmatpush.msra.mxu0 %v1678
        %1752 = vmatpush.msra.mxu0 %v1675
        %1753 = vmatpush.msra.mxu0 %v1672
        %1754 = vmatpush.msra.mxu0 %v1669
        %1755 = vmatpush.msra.mxu0 %v1666
        %1756 = vmatmul.f32.gmra.mxu0 %v1689
        %v1757 = vpop.f32.mrf.mxu0
        %v1758 = vadd.f32 0.0, %v1757
        %1759 = vmatmul.f32.gmra.mxu0 %v1692
        %v1760 = vpop.f32.mrf.mxu0
        %v1761 = vadd.f32 0.0, %v1760
        %1762 = vdwg.mxu0
        %v1764 = vsel %vm1051, %v1164, 0
        %v1767 = vsel %vm1051, %v1167, 0
        %1769 = vmatpush.msra.mxu0 0.0
        %1770 = vmatpush.msra.mxu0 0.0
        %1771 = vmatpush.msra.mxu0 0.0
        %1772 = vmatpush.msra.mxu0 0.0
        %1773 = vmatpush.msra.mxu0 0.0
        %1774 = vmatpush.msra.mxu0 0.0
        %1775 = vmatpush.msra.mxu0 0.0
        %1776 = vmatpush.msra.mxu0 0.0
        %1777 = vmatpush.msra.mxu0 %v1190
        %1778 = vmatpush.msra.mxu0 %v1187
        %1779 = vmatpush.msra.mxu0 %v1184
        %1780 = vmatpush.msra.mxu0 %v1181
        %1781 = vmatpush.msra.mxu0 %v1178
        %1782 = vmatpush.msra.mxu0 %v1175
        %1783 = vmatpush.msra.mxu0 %v1172
        %1784 = vmatpush.msra.mxu0 %v1169
        %1785 = vmatmul.f32.gmra.mxu0 %v1764
        %v1786 = vpop.f32.mrf.mxu0
        %v1787 = vadd.f32 %v1712, %v1786
        %1788 = vmatmul.f32.gmra.mxu0 %v1767
        %v1789 = vpop.f32.mrf.mxu0
        %v1790 = vadd.f32 %v1715, %v1789
        %1791 = vdwg.mxu0
        %1792 = vmatpush.msra.mxu0 0.0
        %1793 = vmatpush.msra.mxu0 0.0
        %1794 = vmatpush.msra.mxu0 0.0
        %1795 = vmatpush.msra.mxu0 0.0
        %1796 = vmatpush.msra.mxu0 0.0
        %1797 = vmatpush.msra.mxu0 0.0
        %1798 = vmatpush.msra.mxu0 0.0
        %1799 = vmatpush.msra.mxu0 0.0
        %1800 = vmatpush.msra.mxu0 %v1191
        %1801 = vmatpush.msra.mxu0 %v1188
        %1802 = vmatpush.msra.mxu0 %v1185
        %1803 = vmatpush.msra.mxu0 %v1182
        %1804 = vmatpush.msra.mxu0 %v1179
        %1805 = vmatpush.msra.mxu0 %v1176
        %1806 = vmatpush.msra.mxu0 %v1173
        %1807 = vmatpush.msra.mxu0 %v1170
        %1808 = vmatmul.f32.gmra.mxu0 %v1764
        %v1809 = vpop.f32.mrf.mxu0
        %v1810 = vadd.f32 %v1735, %v1809
        %1811 = vmatmul.f32.gmra.mxu0 %v1767
        %v1812 = vpop.f32.mrf.mxu0
        %v1813 = vadd.f32 %v1738, %v1812
        %1814 = vdwg.mxu0
        %1815 = vmatpush.msra.mxu0 0.0
        %1816 = vmatpush.msra.mxu0 0.0
        %1817 = vmatpush.msra.mxu0 0.0
        %1818 = vmatpush.msra.mxu0 0.0
        %1819 = vmatpush.msra.mxu0 0.0
        %1820 = vmatpush.msra.mxu0 0.0
        %1821 = vmatpush.msra.mxu0 0.0
        %1822 = vmatpush.msra.mxu0 0.0
        %1823 = vmatpush.msra.mxu0 %v1192
        %1824 = vmatpush.msra.mxu0 %v1189
        %1825 = vmatpush.msra.mxu0 %v1186
        %1826 = vmatpush.msra.mxu0 %v1183
        %1827 = vmatpush.msra.mxu0 %v1180
        %1828 = vmatpush.msra.mxu0 %v1177
        %1829 = vmatpush.msra.mxu0 %v1174
        %1830 = vmatpush.msra.mxu0 %v1171
        %1831 = vmatmul.f32.gmra.mxu0 %v1764
        %v1832 = vpop.f32.mrf.mxu0
        %v1833 = vadd.f32 %v1758, %v1832
        %1834 = vmatmul.f32.gmra.mxu0 %v1767
        %v1835 = vpop.f32.mrf.mxu0
        %v1836 = vadd.f32 %v1761, %v1835
        %1837 = vdwg.mxu0
        %s1838 = scalar_lea.vmem %s3, 768
        %v1839 = vld [vmem:[%s1838] sm:$0xff]
        %v1840 = vld [vmem:[%s1838 + $0x8] sm:$0xff]
        %v1841 = vld [vmem:[%s1838 + $0x10] sm:$0xff]
        %v1842 = vld [vmem:[%s1838 + $0x18] sm:$0xff]
        %v1843 = vld [vmem:[%s1838 + $0x20] sm:$0xff]
        %v1844 = vld [vmem:[%s1838 + $0x28] sm:$0xff]
        %v1845 = vld [vmem:[%s1838 + $0x30] sm:$0xff]
        %v1846 = vld [vmem:[%s1838 + $0x38] sm:$0xff]
        %v1847 = vld [vmem:[%s1838 + $0x40] sm:$0xff]
        %v1848 = vld [vmem:[%s1838 + $0x48] sm:$0xff]
        %v1849 = vld [vmem:[%s1838 + $0x50] sm:$0xff]
        %v1850 = vld [vmem:[%s1838 + $0x58] sm:$0xff]
        %v1851 = vld [vmem:[%s1838 + $0x60] sm:$0xff]
        %v1852 = vld [vmem:[%s1838 + $0x68] sm:$0xff]
        %v1853 = vld [vmem:[%s1838 + $0x70] sm:$0xff]
        %v1854 = vld [vmem:[%s1838 + $0x78] sm:$0xff]
        %v1855 = vld [vmem:[%s1838 + $0x80] sm:$0xff]
        %v1856 = vld [vmem:[%s1838 + $0x88] sm:$0xff]
        %v1857 = vld [vmem:[%s1838 + $0x90] sm:$0xff]
        %v1858 = vld [vmem:[%s1838 + $0x98] sm:$0xff]
        %v1859 = vld [vmem:[%s1838 + $0xa0] sm:$0xff]
        %v1860 = vld [vmem:[%s1838 + $0xa8] sm:$0xff]
        %v1861 = vld [vmem:[%s1838 + $0xb0] sm:$0xff]
        %v1862 = vld [vmem:[%s1838 + $0xb8] sm:$0xff]
        %v1863 = vld [vmem:[%s1838 + $0xc0] sm:$0xff]
        %v1864 = vld [vmem:[%s1838 + $0xc8] sm:$0xff]
        %v1865 = vld [vmem:[%s1838 + $0xd0] sm:$0xff]
        %v1866 = vld [vmem:[%s1838 + $0xd8] sm:$0xff]
        %v1867 = vld [vmem:[%s1838 + $0xe0] sm:$0xff]
        %v1868 = vld [vmem:[%s1838 + $0xe8] sm:$0xff]
        %v1869 = vld [vmem:[%s1838 + $0xf0] sm:$0xff]
        %v1870 = vld [vmem:[%s1838 + $0xf8] sm:$0xff]
        %v1871 = vld [vmem:[%s1838 + $0x100] sm:$0xff]
        %v1872 = vld [vmem:[%s1838 + $0x108] sm:$0xff]
        %v1873 = vld [vmem:[%s1838 + $0x110] sm:$0xff]
        %v1874 = vld [vmem:[%s1838 + $0x118] sm:$0xff]
        %v1875 = vld [vmem:[%s1838 + $0x120] sm:$0xff]
        %v1876 = vld [vmem:[%s1838 + $0x128] sm:$0xff]
        %v1877 = vld [vmem:[%s1838 + $0x130] sm:$0xff]
        %v1878 = vld [vmem:[%s1838 + $0x138] sm:$0xff]
        %v1879 = vld [vmem:[%s1838 + $0x140] sm:$0xff]
        %v1880 = vld [vmem:[%s1838 + $0x148] sm:$0xff]
        %v1881 = vld [vmem:[%s1838 + $0x150] sm:$0xff]
        %v1882 = vld [vmem:[%s1838 + $0x158] sm:$0xff]
        %v1883 = vld [vmem:[%s1838 + $0x160] sm:$0xff]
        %v1884 = vld [vmem:[%s1838 + $0x168] sm:$0xff]
        %v1885 = vld [vmem:[%s1838 + $0x170] sm:$0xff]
        %v1886 = vld [vmem:[%s1838 + $0x178] sm:$0xff]
        %1887 = vmatpush.msra.mxu0 %v1854
        %1888 = vmatpush.msra.mxu0 %v1853
        %1889 = vmatpush.msra.mxu0 %v1852
        %1890 = vmatpush.msra.mxu0 %v1851
        %1891 = vmatpush.msra.mxu0 %v1850
        %1892 = vmatpush.msra.mxu0 %v1849
        %1893 = vmatpush.msra.mxu0 %v1848
        %1894 = vmatpush.msra.mxu0 %v1847
        %1895 = vmatpush.msra.mxu0 %v1846
        %1896 = vmatpush.msra.mxu0 %v1845
        %1897 = vmatpush.msra.mxu0 %v1844
        %1898 = vmatpush.msra.mxu0 %v1843
        %1899 = vmatpush.msra.mxu0 %v1842
        %1900 = vmatpush.msra.mxu0 %v1841
        %1901 = vmatpush.msra.mxu0 %v1840
        %1902 = vmatpush.msra.mxu0 %v1839
        %1903 = vmatmul.f32.gmra.mxu0 %v687
        %v1904 = vpop.f32.mrf.mxu0
        %v1905 = vadd.f32 0.0, %v1904
        %1906 = vmatmul.f32.gmra.mxu0 %v690
        %v1907 = vpop.f32.mrf.mxu0
        %v1908 = vadd.f32 0.0, %v1907
        %1909 = vdwg.mxu0
        %1910 = vmatpush.msra.mxu0 %v1870
        %1911 = vmatpush.msra.mxu0 %v1869
        %1912 = vmatpush.msra.mxu0 %v1868
        %1913 = vmatpush.msra.mxu0 %v1867
        %1914 = vmatpush.msra.mxu0 %v1866
        %1915 = vmatpush.msra.mxu0 %v1865
        %1916 = vmatpush.msra.mxu0 %v1864
        %1917 = vmatpush.msra.mxu0 %v1863
        %1918 = vmatpush.msra.mxu0 %v1862
        %1919 = vmatpush.msra.mxu0 %v1861
        %1920 = vmatpush.msra.mxu0 %v1860
        %1921 = vmatpush.msra.mxu0 %v1859
        %1922 = vmatpush.msra.mxu0 %v1858
        %1923 = vmatpush.msra.mxu0 %v1857
        %1924 = vmatpush.msra.mxu0 %v1856
        %1925 = vmatpush.msra.mxu0 %v1855
        %1926 = vmatmul.f32.gmra.mxu0 %v688
        %v1927 = vpop.f32.mrf.mxu0
        %v1928 = vadd.f32 %v1905, %v1927
        %1929 = vmatmul.f32.gmra.mxu0 %v691
        %v1930 = vpop.f32.mrf.mxu0
        %v1931 = vadd.f32 %v1908, %v1930
        %1932 = vdwg.mxu0
        %1933 = vmatpush.msra.mxu0 %v1886
        %1934 = vmatpush.msra.mxu0 %v1885
        %1935 = vmatpush.msra.mxu0 %v1884
        %1936 = vmatpush.msra.mxu0 %v1883
        %1937 = vmatpush.msra.mxu0 %v1882
        %1938 = vmatpush.msra.mxu0 %v1881
        %1939 = vmatpush.msra.mxu0 %v1880
        %1940 = vmatpush.msra.mxu0 %v1879
        %1941 = vmatpush.msra.mxu0 %v1878
        %1942 = vmatpush.msra.mxu0 %v1877
        %1943 = vmatpush.msra.mxu0 %v1876
        %1944 = vmatpush.msra.mxu0 %v1875
        %1945 = vmatpush.msra.mxu0 %v1874
        %1946 = vmatpush.msra.mxu0 %v1873
        %1947 = vmatpush.msra.mxu0 %v1872
        %1948 = vmatpush.msra.mxu0 %v1871
        %1949 = vmatmul.f32.gmra.mxu0 %v689
        %v1950 = vpop.f32.mrf.mxu0
        %v1951 = vadd.f32 %v1928, %v1950
        %1952 = vmatmul.f32.gmra.mxu0 %v692
        %v1953 = vpop.f32.mrf.mxu0
        %v1954 = vadd.f32 %v1931, %v1953
        %1955 = vdwg.mxu0
        %s1956 = scalar_lea.vmem %s4, 768
        %v1957 = vld [vmem:[%s1956] sm:$0xff]
        %v1958 = vld [vmem:[%s1956 + $0x8] sm:$0xff]
        %v1959 = vld [vmem:[%s1956 + $0x10] sm:$0xff]
        %v1960 = vld [vmem:[%s1956 + $0x18] sm:$0xff]
        %v1961 = vld [vmem:[%s1956 + $0x20] sm:$0xff]
        %v1962 = vld [vmem:[%s1956 + $0x28] sm:$0xff]
        %v1963 = vld [vmem:[%s1956 + $0x30] sm:$0xff]
        %v1964 = vld [vmem:[%s1956 + $0x38] sm:$0xff]
        %v1965 = vld [vmem:[%s1956 + $0x40] sm:$0xff]
        %v1966 = vld [vmem:[%s1956 + $0x48] sm:$0xff]
        %v1967 = vld [vmem:[%s1956 + $0x50] sm:$0xff]
        %v1968 = vld [vmem:[%s1956 + $0x58] sm:$0xff]
        %v1969 = vld [vmem:[%s1956 + $0x60] sm:$0xff]
        %v1970 = vld [vmem:[%s1956 + $0x68] sm:$0xff]
        %v1971 = vld [vmem:[%s1956 + $0x70] sm:$0xff]
        %v1972 = vld [vmem:[%s1956 + $0x78] sm:$0xff]
        %v1973 = vld [vmem:[%s1956 + $0x80] sm:$0xff]
        %v1974 = vld [vmem:[%s1956 + $0x88] sm:$0xff]
        %v1975 = vld [vmem:[%s1956 + $0x90] sm:$0xff]
        %v1976 = vld [vmem:[%s1956 + $0x98] sm:$0xff]
        %v1977 = vld [vmem:[%s1956 + $0xa0] sm:$0xff]
        %v1978 = vld [vmem:[%s1956 + $0xa8] sm:$0xff]
        %v1979 = vld [vmem:[%s1956 + $0xb0] sm:$0xff]
        %v1980 = vld [vmem:[%s1956 + $0xb8] sm:$0xff]
        %v1981 = vld [vmem:[%s1956 + $0xc0] sm:$0xff]
        %v1982 = vld [vmem:[%s1956 + $0xc8] sm:$0xff]
        %v1983 = vld [vmem:[%s1956 + $0xd0] sm:$0xff]
        %v1984 = vld [vmem:[%s1956 + $0xd8] sm:$0xff]
        %v1985 = vld [vmem:[%s1956 + $0xe0] sm:$0xff]
        %v1986 = vld [vmem:[%s1956 + $0xe8] sm:$0xff]
        %v1987 = vld [vmem:[%s1956 + $0xf0] sm:$0xff]
        %v1988 = vld [vmem:[%s1956 + $0xf8] sm:$0xff]
        %v1989 = vld [vmem:[%s1956 + $0x100] sm:$0xff]
        %v1990 = vld [vmem:[%s1956 + $0x108] sm:$0xff]
        %v1991 = vld [vmem:[%s1956 + $0x110] sm:$0xff]
        %v1992 = vld [vmem:[%s1956 + $0x118] sm:$0xff]
        %v1993 = vld [vmem:[%s1956 + $0x120] sm:$0xff]
        %v1994 = vld [vmem:[%s1956 + $0x128] sm:$0xff]
        %v1995 = vld [vmem:[%s1956 + $0x130] sm:$0xff]
        %v1996 = vld [vmem:[%s1956 + $0x138] sm:$0xff]
        %v1997 = vld [vmem:[%s1956 + $0x140] sm:$0xff]
        %v1998 = vld [vmem:[%s1956 + $0x148] sm:$0xff]
        %v1999 = vld [vmem:[%s1956 + $0x150] sm:$0xff]
        %v2000 = vld [vmem:[%s1956 + $0x158] sm:$0xff]
        %v2001 = vld [vmem:[%s1956 + $0x160] sm:$0xff]
        %v2002 = vld [vmem:[%s1956 + $0x168] sm:$0xff]
        %v2003 = vld [vmem:[%s1956 + $0x170] sm:$0xff]
        %v2004 = vld [vmem:[%s1956 + $0x178] sm:$0xff]
        %2005 = vmatpush.msra.mxu0 %v1972
        %2006 = vmatpush.msra.mxu0 %v1971
        %2007 = vmatpush.msra.mxu0 %v1970
        %2008 = vmatpush.msra.mxu0 %v1969
        %2009 = vmatpush.msra.mxu0 %v1968
        %2010 = vmatpush.msra.mxu0 %v1967
        %2011 = vmatpush.msra.mxu0 %v1966
        %2012 = vmatpush.msra.mxu0 %v1965
        %2013 = vmatpush.msra.mxu0 %v1964
        %2014 = vmatpush.msra.mxu0 %v1963
        %2015 = vmatpush.msra.mxu0 %v1962
        %2016 = vmatpush.msra.mxu0 %v1961
        %2017 = vmatpush.msra.mxu0 %v1960
        %2018 = vmatpush.msra.mxu0 %v1959
        %2019 = vmatpush.msra.mxu0 %v1958
        %2020 = vmatpush.msra.mxu0 %v1957
        %2021 = vmatmul.f32.gmra.mxu0 %v687
        %v2022 = vpop.f32.mrf.mxu0
        %v2023 = vadd.f32 0.0, %v2022
        %2024 = vmatmul.f32.gmra.mxu0 %v690
        %v2025 = vpop.f32.mrf.mxu0
        %v2026 = vadd.f32 0.0, %v2025
        %2027 = vdwg.mxu0
        %2028 = vmatpush.msra.mxu0 %v1988
        %2029 = vmatpush.msra.mxu0 %v1987
        %2030 = vmatpush.msra.mxu0 %v1986
        %2031 = vmatpush.msra.mxu0 %v1985
        %2032 = vmatpush.msra.mxu0 %v1984
        %2033 = vmatpush.msra.mxu0 %v1983
        %2034 = vmatpush.msra.mxu0 %v1982
        %2035 = vmatpush.msra.mxu0 %v1981
        %2036 = vmatpush.msra.mxu0 %v1980
        %2037 = vmatpush.msra.mxu0 %v1979
        %2038 = vmatpush.msra.mxu0 %v1978
        %2039 = vmatpush.msra.mxu0 %v1977
        %2040 = vmatpush.msra.mxu0 %v1976
        %2041 = vmatpush.msra.mxu0 %v1975
        %2042 = vmatpush.msra.mxu0 %v1974
        %2043 = vmatpush.msra.mxu0 %v1973
        %2044 = vmatmul.f32.gmra.mxu0 %v688
        %v2045 = vpop.f32.mrf.mxu0
        %v2046 = vadd.f32 %v2023, %v2045
        %2047 = vmatmul.f32.gmra.mxu0 %v691
        %v2048 = vpop.f32.mrf.mxu0
        %v2049 = vadd.f32 %v2026, %v2048
        %2050 = vdwg.mxu0
        %2051 = vmatpush.msra.mxu0 %v2004
        %2052 = vmatpush.msra.mxu0 %v2003
        %2053 = vmatpush.msra.mxu0 %v2002
        %2054 = vmatpush.msra.mxu0 %v2001
        %2055 = vmatpush.msra.mxu0 %v2000
        %2056 = vmatpush.msra.mxu0 %v1999
        %2057 = vmatpush.msra.mxu0 %v1998
        %2058 = vmatpush.msra.mxu0 %v1997
        %2059 = vmatpush.msra.mxu0 %v1996
        %2060 = vmatpush.msra.mxu0 %v1995
        %2061 = vmatpush.msra.mxu0 %v1994
        %2062 = vmatpush.msra.mxu0 %v1993
        %2063 = vmatpush.msra.mxu0 %v1992
        %2064 = vmatpush.msra.mxu0 %v1991
        %2065 = vmatpush.msra.mxu0 %v1990
        %2066 = vmatpush.msra.mxu0 %v1989
        %2067 = vmatmul.f32.gmra.mxu0 %v689
        %v2068 = vpop.f32.mrf.mxu0
        %v2069 = vadd.f32 %v2046, %v2068
        %2070 = vmatmul.f32.gmra.mxu0 %v692
        %v2071 = vpop.f32.mrf.mxu0
        %v2072 = vadd.f32 %v2049, %v2071
        %2073 = vdwg.mxu0
        %s2074 = scalar_lea.vmem %s5, 768
        %v2075 = vld [vmem:[%s2074] sm:$0xff]
        %v2076 = vld [vmem:[%s2074 + $0x8] sm:$0xff]
        %v2077 = vld [vmem:[%s2074 + $0x10] sm:$0xff]
        %v2078 = vld [vmem:[%s2074 + $0x18] sm:$0xff]
        %v2079 = vld [vmem:[%s2074 + $0x20] sm:$0xff]
        %v2080 = vld [vmem:[%s2074 + $0x28] sm:$0xff]
        %v2081 = vld [vmem:[%s2074 + $0x30] sm:$0xff]
        %v2082 = vld [vmem:[%s2074 + $0x38] sm:$0xff]
        %v2083 = vld [vmem:[%s2074 + $0x40] sm:$0xff]
        %v2084 = vld [vmem:[%s2074 + $0x48] sm:$0xff]
        %v2085 = vld [vmem:[%s2074 + $0x50] sm:$0xff]
        %v2086 = vld [vmem:[%s2074 + $0x58] sm:$0xff]
        %v2087 = vld [vmem:[%s2074 + $0x60] sm:$0xff]
        %v2088 = vld [vmem:[%s2074 + $0x68] sm:$0xff]
        %v2089 = vld [vmem:[%s2074 + $0x70] sm:$0xff]
        %v2090 = vld [vmem:[%s2074 + $0x78] sm:$0xff]
        %v2091 = vld [vmem:[%s2074 + $0x80] sm:$0xff]
        %v2092 = vld [vmem:[%s2074 + $0x88] sm:$0xff]
        %v2093 = vld [vmem:[%s2074 + $0x90] sm:$0xff]
        %v2094 = vld [vmem:[%s2074 + $0x98] sm:$0xff]
        %v2095 = vld [vmem:[%s2074 + $0xa0] sm:$0xff]
        %v2096 = vld [vmem:[%s2074 + $0xa8] sm:$0xff]
        %v2097 = vld [vmem:[%s2074 + $0xb0] sm:$0xff]
        %v2098 = vld [vmem:[%s2074 + $0xb8] sm:$0xff]
        %v2099 = vld [vmem:[%s2074 + $0xc0] sm:$0xff]
        %v2100 = vld [vmem:[%s2074 + $0xc8] sm:$0xff]
        %v2101 = vld [vmem:[%s2074 + $0xd0] sm:$0xff]
        %v2102 = vld [vmem:[%s2074 + $0xd8] sm:$0xff]
        %v2103 = vld [vmem:[%s2074 + $0xe0] sm:$0xff]
        %v2104 = vld [vmem:[%s2074 + $0xe8] sm:$0xff]
        %v2105 = vld [vmem:[%s2074 + $0xf0] sm:$0xff]
        %v2106 = vld [vmem:[%s2074 + $0xf8] sm:$0xff]
        %v2107 = vld [vmem:[%s2074 + $0x100] sm:$0xff]
        %v2108 = vld [vmem:[%s2074 + $0x108] sm:$0xff]
        %v2109 = vld [vmem:[%s2074 + $0x110] sm:$0xff]
        %v2110 = vld [vmem:[%s2074 + $0x118] sm:$0xff]
        %v2111 = vld [vmem:[%s2074 + $0x120] sm:$0xff]
        %v2112 = vld [vmem:[%s2074 + $0x128] sm:$0xff]
        %v2113 = vld [vmem:[%s2074 + $0x130] sm:$0xff]
        %v2114 = vld [vmem:[%s2074 + $0x138] sm:$0xff]
        %v2115 = vld [vmem:[%s2074 + $0x140] sm:$0xff]
        %v2116 = vld [vmem:[%s2074 + $0x148] sm:$0xff]
        %v2117 = vld [vmem:[%s2074 + $0x150] sm:$0xff]
        %v2118 = vld [vmem:[%s2074 + $0x158] sm:$0xff]
        %v2119 = vld [vmem:[%s2074 + $0x160] sm:$0xff]
        %v2120 = vld [vmem:[%s2074 + $0x168] sm:$0xff]
        %v2121 = vld [vmem:[%s2074 + $0x170] sm:$0xff]
        %v2122 = vld [vmem:[%s2074 + $0x178] sm:$0xff]
        %2123 = vmatpush.msra.mxu0 %v2090
        %2124 = vmatpush.msra.mxu0 %v2089
        %2125 = vmatpush.msra.mxu0 %v2088
        %2126 = vmatpush.msra.mxu0 %v2087
        %2127 = vmatpush.msra.mxu0 %v2086
        %2128 = vmatpush.msra.mxu0 %v2085
        %2129 = vmatpush.msra.mxu0 %v2084
        %2130 = vmatpush.msra.mxu0 %v2083
        %2131 = vmatpush.msra.mxu0 %v2082
        %2132 = vmatpush.msra.mxu0 %v2081
        %2133 = vmatpush.msra.mxu0 %v2080
        %2134 = vmatpush.msra.mxu0 %v2079
        %2135 = vmatpush.msra.mxu0 %v2078
        %2136 = vmatpush.msra.mxu0 %v2077
        %2137 = vmatpush.msra.mxu0 %v2076
        %2138 = vmatpush.msra.mxu0 %v2075
        %2139 = vmatmul.f32.gmra.mxu0 %v687
        %v2140 = vpop.f32.mrf.mxu0
        %v2141 = vadd.f32 0.0, %v2140
        %2142 = vmatmul.f32.gmra.mxu0 %v690
        %v2143 = vpop.f32.mrf.mxu0
        %v2144 = vadd.f32 0.0, %v2143
        %2145 = vdwg.mxu0
        %2146 = vmatpush.msra.mxu0 %v2106
        %2147 = vmatpush.msra.mxu0 %v2105
        %2148 = vmatpush.msra.mxu0 %v2104
        %2149 = vmatpush.msra.mxu0 %v2103
        %2150 = vmatpush.msra.mxu0 %v2102
        %2151 = vmatpush.msra.mxu0 %v2101
        %2152 = vmatpush.msra.mxu0 %v2100
        %2153 = vmatpush.msra.mxu0 %v2099
        %2154 = vmatpush.msra.mxu0 %v2098
        %2155 = vmatpush.msra.mxu0 %v2097
        %2156 = vmatpush.msra.mxu0 %v2096
        %2157 = vmatpush.msra.mxu0 %v2095
        %2158 = vmatpush.msra.mxu0 %v2094
        %2159 = vmatpush.msra.mxu0 %v2093
        %2160 = vmatpush.msra.mxu0 %v2092
        %2161 = vmatpush.msra.mxu0 %v2091
        %2162 = vmatmul.f32.gmra.mxu0 %v688
        %v2163 = vpop.f32.mrf.mxu0
        %v2164 = vadd.f32 %v2141, %v2163
        %2165 = vmatmul.f32.gmra.mxu0 %v691
        %v2166 = vpop.f32.mrf.mxu0
        %v2167 = vadd.f32 %v2144, %v2166
        %2168 = vdwg.mxu0
        %2169 = vmatpush.msra.mxu0 %v2122
        %2170 = vmatpush.msra.mxu0 %v2121
        %2171 = vmatpush.msra.mxu0 %v2120
        %2172 = vmatpush.msra.mxu0 %v2119
        %2173 = vmatpush.msra.mxu0 %v2118
        %2174 = vmatpush.msra.mxu0 %v2117
        %2175 = vmatpush.msra.mxu0 %v2116
        %2176 = vmatpush.msra.mxu0 %v2115
        %2177 = vmatpush.msra.mxu0 %v2114
        %2178 = vmatpush.msra.mxu0 %v2113
        %2179 = vmatpush.msra.mxu0 %v2112
        %2180 = vmatpush.msra.mxu0 %v2111
        %2181 = vmatpush.msra.mxu0 %v2110
        %2182 = vmatpush.msra.mxu0 %v2109
        %2183 = vmatpush.msra.mxu0 %v2108
        %2184 = vmatpush.msra.mxu0 %v2107
        %2185 = vmatmul.f32.gmra.mxu0 %v689
        %v2186 = vpop.f32.mrf.mxu0
        %v2187 = vadd.f32 %v2164, %v2186
        %2188 = vmatmul.f32.gmra.mxu0 %v692
        %v2189 = vpop.f32.mrf.mxu0
        %v2190 = vadd.f32 %v2167, %v2189
        %2191 = vdwg.mxu0
        %v2193 = vsel %vm1051, %v1951, 0
        %v2196 = vsel %vm1051, %v1954, 0
        %v2199 = vsel %vm1051, %v2069, 0
        %v2202 = vsel %vm1051, %v2072, 0
        %2204 = vmatpush.xpose.msra.mxu0 0.0
        %2205 = vmatpush.xpose.msra.mxu0 0.0
        %2206 = vmatpush.xpose.msra.mxu0 0.0
        %2207 = vmatpush.xpose.msra.mxu0 0.0
        %2208 = vmatpush.xpose.msra.mxu0 0.0
        %2209 = vmatpush.xpose.msra.mxu0 0.0
        %2210 = vmatpush.xpose.msra.mxu0 0.0
        %2211 = vmatpush.xpose.msra.mxu0 0.0
        %2212 = vmatpush.xpose.msra.mxu0 0.0
        %2213 = vmatpush.xpose.msra.mxu0 0.0
        %2214 = vmatpush.xpose.msra.mxu0 0.0
        %2215 = vmatpush.xpose.msra.mxu0 0.0
        %2216 = vmatpush.xpose.msra.mxu0 0.0
        %2217 = vmatpush.xpose.msra.mxu0 0.0
        %2218 = vmatpush.xpose.msra.mxu0 %v2202
        %2219 = vmatpush.xpose.msra.mxu0 %v2199
        %2220 = vmatmul.f32.gmra.mxu0 %v2193
        %v2221 = vpop.f32.mrf.mxu0
        %v2222 = vadd.f32 0.0, %v2221
        %2223 = vmatmul.f32.gmra.mxu0 %v2196
        %v2224 = vpop.f32.mrf.mxu0
        %v2225 = vadd.f32 0.0, %v2224
        %2226 = vdwg.mxu0
        %v2227 = vmul.f32 %v2222, 0.05103104
        %v2228 = vmul.f32 %v2225, 0.05103104
        %v2229 = vsel %vm698, %v2227, -inf
        %v2230 = vsel %vm699, %v2228, -inf
        %v2231 = vsel %vm1091, %v2229, -inf
        %2232 = vmax.xlane.f32.xlu0 %v2231
        %v2233 = vpop.xlane.xlu0 %2232
        %v2234 = vsel %vm1091, %v2230, -inf
        %2235 = vmax.xlane.f32.xlu0 %v2234
        %v2236 = vpop.xlane.xlu0 %2235
        %v2237 = vsub.f32 %v2229, %v2233
        %v2238 = vsub.f32 %v2230, %v2236
        %v2239 = vmul.f32 %v2237, 1.442695
        %v2240 = vpow.pop %v2239
        %v2241 = vmul.f32 %v2238, 1.442695
        %v2242 = vpow.pop %v2241
        %v2243 = vsel %vm1091, %v2240, 0.0
        %2244 = vadd.xlane.f32.xlu0 %v2243
        %v2245 = vpop.xlane.xlu0 %2244
        %v2246 = vsel %vm1091, %v2242, 0.0
        %2247 = vadd.xlane.f32.xlu0 %v2246
        %v2248 = vpop.xlane.xlu0 %2247
        %v2249 = vrcp.pop %v2245
        %v2250 = vmul.f32 %v2245, %v2249
        %v2251 = vsub.f32 1.0, %v2250
        %v2252 = vmul.f32 %v2249, %v2251
        %v2253 = vadd.f32 %v2249, %v2252
        %vm2254 = vweird.f32 %v2245
        %vm2255 = vweird.f32 %v2249
        %vm2256 = vmor %vm2254, %vm2255
        %v2257 = vsel %vm2256, %v2249, %v2253
        %v2258 = vand.u32 2147483647, %v2245
        %vm2259 = vcmp.eq.f32.partialorder %v2258, 8.507059e+37
        %v2260 = vand.u32 %v2245, 2147483648
        %v2261 = vor.u32 1.1754944e-38, %v2260
        %v2262 = vsel %vm2259, %v2261, %v2257
        %v2263 = vmul.f32 %v2240, %v2262
        %v2264 = vrcp.pop %v2248
        %v2265 = vmul.f32 %v2248, %v2264
        %v2266 = vsub.f32 1.0, %v2265
        %v2267 = vmul.f32 %v2264, %v2266
        %v2268 = vadd.f32 %v2264, %v2267
        %vm2269 = vweird.f32 %v2248
        %vm2270 = vweird.f32 %v2264
        %vm2271 = vmor %vm2269, %vm2270
        %v2272 = vsel %vm2271, %v2264, %v2268
        %v2273 = vand.u32 2147483647, %v2248
        %vm2274 = vcmp.eq.f32.partialorder %v2273, 8.507059e+37
        %v2275 = vand.u32 %v2248, 2147483648
        %v2276 = vor.u32 1.1754944e-38, %v2275
        %v2277 = vsel %vm2274, %v2276, %v2272
        %v2278 = vmul.f32 %v2242, %v2277
        %v2280 = vsel %vm1091, %v2263, 0
        %v2283 = vsel %vm1091, %v2278, 0
        %2285 = vmatpush.msra.mxu0 0.0
        %2286 = vmatpush.msra.mxu0 0.0
        %2287 = vmatpush.msra.mxu0 0.0
        %2288 = vmatpush.msra.mxu0 0.0
        %2289 = vmatpush.msra.mxu0 0.0
        %2290 = vmatpush.msra.mxu0 0.0
        %2291 = vmatpush.msra.mxu0 0.0
        %2292 = vmatpush.msra.mxu0 0.0
        %2293 = vmatpush.msra.mxu0 0.0
        %2294 = vmatpush.msra.mxu0 0.0
        %2295 = vmatpush.msra.mxu0 0.0
        %2296 = vmatpush.msra.mxu0 0.0
        %2297 = vmatpush.msra.mxu0 0.0
        %2298 = vmatpush.msra.mxu0 0.0
        %2299 = vmatpush.msra.mxu0 %v2190
        %2300 = vmatpush.msra.mxu0 %v2187
        %2301 = vmatmul.f32.gmra.mxu0 %v2280
        %v2302 = vpop.f32.mrf.mxu0
        %v2303 = vadd.f32 0.0, %v2302
        %2304 = vmatmul.f32.gmra.mxu0 %v2283
        %v2305 = vpop.f32.mrf.mxu0
        %v2306 = vadd.f32 0.0, %v2305
        %2307 = vdwg.mxu0
        %s2308 = scalar_lea.vmem [#allocation7], 384
        %v2309 = vld [vmem:[%s2308] sm:$0xff]
        %v2310 = vld [vmem:[%s2308 + $0x8] sm:$0xff]
        %v2311 = vld [vmem:[%s2308 + $0x10] sm:$0xff]
        %v2312 = vld [vmem:[%s2308 + $0x18] sm:$0xff]
        %v2313 = vld [vmem:[%s2308 + $0x20] sm:$0xff]
        %v2314 = vld [vmem:[%s2308 + $0x28] sm:$0xff]
        %v2315 = vld [vmem:[%s2308 + $0x30] sm:$0xff]
        %v2316 = vld [vmem:[%s2308 + $0x38] sm:$0xff]
        %v2317 = vld [vmem:[%s2308 + $0x40] sm:$0xff]
        %v2318 = vld [vmem:[%s2308 + $0x48] sm:$0xff]
        %v2319 = vld [vmem:[%s2308 + $0x50] sm:$0xff]
        %v2320 = vld [vmem:[%s2308 + $0x58] sm:$0xff]
        %v2321 = vld [vmem:[%s2308 + $0x60] sm:$0xff]
        %v2322 = vld [vmem:[%s2308 + $0x68] sm:$0xff]
        %v2323 = vld [vmem:[%s2308 + $0x70] sm:$0xff]
        %v2324 = vld [vmem:[%s2308 + $0x78] sm:$0xff]
        %v2325 = vld [vmem:[%s2308 + $0x80] sm:$0xff]
        %v2326 = vld [vmem:[%s2308 + $0x88] sm:$0xff]
        %v2327 = vld [vmem:[%s2308 + $0x90] sm:$0xff]
        %v2328 = vld [vmem:[%s2308 + $0x98] sm:$0xff]
        %v2329 = vld [vmem:[%s2308 + $0xa0] sm:$0xff]
        %v2330 = vld [vmem:[%s2308 + $0xa8] sm:$0xff]
        %v2331 = vld [vmem:[%s2308 + $0xb0] sm:$0xff]
        %v2332 = vld [vmem:[%s2308 + $0xb8] sm:$0xff]
        %v2334 = vsel %vm1051, %v2303, 0
        %v2337 = vsel %vm1051, %v2306, 0
        %2339 = vmatpush.msra.mxu0 0.0
        %2340 = vmatpush.msra.mxu0 0.0
        %2341 = vmatpush.msra.mxu0 0.0
        %2342 = vmatpush.msra.mxu0 0.0
        %2343 = vmatpush.msra.mxu0 0.0
        %2344 = vmatpush.msra.mxu0 0.0
        %2345 = vmatpush.msra.mxu0 0.0
        %2346 = vmatpush.msra.mxu0 0.0
        %2347 = vmatpush.msra.mxu0 %v2330
        %2348 = vmatpush.msra.mxu0 %v2327
        %2349 = vmatpush.msra.mxu0 %v2324
        %2350 = vmatpush.msra.mxu0 %v2321
        %2351 = vmatpush.msra.mxu0 %v2318
        %2352 = vmatpush.msra.mxu0 %v2315
        %2353 = vmatpush.msra.mxu0 %v2312
        %2354 = vmatpush.msra.mxu0 %v2309
        %2355 = vmatmul.f32.gmra.mxu0 %v2334
        %v2356 = vpop.f32.mrf.mxu0
        %v2357 = vadd.f32 0.0, %v2356
        %2358 = vmatmul.f32.gmra.mxu0 %v2337
        %v2359 = vpop.f32.mrf.mxu0
        %v2360 = vadd.f32 0.0, %v2359
        %2361 = vdwg.mxu0
        %2362 = vmatpush.msra.mxu0 0.0
        %2363 = vmatpush.msra.mxu0 0.0
        %2364 = vmatpush.msra.mxu0 0.0
        %2365 = vmatpush.msra.mxu0 0.0
        %2366 = vmatpush.msra.mxu0 0.0
        %2367 = vmatpush.msra.mxu0 0.0
        %2368 = vmatpush.msra.mxu0 0.0
        %2369 = vmatpush.msra.mxu0 0.0
        %2370 = vmatpush.msra.mxu0 %v2331
        %2371 = vmatpush.msra.mxu0 %v2328
        %2372 = vmatpush.msra.mxu0 %v2325
        %2373 = vmatpush.msra.mxu0 %v2322
        %2374 = vmatpush.msra.mxu0 %v2319
        %2375 = vmatpush.msra.mxu0 %v2316
        %2376 = vmatpush.msra.mxu0 %v2313
        %2377 = vmatpush.msra.mxu0 %v2310
        %2378 = vmatmul.f32.gmra.mxu0 %v2334
        %v2379 = vpop.f32.mrf.mxu0
        %v2380 = vadd.f32 0.0, %v2379
        %2381 = vmatmul.f32.gmra.mxu0 %v2337
        %v2382 = vpop.f32.mrf.mxu0
        %v2383 = vadd.f32 0.0, %v2382
        %2384 = vdwg.mxu0
        %2385 = vmatpush.msra.mxu0 0.0
        %2386 = vmatpush.msra.mxu0 0.0
        %2387 = vmatpush.msra.mxu0 0.0
        %2388 = vmatpush.msra.mxu0 0.0
        %2389 = vmatpush.msra.mxu0 0.0
        %2390 = vmatpush.msra.mxu0 0.0
        %2391 = vmatpush.msra.mxu0 0.0
        %2392 = vmatpush.msra.mxu0 0.0
        %2393 = vmatpush.msra.mxu0 %v2332
        %2394 = vmatpush.msra.mxu0 %v2329
        %2395 = vmatpush.msra.mxu0 %v2326
        %2396 = vmatpush.msra.mxu0 %v2323
        %2397 = vmatpush.msra.mxu0 %v2320
        %2398 = vmatpush.msra.mxu0 %v2317
        %2399 = vmatpush.msra.mxu0 %v2314
        %2400 = vmatpush.msra.mxu0 %v2311
        %2401 = vmatmul.f32.gmra.mxu0 %v2334
        %v2402 = vpop.f32.mrf.mxu0
        %v2403 = vadd.f32 0.0, %v2402
        %2404 = vmatmul.f32.gmra.mxu0 %v2337
        %v2405 = vpop.f32.mrf.mxu0
        %v2406 = vadd.f32 0.0, %v2405
        %2407 = vdwg.mxu0
        %v2408 = vadd.f32 %v1787, %v2357
        %v2409 = vadd.f32 %v1810, %v2380
        %v2410 = vadd.f32 %v1833, %v2403
        %v2411 = vadd.f32 %v1790, %v2360
        %v2412 = vadd.f32 %v1813, %v2383
        %v2413 = vadd.f32 %v1836, %v2406
        %s2414 = scalar_lea.vmem %s3, 1152
        %v2415 = vld [vmem:[%s2414] sm:$0xff]
        %v2416 = vld [vmem:[%s2414 + $0x8] sm:$0xff]
        %v2417 = vld [vmem:[%s2414 + $0x10] sm:$0xff]
        %v2418 = vld [vmem:[%s2414 + $0x18] sm:$0xff]
        %v2419 = vld [vmem:[%s2414 + $0x20] sm:$0xff]
        %v2420 = vld [vmem:[%s2414 + $0x28] sm:$0xff]
        %v2421 = vld [vmem:[%s2414 + $0x30] sm:$0xff]
        %v2422 = vld [vmem:[%s2414 + $0x38] sm:$0xff]
        %v2423 = vld [vmem:[%s2414 + $0x40] sm:$0xff]
        %v2424 = vld [vmem:[%s2414 + $0x48] sm:$0xff]
        %v2425 = vld [vmem:[%s2414 + $0x50] sm:$0xff]
        %v2426 = vld [vmem:[%s2414 + $0x58] sm:$0xff]
        %v2427 = vld [vmem:[%s2414 + $0x60] sm:$0xff]
        %v2428 = vld [vmem:[%s2414 + $0x68] sm:$0xff]
        %v2429 = vld [vmem:[%s2414 + $0x70] sm:$0xff]
        %v2430 = vld [vmem:[%s2414 + $0x78] sm:$0xff]
        %v2431 = vld [vmem:[%s2414 + $0x80] sm:$0xff]
        %v2432 = vld [vmem:[%s2414 + $0x88] sm:$0xff]
        %v2433 = vld [vmem:[%s2414 + $0x90] sm:$0xff]
        %v2434 = vld [vmem:[%s2414 + $0x98] sm:$0xff]
        %v2435 = vld [vmem:[%s2414 + $0xa0] sm:$0xff]
        %v2436 = vld [vmem:[%s2414 + $0xa8] sm:$0xff]
        %v2437 = vld [vmem:[%s2414 + $0xb0] sm:$0xff]
        %v2438 = vld [vmem:[%s2414 + $0xb8] sm:$0xff]
        %v2439 = vld [vmem:[%s2414 + $0xc0] sm:$0xff]
        %v2440 = vld [vmem:[%s2414 + $0xc8] sm:$0xff]
        %v2441 = vld [vmem:[%s2414 + $0xd0] sm:$0xff]
        %v2442 = vld [vmem:[%s2414 + $0xd8] sm:$0xff]
        %v2443 = vld [vmem:[%s2414 + $0xe0] sm:$0xff]
        %v2444 = vld [vmem:[%s2414 + $0xe8] sm:$0xff]
        %v2445 = vld [vmem:[%s2414 + $0xf0] sm:$0xff]
        %v2446 = vld [vmem:[%s2414 + $0xf8] sm:$0xff]
        %v2447 = vld [vmem:[%s2414 + $0x100] sm:$0xff]
        %v2448 = vld [vmem:[%s2414 + $0x108] sm:$0xff]
        %v2449 = vld [vmem:[%s2414 + $0x110] sm:$0xff]
        %v2450 = vld [vmem:[%s2414 + $0x118] sm:$0xff]
        %v2451 = vld [vmem:[%s2414 + $0x120] sm:$0xff]
        %v2452 = vld [vmem:[%s2414 + $0x128] sm:$0xff]
        %v2453 = vld [vmem:[%s2414 + $0x130] sm:$0xff]
        %v2454 = vld [vmem:[%s2414 + $0x138] sm:$0xff]
        %v2455 = vld [vmem:[%s2414 + $0x140] sm:$0xff]
        %v2456 = vld [vmem:[%s2414 + $0x148] sm:$0xff]
        %v2457 = vld [vmem:[%s2414 + $0x150] sm:$0xff]
        %v2458 = vld [vmem:[%s2414 + $0x158] sm:$0xff]
        %v2459 = vld [vmem:[%s2414 + $0x160] sm:$0xff]
        %v2460 = vld [vmem:[%s2414 + $0x168] sm:$0xff]
        %v2461 = vld [vmem:[%s2414 + $0x170] sm:$0xff]
        %v2462 = vld [vmem:[%s2414 + $0x178] sm:$0xff]
        %2463 = vmatpush.msra.mxu0 %v2430
        %2464 = vmatpush.msra.mxu0 %v2429
        %2465 = vmatpush.msra.mxu0 %v2428
        %2466 = vmatpush.msra.mxu0 %v2427
        %2467 = vmatpush.msra.mxu0 %v2426
        %2468 = vmatpush.msra.mxu0 %v2425
        %2469 = vmatpush.msra.mxu0 %v2424
        %2470 = vmatpush.msra.mxu0 %v2423
        %2471 = vmatpush.msra.mxu0 %v2422
        %2472 = vmatpush.msra.mxu0 %v2421
        %2473 = vmatpush.msra.mxu0 %v2420
        %2474 = vmatpush.msra.mxu0 %v2419
        %2475 = vmatpush.msra.mxu0 %v2418
        %2476 = vmatpush.msra.mxu0 %v2417
        %2477 = vmatpush.msra.mxu0 %v2416
        %2478 = vmatpush.msra.mxu0 %v2415
        %2479 = vmatmul.f32.gmra.mxu0 %v687
        %v2480 = vpop.f32.mrf.mxu0
        %v2481 = vadd.f32 0.0, %v2480
        %2482 = vmatmul.f32.gmra.mxu0 %v690
        %v2483 = vpop.f32.mrf.mxu0
        %v2484 = vadd.f32 0.0, %v2483
        %2485 = vdwg.mxu0
        %2486 = vmatpush.msra.mxu0 %v2446
        %2487 = vmatpush.msra.mxu0 %v2445
        %2488 = vmatpush.msra.mxu0 %v2444
        %2489 = vmatpush.msra.mxu0 %v2443
        %2490 = vmatpush.msra.mxu0 %v2442
        %2491 = vmatpush.msra.mxu0 %v2441
        %2492 = vmatpush.msra.mxu0 %v2440
        %2493 = vmatpush.msra.mxu0 %v2439
        %2494 = vmatpush.msra.mxu0 %v2438
        %2495 = vmatpush.msra.mxu0 %v2437
        %2496 = vmatpush.msra.mxu0 %v2436
        %2497 = vmatpush.msra.mxu0 %v2435
        %2498 = vmatpush.msra.mxu0 %v2434
        %2499 = vmatpush.msra.mxu0 %v2433
        %2500 = vmatpush.msra.mxu0 %v2432
        %2501 = vmatpush.msra.mxu0 %v2431
        %2502 = vmatmul.f32.gmra.mxu0 %v688
        %v2503 = vpop.f32.mrf.mxu0
        %v2504 = vadd.f32 %v2481, %v2503
        %2505 = vmatmul.f32.gmra.mxu0 %v691
        %v2506 = vpop.f32.mrf.mxu0
        %v2507 = vadd.f32 %v2484, %v2506
        %2508 = vdwg.mxu0
        %2509 = vmatpush.msra.mxu0 %v2462
        %2510 = vmatpush.msra.mxu0 %v2461
        %2511 = vmatpush.msra.mxu0 %v2460
        %2512 = vmatpush.msra.mxu0 %v2459
        %2513 = vmatpush.msra.mxu0 %v2458
        %2514 = vmatpush.msra.mxu0 %v2457
        %2515 = vmatpush.msra.mxu0 %v2456
        %2516 = vmatpush.msra.mxu0 %v2455
        %2517 = vmatpush.msra.mxu0 %v2454
        %2518 = vmatpush.msra.mxu0 %v2453
        %2519 = vmatpush.msra.mxu0 %v2452
        %2520 = vmatpush.msra.mxu0 %v2451
        %2521 = vmatpush.msra.mxu0 %v2450
        %2522 = vmatpush.msra.mxu0 %v2449
        %2523 = vmatpush.msra.mxu0 %v2448
        %2524 = vmatpush.msra.mxu0 %v2447
        %2525 = vmatmul.f32.gmra.mxu0 %v689
        %v2526 = vpop.f32.mrf.mxu0
        %v2527 = vadd.f32 %v2504, %v2526
        %2528 = vmatmul.f32.gmra.mxu0 %v692
        %v2529 = vpop.f32.mrf.mxu0
        %v2530 = vadd.f32 %v2507, %v2529
        %2531 = vdwg.mxu0
        %s2532 = scalar_lea.vmem %s4, 1152
        %v2533 = vld [vmem:[%s2532] sm:$0xff]
        %v2534 = vld [vmem:[%s2532 + $0x8] sm:$0xff]
        %v2535 = vld [vmem:[%s2532 + $0x10] sm:$0xff]
        %v2536 = vld [vmem:[%s2532 + $0x18] sm:$0xff]
        %v2537 = vld [vmem:[%s2532 + $0x20] sm:$0xff]
        %v2538 = vld [vmem:[%s2532 + $0x28] sm:$0xff]
        %v2539 = vld [vmem:[%s2532 + $0x30] sm:$0xff]
        %v2540 = vld [vmem:[%s2532 + $0x38] sm:$0xff]
        %v2541 = vld [vmem:[%s2532 + $0x40] sm:$0xff]
        %v2542 = vld [vmem:[%s2532 + $0x48] sm:$0xff]
        %v2543 = vld [vmem:[%s2532 + $0x50] sm:$0xff]
        %v2544 = vld [vmem:[%s2532 + $0x58] sm:$0xff]
        %v2545 = vld [vmem:[%s2532 + $0x60] sm:$0xff]
        %v2546 = vld [vmem:[%s2532 + $0x68] sm:$0xff]
        %v2547 = vld [vmem:[%s2532 + $0x70] sm:$0xff]
        %v2548 = vld [vmem:[%s2532 + $0x78] sm:$0xff]
        %v2549 = vld [vmem:[%s2532 + $0x80] sm:$0xff]
        %v2550 = vld [vmem:[%s2532 + $0x88] sm:$0xff]
        %v2551 = vld [vmem:[%s2532 + $0x90] sm:$0xff]
        %v2552 = vld [vmem:[%s2532 + $0x98] sm:$0xff]
        %v2553 = vld [vmem:[%s2532 + $0xa0] sm:$0xff]
        %v2554 = vld [vmem:[%s2532 + $0xa8] sm:$0xff]
        %v2555 = vld [vmem:[%s2532 + $0xb0] sm:$0xff]
        %v2556 = vld [vmem:[%s2532 + $0xb8] sm:$0xff]
        %v2557 = vld [vmem:[%s2532 + $0xc0] sm:$0xff]
        %v2558 = vld [vmem:[%s2532 + $0xc8] sm:$0xff]
        %v2559 = vld [vmem:[%s2532 + $0xd0] sm:$0xff]
        %v2560 = vld [vmem:[%s2532 + $0xd8] sm:$0xff]
        %v2561 = vld [vmem:[%s2532 + $0xe0] sm:$0xff]
        %v2562 = vld [vmem:[%s2532 + $0xe8] sm:$0xff]
        %v2563 = vld [vmem:[%s2532 + $0xf0] sm:$0xff]
        %v2564 = vld [vmem:[%s2532 + $0xf8] sm:$0xff]
        %v2565 = vld [vmem:[%s2532 + $0x100] sm:$0xff]
        %v2566 = vld [vmem:[%s2532 + $0x108] sm:$0xff]
        %v2567 = vld [vmem:[%s2532 + $0x110] sm:$0xff]
        %v2568 = vld [vmem:[%s2532 + $0x118] sm:$0xff]
        %v2569 = vld [vmem:[%s2532 + $0x120] sm:$0xff]
        %v2570 = vld [vmem:[%s2532 + $0x128] sm:$0xff]
        %v2571 = vld [vmem:[%s2532 + $0x130] sm:$0xff]
        %v2572 = vld [vmem:[%s2532 + $0x138] sm:$0xff]
        %v2573 = vld [vmem:[%s2532 + $0x140] sm:$0xff]
        %v2574 = vld [vmem:[%s2532 + $0x148] sm:$0xff]
        %v2575 = vld [vmem:[%s2532 + $0x150] sm:$0xff]
        %v2576 = vld [vmem:[%s2532 + $0x158] sm:$0xff]
        %v2577 = vld [vmem:[%s2532 + $0x160] sm:$0xff]
        %v2578 = vld [vmem:[%s2532 + $0x168] sm:$0xff]
        %v2579 = vld [vmem:[%s2532 + $0x170] sm:$0xff]
        %v2580 = vld [vmem:[%s2532 + $0x178] sm:$0xff]
        %2581 = vmatpush.msra.mxu0 %v2548
        %2582 = vmatpush.msra.mxu0 %v2547
        %2583 = vmatpush.msra.mxu0 %v2546
        %2584 = vmatpush.msra.mxu0 %v2545
        %2585 = vmatpush.msra.mxu0 %v2544
        %2586 = vmatpush.msra.mxu0 %v2543
        %2587 = vmatpush.msra.mxu0 %v2542
        %2588 = vmatpush.msra.mxu0 %v2541
        %2589 = vmatpush.msra.mxu0 %v2540
        %2590 = vmatpush.msra.mxu0 %v2539
        %2591 = vmatpush.msra.mxu0 %v2538
        %2592 = vmatpush.msra.mxu0 %v2537
        %2593 = vmatpush.msra.mxu0 %v2536
        %2594 = vmatpush.msra.mxu0 %v2535
        %2595 = vmatpush.msra.mxu0 %v2534
        %2596 = vmatpush.msra.mxu0 %v2533
        %2597 = vmatmul.f32.gmra.mxu0 %v687
        %v2598 = vpop.f32.mrf.mxu0
        %v2599 = vadd.f32 0.0, %v2598
        %2600 = vmatmul.f32.gmra.mxu0 %v690
        %v2601 = vpop.f32.mrf.mxu0
        %v2602 = vadd.f32 0.0, %v2601
        %2603 = vdwg.mxu0
        %2604 = vmatpush.msra.mxu0 %v2564
        %2605 = vmatpush.msra.mxu0 %v2563
        %2606 = vmatpush.msra.mxu0 %v2562
        %2607 = vmatpush.msra.mxu0 %v2561
        %2608 = vmatpush.msra.mxu0 %v2560
        %2609 = vmatpush.msra.mxu0 %v2559
        %2610 = vmatpush.msra.mxu0 %v2558
        %2611 = vmatpush.msra.mxu0 %v2557
        %2612 = vmatpush.msra.mxu0 %v2556
        %2613 = vmatpush.msra.mxu0 %v2555
        %2614 = vmatpush.msra.mxu0 %v2554
        %2615 = vmatpush.msra.mxu0 %v2553
        %2616 = vmatpush.msra.mxu0 %v2552
        %2617 = vmatpush.msra.mxu0 %v2551
        %2618 = vmatpush.msra.mxu0 %v2550
        %2619 = vmatpush.msra.mxu0 %v2549
        %2620 = vmatmul.f32.gmra.mxu0 %v688
        %v2621 = vpop.f32.mrf.mxu0
        %v2622 = vadd.f32 %v2599, %v2621
        %2623 = vmatmul.f32.gmra.mxu0 %v691
        %v2624 = vpop.f32.mrf.mxu0
        %v2625 = vadd.f32 %v2602, %v2624
        %2626 = vdwg.mxu0
        %2627 = vmatpush.msra.mxu0 %v2580
        %2628 = vmatpush.msra.mxu0 %v2579
        %2629 = vmatpush.msra.mxu0 %v2578
        %2630 = vmatpush.msra.mxu0 %v2577
        %2631 = vmatpush.msra.mxu0 %v2576
        %2632 = vmatpush.msra.mxu0 %v2575
        %2633 = vmatpush.msra.mxu0 %v2574
        %2634 = vmatpush.msra.mxu0 %v2573
        %2635 = vmatpush.msra.mxu0 %v2572
        %2636 = vmatpush.msra.mxu0 %v2571
        %2637 = vmatpush.msra.mxu0 %v2570
        %2638 = vmatpush.msra.mxu0 %v2569
        %2639 = vmatpush.msra.mxu0 %v2568
        %2640 = vmatpush.msra.mxu0 %v2567
        %2641 = vmatpush.msra.mxu0 %v2566
        %2642 = vmatpush.msra.mxu0 %v2565
        %2643 = vmatmul.f32.gmra.mxu0 %v689
        %v2644 = vpop.f32.mrf.mxu0
        %v2645 = vadd.f32 %v2622, %v2644
        %2646 = vmatmul.f32.gmra.mxu0 %v692
        %v2647 = vpop.f32.mrf.mxu0
        %v2648 = vadd.f32 %v2625, %v2647
        %2649 = vdwg.mxu0
        %s2650 = scalar_lea.vmem %s5, 1152
        %v2651 = vld [vmem:[%s2650] sm:$0xff]
        %v2652 = vld [vmem:[%s2650 + $0x8] sm:$0xff]
        %v2653 = vld [vmem:[%s2650 + $0x10] sm:$0xff]
        %v2654 = vld [vmem:[%s2650 + $0x18] sm:$0xff]
        %v2655 = vld [vmem:[%s2650 + $0x20] sm:$0xff]
        %v2656 = vld [vmem:[%s2650 + $0x28] sm:$0xff]
        %v2657 = vld [vmem:[%s2650 + $0x30] sm:$0xff]
        %v2658 = vld [vmem:[%s2650 + $0x38] sm:$0xff]
        %v2659 = vld [vmem:[%s2650 + $0x40] sm:$0xff]
        %v2660 = vld [vmem:[%s2650 + $0x48] sm:$0xff]
        %v2661 = vld [vmem:[%s2650 + $0x50] sm:$0xff]
        %v2662 = vld [vmem:[%s2650 + $0x58] sm:$0xff]
        %v2663 = vld [vmem:[%s2650 + $0x60] sm:$0xff]
        %v2664 = vld [vmem:[%s2650 + $0x68] sm:$0xff]
        %v2665 = vld [vmem:[%s2650 + $0x70] sm:$0xff]
        %v2666 = vld [vmem:[%s2650 + $0x78] sm:$0xff]
        %v2667 = vld [vmem:[%s2650 + $0x80] sm:$0xff]
        %v2668 = vld [vmem:[%s2650 + $0x88] sm:$0xff]
        %v2669 = vld [vmem:[%s2650 + $0x90] sm:$0xff]
        %v2670 = vld [vmem:[%s2650 + $0x98] sm:$0xff]
        %v2671 = vld [vmem:[%s2650 + $0xa0] sm:$0xff]
        %v2672 = vld [vmem:[%s2650 + $0xa8] sm:$0xff]
        %v2673 = vld [vmem:[%s2650 + $0xb0] sm:$0xff]
        %v2674 = vld [vmem:[%s2650 + $0xb8] sm:$0xff]
        %v2675 = vld [vmem:[%s2650 + $0xc0] sm:$0xff]
        %v2676 = vld [vmem:[%s2650 + $0xc8] sm:$0xff]
        %v2677 = vld [vmem:[%s2650 + $0xd0] sm:$0xff]
        %v2678 = vld [vmem:[%s2650 + $0xd8] sm:$0xff]
        %v2679 = vld [vmem:[%s2650 + $0xe0] sm:$0xff]
        %v2680 = vld [vmem:[%s2650 + $0xe8] sm:$0xff]
        %v2681 = vld [vmem:[%s2650 + $0xf0] sm:$0xff]
        %v2682 = vld [vmem:[%s2650 + $0xf8] sm:$0xff]
        %v2683 = vld [vmem:[%s2650 + $0x100] sm:$0xff]
        %v2684 = vld [vmem:[%s2650 + $0x108] sm:$0xff]
        %v2685 = vld [vmem:[%s2650 + $0x110] sm:$0xff]
        %v2686 = vld [vmem:[%s2650 + $0x118] sm:$0xff]
        %v2687 = vld [vmem:[%s2650 + $0x120] sm:$0xff]
        %v2688 = vld [vmem:[%s2650 + $0x128] sm:$0xff]
        %v2689 = vld [vmem:[%s2650 + $0x130] sm:$0xff]
        %v2690 = vld [vmem:[%s2650 + $0x138] sm:$0xff]
        %v2691 = vld [vmem:[%s2650 + $0x140] sm:$0xff]
        %v2692 = vld [vmem:[%s2650 + $0x148] sm:$0xff]
        %v2693 = vld [vmem:[%s2650 + $0x150] sm:$0xff]
        %v2694 = vld [vmem:[%s2650 + $0x158] sm:$0xff]
        %v2695 = vld [vmem:[%s2650 + $0x160] sm:$0xff]
        %v2696 = vld [vmem:[%s2650 + $0x168] sm:$0xff]
        %v2697 = vld [vmem:[%s2650 + $0x170] sm:$0xff]
        %v2698 = vld [vmem:[%s2650 + $0x178] sm:$0xff]
        %2699 = vmatpush.msra.mxu0 %v2666
        %2700 = vmatpush.msra.mxu0 %v2665
        %2701 = vmatpush.msra.mxu0 %v2664
        %2702 = vmatpush.msra.mxu0 %v2663
        %2703 = vmatpush.msra.mxu0 %v2662
        %2704 = vmatpush.msra.mxu0 %v2661
        %2705 = vmatpush.msra.mxu0 %v2660
        %2706 = vmatpush.msra.mxu0 %v2659
        %2707 = vmatpush.msra.mxu0 %v2658
        %2708 = vmatpush.msra.mxu0 %v2657
        %2709 = vmatpush.msra.mxu0 %v2656
        %2710 = vmatpush.msra.mxu0 %v2655
        %2711 = vmatpush.msra.mxu0 %v2654
        %2712 = vmatpush.msra.mxu0 %v2653
        %2713 = vmatpush.msra.mxu0 %v2652
        %2714 = vmatpush.msra.mxu0 %v2651
        %2715 = vmatmul.f32.gmra.mxu0 %v687
        %v2716 = vpop.f32.mrf.mxu0
        %v2717 = vadd.f32 0.0, %v2716
        %2718 = vmatmul.f32.gmra.mxu0 %v690
        %v2719 = vpop.f32.mrf.mxu0
        %v2720 = vadd.f32 0.0, %v2719
        %2721 = vdwg.mxu0
        %2722 = vmatpush.msra.mxu0 %v2682
        %2723 = vmatpush.msra.mxu0 %v2681
        %2724 = vmatpush.msra.mxu0 %v2680
        %2725 = vmatpush.msra.mxu0 %v2679
        %2726 = vmatpush.msra.mxu0 %v2678
        %2727 = vmatpush.msra.mxu0 %v2677
        %2728 = vmatpush.msra.mxu0 %v2676
        %2729 = vmatpush.msra.mxu0 %v2675
        %2730 = vmatpush.msra.mxu0 %v2674
        %2731 = vmatpush.msra.mxu0 %v2673
        %2732 = vmatpush.msra.mxu0 %v2672
        %2733 = vmatpush.msra.mxu0 %v2671
        %2734 = vmatpush.msra.mxu0 %v2670
        %2735 = vmatpush.msra.mxu0 %v2669
        %2736 = vmatpush.msra.mxu0 %v2668
        %2737 = vmatpush.msra.mxu0 %v2667
        %2738 = vmatmul.f32.gmra.mxu0 %v688
        %v2739 = vpop.f32.mrf.mxu0
        %v2740 = vadd.f32 %v2717, %v2739
        %2741 = vmatmul.f32.gmra.mxu0 %v691
        %v2742 = vpop.f32.mrf.mxu0
        %v2743 = vadd.f32 %v2720, %v2742
        %2744 = vdwg.mxu0
        %2745 = vmatpush.msra.mxu0 %v2698
        %2746 = vmatpush.msra.mxu0 %v2697
        %2747 = vmatpush.msra.mxu0 %v2696
        %2748 = vmatpush.msra.mxu0 %v2695
        %2749 = vmatpush.msra.mxu0 %v2694
        %2750 = vmatpush.msra.mxu0 %v2693
        %2751 = vmatpush.msra.mxu0 %v2692
        %2752 = vmatpush.msra.mxu0 %v2691
        %2753 = vmatpush.msra.mxu0 %v2690
        %2754 = vmatpush.msra.mxu0 %v2689
        %2755 = vmatpush.msra.mxu0 %v2688
        %2756 = vmatpush.msra.mxu0 %v2687
        %2757 = vmatpush.msra.mxu0 %v2686
        %2758 = vmatpush.msra.mxu0 %v2685
        %2759 = vmatpush.msra.mxu0 %v2684
        %2760 = vmatpush.msra.mxu0 %v2683
        %2761 = vmatmul.f32.gmra.mxu0 %v689
        %v2762 = vpop.f32.mrf.mxu0
        %v2763 = vadd.f32 %v2740, %v2762
        %2764 = vmatmul.f32.gmra.mxu0 %v692
        %v2765 = vpop.f32.mrf.mxu0
        %v2766 = vadd.f32 %v2743, %v2765
        %2767 = vdwg.mxu0
        %v2769 = vsel %vm1051, %v2527, 0
        %v2772 = vsel %vm1051, %v2530, 0
        %v2775 = vsel %vm1051, %v2645, 0
        %v2778 = vsel %vm1051, %v2648, 0
        %2780 = vmatpush.xpose.msra.mxu0 0.0
        %2781 = vmatpush.xpose.msra.mxu0 0.0
        %2782 = vmatpush.xpose.msra.mxu0 0.0
        %2783 = vmatpush.xpose.msra.mxu0 0.0
        %2784 = vmatpush.xpose.msra.mxu0 0.0
        %2785 = vmatpush.xpose.msra.mxu0 0.0
        %2786 = vmatpush.xpose.msra.mxu0 0.0
        %2787 = vmatpush.xpose.msra.mxu0 0.0
        %2788 = vmatpush.xpose.msra.mxu0 0.0
        %2789 = vmatpush.xpose.msra.mxu0 0.0
        %2790 = vmatpush.xpose.msra.mxu0 0.0
        %2791 = vmatpush.xpose.msra.mxu0 0.0
        %2792 = vmatpush.xpose.msra.mxu0 0.0
        %2793 = vmatpush.xpose.msra.mxu0 0.0
        %2794 = vmatpush.xpose.msra.mxu0 %v2778
        %2795 = vmatpush.xpose.msra.mxu0 %v2775
        %2796 = vmatmul.f32.gmra.mxu0 %v2769
        %v2797 = vpop.f32.mrf.mxu0
        %v2798 = vadd.f32 0.0, %v2797
        %2799 = vmatmul.f32.gmra.mxu0 %v2772
        %v2800 = vpop.f32.mrf.mxu0
        %v2801 = vadd.f32 0.0, %v2800
        %2802 = vdwg.mxu0
        %v2803 = vmul.f32 %v2798, 0.05103104
        %v2804 = vmul.f32 %v2801, 0.05103104
        %v2805 = vsel %vm698, %v2803, -inf
        %v2806 = vsel %vm699, %v2804, -inf
        %v2807 = vsel %vm1091, %v2805, -inf
        %2808 = vmax.xlane.f32.xlu0 %v2807
        %v2809 = vpop.xlane.xlu0 %2808
        %v2810 = vsel %vm1091, %v2806, -inf
        %2811 = vmax.xlane.f32.xlu0 %v2810
        %v2812 = vpop.xlane.xlu0 %2811
        %v2813 = vsub.f32 %v2805, %v2809
        %v2814 = vsub.f32 %v2806, %v2812
        %v2815 = vmul.f32 %v2813, 1.442695
        %v2816 = vpow.pop %v2815
        %v2817 = vmul.f32 %v2814, 1.442695
        %v2818 = vpow.pop %v2817
        %v2819 = vsel %vm1091, %v2816, 0.0
        %2820 = vadd.xlane.f32.xlu0 %v2819
        %v2821 = vpop.xlane.xlu0 %2820
        %v2822 = vsel %vm1091, %v2818, 0.0
        %2823 = vadd.xlane.f32.xlu0 %v2822
        %v2824 = vpop.xlane.xlu0 %2823
        %v2825 = vrcp.pop %v2821
        %v2826 = vmul.f32 %v2821, %v2825
        %v2827 = vsub.f32 1.0, %v2826
        %v2828 = vmul.f32 %v2825, %v2827
        %v2829 = vadd.f32 %v2825, %v2828
        %vm2830 = vweird.f32 %v2821
        %vm2831 = vweird.f32 %v2825
        %vm2832 = vmor %vm2830, %vm2831
        %v2833 = vsel %vm2832, %v2825, %v2829
        %v2834 = vand.u32 2147483647, %v2821
        %vm2835 = vcmp.eq.f32.partialorder %v2834, 8.507059e+37
        %v2836 = vand.u32 %v2821, 2147483648
        %v2837 = vor.u32 1.1754944e-38, %v2836
        %v2838 = vsel %vm2835, %v2837, %v2833
        %v2839 = vmul.f32 %v2816, %v2838
        %v2840 = vrcp.pop %v2824
        %v2841 = vmul.f32 %v2824, %v2840
        %v2842 = vsub.f32 1.0, %v2841
        %v2843 = vmul.f32 %v2840, %v2842
        %v2844 = vadd.f32 %v2840, %v2843
        %vm2845 = vweird.f32 %v2824
        %vm2846 = vweird.f32 %v2840
        %vm2847 = vmor %vm2845, %vm2846
        %v2848 = vsel %vm2847, %v2840, %v2844
        %v2849 = vand.u32 2147483647, %v2824
        %vm2850 = vcmp.eq.f32.partialorder %v2849, 8.507059e+37
        %v2851 = vand.u32 %v2824, 2147483648
        %v2852 = vor.u32 1.1754944e-38, %v2851
        %v2853 = vsel %vm2850, %v2852, %v2848
        %v2854 = vmul.f32 %v2818, %v2853
        %v2856 = vsel %vm1091, %v2839, 0
        %v2859 = vsel %vm1091, %v2854, 0
        %2861 = vmatpush.msra.mxu0 0.0
        %2862 = vmatpush.msra.mxu0 0.0
        %2863 = vmatpush.msra.mxu0 0.0
        %2864 = vmatpush.msra.mxu0 0.0
        %2865 = vmatpush.msra.mxu0 0.0
        %2866 = vmatpush.msra.mxu0 0.0
        %2867 = vmatpush.msra.mxu0 0.0
        %2868 = vmatpush.msra.mxu0 0.0
        %2869 = vmatpush.msra.mxu0 0.0
        %2870 = vmatpush.msra.mxu0 0.0
        %2871 = vmatpush.msra.mxu0 0.0
        %2872 = vmatpush.msra.mxu0 0.0
        %2873 = vmatpush.msra.mxu0 0.0
        %2874 = vmatpush.msra.mxu0 0.0
        %2875 = vmatpush.msra.mxu0 %v2766
        %2876 = vmatpush.msra.mxu0 %v2763
        %2877 = vmatmul.f32.gmra.mxu0 %v2856
        %v2878 = vpop.f32.mrf.mxu0
        %v2879 = vadd.f32 0.0, %v2878
        %2880 = vmatmul.f32.gmra.mxu0 %v2859
        %v2881 = vpop.f32.mrf.mxu0
        %v2882 = vadd.f32 0.0, %v2881
        %2883 = vdwg.mxu0
        %s2884 = scalar_lea.vmem [#allocation7], 576
        %v2885 = vld [vmem:[%s2884] sm:$0xff]
        %v2886 = vld [vmem:[%s2884 + $0x8] sm:$0xff]
        %v2887 = vld [vmem:[%s2884 + $0x10] sm:$0xff]
        %v2888 = vld [vmem:[%s2884 + $0x18] sm:$0xff]
        %v2889 = vld [vmem:[%s2884 + $0x20] sm:$0xff]
        %v2890 = vld [vmem:[%s2884 + $0x28] sm:$0xff]
        %v2891 = vld [vmem:[%s2884 + $0x30] sm:$0xff]
        %v2892 = vld [vmem:[%s2884 + $0x38] sm:$0xff]
        %v2893 = vld [vmem:[%s2884 + $0x40] sm:$0xff]
        %v2894 = vld [vmem:[%s2884 + $0x48] sm:$0xff]
        %v2895 = vld [vmem:[%s2884 + $0x50] sm:$0xff]
        %v2896 = vld [vmem:[%s2884 + $0x58] sm:$0xff]
        %v2897 = vld [vmem:[%s2884 + $0x60] sm:$0xff]
        %v2898 = vld [vmem:[%s2884 + $0x68] sm:$0xff]
        %v2899 = vld [vmem:[%s2884 + $0x70] sm:$0xff]
        %v2900 = vld [vmem:[%s2884 + $0x78] sm:$0xff]
        %v2901 = vld [vmem:[%s2884 + $0x80] sm:$0xff]
        %v2902 = vld [vmem:[%s2884 + $0x88] sm:$0xff]
        %v2903 = vld [vmem:[%s2884 + $0x90] sm:$0xff]
        %v2904 = vld [vmem:[%s2884 + $0x98] sm:$0xff]
        %v2905 = vld [vmem:[%s2884 + $0xa0] sm:$0xff]
        %v2906 = vld [vmem:[%s2884 + $0xa8] sm:$0xff]
        %v2907 = vld [vmem:[%s2884 + $0xb0] sm:$0xff]
        %v2908 = vld [vmem:[%s2884 + $0xb8] sm:$0xff]
        %v2910 = vsel %vm1051, %v2879, 0
        %v2913 = vsel %vm1051, %v2882, 0
        %2915 = vmatpush.msra.mxu0 0.0
        %2916 = vmatpush.msra.mxu0 0.0
        %2917 = vmatpush.msra.mxu0 0.0
        %2918 = vmatpush.msra.mxu0 0.0
        %2919 = vmatpush.msra.mxu0 0.0
        %2920 = vmatpush.msra.mxu0 0.0
        %2921 = vmatpush.msra.mxu0 0.0
        %2922 = vmatpush.msra.mxu0 0.0
        %2923 = vmatpush.msra.mxu0 %v2906
        %2924 = vmatpush.msra.mxu0 %v2903
        %2925 = vmatpush.msra.mxu0 %v2900
        %2926 = vmatpush.msra.mxu0 %v2897
        %2927 = vmatpush.msra.mxu0 %v2894
        %2928 = vmatpush.msra.mxu0 %v2891
        %2929 = vmatpush.msra.mxu0 %v2888
        %2930 = vmatpush.msra.mxu0 %v2885
        %2931 = vmatmul.f32.gmra.mxu0 %v2910
        %v2932 = vpop.f32.mrf.mxu0
        %v2933 = vadd.f32 0.0, %v2932
        %2934 = vmatmul.f32.gmra.mxu0 %v2913
        %v2935 = vpop.f32.mrf.mxu0
        %v2936 = vadd.f32 0.0, %v2935
        %2937 = vdwg.mxu0
        %2938 = vmatpush.msra.mxu0 0.0
        %2939 = vmatpush.msra.mxu0 0.0
        %2940 = vmatpush.msra.mxu0 0.0
        %2941 = vmatpush.msra.mxu0 0.0
        %2942 = vmatpush.msra.mxu0 0.0
        %2943 = vmatpush.msra.mxu0 0.0
        %2944 = vmatpush.msra.mxu0 0.0
        %2945 = vmatpush.msra.mxu0 0.0
        %2946 = vmatpush.msra.mxu0 %v2907
        %2947 = vmatpush.msra.mxu0 %v2904
        %2948 = vmatpush.msra.mxu0 %v2901
        %2949 = vmatpush.msra.mxu0 %v2898
        %2950 = vmatpush.msra.mxu0 %v2895
        %2951 = vmatpush.msra.mxu0 %v2892
        %2952 = vmatpush.msra.mxu0 %v2889
        %2953 = vmatpush.msra.mxu0 %v2886
        %2954 = vmatmul.f32.gmra.mxu0 %v2910
        %v2955 = vpop.f32.mrf.mxu0
        %v2956 = vadd.f32 0.0, %v2955
        %2957 = vmatmul.f32.gmra.mxu0 %v2913
        %v2958 = vpop.f32.mrf.mxu0
        %v2959 = vadd.f32 0.0, %v2958
        %2960 = vdwg.mxu0
        %2961 = vmatpush.msra.mxu0 0.0
        %2962 = vmatpush.msra.mxu0 0.0
        %2963 = vmatpush.msra.mxu0 0.0
        %2964 = vmatpush.msra.mxu0 0.0
        %2965 = vmatpush.msra.mxu0 0.0
        %2966 = vmatpush.msra.mxu0 0.0
        %2967 = vmatpush.msra.mxu0 0.0
        %2968 = vmatpush.msra.mxu0 0.0
        %2969 = vmatpush.msra.mxu0 %v2908
        %2970 = vmatpush.msra.mxu0 %v2905
        %2971 = vmatpush.msra.mxu0 %v2902
        %2972 = vmatpush.msra.mxu0 %v2899
        %2973 = vmatpush.msra.mxu0 %v2896
        %2974 = vmatpush.msra.mxu0 %v2893
        %2975 = vmatpush.msra.mxu0 %v2890
        %2976 = vmatpush.msra.mxu0 %v2887
        %2977 = vmatmul.f32.gmra.mxu0 %v2910
        %v2978 = vpop.f32.mrf.mxu0
        %v2979 = vadd.f32 0.0, %v2978
        %2980 = vmatmul.f32.gmra.mxu0 %v2913
        %v2981 = vpop.f32.mrf.mxu0
        %v2982 = vadd.f32 0.0, %v2981
        %2983 = vdwg.mxu0
        %v2984 = vadd.f32 %v2408, %v2933
        %v2985 = vadd.f32 %v2409, %v2956
        %v2986 = vadd.f32 %v2410, %v2979
        %v2987 = vadd.f32 %v2411, %v2936
        %v2988 = vadd.f32 %v2412, %v2959
        %v2989 = vadd.f32 %v2413, %v2982
        %s2990 = scalar_lea.vmem %s3, 1536
        %v2991 = vld [vmem:[%s2990] sm:$0xff]
        %v2992 = vld [vmem:[%s2990 + $0x8] sm:$0xff]
        %v2993 = vld [vmem:[%s2990 + $0x10] sm:$0xff]
        %v2994 = vld [vmem:[%s2990 + $0x18] sm:$0xff]
        %v2995 = vld [vmem:[%s2990 + $0x20] sm:$0xff]
        %v2996 = vld [vmem:[%s2990 + $0x28] sm:$0xff]
        %v2997 = vld [vmem:[%s2990 + $0x30] sm:$0xff]
        %v2998 = vld [vmem:[%s2990 + $0x38] sm:$0xff]
        %v2999 = vld [vmem:[%s2990 + $0x40] sm:$0xff]
        %v3000 = vld [vmem:[%s2990 + $0x48] sm:$0xff]
        %v3001 = vld [vmem:[%s2990 + $0x50] sm:$0xff]
        %v3002 = vld [vmem:[%s2990 + $0x58] sm:$0xff]
        %v3003 = vld [vmem:[%s2990 + $0x60] sm:$0xff]
        %v3004 = vld [vmem:[%s2990 + $0x68] sm:$0xff]
        %v3005 = vld [vmem:[%s2990 + $0x70] sm:$0xff]
        %v3006 = vld [vmem:[%s2990 + $0x78] sm:$0xff]
        %v3007 = vld [vmem:[%s2990 + $0x80] sm:$0xff]
        %v3008 = vld [vmem:[%s2990 + $0x88] sm:$0xff]
        %v3009 = vld [vmem:[%s2990 + $0x90] sm:$0xff]
        %v3010 = vld [vmem:[%s2990 + $0x98] sm:$0xff]
        %v3011 = vld [vmem:[%s2990 + $0xa0] sm:$0xff]
        %v3012 = vld [vmem:[%s2990 + $0xa8] sm:$0xff]
        %v3013 = vld [vmem:[%s2990 + $0xb0] sm:$0xff]
        %v3014 = vld [vmem:[%s2990 + $0xb8] sm:$0xff]
        %v3015 = vld [vmem:[%s2990 + $0xc0] sm:$0xff]
        %v3016 = vld [vmem:[%s2990 + $0xc8] sm:$0xff]
        %v3017 = vld [vmem:[%s2990 + $0xd0] sm:$0xff]
        %v3018 = vld [vmem:[%s2990 + $0xd8] sm:$0xff]
        %v3019 = vld [vmem:[%s2990 + $0xe0] sm:$0xff]
        %v3020 = vld [vmem:[%s2990 + $0xe8] sm:$0xff]
        %v3021 = vld [vmem:[%s2990 + $0xf0] sm:$0xff]
        %v3022 = vld [vmem:[%s2990 + $0xf8] sm:$0xff]
        %v3023 = vld [vmem:[%s2990 + $0x100] sm:$0xff]
        %v3024 = vld [vmem:[%s2990 + $0x108] sm:$0xff]
        %v3025 = vld [vmem:[%s2990 + $0x110] sm:$0xff]
        %v3026 = vld [vmem:[%s2990 + $0x118] sm:$0xff]
        %v3027 = vld [vmem:[%s2990 + $0x120] sm:$0xff]
        %v3028 = vld [vmem:[%s2990 + $0x128] sm:$0xff]
        %v3029 = vld [vmem:[%s2990 + $0x130] sm:$0xff]
        %v3030 = vld [vmem:[%s2990 + $0x138] sm:$0xff]
        %v3031 = vld [vmem:[%s2990 + $0x140] sm:$0xff]
        %v3032 = vld [vmem:[%s2990 + $0x148] sm:$0xff]
        %v3033 = vld [vmem:[%s2990 + $0x150] sm:$0xff]
        %v3034 = vld [vmem:[%s2990 + $0x158] sm:$0xff]
        %v3035 = vld [vmem:[%s2990 + $0x160] sm:$0xff]
        %v3036 = vld [vmem:[%s2990 + $0x168] sm:$0xff]
        %v3037 = vld [vmem:[%s2990 + $0x170] sm:$0xff]
        %v3038 = vld [vmem:[%s2990 + $0x178] sm:$0xff]
        %3039 = vmatpush.msra.mxu0 %v3006
        %3040 = vmatpush.msra.mxu0 %v3005
        %3041 = vmatpush.msra.mxu0 %v3004
        %3042 = vmatpush.msra.mxu0 %v3003
        %3043 = vmatpush.msra.mxu0 %v3002
        %3044 = vmatpush.msra.mxu0 %v3001
        %3045 = vmatpush.msra.mxu0 %v3000
        %3046 = vmatpush.msra.mxu0 %v2999
        %3047 = vmatpush.msra.mxu0 %v2998
        %3048 = vmatpush.msra.mxu0 %v2997
        %3049 = vmatpush.msra.mxu0 %v2996
        %3050 = vmatpush.msra.mxu0 %v2995
        %3051 = vmatpush.msra.mxu0 %v2994
        %3052 = vmatpush.msra.mxu0 %v2993
        %3053 = vmatpush.msra.mxu0 %v2992
        %3054 = vmatpush.msra.mxu0 %v2991
        %3055 = vmatmul.f32.gmra.mxu0 %v687
        %v3056 = vpop.f32.mrf.mxu0
        %v3057 = vadd.f32 0.0, %v3056
        %3058 = vmatmul.f32.gmra.mxu0 %v690
        %v3059 = vpop.f32.mrf.mxu0
        %v3060 = vadd.f32 0.0, %v3059
        %3061 = vdwg.mxu0
        %3062 = vmatpush.msra.mxu0 %v3022
        %3063 = vmatpush.msra.mxu0 %v3021
        %3064 = vmatpush.msra.mxu0 %v3020
        %3065 = vmatpush.msra.mxu0 %v3019
        %3066 = vmatpush.msra.mxu0 %v3018
        %3067 = vmatpush.msra.mxu0 %v3017
        %3068 = vmatpush.msra.mxu0 %v3016
        %3069 = vmatpush.msra.mxu0 %v3015
        %3070 = vmatpush.msra.mxu0 %v3014
        %3071 = vmatpush.msra.mxu0 %v3013
        %3072 = vmatpush.msra.mxu0 %v3012
        %3073 = vmatpush.msra.mxu0 %v3011
        %3074 = vmatpush.msra.mxu0 %v3010
        %3075 = vmatpush.msra.mxu0 %v3009
        %3076 = vmatpush.msra.mxu0 %v3008
        %3077 = vmatpush.msra.mxu0 %v3007
        %3078 = vmatmul.f32.gmra.mxu0 %v688
        %v3079 = vpop.f32.mrf.mxu0
        %v3080 = vadd.f32 %v3057, %v3079
        %3081 = vmatmul.f32.gmra.mxu0 %v691
        %v3082 = vpop.f32.mrf.mxu0
        %v3083 = vadd.f32 %v3060, %v3082
        %3084 = vdwg.mxu0
        %3085 = vmatpush.msra.mxu0 %v3038
        %3086 = vmatpush.msra.mxu0 %v3037
        %3087 = vmatpush.msra.mxu0 %v3036
        %3088 = vmatpush.msra.mxu0 %v3035
        %3089 = vmatpush.msra.mxu0 %v3034
        %3090 = vmatpush.msra.mxu0 %v3033
        %3091 = vmatpush.msra.mxu0 %v3032
        %3092 = vmatpush.msra.mxu0 %v3031
        %3093 = vmatpush.msra.mxu0 %v3030
        %3094 = vmatpush.msra.mxu0 %v3029
        %3095 = vmatpush.msra.mxu0 %v3028
        %3096 = vmatpush.msra.mxu0 %v3027
        %3097 = vmatpush.msra.mxu0 %v3026
        %3098 = vmatpush.msra.mxu0 %v3025
        %3099 = vmatpush.msra.mxu0 %v3024
        %3100 = vmatpush.msra.mxu0 %v3023
        %3101 = vmatmul.f32.gmra.mxu0 %v689
        %v3102 = vpop.f32.mrf.mxu0
        %v3103 = vadd.f32 %v3080, %v3102
        %3104 = vmatmul.f32.gmra.mxu0 %v692
        %v3105 = vpop.f32.mrf.mxu0
        %v3106 = vadd.f32 %v3083, %v3105
        %3107 = vdwg.mxu0
        %s3108 = scalar_lea.vmem %s4, 1536
        %v3109 = vld [vmem:[%s3108] sm:$0xff]
        %v3110 = vld [vmem:[%s3108 + $0x8] sm:$0xff]
        %v3111 = vld [vmem:[%s3108 + $0x10] sm:$0xff]
        %v3112 = vld [vmem:[%s3108 + $0x18] sm:$0xff]
        %v3113 = vld [vmem:[%s3108 + $0x20] sm:$0xff]
        %v3114 = vld [vmem:[%s3108 + $0x28] sm:$0xff]
        %v3115 = vld [vmem:[%s3108 + $0x30] sm:$0xff]
        %v3116 = vld [vmem:[%s3108 + $0x38] sm:$0xff]
        %v3117 = vld [vmem:[%s3108 + $0x40] sm:$0xff]
        %v3118 = vld [vmem:[%s3108 + $0x48] sm:$0xff]
        %v3119 = vld [vmem:[%s3108 + $0x50] sm:$0xff]
        %v3120 = vld [vmem:[%s3108 + $0x58] sm:$0xff]
        %v3121 = vld [vmem:[%s3108 + $0x60] sm:$0xff]
        %v3122 = vld [vmem:[%s3108 + $0x68] sm:$0xff]
        %v3123 = vld [vmem:[%s3108 + $0x70] sm:$0xff]
        %v3124 = vld [vmem:[%s3108 + $0x78] sm:$0xff]
        %v3125 = vld [vmem:[%s3108 + $0x80] sm:$0xff]
        %v3126 = vld [vmem:[%s3108 + $0x88] sm:$0xff]
        %v3127 = vld [vmem:[%s3108 + $0x90] sm:$0xff]
        %v3128 = vld [vmem:[%s3108 + $0x98] sm:$0xff]
        %v3129 = vld [vmem:[%s3108 + $0xa0] sm:$0xff]
        %v3130 = vld [vmem:[%s3108 + $0xa8] sm:$0xff]
        %v3131 = vld [vmem:[%s3108 + $0xb0] sm:$0xff]
        %v3132 = vld [vmem:[%s3108 + $0xb8] sm:$0xff]
        %v3133 = vld [vmem:[%s3108 + $0xc0] sm:$0xff]
        %v3134 = vld [vmem:[%s3108 + $0xc8] sm:$0xff]
        %v3135 = vld [vmem:[%s3108 + $0xd0] sm:$0xff]
        %v3136 = vld [vmem:[%s3108 + $0xd8] sm:$0xff]
        %v3137 = vld [vmem:[%s3108 + $0xe0] sm:$0xff]
        %v3138 = vld [vmem:[%s3108 + $0xe8] sm:$0xff]
        %v3139 = vld [vmem:[%s3108 + $0xf0] sm:$0xff]
        %v3140 = vld [vmem:[%s3108 + $0xf8] sm:$0xff]
        %v3141 = vld [vmem:[%s3108 + $0x100] sm:$0xff]
        %v3142 = vld [vmem:[%s3108 + $0x108] sm:$0xff]
        %v3143 = vld [vmem:[%s3108 + $0x110] sm:$0xff]
        %v3144 = vld [vmem:[%s3108 + $0x118] sm:$0xff]
        %v3145 = vld [vmem:[%s3108 + $0x120] sm:$0xff]
        %v3146 = vld [vmem:[%s3108 + $0x128] sm:$0xff]
        %v3147 = vld [vmem:[%s3108 + $0x130] sm:$0xff]
        %v3148 = vld [vmem:[%s3108 + $0x138] sm:$0xff]
        %v3149 = vld [vmem:[%s3108 + $0x140] sm:$0xff]
        %v3150 = vld [vmem:[%s3108 + $0x148] sm:$0xff]
        %v3151 = vld [vmem:[%s3108 + $0x150] sm:$0xff]
        %v3152 = vld [vmem:[%s3108 + $0x158] sm:$0xff]
        %v3153 = vld [vmem:[%s3108 + $0x160] sm:$0xff]
        %v3154 = vld [vmem:[%s3108 + $0x168] sm:$0xff]
        %v3155 = vld [vmem:[%s3108 + $0x170] sm:$0xff]
        %v3156 = vld [vmem:[%s3108 + $0x178] sm:$0xff]
        %3157 = vmatpush.msra.mxu0 %v3124
        %3158 = vmatpush.msra.mxu0 %v3123
        %3159 = vmatpush.msra.mxu0 %v3122
        %3160 = vmatpush.msra.mxu0 %v3121
        %3161 = vmatpush.msra.mxu0 %v3120
        %3162 = vmatpush.msra.mxu0 %v3119
        %3163 = vmatpush.msra.mxu0 %v3118
        %3164 = vmatpush.msra.mxu0 %v3117
        %3165 = vmatpush.msra.mxu0 %v3116
        %3166 = vmatpush.msra.mxu0 %v3115
        %3167 = vmatpush.msra.mxu0 %v3114
        %3168 = vmatpush.msra.mxu0 %v3113
        %3169 = vmatpush.msra.mxu0 %v3112
        %3170 = vmatpush.msra.mxu0 %v3111
        %3171 = vmatpush.msra.mxu0 %v3110
        %3172 = vmatpush.msra.mxu0 %v3109
        %3173 = vmatmul.f32.gmra.mxu0 %v687
        %v3174 = vpop.f32.mrf.mxu0
        %v3175 = vadd.f32 0.0, %v3174
        %3176 = vmatmul.f32.gmra.mxu0 %v690
        %v3177 = vpop.f32.mrf.mxu0
        %v3178 = vadd.f32 0.0, %v3177
        %3179 = vdwg.mxu0
        %3180 = vmatpush.msra.mxu0 %v3140
        %3181 = vmatpush.msra.mxu0 %v3139
        %3182 = vmatpush.msra.mxu0 %v3138
        %3183 = vmatpush.msra.mxu0 %v3137
        %3184 = vmatpush.msra.mxu0 %v3136
        %3185 = vmatpush.msra.mxu0 %v3135
        %3186 = vmatpush.msra.mxu0 %v3134
        %3187 = vmatpush.msra.mxu0 %v3133
        %3188 = vmatpush.msra.mxu0 %v3132
        %3189 = vmatpush.msra.mxu0 %v3131
        %3190 = vmatpush.msra.mxu0 %v3130
        %3191 = vmatpush.msra.mxu0 %v3129
        %3192 = vmatpush.msra.mxu0 %v3128
        %3193 = vmatpush.msra.mxu0 %v3127
        %3194 = vmatpush.msra.mxu0 %v3126
        %3195 = vmatpush.msra.mxu0 %v3125
        %3196 = vmatmul.f32.gmra.mxu0 %v688
        %v3197 = vpop.f32.mrf.mxu0
        %v3198 = vadd.f32 %v3175, %v3197
        %3199 = vmatmul.f32.gmra.mxu0 %v691
        %v3200 = vpop.f32.mrf.mxu0
        %v3201 = vadd.f32 %v3178, %v3200
        %3202 = vdwg.mxu0
        %3203 = vmatpush.msra.mxu0 %v3156
        %3204 = vmatpush.msra.mxu0 %v3155
        %3205 = vmatpush.msra.mxu0 %v3154
        %3206 = vmatpush.msra.mxu0 %v3153
        %3207 = vmatpush.msra.mxu0 %v3152
        %3208 = vmatpush.msra.mxu0 %v3151
        %3209 = vmatpush.msra.mxu0 %v3150
        %3210 = vmatpush.msra.mxu0 %v3149
        %3211 = vmatpush.msra.mxu0 %v3148
        %3212 = vmatpush.msra.mxu0 %v3147
        %3213 = vmatpush.msra.mxu0 %v3146
        %3214 = vmatpush.msra.mxu0 %v3145
        %3215 = vmatpush.msra.mxu0 %v3144
        %3216 = vmatpush.msra.mxu0 %v3143
        %3217 = vmatpush.msra.mxu0 %v3142
        %3218 = vmatpush.msra.mxu0 %v3141
        %3219 = vmatmul.f32.gmra.mxu0 %v689
        %v3220 = vpop.f32.mrf.mxu0
        %v3221 = vadd.f32 %v3198, %v3220
        %3222 = vmatmul.f32.gmra.mxu0 %v692
        %v3223 = vpop.f32.mrf.mxu0
        %v3224 = vadd.f32 %v3201, %v3223
        %3225 = vdwg.mxu0
        %s3226 = scalar_lea.vmem %s5, 1536
        %v3227 = vld [vmem:[%s3226] sm:$0xff]
        %v3228 = vld [vmem:[%s3226 + $0x8] sm:$0xff]
        %v3229 = vld [vmem:[%s3226 + $0x10] sm:$0xff]
        %v3230 = vld [vmem:[%s3226 + $0x18] sm:$0xff]
        %v3231 = vld [vmem:[%s3226 + $0x20] sm:$0xff]
        %v3232 = vld [vmem:[%s3226 + $0x28] sm:$0xff]
        %v3233 = vld [vmem:[%s3226 + $0x30] sm:$0xff]
        %v3234 = vld [vmem:[%s3226 + $0x38] sm:$0xff]
        %v3235 = vld [vmem:[%s3226 + $0x40] sm:$0xff]
        %v3236 = vld [vmem:[%s3226 + $0x48] sm:$0xff]
        %v3237 = vld [vmem:[%s3226 + $0x50] sm:$0xff]
        %v3238 = vld [vmem:[%s3226 + $0x58] sm:$0xff]
        %v3239 = vld [vmem:[%s3226 + $0x60] sm:$0xff]
        %v3240 = vld [vmem:[%s3226 + $0x68] sm:$0xff]
        %v3241 = vld [vmem:[%s3226 + $0x70] sm:$0xff]
        %v3242 = vld [vmem:[%s3226 + $0x78] sm:$0xff]
        %v3243 = vld [vmem:[%s3226 + $0x80] sm:$0xff]
        %v3244 = vld [vmem:[%s3226 + $0x88] sm:$0xff]
        %v3245 = vld [vmem:[%s3226 + $0x90] sm:$0xff]
        %v3246 = vld [vmem:[%s3226 + $0x98] sm:$0xff]
        %v3247 = vld [vmem:[%s3226 + $0xa0] sm:$0xff]
        %v3248 = vld [vmem:[%s3226 + $0xa8] sm:$0xff]
        %v3249 = vld [vmem:[%s3226 + $0xb0] sm:$0xff]
        %v3250 = vld [vmem:[%s3226 + $0xb8] sm:$0xff]
        %v3251 = vld [vmem:[%s3226 + $0xc0] sm:$0xff]
        %v3252 = vld [vmem:[%s3226 + $0xc8] sm:$0xff]
        %v3253 = vld [vmem:[%s3226 + $0xd0] sm:$0xff]
        %v3254 = vld [vmem:[%s3226 + $0xd8] sm:$0xff]
        %v3255 = vld [vmem:[%s3226 + $0xe0] sm:$0xff]
        %v3256 = vld [vmem:[%s3226 + $0xe8] sm:$0xff]
        %v3257 = vld [vmem:[%s3226 + $0xf0] sm:$0xff]
        %v3258 = vld [vmem:[%s3226 + $0xf8] sm:$0xff]
        %v3259 = vld [vmem:[%s3226 + $0x100] sm:$0xff]
        %v3260 = vld [vmem:[%s3226 + $0x108] sm:$0xff]
        %v3261 = vld [vmem:[%s3226 + $0x110] sm:$0xff]
        %v3262 = vld [vmem:[%s3226 + $0x118] sm:$0xff]
        %v3263 = vld [vmem:[%s3226 + $0x120] sm:$0xff]
        %v3264 = vld [vmem:[%s3226 + $0x128] sm:$0xff]
        %v3265 = vld [vmem:[%s3226 + $0x130] sm:$0xff]
        %v3266 = vld [vmem:[%s3226 + $0x138] sm:$0xff]
        %v3267 = vld [vmem:[%s3226 + $0x140] sm:$0xff]
        %v3268 = vld [vmem:[%s3226 + $0x148] sm:$0xff]
        %v3269 = vld [vmem:[%s3226 + $0x150] sm:$0xff]
        %v3270 = vld [vmem:[%s3226 + $0x158] sm:$0xff]
        %v3271 = vld [vmem:[%s3226 + $0x160] sm:$0xff]
        %v3272 = vld [vmem:[%s3226 + $0x168] sm:$0xff]
        %v3273 = vld [vmem:[%s3226 + $0x170] sm:$0xff]
        %v3274 = vld [vmem:[%s3226 + $0x178] sm:$0xff]
        %3275 = vmatpush.msra.mxu0 %v3242
        %3276 = vmatpush.msra.mxu0 %v3241
        %3277 = vmatpush.msra.mxu0 %v3240
        %3278 = vmatpush.msra.mxu0 %v3239
        %3279 = vmatpush.msra.mxu0 %v3238
        %3280 = vmatpush.msra.mxu0 %v3237
        %3281 = vmatpush.msra.mxu0 %v3236
        %3282 = vmatpush.msra.mxu0 %v3235
        %3283 = vmatpush.msra.mxu0 %v3234
        %3284 = vmatpush.msra.mxu0 %v3233
        %3285 = vmatpush.msra.mxu0 %v3232
        %3286 = vmatpush.msra.mxu0 %v3231
        %3287 = vmatpush.msra.mxu0 %v3230
        %3288 = vmatpush.msra.mxu0 %v3229
        %3289 = vmatpush.msra.mxu0 %v3228
        %3290 = vmatpush.msra.mxu0 %v3227
        %3291 = vmatmul.f32.gmra.mxu0 %v687
        %v3292 = vpop.f32.mrf.mxu0
        %v3293 = vadd.f32 0.0, %v3292
        %3294 = vmatmul.f32.gmra.mxu0 %v690
        %v3295 = vpop.f32.mrf.mxu0
        %v3296 = vadd.f32 0.0, %v3295
        %3297 = vdwg.mxu0
        %3298 = vmatpush.msra.mxu0 %v3258
        %3299 = vmatpush.msra.mxu0 %v3257
        %3300 = vmatpush.msra.mxu0 %v3256
        %3301 = vmatpush.msra.mxu0 %v3255
        %3302 = vmatpush.msra.mxu0 %v3254
        %3303 = vmatpush.msra.mxu0 %v3253
        %3304 = vmatpush.msra.mxu0 %v3252
        %3305 = vmatpush.msra.mxu0 %v3251
        %3306 = vmatpush.msra.mxu0 %v3250
        %3307 = vmatpush.msra.mxu0 %v3249
        %3308 = vmatpush.msra.mxu0 %v3248
        %3309 = vmatpush.msra.mxu0 %v3247
        %3310 = vmatpush.msra.mxu0 %v3246
        %3311 = vmatpush.msra.mxu0 %v3245
        %3312 = vmatpush.msra.mxu0 %v3244
        %3313 = vmatpush.msra.mxu0 %v3243
        %3314 = vmatmul.f32.gmra.mxu0 %v688
        %v3315 = vpop.f32.mrf.mxu0
        %v3316 = vadd.f32 %v3293, %v3315
        %3317 = vmatmul.f32.gmra.mxu0 %v691
        %v3318 = vpop.f32.mrf.mxu0
        %v3319 = vadd.f32 %v3296, %v3318
        %3320 = vdwg.mxu0
        %3321 = vmatpush.msra.mxu0 %v3274
        %3322 = vmatpush.msra.mxu0 %v3273
        %3323 = vmatpush.msra.mxu0 %v3272
        %3324 = vmatpush.msra.mxu0 %v3271
        %3325 = vmatpush.msra.mxu0 %v3270
        %3326 = vmatpush.msra.mxu0 %v3269
        %3327 = vmatpush.msra.mxu0 %v3268
        %3328 = vmatpush.msra.mxu0 %v3267
        %3329 = vmatpush.msra.mxu0 %v3266
        %3330 = vmatpush.msra.mxu0 %v3265
        %3331 = vmatpush.msra.mxu0 %v3264
        %3332 = vmatpush.msra.mxu0 %v3263
        %3333 = vmatpush.msra.mxu0 %v3262
        %3334 = vmatpush.msra.mxu0 %v3261
        %3335 = vmatpush.msra.mxu0 %v3260
        %3336 = vmatpush.msra.mxu0 %v3259
        %3337 = vmatmul.f32.gmra.mxu0 %v689
        %v3338 = vpop.f32.mrf.mxu0
        %v3339 = vadd.f32 %v3316, %v3338
        %3340 = vmatmul.f32.gmra.mxu0 %v692
        %v3341 = vpop.f32.mrf.mxu0
        %v3342 = vadd.f32 %v3319, %v3341
        %3343 = vdwg.mxu0
        %v3345 = vsel %vm1051, %v3103, 0
        %v3348 = vsel %vm1051, %v3106, 0
        %v3351 = vsel %vm1051, %v3221, 0
        %v3354 = vsel %vm1051, %v3224, 0
        %3356 = vmatpush.xpose.msra.mxu0 0.0
        %3357 = vmatpush.xpose.msra.mxu0 0.0
        %3358 = vmatpush.xpose.msra.mxu0 0.0
        %3359 = vmatpush.xpose.msra.mxu0 0.0
        %3360 = vmatpush.xpose.msra.mxu0 0.0
        %3361 = vmatpush.xpose.msra.mxu0 0.0
        %3362 = vmatpush.xpose.msra.mxu0 0.0
        %3363 = vmatpush.xpose.msra.mxu0 0.0
        %3364 = vmatpush.xpose.msra.mxu0 0.0
        %3365 = vmatpush.xpose.msra.mxu0 0.0
        %3366 = vmatpush.xpose.msra.mxu0 0.0
        %3367 = vmatpush.xpose.msra.mxu0 0.0
        %3368 = vmatpush.xpose.msra.mxu0 0.0
        %3369 = vmatpush.xpose.msra.mxu0 0.0
        %3370 = vmatpush.xpose.msra.mxu0 %v3354
        %3371 = vmatpush.xpose.msra.mxu0 %v3351
        %3372 = vmatmul.f32.gmra.mxu0 %v3345
        %v3373 = vpop.f32.mrf.mxu0
        %v3374 = vadd.f32 0.0, %v3373
        %3375 = vmatmul.f32.gmra.mxu0 %v3348
        %v3376 = vpop.f32.mrf.mxu0
        %v3377 = vadd.f32 0.0, %v3376
        %3378 = vdwg.mxu0
        %v3379 = vmul.f32 %v3374, 0.05103104
        %v3380 = vmul.f32 %v3377, 0.05103104
        %v3381 = vsel %vm698, %v3379, -inf
        %v3382 = vsel %vm699, %v3380, -inf
        %v3383 = vsel %vm1091, %v3381, -inf
        %3384 = vmax.xlane.f32.xlu0 %v3383
        %v3385 = vpop.xlane.xlu0 %3384
        %v3386 = vsel %vm1091, %v3382, -inf
        %3387 = vmax.xlane.f32.xlu0 %v3386
        %v3388 = vpop.xlane.xlu0 %3387
        %v3389 = vsub.f32 %v3381, %v3385
        %v3390 = vsub.f32 %v3382, %v3388
        %v3391 = vmul.f32 %v3389, 1.442695
        %v3392 = vpow.pop %v3391
        %v3393 = vmul.f32 %v3390, 1.442695
        %v3394 = vpow.pop %v3393
        %v3395 = vsel %vm1091, %v3392, 0.0
        %3396 = vadd.xlane.f32.xlu0 %v3395
        %v3397 = vpop.xlane.xlu0 %3396
        %v3398 = vsel %vm1091, %v3394, 0.0
        %3399 = vadd.xlane.f32.xlu0 %v3398
        %v3400 = vpop.xlane.xlu0 %3399
        %v3401 = vrcp.pop %v3397
        %v3402 = vmul.f32 %v3397, %v3401
        %v3403 = vsub.f32 1.0, %v3402
        %v3404 = vmul.f32 %v3401, %v3403
        %v3405 = vadd.f32 %v3401, %v3404
        %vm3406 = vweird.f32 %v3397
        %vm3407 = vweird.f32 %v3401
        %vm3408 = vmor %vm3406, %vm3407
        %v3409 = vsel %vm3408, %v3401, %v3405
        %v3410 = vand.u32 2147483647, %v3397
        %vm3411 = vcmp.eq.f32.partialorder %v3410, 8.507059e+37
        %v3412 = vand.u32 %v3397, 2147483648
        %v3413 = vor.u32 1.1754944e-38, %v3412
        %v3414 = vsel %vm3411, %v3413, %v3409
        %v3415 = vmul.f32 %v3392, %v3414
        %v3416 = vrcp.pop %v3400
        %v3417 = vmul.f32 %v3400, %v3416
        %v3418 = vsub.f32 1.0, %v3417
        %v3419 = vmul.f32 %v3416, %v3418
        %v3420 = vadd.f32 %v3416, %v3419
        %vm3421 = vweird.f32 %v3400
        %vm3422 = vweird.f32 %v3416
        %vm3423 = vmor %vm3421, %vm3422
        %v3424 = vsel %vm3423, %v3416, %v3420
        %v3425 = vand.u32 2147483647, %v3400
        %vm3426 = vcmp.eq.f32.partialorder %v3425, 8.507059e+37
        %v3427 = vand.u32 %v3400, 2147483648
        %v3428 = vor.u32 1.1754944e-38, %v3427
        %v3429 = vsel %vm3426, %v3428, %v3424
        %v3430 = vmul.f32 %v3394, %v3429
        %v3432 = vsel %vm1091, %v3415, 0
        %v3435 = vsel %vm1091, %v3430, 0
        %3437 = vmatpush.msra.mxu0 0.0
        %3438 = vmatpush.msra.mxu0 0.0
        %3439 = vmatpush.msra.mxu0 0.0
        %3440 = vmatpush.msra.mxu0 0.0
        %3441 = vmatpush.msra.mxu0 0.0
        %3442 = vmatpush.msra.mxu0 0.0
        %3443 = vmatpush.msra.mxu0 0.0
        %3444 = vmatpush.msra.mxu0 0.0
        %3445 = vmatpush.msra.mxu0 0.0
        %3446 = vmatpush.msra.mxu0 0.0
        %3447 = vmatpush.msra.mxu0 0.0
        %3448 = vmatpush.msra.mxu0 0.0
        %3449 = vmatpush.msra.mxu0 0.0
        %3450 = vmatpush.msra.mxu0 0.0
        %3451 = vmatpush.msra.mxu0 %v3342
        %3452 = vmatpush.msra.mxu0 %v3339
        %3453 = vmatmul.f32.gmra.mxu0 %v3432
        %v3454 = vpop.f32.mrf.mxu0
        %v3455 = vadd.f32 0.0, %v3454
        %3456 = vmatmul.f32.gmra.mxu0 %v3435
        %v3457 = vpop.f32.mrf.mxu0
        %v3458 = vadd.f32 0.0, %v3457
        %3459 = vdwg.mxu0
        %s3460 = scalar_lea.vmem [#allocation7], 768
        %v3461 = vld [vmem:[%s3460] sm:$0xff]
        %v3462 = vld [vmem:[%s3460 + $0x8] sm:$0xff]
        %v3463 = vld [vmem:[%s3460 + $0x10] sm:$0xff]
        %v3464 = vld [vmem:[%s3460 + $0x18] sm:$0xff]
        %v3465 = vld [vmem:[%s3460 + $0x20] sm:$0xff]
        %v3466 = vld [vmem:[%s3460 + $0x28] sm:$0xff]
        %v3467 = vld [vmem:[%s3460 + $0x30] sm:$0xff]
        %v3468 = vld [vmem:[%s3460 + $0x38] sm:$0xff]
        %v3469 = vld [vmem:[%s3460 + $0x40] sm:$0xff]
        %v3470 = vld [vmem:[%s3460 + $0x48] sm:$0xff]
        %v3471 = vld [vmem:[%s3460 + $0x50] sm:$0xff]
        %v3472 = vld [vmem:[%s3460 + $0x58] sm:$0xff]
        %v3473 = vld [vmem:[%s3460 + $0x60] sm:$0xff]
        %v3474 = vld [vmem:[%s3460 + $0x68] sm:$0xff]
        %v3475 = vld [vmem:[%s3460 + $0x70] sm:$0xff]
        %v3476 = vld [vmem:[%s3460 + $0x78] sm:$0xff]
        %v3477 = vld [vmem:[%s3460 + $0x80] sm:$0xff]
        %v3478 = vld [vmem:[%s3460 + $0x88] sm:$0xff]
        %v3479 = vld [vmem:[%s3460 + $0x90] sm:$0xff]
        %v3480 = vld [vmem:[%s3460 + $0x98] sm:$0xff]
        %v3481 = vld [vmem:[%s3460 + $0xa0] sm:$0xff]
        %v3482 = vld [vmem:[%s3460 + $0xa8] sm:$0xff]
        %v3483 = vld [vmem:[%s3460 + $0xb0] sm:$0xff]
        %v3484 = vld [vmem:[%s3460 + $0xb8] sm:$0xff]
        %v3486 = vsel %vm1051, %v3455, 0
        %v3489 = vsel %vm1051, %v3458, 0
        %3491 = vmatpush.msra.mxu0 0.0
        %3492 = vmatpush.msra.mxu0 0.0
        %3493 = vmatpush.msra.mxu0 0.0
        %3494 = vmatpush.msra.mxu0 0.0
        %3495 = vmatpush.msra.mxu0 0.0
        %3496 = vmatpush.msra.mxu0 0.0
        %3497 = vmatpush.msra.mxu0 0.0
        %3498 = vmatpush.msra.mxu0 0.0
        %3499 = vmatpush.msra.mxu0 %v3482
        %3500 = vmatpush.msra.mxu0 %v3479
        %3501 = vmatpush.msra.mxu0 %v3476
        %3502 = vmatpush.msra.mxu0 %v3473
        %3503 = vmatpush.msra.mxu0 %v3470
        %3504 = vmatpush.msra.mxu0 %v3467
        %3505 = vmatpush.msra.mxu0 %v3464
        %3506 = vmatpush.msra.mxu0 %v3461
        %3507 = vmatmul.f32.gmra.mxu0 %v3486
        %v3508 = vpop.f32.mrf.mxu0
        %v3509 = vadd.f32 0.0, %v3508
        %3510 = vmatmul.f32.gmra.mxu0 %v3489
        %v3511 = vpop.f32.mrf.mxu0
        %v3512 = vadd.f32 0.0, %v3511
        %3513 = vdwg.mxu0
        %3514 = vmatpush.msra.mxu0 0.0
        %3515 = vmatpush.msra.mxu0 0.0
        %3516 = vmatpush.msra.mxu0 0.0
        %3517 = vmatpush.msra.mxu0 0.0
        %3518 = vmatpush.msra.mxu0 0.0
        %3519 = vmatpush.msra.mxu0 0.0
        %3520 = vmatpush.msra.mxu0 0.0
        %3521 = vmatpush.msra.mxu0 0.0
        %3522 = vmatpush.msra.mxu0 %v3483
        %3523 = vmatpush.msra.mxu0 %v3480
        %3524 = vmatpush.msra.mxu0 %v3477
        %3525 = vmatpush.msra.mxu0 %v3474
        %3526 = vmatpush.msra.mxu0 %v3471
        %3527 = vmatpush.msra.mxu0 %v3468
        %3528 = vmatpush.msra.mxu0 %v3465
        %3529 = vmatpush.msra.mxu0 %v3462
        %3530 = vmatmul.f32.gmra.mxu0 %v3486
        %v3531 = vpop.f32.mrf.mxu0
        %v3532 = vadd.f32 0.0, %v3531
        %3533 = vmatmul.f32.gmra.mxu0 %v3489
        %v3534 = vpop.f32.mrf.mxu0
        %v3535 = vadd.f32 0.0, %v3534
        %3536 = vdwg.mxu0
        %3537 = vmatpush.msra.mxu0 0.0
        %3538 = vmatpush.msra.mxu0 0.0
        %3539 = vmatpush.msra.mxu0 0.0
        %3540 = vmatpush.msra.mxu0 0.0
        %3541 = vmatpush.msra.mxu0 0.0
        %3542 = vmatpush.msra.mxu0 0.0
        %3543 = vmatpush.msra.mxu0 0.0
        %3544 = vmatpush.msra.mxu0 0.0
        %3545 = vmatpush.msra.mxu0 %v3484
        %3546 = vmatpush.msra.mxu0 %v3481
        %3547 = vmatpush.msra.mxu0 %v3478
        %3548 = vmatpush.msra.mxu0 %v3475
        %3549 = vmatpush.msra.mxu0 %v3472
        %3550 = vmatpush.msra.mxu0 %v3469
        %3551 = vmatpush.msra.mxu0 %v3466
        %3552 = vmatpush.msra.mxu0 %v3463
        %3553 = vmatmul.f32.gmra.mxu0 %v3486
        %v3554 = vpop.f32.mrf.mxu0
        %v3555 = vadd.f32 0.0, %v3554
        %3556 = vmatmul.f32.gmra.mxu0 %v3489
        %v3557 = vpop.f32.mrf.mxu0
        %v3558 = vadd.f32 0.0, %v3557
        %3559 = vdwg.mxu0
        %v3560 = vadd.f32 %v2984, %v3509
        %v3561 = vadd.f32 %v2985, %v3532
        %v3562 = vadd.f32 %v2986, %v3555
        %v3563 = vadd.f32 %v2987, %v3512
        %v3564 = vadd.f32 %v2988, %v3535
        %v3565 = vadd.f32 %v2989, %v3558
        %s3566 = scalar_lea.vmem %s3, 1920
        %v3567 = vld [vmem:[%s3566] sm:$0xff]
        %v3568 = vld [vmem:[%s3566 + $0x8] sm:$0xff]
        %v3569 = vld [vmem:[%s3566 + $0x10] sm:$0xff]
        %v3570 = vld [vmem:[%s3566 + $0x18] sm:$0xff]
        %v3571 = vld [vmem:[%s3566 + $0x20] sm:$0xff]
        %v3572 = vld [vmem:[%s3566 + $0x28] sm:$0xff]
        %v3573 = vld [vmem:[%s3566 + $0x30] sm:$0xff]
        %v3574 = vld [vmem:[%s3566 + $0x38] sm:$0xff]
        %v3575 = vld [vmem:[%s3566 + $0x40] sm:$0xff]
        %v3576 = vld [vmem:[%s3566 + $0x48] sm:$0xff]
        %v3577 = vld [vmem:[%s3566 + $0x50] sm:$0xff]
        %v3578 = vld [vmem:[%s3566 + $0x58] sm:$0xff]
        %v3579 = vld [vmem:[%s3566 + $0x60] sm:$0xff]
        %v3580 = vld [vmem:[%s3566 + $0x68] sm:$0xff]
        %v3581 = vld [vmem:[%s3566 + $0x70] sm:$0xff]
        %v3582 = vld [vmem:[%s3566 + $0x78] sm:$0xff]
        %v3583 = vld [vmem:[%s3566 + $0x80] sm:$0xff]
        %v3584 = vld [vmem:[%s3566 + $0x88] sm:$0xff]
        %v3585 = vld [vmem:[%s3566 + $0x90] sm:$0xff]
        %v3586 = vld [vmem:[%s3566 + $0x98] sm:$0xff]
        %v3587 = vld [vmem:[%s3566 + $0xa0] sm:$0xff]
        %v3588 = vld [vmem:[%s3566 + $0xa8] sm:$0xff]
        %v3589 = vld [vmem:[%s3566 + $0xb0] sm:$0xff]
        %v3590 = vld [vmem:[%s3566 + $0xb8] sm:$0xff]
        %v3591 = vld [vmem:[%s3566 + $0xc0] sm:$0xff]
        %v3592 = vld [vmem:[%s3566 + $0xc8] sm:$0xff]
        %v3593 = vld [vmem:[%s3566 + $0xd0] sm:$0xff]
        %v3594 = vld [vmem:[%s3566 + $0xd8] sm:$0xff]
        %v3595 = vld [vmem:[%s3566 + $0xe0] sm:$0xff]
        %v3596 = vld [vmem:[%s3566 + $0xe8] sm:$0xff]
        %v3597 = vld [vmem:[%s3566 + $0xf0] sm:$0xff]
        %v3598 = vld [vmem:[%s3566 + $0xf8] sm:$0xff]
        %v3599 = vld [vmem:[%s3566 + $0x100] sm:$0xff]
        %v3600 = vld [vmem:[%s3566 + $0x108] sm:$0xff]
        %v3601 = vld [vmem:[%s3566 + $0x110] sm:$0xff]
        %v3602 = vld [vmem:[%s3566 + $0x118] sm:$0xff]
        %v3603 = vld [vmem:[%s3566 + $0x120] sm:$0xff]
        %v3604 = vld [vmem:[%s3566 + $0x128] sm:$0xff]
        %v3605 = vld [vmem:[%s3566 + $0x130] sm:$0xff]
        %v3606 = vld [vmem:[%s3566 + $0x138] sm:$0xff]
        %v3607 = vld [vmem:[%s3566 + $0x140] sm:$0xff]
        %v3608 = vld [vmem:[%s3566 + $0x148] sm:$0xff]
        %v3609 = vld [vmem:[%s3566 + $0x150] sm:$0xff]
        %v3610 = vld [vmem:[%s3566 + $0x158] sm:$0xff]
        %v3611 = vld [vmem:[%s3566 + $0x160] sm:$0xff]
        %v3612 = vld [vmem:[%s3566 + $0x168] sm:$0xff]
        %v3613 = vld [vmem:[%s3566 + $0x170] sm:$0xff]
        %v3614 = vld [vmem:[%s3566 + $0x178] sm:$0xff]
        %3615 = vmatpush.msra.mxu0 %v3582
        %3616 = vmatpush.msra.mxu0 %v3581
        %3617 = vmatpush.msra.mxu0 %v3580
        %3618 = vmatpush.msra.mxu0 %v3579
        %3619 = vmatpush.msra.mxu0 %v3578
        %3620 = vmatpush.msra.mxu0 %v3577
        %3621 = vmatpush.msra.mxu0 %v3576
        %3622 = vmatpush.msra.mxu0 %v3575
        %3623 = vmatpush.msra.mxu0 %v3574
        %3624 = vmatpush.msra.mxu0 %v3573
        %3625 = vmatpush.msra.mxu0 %v3572
        %3626 = vmatpush.msra.mxu0 %v3571
        %3627 = vmatpush.msra.mxu0 %v3570
        %3628 = vmatpush.msra.mxu0 %v3569
        %3629 = vmatpush.msra.mxu0 %v3568
        %3630 = vmatpush.msra.mxu0 %v3567
        %3631 = vmatmul.f32.gmra.mxu0 %v687
        %v3632 = vpop.f32.mrf.mxu0
        %v3633 = vadd.f32 0.0, %v3632
        %3634 = vmatmul.f32.gmra.mxu0 %v690
        %v3635 = vpop.f32.mrf.mxu0
        %v3636 = vadd.f32 0.0, %v3635
        %3637 = vdwg.mxu0
        %3638 = vmatpush.msra.mxu0 %v3598
        %3639 = vmatpush.msra.mxu0 %v3597
        %3640 = vmatpush.msra.mxu0 %v3596
        %3641 = vmatpush.msra.mxu0 %v3595
        %3642 = vmatpush.msra.mxu0 %v3594
        %3643 = vmatpush.msra.mxu0 %v3593
        %3644 = vmatpush.msra.mxu0 %v3592
        %3645 = vmatpush.msra.mxu0 %v3591
        %3646 = vmatpush.msra.mxu0 %v3590
        %3647 = vmatpush.msra.mxu0 %v3589
        %3648 = vmatpush.msra.mxu0 %v3588
        %3649 = vmatpush.msra.mxu0 %v3587
        %3650 = vmatpush.msra.mxu0 %v3586
        %3651 = vmatpush.msra.mxu0 %v3585
        %3652 = vmatpush.msra.mxu0 %v3584
        %3653 = vmatpush.msra.mxu0 %v3583
        %3654 = vmatmul.f32.gmra.mxu0 %v688
        %v3655 = vpop.f32.mrf.mxu0
        %v3656 = vadd.f32 %v3633, %v3655
        %3657 = vmatmul.f32.gmra.mxu0 %v691
        %v3658 = vpop.f32.mrf.mxu0
        %v3659 = vadd.f32 %v3636, %v3658
        %3660 = vdwg.mxu0
        %3661 = vmatpush.msra.mxu0 %v3614
        %3662 = vmatpush.msra.mxu0 %v3613
        %3663 = vmatpush.msra.mxu0 %v3612
        %3664 = vmatpush.msra.mxu0 %v3611
        %3665 = vmatpush.msra.mxu0 %v3610
        %3666 = vmatpush.msra.mxu0 %v3609
        %3667 = vmatpush.msra.mxu0 %v3608
        %3668 = vmatpush.msra.mxu0 %v3607
        %3669 = vmatpush.msra.mxu0 %v3606
        %3670 = vmatpush.msra.mxu0 %v3605
        %3671 = vmatpush.msra.mxu0 %v3604
        %3672 = vmatpush.msra.mxu0 %v3603
        %3673 = vmatpush.msra.mxu0 %v3602
        %3674 = vmatpush.msra.mxu0 %v3601
        %3675 = vmatpush.msra.mxu0 %v3600
        %3676 = vmatpush.msra.mxu0 %v3599
        %3677 = vmatmul.f32.gmra.mxu0 %v689
        %v3678 = vpop.f32.mrf.mxu0
        %v3679 = vadd.f32 %v3656, %v3678
        %3680 = vmatmul.f32.gmra.mxu0 %v692
        %v3681 = vpop.f32.mrf.mxu0
        %v3682 = vadd.f32 %v3659, %v3681
        %3683 = vdwg.mxu0
        %s3684 = scalar_lea.vmem %s4, 1920
        %v3685 = vld [vmem:[%s3684] sm:$0xff]
        %v3686 = vld [vmem:[%s3684 + $0x8] sm:$0xff]
        %v3687 = vld [vmem:[%s3684 + $0x10] sm:$0xff]
        %v3688 = vld [vmem:[%s3684 + $0x18] sm:$0xff]
        %v3689 = vld [vmem:[%s3684 + $0x20] sm:$0xff]
        %v3690 = vld [vmem:[%s3684 + $0x28] sm:$0xff]
        %v3691 = vld [vmem:[%s3684 + $0x30] sm:$0xff]
        %v3692 = vld [vmem:[%s3684 + $0x38] sm:$0xff]
        %v3693 = vld [vmem:[%s3684 + $0x40] sm:$0xff]
        %v3694 = vld [vmem:[%s3684 + $0x48] sm:$0xff]
        %v3695 = vld [vmem:[%s3684 + $0x50] sm:$0xff]
        %v3696 = vld [vmem:[%s3684 + $0x58] sm:$0xff]
        %v3697 = vld [vmem:[%s3684 + $0x60] sm:$0xff]
        %v3698 = vld [vmem:[%s3684 + $0x68] sm:$0xff]
        %v3699 = vld [vmem:[%s3684 + $0x70] sm:$0xff]
        %v3700 = vld [vmem:[%s3684 + $0x78] sm:$0xff]
        %v3701 = vld [vmem:[%s3684 + $0x80] sm:$0xff]
        %v3702 = vld [vmem:[%s3684 + $0x88] sm:$0xff]
        %v3703 = vld [vmem:[%s3684 + $0x90] sm:$0xff]
        %v3704 = vld [vmem:[%s3684 + $0x98] sm:$0xff]
        %v3705 = vld [vmem:[%s3684 + $0xa0] sm:$0xff]
        %v3706 = vld [vmem:[%s3684 + $0xa8] sm:$0xff]
        %v3707 = vld [vmem:[%s3684 + $0xb0] sm:$0xff]
        %v3708 = vld [vmem:[%s3684 + $0xb8] sm:$0xff]
        %v3709 = vld [vmem:[%s3684 + $0xc0] sm:$0xff]
        %v3710 = vld [vmem:[%s3684 + $0xc8] sm:$0xff]
        %v3711 = vld [vmem:[%s3684 + $0xd0] sm:$0xff]
        %v3712 = vld [vmem:[%s3684 + $0xd8] sm:$0xff]
        %v3713 = vld [vmem:[%s3684 + $0xe0] sm:$0xff]
        %v3714 = vld [vmem:[%s3684 + $0xe8] sm:$0xff]
        %v3715 = vld [vmem:[%s3684 + $0xf0] sm:$0xff]
        %v3716 = vld [vmem:[%s3684 + $0xf8] sm:$0xff]
        %v3717 = vld [vmem:[%s3684 + $0x100] sm:$0xff]
        %v3718 = vld [vmem:[%s3684 + $0x108] sm:$0xff]
        %v3719 = vld [vmem:[%s3684 + $0x110] sm:$0xff]
        %v3720 = vld [vmem:[%s3684 + $0x118] sm:$0xff]
        %v3721 = vld [vmem:[%s3684 + $0x120] sm:$0xff]
        %v3722 = vld [vmem:[%s3684 + $0x128] sm:$0xff]
        %v3723 = vld [vmem:[%s3684 + $0x130] sm:$0xff]
        %v3724 = vld [vmem:[%s3684 + $0x138] sm:$0xff]
        %v3725 = vld [vmem:[%s3684 + $0x140] sm:$0xff]
        %v3726 = vld [vmem:[%s3684 + $0x148] sm:$0xff]
        %v3727 = vld [vmem:[%s3684 + $0x150] sm:$0xff]
        %v3728 = vld [vmem:[%s3684 + $0x158] sm:$0xff]
        %v3729 = vld [vmem:[%s3684 + $0x160] sm:$0xff]
        %v3730 = vld [vmem:[%s3684 + $0x168] sm:$0xff]
        %v3731 = vld [vmem:[%s3684 + $0x170] sm:$0xff]
        %v3732 = vld [vmem:[%s3684 + $0x178] sm:$0xff]
        %3733 = vmatpush.msra.mxu0 %v3700
        %3734 = vmatpush.msra.mxu0 %v3699
        %3735 = vmatpush.msra.mxu0 %v3698
        %3736 = vmatpush.msra.mxu0 %v3697
        %3737 = vmatpush.msra.mxu0 %v3696
        %3738 = vmatpush.msra.mxu0 %v3695
        %3739 = vmatpush.msra.mxu0 %v3694
        %3740 = vmatpush.msra.mxu0 %v3693
        %3741 = vmatpush.msra.mxu0 %v3692
        %3742 = vmatpush.msra.mxu0 %v3691
        %3743 = vmatpush.msra.mxu0 %v3690
        %3744 = vmatpush.msra.mxu0 %v3689
        %3745 = vmatpush.msra.mxu0 %v3688
        %3746 = vmatpush.msra.mxu0 %v3687
        %3747 = vmatpush.msra.mxu0 %v3686
        %3748 = vmatpush.msra.mxu0 %v3685
        %3749 = vmatmul.f32.gmra.mxu0 %v687
        %v3750 = vpop.f32.mrf.mxu0
        %v3751 = vadd.f32 0.0, %v3750
        %3752 = vmatmul.f32.gmra.mxu0 %v690
        %v3753 = vpop.f32.mrf.mxu0
        %v3754 = vadd.f32 0.0, %v3753
        %3755 = vdwg.mxu0
        %3756 = vmatpush.msra.mxu0 %v3716
        %3757 = vmatpush.msra.mxu0 %v3715
        %3758 = vmatpush.msra.mxu0 %v3714
        %3759 = vmatpush.msra.mxu0 %v3713
        %3760 = vmatpush.msra.mxu0 %v3712
        %3761 = vmatpush.msra.mxu0 %v3711
        %3762 = vmatpush.msra.mxu0 %v3710
        %3763 = vmatpush.msra.mxu0 %v3709
        %3764 = vmatpush.msra.mxu0 %v3708
        %3765 = vmatpush.msra.mxu0 %v3707
        %3766 = vmatpush.msra.mxu0 %v3706
        %3767 = vmatpush.msra.mxu0 %v3705
        %3768 = vmatpush.msra.mxu0 %v3704
        %3769 = vmatpush.msra.mxu0 %v3703
        %3770 = vmatpush.msra.mxu0 %v3702
        %3771 = vmatpush.msra.mxu0 %v3701
        %3772 = vmatmul.f32.gmra.mxu0 %v688
        %v3773 = vpop.f32.mrf.mxu0
        %v3774 = vadd.f32 %v3751, %v3773
        %3775 = vmatmul.f32.gmra.mxu0 %v691
        %v3776 = vpop.f32.mrf.mxu0
        %v3777 = vadd.f32 %v3754, %v3776
        %3778 = vdwg.mxu0
        %3779 = vmatpush.msra.mxu0 %v3732
        %3780 = vmatpush.msra.mxu0 %v3731
        %3781 = vmatpush.msra.mxu0 %v3730
        %3782 = vmatpush.msra.mxu0 %v3729
        %3783 = vmatpush.msra.mxu0 %v3728
        %3784 = vmatpush.msra.mxu0 %v3727
        %3785 = vmatpush.msra.mxu0 %v3726
        %3786 = vmatpush.msra.mxu0 %v3725
        %3787 = vmatpush.msra.mxu0 %v3724
        %3788 = vmatpush.msra.mxu0 %v3723
        %3789 = vmatpush.msra.mxu0 %v3722
        %3790 = vmatpush.msra.mxu0 %v3721
        %3791 = vmatpush.msra.mxu0 %v3720
        %3792 = vmatpush.msra.mxu0 %v3719
        %3793 = vmatpush.msra.mxu0 %v3718
        %3794 = vmatpush.msra.mxu0 %v3717
        %3795 = vmatmul.f32.gmra.mxu0 %v689
        %v3796 = vpop.f32.mrf.mxu0
        %v3797 = vadd.f32 %v3774, %v3796
        %3798 = vmatmul.f32.gmra.mxu0 %v692
        %v3799 = vpop.f32.mrf.mxu0
        %v3800 = vadd.f32 %v3777, %v3799
        %3801 = vdwg.mxu0
        %s3802 = scalar_lea.vmem %s5, 1920
        %v3803 = vld [vmem:[%s3802] sm:$0xff]
        %v3804 = vld [vmem:[%s3802 + $0x8] sm:$0xff]
        %v3805 = vld [vmem:[%s3802 + $0x10] sm:$0xff]
        %v3806 = vld [vmem:[%s3802 + $0x18] sm:$0xff]
        %v3807 = vld [vmem:[%s3802 + $0x20] sm:$0xff]
        %v3808 = vld [vmem:[%s3802 + $0x28] sm:$0xff]
        %v3809 = vld [vmem:[%s3802 + $0x30] sm:$0xff]
        %v3810 = vld [vmem:[%s3802 + $0x38] sm:$0xff]
        %v3811 = vld [vmem:[%s3802 + $0x40] sm:$0xff]
        %v3812 = vld [vmem:[%s3802 + $0x48] sm:$0xff]
        %v3813 = vld [vmem:[%s3802 + $0x50] sm:$0xff]
        %v3814 = vld [vmem:[%s3802 + $0x58] sm:$0xff]
        %v3815 = vld [vmem:[%s3802 + $0x60] sm:$0xff]
        %v3816 = vld [vmem:[%s3802 + $0x68] sm:$0xff]
        %v3817 = vld [vmem:[%s3802 + $0x70] sm:$0xff]
        %v3818 = vld [vmem:[%s3802 + $0x78] sm:$0xff]
        %v3819 = vld [vmem:[%s3802 + $0x80] sm:$0xff]
        %v3820 = vld [vmem:[%s3802 + $0x88] sm:$0xff]
        %v3821 = vld [vmem:[%s3802 + $0x90] sm:$0xff]
        %v3822 = vld [vmem:[%s3802 + $0x98] sm:$0xff]
        %v3823 = vld [vmem:[%s3802 + $0xa0] sm:$0xff]
        %v3824 = vld [vmem:[%s3802 + $0xa8] sm:$0xff]
        %v3825 = vld [vmem:[%s3802 + $0xb0] sm:$0xff]
        %v3826 = vld [vmem:[%s3802 + $0xb8] sm:$0xff]
        %v3827 = vld [vmem:[%s3802 + $0xc0] sm:$0xff]
        %v3828 = vld [vmem:[%s3802 + $0xc8] sm:$0xff]
        %v3829 = vld [vmem:[%s3802 + $0xd0] sm:$0xff]
        %v3830 = vld [vmem:[%s3802 + $0xd8] sm:$0xff]
        %v3831 = vld [vmem:[%s3802 + $0xe0] sm:$0xff]
        %v3832 = vld [vmem:[%s3802 + $0xe8] sm:$0xff]
        %v3833 = vld [vmem:[%s3802 + $0xf0] sm:$0xff]
        %v3834 = vld [vmem:[%s3802 + $0xf8] sm:$0xff]
        %v3835 = vld [vmem:[%s3802 + $0x100] sm:$0xff]
        %v3836 = vld [vmem:[%s3802 + $0x108] sm:$0xff]
        %v3837 = vld [vmem:[%s3802 + $0x110] sm:$0xff]
        %v3838 = vld [vmem:[%s3802 + $0x118] sm:$0xff]
        %v3839 = vld [vmem:[%s3802 + $0x120] sm:$0xff]
        %v3840 = vld [vmem:[%s3802 + $0x128] sm:$0xff]
        %v3841 = vld [vmem:[%s3802 + $0x130] sm:$0xff]
        %v3842 = vld [vmem:[%s3802 + $0x138] sm:$0xff]
        %v3843 = vld [vmem:[%s3802 + $0x140] sm:$0xff]
        %v3844 = vld [vmem:[%s3802 + $0x148] sm:$0xff]
        %v3845 = vld [vmem:[%s3802 + $0x150] sm:$0xff]
        %v3846 = vld [vmem:[%s3802 + $0x158] sm:$0xff]
        %v3847 = vld [vmem:[%s3802 + $0x160] sm:$0xff]
        %v3848 = vld [vmem:[%s3802 + $0x168] sm:$0xff]
        %v3849 = vld [vmem:[%s3802 + $0x170] sm:$0xff]
        %v3850 = vld [vmem:[%s3802 + $0x178] sm:$0xff]
        %3851 = vmatpush.msra.mxu0 %v3818
        %3852 = vmatpush.msra.mxu0 %v3817
        %3853 = vmatpush.msra.mxu0 %v3816
        %3854 = vmatpush.msra.mxu0 %v3815
        %3855 = vmatpush.msra.mxu0 %v3814
        %3856 = vmatpush.msra.mxu0 %v3813
        %3857 = vmatpush.msra.mxu0 %v3812
        %3858 = vmatpush.msra.mxu0 %v3811
        %3859 = vmatpush.msra.mxu0 %v3810
        %3860 = vmatpush.msra.mxu0 %v3809
        %3861 = vmatpush.msra.mxu0 %v3808
        %3862 = vmatpush.msra.mxu0 %v3807
        %3863 = vmatpush.msra.mxu0 %v3806
        %3864 = vmatpush.msra.mxu0 %v3805
        %3865 = vmatpush.msra.mxu0 %v3804
        %3866 = vmatpush.msra.mxu0 %v3803
        %3867 = vmatmul.f32.gmra.mxu0 %v687
        %v3868 = vpop.f32.mrf.mxu0
        %v3869 = vadd.f32 0.0, %v3868
        %3870 = vmatmul.f32.gmra.mxu0 %v690
        %v3871 = vpop.f32.mrf.mxu0
        %v3872 = vadd.f32 0.0, %v3871
        %3873 = vdwg.mxu0
        %3874 = vmatpush.msra.mxu0 %v3834
        %3875 = vmatpush.msra.mxu0 %v3833
        %3876 = vmatpush.msra.mxu0 %v3832
        %3877 = vmatpush.msra.mxu0 %v3831
        %3878 = vmatpush.msra.mxu0 %v3830
        %3879 = vmatpush.msra.mxu0 %v3829
        %3880 = vmatpush.msra.mxu0 %v3828
        %3881 = vmatpush.msra.mxu0 %v3827
        %3882 = vmatpush.msra.mxu0 %v3826
        %3883 = vmatpush.msra.mxu0 %v3825
        %3884 = vmatpush.msra.mxu0 %v3824
        %3885 = vmatpush.msra.mxu0 %v3823
        %3886 = vmatpush.msra.mxu0 %v3822
        %3887 = vmatpush.msra.mxu0 %v3821
        %3888 = vmatpush.msra.mxu0 %v3820
        %3889 = vmatpush.msra.mxu0 %v3819
        %3890 = vmatmul.f32.gmra.mxu0 %v688
        %v3891 = vpop.f32.mrf.mxu0
        %v3892 = vadd.f32 %v3869, %v3891
        %3893 = vmatmul.f32.gmra.mxu0 %v691
        %v3894 = vpop.f32.mrf.mxu0
        %v3895 = vadd.f32 %v3872, %v3894
        %3896 = vdwg.mxu0
        %3897 = vmatpush.msra.mxu0 %v3850
        %3898 = vmatpush.msra.mxu0 %v3849
        %3899 = vmatpush.msra.mxu0 %v3848
        %3900 = vmatpush.msra.mxu0 %v3847
        %3901 = vmatpush.msra.mxu0 %v3846
        %3902 = vmatpush.msra.mxu0 %v3845
        %3903 = vmatpush.msra.mxu0 %v3844
        %3904 = vmatpush.msra.mxu0 %v3843
        %3905 = vmatpush.msra.mxu0 %v3842
        %3906 = vmatpush.msra.mxu0 %v3841
        %3907 = vmatpush.msra.mxu0 %v3840
        %3908 = vmatpush.msra.mxu0 %v3839
        %3909 = vmatpush.msra.mxu0 %v3838
        %3910 = vmatpush.msra.mxu0 %v3837
        %3911 = vmatpush.msra.mxu0 %v3836
        %3912 = vmatpush.msra.mxu0 %v3835
        %3913 = vmatmul.f32.gmra.mxu0 %v689
        %v3914 = vpop.f32.mrf.mxu0
        %v3915 = vadd.f32 %v3892, %v3914
        %3916 = vmatmul.f32.gmra.mxu0 %v692
        %v3917 = vpop.f32.mrf.mxu0
        %v3918 = vadd.f32 %v3895, %v3917
        %3919 = vdwg.mxu0
        %v3921 = vsel %vm1051, %v3679, 0
        %v3924 = vsel %vm1051, %v3682, 0
        %v3927 = vsel %vm1051, %v3797, 0
        %v3930 = vsel %vm1051, %v3800, 0
        %3932 = vmatpush.xpose.msra.mxu0 0.0
        %3933 = vmatpush.xpose.msra.mxu0 0.0
        %3934 = vmatpush.xpose.msra.mxu0 0.0
        %3935 = vmatpush.xpose.msra.mxu0 0.0
        %3936 = vmatpush.xpose.msra.mxu0 0.0
        %3937 = vmatpush.xpose.msra.mxu0 0.0
        %3938 = vmatpush.xpose.msra.mxu0 0.0
        %3939 = vmatpush.xpose.msra.mxu0 0.0
        %3940 = vmatpush.xpose.msra.mxu0 0.0
        %3941 = vmatpush.xpose.msra.mxu0 0.0
        %3942 = vmatpush.xpose.msra.mxu0 0.0
        %3943 = vmatpush.xpose.msra.mxu0 0.0
        %3944 = vmatpush.xpose.msra.mxu0 0.0
        %3945 = vmatpush.xpose.msra.mxu0 0.0
        %3946 = vmatpush.xpose.msra.mxu0 %v3930
        %3947 = vmatpush.xpose.msra.mxu0 %v3927
        %3948 = vmatmul.f32.gmra.mxu0 %v3921
        %v3949 = vpop.f32.mrf.mxu0
        %v3950 = vadd.f32 0.0, %v3949
        %3951 = vmatmul.f32.gmra.mxu0 %v3924
        %v3952 = vpop.f32.mrf.mxu0
        %v3953 = vadd.f32 0.0, %v3952
        %3954 = vdwg.mxu0
        %v3955 = vmul.f32 %v3950, 0.05103104
        %v3956 = vmul.f32 %v3953, 0.05103104
        %v3957 = vsel %vm698, %v3955, -inf
        %v3958 = vsel %vm699, %v3956, -inf
        %v3959 = vsel %vm1091, %v3957, -inf
        %3960 = vmax.xlane.f32.xlu0 %v3959
        %v3961 = vpop.xlane.xlu0 %3960
        %v3962 = vsel %vm1091, %v3958, -inf
        %3963 = vmax.xlane.f32.xlu0 %v3962
        %v3964 = vpop.xlane.xlu0 %3963
        %v3965 = vsub.f32 %v3957, %v3961
        %v3966 = vsub.f32 %v3958, %v3964
        %v3967 = vmul.f32 %v3965, 1.442695
        %v3968 = vpow.pop %v3967
        %v3969 = vmul.f32 %v3966, 1.442695
        %v3970 = vpow.pop %v3969
        %v3971 = vsel %vm1091, %v3968, 0.0
        %3972 = vadd.xlane.f32.xlu0 %v3971
        %v3973 = vpop.xlane.xlu0 %3972
        %v3974 = vsel %vm1091, %v3970, 0.0
        %3975 = vadd.xlane.f32.xlu0 %v3974
        %v3976 = vpop.xlane.xlu0 %3975
        %v3977 = vrcp.pop %v3973
        %v3978 = vmul.f32 %v3973, %v3977
        %v3979 = vsub.f32 1.0, %v3978
        %v3980 = vmul.f32 %v3977, %v3979
        %v3981 = vadd.f32 %v3977, %v3980
        %vm3982 = vweird.f32 %v3973
        %vm3983 = vweird.f32 %v3977
        %vm3984 = vmor %vm3982, %vm3983
        %v3985 = vsel %vm3984, %v3977, %v3981
        %v3986 = vand.u32 2147483647, %v3973
        %vm3987 = vcmp.eq.f32.partialorder %v3986, 8.507059e+37
        %v3988 = vand.u32 %v3973, 2147483648
        %v3989 = vor.u32 1.1754944e-38, %v3988
        %v3990 = vsel %vm3987, %v3989, %v3985
        %v3991 = vmul.f32 %v3968, %v3990
        %v3992 = vrcp.pop %v3976
        %v3993 = vmul.f32 %v3976, %v3992
        %v3994 = vsub.f32 1.0, %v3993
        %v3995 = vmul.f32 %v3992, %v3994
        %v3996 = vadd.f32 %v3992, %v3995
        %vm3997 = vweird.f32 %v3976
        %vm3998 = vweird.f32 %v3992
        %vm3999 = vmor %vm3997, %vm3998
        %v4000 = vsel %vm3999, %v3992, %v3996
        %v4001 = vand.u32 2147483647, %v3976
        %vm4002 = vcmp.eq.f32.partialorder %v4001, 8.507059e+37
        %v4003 = vand.u32 %v3976, 2147483648
        %v4004 = vor.u32 1.1754944e-38, %v4003
        %v4005 = vsel %vm4002, %v4004, %v4000
        %v4006 = vmul.f32 %v3970, %v4005
        %v4008 = vsel %vm1091, %v3991, 0
        %v4011 = vsel %vm1091, %v4006, 0
        %4013 = vmatpush.msra.mxu0 0.0
        %4014 = vmatpush.msra.mxu0 0.0
        %4015 = vmatpush.msra.mxu0 0.0
        %4016 = vmatpush.msra.mxu0 0.0
        %4017 = vmatpush.msra.mxu0 0.0
        %4018 = vmatpush.msra.mxu0 0.0
        %4019 = vmatpush.msra.mxu0 0.0
        %4020 = vmatpush.msra.mxu0 0.0
        %4021 = vmatpush.msra.mxu0 0.0
        %4022 = vmatpush.msra.mxu0 0.0
        %4023 = vmatpush.msra.mxu0 0.0
        %4024 = vmatpush.msra.mxu0 0.0
        %4025 = vmatpush.msra.mxu0 0.0
        %4026 = vmatpush.msra.mxu0 0.0
        %4027 = vmatpush.msra.mxu0 %v3918
        %4028 = vmatpush.msra.mxu0 %v3915
        %4029 = vmatmul.f32.gmra.mxu0 %v4008
        %v4030 = vpop.f32.mrf.mxu0
        %v4031 = vadd.f32 0.0, %v4030
        %4032 = vmatmul.f32.gmra.mxu0 %v4011
        %v4033 = vpop.f32.mrf.mxu0
        %v4034 = vadd.f32 0.0, %v4033
        %4035 = vdwg.mxu0
        %s4036 = scalar_lea.vmem [#allocation7], 960
        %v4037 = vld [vmem:[%s4036] sm:$0xff]
        %v4038 = vld [vmem:[%s4036 + $0x8] sm:$0xff]
        %v4039 = vld [vmem:[%s4036 + $0x10] sm:$0xff]
        %v4040 = vld [vmem:[%s4036 + $0x18] sm:$0xff]
        %v4041 = vld [vmem:[%s4036 + $0x20] sm:$0xff]
        %v4042 = vld [vmem:[%s4036 + $0x28] sm:$0xff]
        %v4043 = vld [vmem:[%s4036 + $0x30] sm:$0xff]
        %v4044 = vld [vmem:[%s4036 + $0x38] sm:$0xff]
        %v4045 = vld [vmem:[%s4036 + $0x40] sm:$0xff]
        %v4046 = vld [vmem:[%s4036 + $0x48] sm:$0xff]
        %v4047 = vld [vmem:[%s4036 + $0x50] sm:$0xff]
        %v4048 = vld [vmem:[%s4036 + $0x58] sm:$0xff]
        %v4049 = vld [vmem:[%s4036 + $0x60] sm:$0xff]
        %v4050 = vld [vmem:[%s4036 + $0x68] sm:$0xff]
        %v4051 = vld [vmem:[%s4036 + $0x70] sm:$0xff]
        %v4052 = vld [vmem:[%s4036 + $0x78] sm:$0xff]
        %v4053 = vld [vmem:[%s4036 + $0x80] sm:$0xff]
        %v4054 = vld [vmem:[%s4036 + $0x88] sm:$0xff]
        %v4055 = vld [vmem:[%s4036 + $0x90] sm:$0xff]
        %v4056 = vld [vmem:[%s4036 + $0x98] sm:$0xff]
        %v4057 = vld [vmem:[%s4036 + $0xa0] sm:$0xff]
        %v4058 = vld [vmem:[%s4036 + $0xa8] sm:$0xff]
        %v4059 = vld [vmem:[%s4036 + $0xb0] sm:$0xff]
        %v4060 = vld [vmem:[%s4036 + $0xb8] sm:$0xff]
        %v4062 = vsel %vm1051, %v4031, 0
        %v4065 = vsel %vm1051, %v4034, 0
        %4067 = vmatpush.msra.mxu0 0.0
        %4068 = vmatpush.msra.mxu0 0.0
        %4069 = vmatpush.msra.mxu0 0.0
        %4070 = vmatpush.msra.mxu0 0.0
        %4071 = vmatpush.msra.mxu0 0.0
        %4072 = vmatpush.msra.mxu0 0.0
        %4073 = vmatpush.msra.mxu0 0.0
        %4074 = vmatpush.msra.mxu0 0.0
        %4075 = vmatpush.msra.mxu0 %v4058
        %4076 = vmatpush.msra.mxu0 %v4055
        %4077 = vmatpush.msra.mxu0 %v4052
        %4078 = vmatpush.msra.mxu0 %v4049
        %4079 = vmatpush.msra.mxu0 %v4046
        %4080 = vmatpush.msra.mxu0 %v4043
        %4081 = vmatpush.msra.mxu0 %v4040
        %4082 = vmatpush.msra.mxu0 %v4037
        %4083 = vmatmul.f32.gmra.mxu0 %v4062
        %v4084 = vpop.f32.mrf.mxu0
        %v4085 = vadd.f32 0.0, %v4084
        %4086 = vmatmul.f32.gmra.mxu0 %v4065
        %v4087 = vpop.f32.mrf.mxu0
        %v4088 = vadd.f32 0.0, %v4087
        %4089 = vdwg.mxu0
        %4090 = vmatpush.msra.mxu0 0.0
        %4091 = vmatpush.msra.mxu0 0.0
        %4092 = vmatpush.msra.mxu0 0.0
        %4093 = vmatpush.msra.mxu0 0.0
        %4094 = vmatpush.msra.mxu0 0.0
        %4095 = vmatpush.msra.mxu0 0.0
        %4096 = vmatpush.msra.mxu0 0.0
        %4097 = vmatpush.msra.mxu0 0.0
        %4098 = vmatpush.msra.mxu0 %v4059
        %4099 = vmatpush.msra.mxu0 %v4056
        %4100 = vmatpush.msra.mxu0 %v4053
        %4101 = vmatpush.msra.mxu0 %v4050
        %4102 = vmatpush.msra.mxu0 %v4047
        %4103 = vmatpush.msra.mxu0 %v4044
        %4104 = vmatpush.msra.mxu0 %v4041
        %4105 = vmatpush.msra.mxu0 %v4038
        %4106 = vmatmul.f32.gmra.mxu0 %v4062
        %v4107 = vpop.f32.mrf.mxu0
        %v4108 = vadd.f32 0.0, %v4107
        %4109 = vmatmul.f32.gmra.mxu0 %v4065
        %v4110 = vpop.f32.mrf.mxu0
        %v4111 = vadd.f32 0.0, %v4110
        %4112 = vdwg.mxu0
        %4113 = vmatpush.msra.mxu0 0.0
        %4114 = vmatpush.msra.mxu0 0.0
        %4115 = vmatpush.msra.mxu0 0.0
        %4116 = vmatpush.msra.mxu0 0.0
        %4117 = vmatpush.msra.mxu0 0.0
        %4118 = vmatpush.msra.mxu0 0.0
        %4119 = vmatpush.msra.mxu0 0.0
        %4120 = vmatpush.msra.mxu0 0.0
        %4121 = vmatpush.msra.mxu0 %v4060
        %4122 = vmatpush.msra.mxu0 %v4057
        %4123 = vmatpush.msra.mxu0 %v4054
        %4124 = vmatpush.msra.mxu0 %v4051
        %4125 = vmatpush.msra.mxu0 %v4048
        %4126 = vmatpush.msra.mxu0 %v4045
        %4127 = vmatpush.msra.mxu0 %v4042
        %4128 = vmatpush.msra.mxu0 %v4039
        %4129 = vmatmul.f32.gmra.mxu0 %v4062
        %v4130 = vpop.f32.mrf.mxu0
        %v4131 = vadd.f32 0.0, %v4130
        %4132 = vmatmul.f32.gmra.mxu0 %v4065
        %v4133 = vpop.f32.mrf.mxu0
        %v4134 = vadd.f32 0.0, %v4133
        %4135 = vdwg.mxu0
        %v4136 = vadd.f32 %v3560, %v4085
        %v4137 = vadd.f32 %v3561, %v4108
        %v4138 = vadd.f32 %v3562, %v4131
        %v4139 = vadd.f32 %v3563, %v4088
        %v4140 = vadd.f32 %v3564, %v4111
        %v4141 = vadd.f32 %v3565, %v4134
        %v4142 = vld [vmem:[#allocation8] sm:$0x7]
        %v4144 = vperm.slane %v4142, 0
        %v4145 = vperm.slane %v4142, 1
        %v4146 = vperm.slane %v4142, 2
        %v4150 = vadd.f32 %v4136, %v4144
        %v4151 = vadd.f32 %v4137, %v4145
        %v4152 = vadd.f32 %v4138, %v4146
        %v4153 = vadd.f32 %v4139, %v4144
        %v4154 = vadd.f32 %v4140, %v4145
        %v4155 = vadd.f32 %v4141, %v4146
        %v4156 = vadd.f32 %v592, %v4150
        %v4157 = vadd.f32 %v593, %v4151
        %v4158 = vadd.f32 %v594, %v4152
        %v4159 = vadd.f32 %v595, %v4153
        %v4160 = vadd.f32 %v596, %v4154
        %v4161 = vadd.f32 %v597, %v4155
        %v4162 = vld [vmem:[#allocation10] sm:$0x7]
        %v4163 = vld [vmem:[#allocation11] sm:$0x7]
        %v4164 = vadd.f32 %v4156, %v4157
        %v4165 = vadd.f32 %v4164, %v4158
        %4166 = vadd.xlane.f32.xlu0 %v4165
        %v4167 = vpop.xlane.xlu0 %4166
        %v4168 = vadd.f32 %v4159, %v4160
        %v4169 = vadd.f32 %v4168, %v4161
        %4170 = vadd.xlane.f32.xlu0 %v4169
        %v4171 = vpop.xlane.xlu0 %4170
        %v4172 = vmul.f32 %v4167, %v614
        %v4173 = vmul.f32 %v4171, %v614
        %v4174 = vsub.f32 %v4156, %v4172
        %v4175 = vsub.f32 %v4157, %v4172
        %v4176 = vsub.f32 %v4158, %v4172
        %v4177 = vsub.f32 %v4159, %v4173
        %v4178 = vsub.f32 %v4160, %v4173
        %v4179 = vsub.f32 %v4161, %v4173
        %v4180 = vmul.f32 %v4174, %v4174
        %v4181 = vmul.f32 %v4175, %v4175
        %v4182 = vmul.f32 %v4176, %v4176
        %v4183 = vmul.f32 %v4177, %v4177
        %v4184 = vmul.f32 %v4178, %v4178
        %v4185 = vmul.f32 %v4179, %v4179
        %v4186 = vadd.f32 %v4180, %v4181
        %v4187 = vadd.f32 %v4186, %v4182
        %4188 = vadd.xlane.f32.xlu0 %v4187
        %v4189 = vpop.xlane.xlu0 %4188
        %v4190 = vadd.f32 %v4183, %v4184
        %v4191 = vadd.f32 %v4190, %v4185
        %4192 = vadd.xlane.f32.xlu0 %v4191
        %v4193 = vpop.xlane.xlu0 %4192
        %v4194 = vmul.f32 %v4189, %v614
        %v4195 = vmul.f32 %v4193, %v614
        %v4196 = vadd.f32 %v4194, 1e-05
        %v4197 = vadd.f32 %v4195, 1e-05
        %v4198 = vrsqrt.pop %v4196
        %v4199 = vmul.f32 %v4198, %v4196
        %v4200 = vmul.f32 %v4199, %v4198
        %v4201 = vmul.f32 0.5, %v4200
        %v4202 = vsub.f32 1.5, %v4201
        %v4203 = vmul.f32 %v4198, %v4202
        %vm4204 = vweird.f32 %v4196
        %vm4205 = vweird.f32 %v4198
        %vm4206 = vmor %vm4204, %vm4205
        %v4207 = vsel %vm4206, %v4198, %v4203
        %v4208 = vrsqrt.pop %v4197
        %v4209 = vmul.f32 %v4208, %v4197
        %v4210 = vmul.f32 %v4209, %v4208
        %v4211 = vmul.f32 0.5, %v4210
        %v4212 = vsub.f32 1.5, %v4211
        %v4213 = vmul.f32 %v4208, %v4212
        %vm4214 = vweird.f32 %v4197
        %vm4215 = vweird.f32 %v4208
        %vm4216 = vmor %vm4214, %vm4215
        %v4217 = vsel %vm4216, %v4208, %v4213
        %v4218 = vmul.f32 %v4174, %v4207
        %v4219 = vmul.f32 %v4175, %v4207
        %v4220 = vmul.f32 %v4176, %v4207
        %v4221 = vmul.f32 %v4177, %v4217
        %v4222 = vmul.f32 %v4178, %v4217
        %v4223 = vmul.f32 %v4179, %v4217
        %v4225 = vperm.slane %v4162, 0
        %v4226 = vperm.slane %v4162, 1
        %v4227 = vperm.slane %v4162, 2
        %v4231 = vmul.f32 %v4218, %v4225
        %v4232 = vmul.f32 %v4219, %v4226
        %v4233 = vmul.f32 %v4220, %v4227
        %v4234 = vmul.f32 %v4221, %v4225
        %v4235 = vmul.f32 %v4222, %v4226
        %v4236 = vmul.f32 %v4223, %v4227
        %v4238 = vperm.slane %v4163, 0
        %v4239 = vperm.slane %v4163, 1
        %v4240 = vperm.slane %v4163, 2
        %v4244 = vadd.f32 %v4231, %v4238
        %v4245 = vadd.f32 %v4232, %v4239
        %v4246 = vadd.f32 %v4233, %v4240
        %v4247 = vadd.f32 %v4234, %v4238
        %v4248 = vadd.f32 %v4235, %v4239
        %v4249 = vadd.f32 %v4236, %v4240
        %v4250 = vld [vmem:[%s10] sm:$0xff]
        %v4251 = vld [vmem:[%s10 + $0x8] sm:$0xff]
        %v4252 = vld [vmem:[%s10 + $0x10] sm:$0xff]
        %v4253 = vld [vmem:[%s10 + $0x18] sm:$0xff]
        %v4254 = vld [vmem:[%s10 + $0x20] sm:$0xff]
        %v4255 = vld [vmem:[%s10 + $0x28] sm:$0xff]
        %v4256 = vld [vmem:[%s10 + $0x30] sm:$0xff]
        %v4257 = vld [vmem:[%s10 + $0x38] sm:$0xff]
        %v4258 = vld [vmem:[%s10 + $0x40] sm:$0xff]
        %v4259 = vld [vmem:[%s10 + $0x48] sm:$0xff]
        %v4260 = vld [vmem:[%s10 + $0x50] sm:$0xff]
        %v4261 = vld [vmem:[%s10 + $0x58] sm:$0xff]
        %v4262 = vld [vmem:[%s10 + $0x60] sm:$0xff]
        %v4263 = vld [vmem:[%s10 + $0x68] sm:$0xff]
        %v4264 = vld [vmem:[%s10 + $0x70] sm:$0xff]
        %v4265 = vld [vmem:[%s10 + $0x78] sm:$0xff]
        %v4266 = vld [vmem:[%s10 + $0x80] sm:$0xff]
        %v4267 = vld [vmem:[%s10 + $0x88] sm:$0xff]
        %v4268 = vld [vmem:[%s10 + $0x90] sm:$0xff]
        %v4269 = vld [vmem:[%s10 + $0x98] sm:$0xff]
        %v4270 = vld [vmem:[%s10 + $0xa0] sm:$0xff]
        %v4271 = vld [vmem:[%s10 + $0xa8] sm:$0xff]
        %v4272 = vld [vmem:[%s10 + $0xb0] sm:$0xff]
        %v4273 = vld [vmem:[%s10 + $0xb8] sm:$0xff]
        %v4274 = vld [vmem:[%s10 + $0xc0] sm:$0xff]
        %v4275 = vld [vmem:[%s10 + $0xc8] sm:$0xff]
        %v4276 = vld [vmem:[%s10 + $0xd0] sm:$0xff]
        %v4277 = vld [vmem:[%s10 + $0xd8] sm:$0xff]
        %v4278 = vld [vmem:[%s10 + $0xe0] sm:$0xff]
        %v4279 = vld [vmem:[%s10 + $0xe8] sm:$0xff]
        %v4280 = vld [vmem:[%s10 + $0xf0] sm:$0xff]
        %v4281 = vld [vmem:[%s10 + $0xf8] sm:$0xff]
        %v4282 = vld [vmem:[%s10 + $0x100] sm:$0xff]
        %v4283 = vld [vmem:[%s10 + $0x108] sm:$0xff]
        %v4284 = vld [vmem:[%s10 + $0x110] sm:$0xff]
        %v4285 = vld [vmem:[%s10 + $0x118] sm:$0xff]
        %v4286 = vld [vmem:[%s10 + $0x120] sm:$0xff]
        %v4287 = vld [vmem:[%s10 + $0x128] sm:$0xff]
        %v4288 = vld [vmem:[%s10 + $0x130] sm:$0xff]
        %v4289 = vld [vmem:[%s10 + $0x138] sm:$0xff]
        %v4290 = vld [vmem:[%s10 + $0x140] sm:$0xff]
        %v4291 = vld [vmem:[%s10 + $0x148] sm:$0xff]
        %v4292 = vld [vmem:[%s10 + $0x150] sm:$0xff]
        %v4293 = vld [vmem:[%s10 + $0x158] sm:$0xff]
        %v4294 = vld [vmem:[%s10 + $0x160] sm:$0xff]
        %v4295 = vld [vmem:[%s10 + $0x168] sm:$0xff]
        %v4296 = vld [vmem:[%s10 + $0x170] sm:$0xff]
        %v4297 = vld [vmem:[%s10 + $0x178] sm:$0xff]
        %v4298 = vld [vmem:[%s10 + $0x180] sm:$0xff]
        %v4299 = vld [vmem:[%s10 + $0x188] sm:$0xff]
        %v4300 = vld [vmem:[%s10 + $0x190] sm:$0xff]
        %v4301 = vld [vmem:[%s10 + $0x198] sm:$0xff]
        %v4302 = vld [vmem:[%s10 + $0x1a0] sm:$0xff]
        %v4303 = vld [vmem:[%s10 + $0x1a8] sm:$0xff]
        %v4304 = vld [vmem:[%s10 + $0x1b0] sm:$0xff]
        %v4305 = vld [vmem:[%s10 + $0x1b8] sm:$0xff]
        %v4306 = vld [vmem:[%s10 + $0x1c0] sm:$0xff]
        %v4307 = vld [vmem:[%s10 + $0x1c8] sm:$0xff]
        %v4308 = vld [vmem:[%s10 + $0x1d0] sm:$0xff]
        %v4309 = vld [vmem:[%s10 + $0x1d8] sm:$0xff]
        %v4310 = vld [vmem:[%s10 + $0x1e0] sm:$0xff]
        %v4311 = vld [vmem:[%s10 + $0x1e8] sm:$0xff]
        %v4312 = vld [vmem:[%s10 + $0x1f0] sm:$0xff]
        %v4313 = vld [vmem:[%s10 + $0x1f8] sm:$0xff]
        %v4314 = vld [vmem:[%s10 + $0x200] sm:$0xff]
        %v4315 = vld [vmem:[%s10 + $0x208] sm:$0xff]
        %v4316 = vld [vmem:[%s10 + $0x210] sm:$0xff]
        %v4317 = vld [vmem:[%s10 + $0x218] sm:$0xff]
        %v4318 = vld [vmem:[%s10 + $0x220] sm:$0xff]
        %v4319 = vld [vmem:[%s10 + $0x228] sm:$0xff]
        %v4320 = vld [vmem:[%s10 + $0x230] sm:$0xff]
        %v4321 = vld [vmem:[%s10 + $0x238] sm:$0xff]
        %v4322 = vld [vmem:[%s10 + $0x240] sm:$0xff]
        %v4323 = vld [vmem:[%s10 + $0x248] sm:$0xff]
        %v4324 = vld [vmem:[%s10 + $0x250] sm:$0xff]
        %v4325 = vld [vmem:[%s10 + $0x258] sm:$0xff]
        %v4326 = vld [vmem:[%s10 + $0x260] sm:$0xff]
        %v4327 = vld [vmem:[%s10 + $0x268] sm:$0xff]
        %v4328 = vld [vmem:[%s10 + $0x270] sm:$0xff]
        %v4329 = vld [vmem:[%s10 + $0x278] sm:$0xff]
        %v4330 = vld [vmem:[%s10 + $0x280] sm:$0xff]
        %v4331 = vld [vmem:[%s10 + $0x288] sm:$0xff]
        %v4332 = vld [vmem:[%s10 + $0x290] sm:$0xff]
        %v4333 = vld [vmem:[%s10 + $0x298] sm:$0xff]
        %v4334 = vld [vmem:[%s10 + $0x2a0] sm:$0xff]
        %v4335 = vld [vmem:[%s10 + $0x2a8] sm:$0xff]
        %v4336 = vld [vmem:[%s10 + $0x2b0] sm:$0xff]
        %v4337 = vld [vmem:[%s10 + $0x2b8] sm:$0xff]
        %v4338 = vld [vmem:[%s10 + $0x2c0] sm:$0xff]
        %v4339 = vld [vmem:[%s10 + $0x2c8] sm:$0xff]
        %v4340 = vld [vmem:[%s10 + $0x2d0] sm:$0xff]
        %v4341 = vld [vmem:[%s10 + $0x2d8] sm:$0xff]
        %v4342 = vld [vmem:[%s10 + $0x2e0] sm:$0xff]
        %v4343 = vld [vmem:[%s10 + $0x2e8] sm:$0xff]
        %v4344 = vld [vmem:[%s10 + $0x2f0] sm:$0xff]
        %v4345 = vld [vmem:[%s10 + $0x2f8] sm:$0xff]
        %v4346 = vld [vmem:[%s10 + $0x300] sm:$0xff]
        %v4347 = vld [vmem:[%s10 + $0x308] sm:$0xff]
        %v4348 = vld [vmem:[%s10 + $0x310] sm:$0xff]
        %v4349 = vld [vmem:[%s10 + $0x318] sm:$0xff]
        %v4350 = vld [vmem:[%s10 + $0x320] sm:$0xff]
        %v4351 = vld [vmem:[%s10 + $0x328] sm:$0xff]
        %v4352 = vld [vmem:[%s10 + $0x330] sm:$0xff]
        %v4353 = vld [vmem:[%s10 + $0x338] sm:$0xff]
        %v4354 = vld [vmem:[%s10 + $0x340] sm:$0xff]
        %v4355 = vld [vmem:[%s10 + $0x348] sm:$0xff]
        %v4356 = vld [vmem:[%s10 + $0x350] sm:$0xff]
        %v4357 = vld [vmem:[%s10 + $0x358] sm:$0xff]
        %v4358 = vld [vmem:[%s10 + $0x360] sm:$0xff]
        %v4359 = vld [vmem:[%s10 + $0x368] sm:$0xff]
        %v4360 = vld [vmem:[%s10 + $0x370] sm:$0xff]
        %v4361 = vld [vmem:[%s10 + $0x378] sm:$0xff]
        %v4362 = vld [vmem:[%s10 + $0x380] sm:$0xff]
        %v4363 = vld [vmem:[%s10 + $0x388] sm:$0xff]
        %v4364 = vld [vmem:[%s10 + $0x390] sm:$0xff]
        %v4365 = vld [vmem:[%s10 + $0x398] sm:$0xff]
        %v4366 = vld [vmem:[%s10 + $0x3a0] sm:$0xff]
        %v4367 = vld [vmem:[%s10 + $0x3a8] sm:$0xff]
        %v4368 = vld [vmem:[%s10 + $0x3b0] sm:$0xff]
        %v4369 = vld [vmem:[%s10 + $0x3b8] sm:$0xff]
        %v4370 = vld [vmem:[%s10 + $0x3c0] sm:$0xff]
        %v4371 = vld [vmem:[%s10 + $0x3c8] sm:$0xff]
        %v4372 = vld [vmem:[%s10 + $0x3d0] sm:$0xff]
        %v4373 = vld [vmem:[%s10 + $0x3d8] sm:$0xff]
        %v4374 = vld [vmem:[%s10 + $0x3e0] sm:$0xff]
        %v4375 = vld [vmem:[%s10 + $0x3e8] sm:$0xff]
        %v4376 = vld [vmem:[%s10 + $0x3f0] sm:$0xff]
        %v4377 = vld [vmem:[%s10 + $0x3f8] sm:$0xff]
        %v4378 = vld [vmem:[%s10 + $0x400] sm:$0xff]
        %v4379 = vld [vmem:[%s10 + $0x408] sm:$0xff]
        %v4380 = vld [vmem:[%s10 + $0x410] sm:$0xff]
        %v4381 = vld [vmem:[%s10 + $0x418] sm:$0xff]
        %v4382 = vld [vmem:[%s10 + $0x420] sm:$0xff]
        %v4383 = vld [vmem:[%s10 + $0x428] sm:$0xff]
        %v4384 = vld [vmem:[%s10 + $0x430] sm:$0xff]
        %v4385 = vld [vmem:[%s10 + $0x438] sm:$0xff]
        %v4386 = vld [vmem:[%s10 + $0x440] sm:$0xff]
        %v4387 = vld [vmem:[%s10 + $0x448] sm:$0xff]
        %v4388 = vld [vmem:[%s10 + $0x450] sm:$0xff]
        %v4389 = vld [vmem:[%s10 + $0x458] sm:$0xff]
        %v4390 = vld [vmem:[%s10 + $0x460] sm:$0xff]
        %v4391 = vld [vmem:[%s10 + $0x468] sm:$0xff]
        %v4392 = vld [vmem:[%s10 + $0x470] sm:$0xff]
        %v4393 = vld [vmem:[%s10 + $0x478] sm:$0xff]
        %v4394 = vld [vmem:[%s10 + $0x480] sm:$0xff]
        %v4395 = vld [vmem:[%s10 + $0x488] sm:$0xff]
        %v4396 = vld [vmem:[%s10 + $0x490] sm:$0xff]
        %v4397 = vld [vmem:[%s10 + $0x498] sm:$0xff]
        %v4398 = vld [vmem:[%s10 + $0x4a0] sm:$0xff]
        %v4399 = vld [vmem:[%s10 + $0x4a8] sm:$0xff]
        %v4400 = vld [vmem:[%s10 + $0x4b0] sm:$0xff]
        %v4401 = vld [vmem:[%s10 + $0x4b8] sm:$0xff]
        %v4402 = vld [vmem:[%s10 + $0x4c0] sm:$0xff]
        %v4403 = vld [vmem:[%s10 + $0x4c8] sm:$0xff]
        %v4404 = vld [vmem:[%s10 + $0x4d0] sm:$0xff]
        %v4405 = vld [vmem:[%s10 + $0x4d8] sm:$0xff]
        %v4406 = vld [vmem:[%s10 + $0x4e0] sm:$0xff]
        %v4407 = vld [vmem:[%s10 + $0x4e8] sm:$0xff]
        %v4408 = vld [vmem:[%s10 + $0x4f0] sm:$0xff]
        %v4409 = vld [vmem:[%s10 + $0x4f8] sm:$0xff]
        %v4410 = vld [vmem:[%s10 + $0x500] sm:$0xff]
        %v4411 = vld [vmem:[%s10 + $0x508] sm:$0xff]
        %v4412 = vld [vmem:[%s10 + $0x510] sm:$0xff]
        %v4413 = vld [vmem:[%s10 + $0x518] sm:$0xff]
        %v4414 = vld [vmem:[%s10 + $0x520] sm:$0xff]
        %v4415 = vld [vmem:[%s10 + $0x528] sm:$0xff]
        %v4416 = vld [vmem:[%s10 + $0x530] sm:$0xff]
        %v4417 = vld [vmem:[%s10 + $0x538] sm:$0xff]
        %v4418 = vld [vmem:[%s10 + $0x540] sm:$0xff]
        %v4419 = vld [vmem:[%s10 + $0x548] sm:$0xff]
        %v4420 = vld [vmem:[%s10 + $0x550] sm:$0xff]
        %v4421 = vld [vmem:[%s10 + $0x558] sm:$0xff]
        %v4422 = vld [vmem:[%s10 + $0x560] sm:$0xff]
        %v4423 = vld [vmem:[%s10 + $0x568] sm:$0xff]
        %v4424 = vld [vmem:[%s10 + $0x570] sm:$0xff]
        %v4425 = vld [vmem:[%s10 + $0x578] sm:$0xff]
        %v4426 = vld [vmem:[%s10 + $0x580] sm:$0xff]
        %v4427 = vld [vmem:[%s10 + $0x588] sm:$0xff]
        %v4428 = vld [vmem:[%s10 + $0x590] sm:$0xff]
        %v4429 = vld [vmem:[%s10 + $0x598] sm:$0xff]
        %v4430 = vld [vmem:[%s10 + $0x5a0] sm:$0xff]
        %v4431 = vld [vmem:[%s10 + $0x5a8] sm:$0xff]
        %v4432 = vld [vmem:[%s10 + $0x5b0] sm:$0xff]
        %v4433 = vld [vmem:[%s10 + $0x5b8] sm:$0xff]
        %v4434 = vld [vmem:[%s10 + $0x5c0] sm:$0xff]
        %v4435 = vld [vmem:[%s10 + $0x5c8] sm:$0xff]
        %v4436 = vld [vmem:[%s10 + $0x5d0] sm:$0xff]
        %v4437 = vld [vmem:[%s10 + $0x5d8] sm:$0xff]
        %v4438 = vld [vmem:[%s10 + $0x5e0] sm:$0xff]
        %v4439 = vld [vmem:[%s10 + $0x5e8] sm:$0xff]
        %v4440 = vld [vmem:[%s10 + $0x5f0] sm:$0xff]
        %v4441 = vld [vmem:[%s10 + $0x5f8] sm:$0xff]
        %v4442 = vld [vmem:[%s10 + $0x600] sm:$0xff]
        %v4443 = vld [vmem:[%s10 + $0x608] sm:$0xff]
        %v4444 = vld [vmem:[%s10 + $0x610] sm:$0xff]
        %v4445 = vld [vmem:[%s10 + $0x618] sm:$0xff]
        %v4446 = vld [vmem:[%s10 + $0x620] sm:$0xff]
        %v4447 = vld [vmem:[%s10 + $0x628] sm:$0xff]
        %v4448 = vld [vmem:[%s10 + $0x630] sm:$0xff]
        %v4449 = vld [vmem:[%s10 + $0x638] sm:$0xff]
        %v4450 = vld [vmem:[%s10 + $0x640] sm:$0xff]
        %v4451 = vld [vmem:[%s10 + $0x648] sm:$0xff]
        %v4452 = vld [vmem:[%s10 + $0x650] sm:$0xff]
        %v4453 = vld [vmem:[%s10 + $0x658] sm:$0xff]
        %v4454 = vld [vmem:[%s10 + $0x660] sm:$0xff]
        %v4455 = vld [vmem:[%s10 + $0x668] sm:$0xff]
        %v4456 = vld [vmem:[%s10 + $0x670] sm:$0xff]
        %v4457 = vld [vmem:[%s10 + $0x678] sm:$0xff]
        %v4458 = vld [vmem:[%s10 + $0x680] sm:$0xff]
        %v4459 = vld [vmem:[%s10 + $0x688] sm:$0xff]
        %v4460 = vld [vmem:[%s10 + $0x690] sm:$0xff]
        %v4461 = vld [vmem:[%s10 + $0x698] sm:$0xff]
        %v4462 = vld [vmem:[%s10 + $0x6a0] sm:$0xff]
        %v4463 = vld [vmem:[%s10 + $0x6a8] sm:$0xff]
        %v4464 = vld [vmem:[%s10 + $0x6b0] sm:$0xff]
        %v4465 = vld [vmem:[%s10 + $0x6b8] sm:$0xff]
        %v4466 = vld [vmem:[%s10 + $0x6c0] sm:$0xff]
        %v4467 = vld [vmem:[%s10 + $0x6c8] sm:$0xff]
        %v4468 = vld [vmem:[%s10 + $0x6d0] sm:$0xff]
        %v4469 = vld [vmem:[%s10 + $0x6d8] sm:$0xff]
        %v4470 = vld [vmem:[%s10 + $0x6e0] sm:$0xff]
        %v4471 = vld [vmem:[%s10 + $0x6e8] sm:$0xff]
        %v4472 = vld [vmem:[%s10 + $0x6f0] sm:$0xff]
        %v4473 = vld [vmem:[%s10 + $0x6f8] sm:$0xff]
        %v4474 = vld [vmem:[%s10 + $0x700] sm:$0xff]
        %v4475 = vld [vmem:[%s10 + $0x708] sm:$0xff]
        %v4476 = vld [vmem:[%s10 + $0x710] sm:$0xff]
        %v4477 = vld [vmem:[%s10 + $0x718] sm:$0xff]
        %v4478 = vld [vmem:[%s10 + $0x720] sm:$0xff]
        %v4479 = vld [vmem:[%s10 + $0x728] sm:$0xff]
        %v4480 = vld [vmem:[%s10 + $0x730] sm:$0xff]
        %v4481 = vld [vmem:[%s10 + $0x738] sm:$0xff]
        %v4482 = vld [vmem:[%s10 + $0x740] sm:$0xff]
        %v4483 = vld [vmem:[%s10 + $0x748] sm:$0xff]
        %v4484 = vld [vmem:[%s10 + $0x750] sm:$0xff]
        %v4485 = vld [vmem:[%s10 + $0x758] sm:$0xff]
        %v4486 = vld [vmem:[%s10 + $0x760] sm:$0xff]
        %v4487 = vld [vmem:[%s10 + $0x768] sm:$0xff]
        %v4488 = vld [vmem:[%s10 + $0x770] sm:$0xff]
        %v4489 = vld [vmem:[%s10 + $0x778] sm:$0xff]
        %v4490 = vld [vmem:[%s10 + $0x780] sm:$0xff]
        %v4491 = vld [vmem:[%s10 + $0x788] sm:$0xff]
        %v4492 = vld [vmem:[%s10 + $0x790] sm:$0xff]
        %v4493 = vld [vmem:[%s10 + $0x798] sm:$0xff]
        %v4494 = vld [vmem:[%s10 + $0x7a0] sm:$0xff]
        %v4495 = vld [vmem:[%s10 + $0x7a8] sm:$0xff]
        %v4496 = vld [vmem:[%s10 + $0x7b0] sm:$0xff]
        %v4497 = vld [vmem:[%s10 + $0x7b8] sm:$0xff]
        %v4498 = vld [vmem:[%s10 + $0x7c0] sm:$0xff]
        %v4499 = vld [vmem:[%s10 + $0x7c8] sm:$0xff]
        %v4500 = vld [vmem:[%s10 + $0x7d0] sm:$0xff]
        %v4501 = vld [vmem:[%s10 + $0x7d8] sm:$0xff]
        %v4502 = vld [vmem:[%s10 + $0x7e0] sm:$0xff]
        %v4503 = vld [vmem:[%s10 + $0x7e8] sm:$0xff]
        %v4504 = vld [vmem:[%s10 + $0x7f0] sm:$0xff]
        %v4505 = vld [vmem:[%s10 + $0x7f8] sm:$0xff]
        %v4506 = vld [vmem:[%s10 + $0x800] sm:$0xff]
        %v4507 = vld [vmem:[%s10 + $0x808] sm:$0xff]
        %v4508 = vld [vmem:[%s10 + $0x810] sm:$0xff]
        %v4509 = vld [vmem:[%s10 + $0x818] sm:$0xff]
        %v4510 = vld [vmem:[%s10 + $0x820] sm:$0xff]
        %v4511 = vld [vmem:[%s10 + $0x828] sm:$0xff]
        %v4512 = vld [vmem:[%s10 + $0x830] sm:$0xff]
        %v4513 = vld [vmem:[%s10 + $0x838] sm:$0xff]
        %v4514 = vld [vmem:[%s10 + $0x840] sm:$0xff]
        %v4515 = vld [vmem:[%s10 + $0x848] sm:$0xff]
        %v4516 = vld [vmem:[%s10 + $0x850] sm:$0xff]
        %v4517 = vld [vmem:[%s10 + $0x858] sm:$0xff]
        %v4518 = vld [vmem:[%s10 + $0x860] sm:$0xff]
        %v4519 = vld [vmem:[%s10 + $0x868] sm:$0xff]
        %v4520 = vld [vmem:[%s10 + $0x870] sm:$0xff]
        %v4521 = vld [vmem:[%s10 + $0x878] sm:$0xff]
        %v4522 = vld [vmem:[%s10 + $0x880] sm:$0xff]
        %v4523 = vld [vmem:[%s10 + $0x888] sm:$0xff]
        %v4524 = vld [vmem:[%s10 + $0x890] sm:$0xff]
        %v4525 = vld [vmem:[%s10 + $0x898] sm:$0xff]
        %v4526 = vld [vmem:[%s10 + $0x8a0] sm:$0xff]
        %v4527 = vld [vmem:[%s10 + $0x8a8] sm:$0xff]
        %v4528 = vld [vmem:[%s10 + $0x8b0] sm:$0xff]
        %v4529 = vld [vmem:[%s10 + $0x8b8] sm:$0xff]
        %v4530 = vld [vmem:[%s10 + $0x8c0] sm:$0xff]
        %v4531 = vld [vmem:[%s10 + $0x8c8] sm:$0xff]
        %v4532 = vld [vmem:[%s10 + $0x8d0] sm:$0xff]
        %v4533 = vld [vmem:[%s10 + $0x8d8] sm:$0xff]
        %v4534 = vld [vmem:[%s10 + $0x8e0] sm:$0xff]
        %v4535 = vld [vmem:[%s10 + $0x8e8] sm:$0xff]
        %v4536 = vld [vmem:[%s10 + $0x8f0] sm:$0xff]
        %v4537 = vld [vmem:[%s10 + $0x8f8] sm:$0xff]
        %v4538 = vld [vmem:[%s10 + $0x900] sm:$0xff]
        %v4539 = vld [vmem:[%s10 + $0x908] sm:$0xff]
        %v4540 = vld [vmem:[%s10 + $0x910] sm:$0xff]
        %v4541 = vld [vmem:[%s10 + $0x918] sm:$0xff]
        %v4542 = vld [vmem:[%s10 + $0x920] sm:$0xff]
        %v4543 = vld [vmem:[%s10 + $0x928] sm:$0xff]
        %v4544 = vld [vmem:[%s10 + $0x930] sm:$0xff]
        %v4545 = vld [vmem:[%s10 + $0x938] sm:$0xff]
        %v4546 = vld [vmem:[%s10 + $0x940] sm:$0xff]
        %v4547 = vld [vmem:[%s10 + $0x948] sm:$0xff]
        %v4548 = vld [vmem:[%s10 + $0x950] sm:$0xff]
        %v4549 = vld [vmem:[%s10 + $0x958] sm:$0xff]
        %v4550 = vld [vmem:[%s10 + $0x960] sm:$0xff]
        %v4551 = vld [vmem:[%s10 + $0x968] sm:$0xff]
        %v4552 = vld [vmem:[%s10 + $0x970] sm:$0xff]
        %v4553 = vld [vmem:[%s10 + $0x978] sm:$0xff]
        %v4554 = vld [vmem:[%s10 + $0x980] sm:$0xff]
        %v4555 = vld [vmem:[%s10 + $0x988] sm:$0xff]
        %v4556 = vld [vmem:[%s10 + $0x990] sm:$0xff]
        %v4557 = vld [vmem:[%s10 + $0x998] sm:$0xff]
        %v4558 = vld [vmem:[%s10 + $0x9a0] sm:$0xff]
        %v4559 = vld [vmem:[%s10 + $0x9a8] sm:$0xff]
        %v4560 = vld [vmem:[%s10 + $0x9b0] sm:$0xff]
        %v4561 = vld [vmem:[%s10 + $0x9b8] sm:$0xff]
        %v4562 = vld [vmem:[%s10 + $0x9c0] sm:$0xff]
        %v4563 = vld [vmem:[%s10 + $0x9c8] sm:$0xff]
        %v4564 = vld [vmem:[%s10 + $0x9d0] sm:$0xff]
        %v4565 = vld [vmem:[%s10 + $0x9d8] sm:$0xff]
        %v4566 = vld [vmem:[%s10 + $0x9e0] sm:$0xff]
        %v4567 = vld [vmem:[%s10 + $0x9e8] sm:$0xff]
        %v4568 = vld [vmem:[%s10 + $0x9f0] sm:$0xff]
        %v4569 = vld [vmem:[%s10 + $0x9f8] sm:$0xff]
        %v4570 = vld [vmem:[%s10 + $0xa00] sm:$0xff]
        %v4571 = vld [vmem:[%s10 + $0xa08] sm:$0xff]
        %v4572 = vld [vmem:[%s10 + $0xa10] sm:$0xff]
        %v4573 = vld [vmem:[%s10 + $0xa18] sm:$0xff]
        %v4574 = vld [vmem:[%s10 + $0xa20] sm:$0xff]
        %v4575 = vld [vmem:[%s10 + $0xa28] sm:$0xff]
        %v4576 = vld [vmem:[%s10 + $0xa30] sm:$0xff]
        %v4577 = vld [vmem:[%s10 + $0xa38] sm:$0xff]
        %v4578 = vld [vmem:[%s10 + $0xa40] sm:$0xff]
        %v4579 = vld [vmem:[%s10 + $0xa48] sm:$0xff]
        %v4580 = vld [vmem:[%s10 + $0xa50] sm:$0xff]
        %v4581 = vld [vmem:[%s10 + $0xa58] sm:$0xff]
        %v4582 = vld [vmem:[%s10 + $0xa60] sm:$0xff]
        %v4583 = vld [vmem:[%s10 + $0xa68] sm:$0xff]
        %v4584 = vld [vmem:[%s10 + $0xa70] sm:$0xff]
        %v4585 = vld [vmem:[%s10 + $0xa78] sm:$0xff]
        %v4586 = vld [vmem:[%s10 + $0xa80] sm:$0xff]
        %v4587 = vld [vmem:[%s10 + $0xa88] sm:$0xff]
        %v4588 = vld [vmem:[%s10 + $0xa90] sm:$0xff]
        %v4589 = vld [vmem:[%s10 + $0xa98] sm:$0xff]
        %v4590 = vld [vmem:[%s10 + $0xaa0] sm:$0xff]
        %v4591 = vld [vmem:[%s10 + $0xaa8] sm:$0xff]
        %v4592 = vld [vmem:[%s10 + $0xab0] sm:$0xff]
        %v4593 = vld [vmem:[%s10 + $0xab8] sm:$0xff]
        %v4594 = vld [vmem:[%s10 + $0xac0] sm:$0xff]
        %v4595 = vld [vmem:[%s10 + $0xac8] sm:$0xff]
        %v4596 = vld [vmem:[%s10 + $0xad0] sm:$0xff]
        %v4597 = vld [vmem:[%s10 + $0xad8] sm:$0xff]
        %v4598 = vld [vmem:[%s10 + $0xae0] sm:$0xff]
        %v4599 = vld [vmem:[%s10 + $0xae8] sm:$0xff]
        %v4600 = vld [vmem:[%s10 + $0xaf0] sm:$0xff]
        %v4601 = vld [vmem:[%s10 + $0xaf8] sm:$0xff]
        %v4602 = vld [vmem:[%s10 + $0xb00] sm:$0xff]
        %v4603 = vld [vmem:[%s10 + $0xb08] sm:$0xff]
        %v4604 = vld [vmem:[%s10 + $0xb10] sm:$0xff]
        %v4605 = vld [vmem:[%s10 + $0xb18] sm:$0xff]
        %v4606 = vld [vmem:[%s10 + $0xb20] sm:$0xff]
        %v4607 = vld [vmem:[%s10 + $0xb28] sm:$0xff]
        %v4608 = vld [vmem:[%s10 + $0xb30] sm:$0xff]
        %v4609 = vld [vmem:[%s10 + $0xb38] sm:$0xff]
        %v4610 = vld [vmem:[%s10 + $0xb40] sm:$0xff]
        %v4611 = vld [vmem:[%s10 + $0xb48] sm:$0xff]
        %v4612 = vld [vmem:[%s10 + $0xb50] sm:$0xff]
        %v4613 = vld [vmem:[%s10 + $0xb58] sm:$0xff]
        %v4614 = vld [vmem:[%s10 + $0xb60] sm:$0xff]
        %v4615 = vld [vmem:[%s10 + $0xb68] sm:$0xff]
        %v4616 = vld [vmem:[%s10 + $0xb70] sm:$0xff]
        %v4617 = vld [vmem:[%s10 + $0xb78] sm:$0xff]
        %v4618 = vld [vmem:[%s10 + $0xb80] sm:$0xff]
        %v4619 = vld [vmem:[%s10 + $0xb88] sm:$0xff]
        %v4620 = vld [vmem:[%s10 + $0xb90] sm:$0xff]
        %v4621 = vld [vmem:[%s10 + $0xb98] sm:$0xff]
        %v4622 = vld [vmem:[%s10 + $0xba0] sm:$0xff]
        %v4623 = vld [vmem:[%s10 + $0xba8] sm:$0xff]
        %v4624 = vld [vmem:[%s10 + $0xbb0] sm:$0xff]
        %v4625 = vld [vmem:[%s10 + $0xbb8] sm:$0xff]
        %v4626 = vld [vmem:[%s10 + $0xbc0] sm:$0xff]
        %v4627 = vld [vmem:[%s10 + $0xbc8] sm:$0xff]
        %v4628 = vld [vmem:[%s10 + $0xbd0] sm:$0xff]
        %v4629 = vld [vmem:[%s10 + $0xbd8] sm:$0xff]
        %v4630 = vld [vmem:[%s10 + $0xbe0] sm:$0xff]
        %v4631 = vld [vmem:[%s10 + $0xbe8] sm:$0xff]
        %v4632 = vld [vmem:[%s10 + $0xbf0] sm:$0xff]
        %v4633 = vld [vmem:[%s10 + $0xbf8] sm:$0xff]
        %v4634 = vld [vmem:[%s10 + $0xc00] sm:$0xff]
        %v4635 = vld [vmem:[%s10 + $0xc08] sm:$0xff]
        %v4636 = vld [vmem:[%s10 + $0xc10] sm:$0xff]
        %v4637 = vld [vmem:[%s10 + $0xc18] sm:$0xff]
        %v4638 = vld [vmem:[%s10 + $0xc20] sm:$0xff]
        %v4639 = vld [vmem:[%s10 + $0xc28] sm:$0xff]
        %v4640 = vld [vmem:[%s10 + $0xc30] sm:$0xff]
        %v4641 = vld [vmem:[%s10 + $0xc38] sm:$0xff]
        %v4642 = vld [vmem:[%s10 + $0xc40] sm:$0xff]
        %v4643 = vld [vmem:[%s10 + $0xc48] sm:$0xff]
        %v4644 = vld [vmem:[%s10 + $0xc50] sm:$0xff]
        %v4645 = vld [vmem:[%s10 + $0xc58] sm:$0xff]
        %v4646 = vld [vmem:[%s10 + $0xc60] sm:$0xff]
        %v4647 = vld [vmem:[%s10 + $0xc68] sm:$0xff]
        %v4648 = vld [vmem:[%s10 + $0xc70] sm:$0xff]
        %v4649 = vld [vmem:[%s10 + $0xc78] sm:$0xff]
        %v4650 = vld [vmem:[%s10 + $0xc80] sm:$0xff]
        %v4651 = vld [vmem:[%s10 + $0xc88] sm:$0xff]
        %v4652 = vld [vmem:[%s10 + $0xc90] sm:$0xff]
        %v4653 = vld [vmem:[%s10 + $0xc98] sm:$0xff]
        %v4654 = vld [vmem:[%s10 + $0xca0] sm:$0xff]
        %v4655 = vld [vmem:[%s10 + $0xca8] sm:$0xff]
        %v4656 = vld [vmem:[%s10 + $0xcb0] sm:$0xff]
        %v4657 = vld [vmem:[%s10 + $0xcb8] sm:$0xff]
        %v4658 = vld [vmem:[%s10 + $0xcc0] sm:$0xff]
        %v4659 = vld [vmem:[%s10 + $0xcc8] sm:$0xff]
        %v4660 = vld [vmem:[%s10 + $0xcd0] sm:$0xff]
        %v4661 = vld [vmem:[%s10 + $0xcd8] sm:$0xff]
        %v4662 = vld [vmem:[%s10 + $0xce0] sm:$0xff]
        %v4663 = vld [vmem:[%s10 + $0xce8] sm:$0xff]
        %v4664 = vld [vmem:[%s10 + $0xcf0] sm:$0xff]
        %v4665 = vld [vmem:[%s10 + $0xcf8] sm:$0xff]
        %v4666 = vld [vmem:[%s10 + $0xd00] sm:$0xff]
        %v4667 = vld [vmem:[%s10 + $0xd08] sm:$0xff]
        %v4668 = vld [vmem:[%s10 + $0xd10] sm:$0xff]
        %v4669 = vld [vmem:[%s10 + $0xd18] sm:$0xff]
        %v4670 = vld [vmem:[%s10 + $0xd20] sm:$0xff]
        %v4671 = vld [vmem:[%s10 + $0xd28] sm:$0xff]
        %v4672 = vld [vmem:[%s10 + $0xd30] sm:$0xff]
        %v4673 = vld [vmem:[%s10 + $0xd38] sm:$0xff]
        %v4674 = vld [vmem:[%s10 + $0xd40] sm:$0xff]
        %v4675 = vld [vmem:[%s10 + $0xd48] sm:$0xff]
        %v4676 = vld [vmem:[%s10 + $0xd50] sm:$0xff]
        %v4677 = vld [vmem:[%s10 + $0xd58] sm:$0xff]
        %v4678 = vld [vmem:[%s10 + $0xd60] sm:$0xff]
        %v4679 = vld [vmem:[%s10 + $0xd68] sm:$0xff]
        %v4680 = vld [vmem:[%s10 + $0xd70] sm:$0xff]
        %v4681 = vld [vmem:[%s10 + $0xd78] sm:$0xff]
        %v4682 = vld [vmem:[%s10 + $0xd80] sm:$0xff]
        %v4683 = vld [vmem:[%s10 + $0xd88] sm:$0xff]
        %v4684 = vld [vmem:[%s10 + $0xd90] sm:$0xff]
        %v4685 = vld [vmem:[%s10 + $0xd98] sm:$0xff]
        %v4686 = vld [vmem:[%s10 + $0xda0] sm:$0xff]
        %v4687 = vld [vmem:[%s10 + $0xda8] sm:$0xff]
        %v4688 = vld [vmem:[%s10 + $0xdb0] sm:$0xff]
        %v4689 = vld [vmem:[%s10 + $0xdb8] sm:$0xff]
        %v4690 = vld [vmem:[%s10 + $0xdc0] sm:$0xff]
        %v4691 = vld [vmem:[%s10 + $0xdc8] sm:$0xff]
        %v4692 = vld [vmem:[%s10 + $0xdd0] sm:$0xff]
        %v4693 = vld [vmem:[%s10 + $0xdd8] sm:$0xff]
        %v4694 = vld [vmem:[%s10 + $0xde0] sm:$0xff]
        %v4695 = vld [vmem:[%s10 + $0xde8] sm:$0xff]
        %v4696 = vld [vmem:[%s10 + $0xdf0] sm:$0xff]
        %v4697 = vld [vmem:[%s10 + $0xdf8] sm:$0xff]
        %v4698 = vld [vmem:[%s10 + $0xe00] sm:$0xff]
        %v4699 = vld [vmem:[%s10 + $0xe08] sm:$0xff]
        %v4700 = vld [vmem:[%s10 + $0xe10] sm:$0xff]
        %v4701 = vld [vmem:[%s10 + $0xe18] sm:$0xff]
        %v4702 = vld [vmem:[%s10 + $0xe20] sm:$0xff]
        %v4703 = vld [vmem:[%s10 + $0xe28] sm:$0xff]
        %v4704 = vld [vmem:[%s10 + $0xe30] sm:$0xff]
        %v4705 = vld [vmem:[%s10 + $0xe38] sm:$0xff]
        %v4706 = vld [vmem:[%s10 + $0xe40] sm:$0xff]
        %v4707 = vld [vmem:[%s10 + $0xe48] sm:$0xff]
        %v4708 = vld [vmem:[%s10 + $0xe50] sm:$0xff]
        %v4709 = vld [vmem:[%s10 + $0xe58] sm:$0xff]
        %v4710 = vld [vmem:[%s10 + $0xe60] sm:$0xff]
        %v4711 = vld [vmem:[%s10 + $0xe68] sm:$0xff]
        %v4712 = vld [vmem:[%s10 + $0xe70] sm:$0xff]
        %v4713 = vld [vmem:[%s10 + $0xe78] sm:$0xff]
        %v4714 = vld [vmem:[%s10 + $0xe80] sm:$0xff]
        %v4715 = vld [vmem:[%s10 + $0xe88] sm:$0xff]
        %v4716 = vld [vmem:[%s10 + $0xe90] sm:$0xff]
        %v4717 = vld [vmem:[%s10 + $0xe98] sm:$0xff]
        %v4718 = vld [vmem:[%s10 + $0xea0] sm:$0xff]
        %v4719 = vld [vmem:[%s10 + $0xea8] sm:$0xff]
        %v4720 = vld [vmem:[%s10 + $0xeb0] sm:$0xff]
        %v4721 = vld [vmem:[%s10 + $0xeb8] sm:$0xff]
        %v4722 = vld [vmem:[%s10 + $0xec0] sm:$0xff]
        %v4723 = vld [vmem:[%s10 + $0xec8] sm:$0xff]
        %v4724 = vld [vmem:[%s10 + $0xed0] sm:$0xff]
        %v4725 = vld [vmem:[%s10 + $0xed8] sm:$0xff]
        %v4726 = vld [vmem:[%s10 + $0xee0] sm:$0xff]
        %v4727 = vld [vmem:[%s10 + $0xee8] sm:$0xff]
        %v4728 = vld [vmem:[%s10 + $0xef0] sm:$0xff]
        %v4729 = vld [vmem:[%s10 + $0xef8] sm:$0xff]
        %v4730 = vld [vmem:[%s10 + $0xf00] sm:$0xff]
        %v4731 = vld [vmem:[%s10 + $0xf08] sm:$0xff]
        %v4732 = vld [vmem:[%s10 + $0xf10] sm:$0xff]
        %v4733 = vld [vmem:[%s10 + $0xf18] sm:$0xff]
        %v4734 = vld [vmem:[%s10 + $0xf20] sm:$0xff]
        %v4735 = vld [vmem:[%s10 + $0xf28] sm:$0xff]
        %v4736 = vld [vmem:[%s10 + $0xf30] sm:$0xff]
        %v4737 = vld [vmem:[%s10 + $0xf38] sm:$0xff]
        %v4738 = vld [vmem:[%s10 + $0xf40] sm:$0xff]
        %v4739 = vld [vmem:[%s10 + $0xf48] sm:$0xff]
        %v4740 = vld [vmem:[%s10 + $0xf50] sm:$0xff]
        %v4741 = vld [vmem:[%s10 + $0xf58] sm:$0xff]
        %v4742 = vld [vmem:[%s10 + $0xf60] sm:$0xff]
        %v4743 = vld [vmem:[%s10 + $0xf68] sm:$0xff]
        %v4744 = vld [vmem:[%s10 + $0xf70] sm:$0xff]
        %v4745 = vld [vmem:[%s10 + $0xf78] sm:$0xff]
        %v4746 = vld [vmem:[%s10 + $0xf80] sm:$0xff]
        %v4747 = vld [vmem:[%s10 + $0xf88] sm:$0xff]
        %v4748 = vld [vmem:[%s10 + $0xf90] sm:$0xff]
        %v4749 = vld [vmem:[%s10 + $0xf98] sm:$0xff]
        %v4750 = vld [vmem:[%s10 + $0xfa0] sm:$0xff]
        %v4751 = vld [vmem:[%s10 + $0xfa8] sm:$0xff]
        %v4752 = vld [vmem:[%s10 + $0xfb0] sm:$0xff]
        %v4753 = vld [vmem:[%s10 + $0xfb8] sm:$0xff]
        %v4754 = vld [vmem:[%s10 + $0xfc0] sm:$0xff]
        %v4755 = vld [vmem:[%s10 + $0xfc8] sm:$0xff]
        %v4756 = vld [vmem:[%s10 + $0xfd0] sm:$0xff]
        %v4757 = vld [vmem:[%s10 + $0xfd8] sm:$0xff]
        %v4758 = vld [vmem:[%s10 + $0xfe0] sm:$0xff]
        %v4759 = vld [vmem:[%s10 + $0xfe8] sm:$0xff]
        %v4760 = vld [vmem:[%s10 + $0xff0] sm:$0xff]
        %v4761 = vld [vmem:[%s10 + $0xff8] sm:$0xff]
        %v4762 = vld [vmem:[%s10 + $0x1000] sm:$0xff]
        %v4763 = vld [vmem:[%s10 + $0x1008] sm:$0xff]
        %v4764 = vld [vmem:[%s10 + $0x1010] sm:$0xff]
        %v4765 = vld [vmem:[%s10 + $0x1018] sm:$0xff]
        %v4766 = vld [vmem:[%s10 + $0x1020] sm:$0xff]
        %v4767 = vld [vmem:[%s10 + $0x1028] sm:$0xff]
        %v4768 = vld [vmem:[%s10 + $0x1030] sm:$0xff]
        %v4769 = vld [vmem:[%s10 + $0x1038] sm:$0xff]
        %v4770 = vld [vmem:[%s10 + $0x1040] sm:$0xff]
        %v4771 = vld [vmem:[%s10 + $0x1048] sm:$0xff]
        %v4772 = vld [vmem:[%s10 + $0x1050] sm:$0xff]
        %v4773 = vld [vmem:[%s10 + $0x1058] sm:$0xff]
        %v4774 = vld [vmem:[%s10 + $0x1060] sm:$0xff]
        %v4775 = vld [vmem:[%s10 + $0x1068] sm:$0xff]
        %v4776 = vld [vmem:[%s10 + $0x1070] sm:$0xff]
        %v4777 = vld [vmem:[%s10 + $0x1078] sm:$0xff]
        %v4778 = vld [vmem:[%s10 + $0x1080] sm:$0xff]
        %v4779 = vld [vmem:[%s10 + $0x1088] sm:$0xff]
        %v4780 = vld [vmem:[%s10 + $0x1090] sm:$0xff]
        %v4781 = vld [vmem:[%s10 + $0x1098] sm:$0xff]
        %v4782 = vld [vmem:[%s10 + $0x10a0] sm:$0xff]
        %v4783 = vld [vmem:[%s10 + $0x10a8] sm:$0xff]
        %v4784 = vld [vmem:[%s10 + $0x10b0] sm:$0xff]
        %v4785 = vld [vmem:[%s10 + $0x10b8] sm:$0xff]
        %v4786 = vld [vmem:[%s10 + $0x10c0] sm:$0xff]
        %v4787 = vld [vmem:[%s10 + $0x10c8] sm:$0xff]
        %v4788 = vld [vmem:[%s10 + $0x10d0] sm:$0xff]
        %v4789 = vld [vmem:[%s10 + $0x10d8] sm:$0xff]
        %v4790 = vld [vmem:[%s10 + $0x10e0] sm:$0xff]
        %v4791 = vld [vmem:[%s10 + $0x10e8] sm:$0xff]
        %v4792 = vld [vmem:[%s10 + $0x10f0] sm:$0xff]
        %v4793 = vld [vmem:[%s10 + $0x10f8] sm:$0xff]
        %v4794 = vld [vmem:[%s10 + $0x1100] sm:$0xff]
        %v4795 = vld [vmem:[%s10 + $0x1108] sm:$0xff]
        %v4796 = vld [vmem:[%s10 + $0x1110] sm:$0xff]
        %v4797 = vld [vmem:[%s10 + $0x1118] sm:$0xff]
        %v4798 = vld [vmem:[%s10 + $0x1120] sm:$0xff]
        %v4799 = vld [vmem:[%s10 + $0x1128] sm:$0xff]
        %v4800 = vld [vmem:[%s10 + $0x1130] sm:$0xff]
        %v4801 = vld [vmem:[%s10 + $0x1138] sm:$0xff]
        %v4802 = vld [vmem:[%s10 + $0x1140] sm:$0xff]
        %v4803 = vld [vmem:[%s10 + $0x1148] sm:$0xff]
        %v4804 = vld [vmem:[%s10 + $0x1150] sm:$0xff]
        %v4805 = vld [vmem:[%s10 + $0x1158] sm:$0xff]
        %v4806 = vld [vmem:[%s10 + $0x1160] sm:$0xff]
        %v4807 = vld [vmem:[%s10 + $0x1168] sm:$0xff]
        %v4808 = vld [vmem:[%s10 + $0x1170] sm:$0xff]
        %v4809 = vld [vmem:[%s10 + $0x1178] sm:$0xff]
        %v4810 = vld [vmem:[%s10 + $0x1180] sm:$0xff]
        %v4811 = vld [vmem:[%s10 + $0x1188] sm:$0xff]
        %v4812 = vld [vmem:[%s10 + $0x1190] sm:$0xff]
        %v4813 = vld [vmem:[%s10 + $0x1198] sm:$0xff]
        %v4814 = vld [vmem:[%s10 + $0x11a0] sm:$0xff]
        %v4815 = vld [vmem:[%s10 + $0x11a8] sm:$0xff]
        %v4816 = vld [vmem:[%s10 + $0x11b0] sm:$0xff]
        %v4817 = vld [vmem:[%s10 + $0x11b8] sm:$0xff]
        %v4818 = vld [vmem:[%s10 + $0x11c0] sm:$0xff]
        %v4819 = vld [vmem:[%s10 + $0x11c8] sm:$0xff]
        %v4820 = vld [vmem:[%s10 + $0x11d0] sm:$0xff]
        %v4821 = vld [vmem:[%s10 + $0x11d8] sm:$0xff]
        %v4822 = vld [vmem:[%s10 + $0x11e0] sm:$0xff]
        %v4823 = vld [vmem:[%s10 + $0x11e8] sm:$0xff]
        %v4824 = vld [vmem:[%s10 + $0x11f0] sm:$0xff]
        %v4825 = vld [vmem:[%s10 + $0x11f8] sm:$0xff]
        %v4826 = vld [vmem:[#allocation13] sm:$0xff]
        %v4827 = vld [vmem:[#allocation13 + $0x8] sm:$0xf]
        %v4830 = vperm.slane %v4826, 0
        %v4831 = vperm.slane %v4826, 1
        %v4832 = vperm.slane %v4826, 2
        %v4833 = vperm.slane %v4826, 3
        %v4834 = vperm.slane %v4826, 4
        %v4835 = vperm.slane %v4826, 5
        %v4836 = vperm.slane %v4826, 6
        %v4837 = vperm.slane %v4826, 7
        %v4838 = vperm.slane %v4827, 0
        %v4839 = vperm.slane %v4827, 1
        %v4840 = vperm.slane %v4827, 2
        %v4841 = vperm.slane %v4827, 3
        %4854 = vmatpush.msra.mxu0 %v4430
        %4855 = vmatpush.msra.mxu0 %v4418
        %4856 = vmatpush.msra.mxu0 %v4406
        %4857 = vmatpush.msra.mxu0 %v4394
        %4858 = vmatpush.msra.mxu0 %v4382
        %4859 = vmatpush.msra.mxu0 %v4370
        %4860 = vmatpush.msra.mxu0 %v4358
        %4861 = vmatpush.msra.mxu0 %v4346
        %4862 = vmatpush.msra.mxu0 %v4334
        %4863 = vmatpush.msra.mxu0 %v4322
        %4864 = vmatpush.msra.mxu0 %v4310
        %4865 = vmatpush.msra.mxu0 %v4298
        %4866 = vmatpush.msra.mxu0 %v4286
        %4867 = vmatpush.msra.mxu0 %v4274
        %4868 = vmatpush.msra.mxu0 %v4262
        %4869 = vmatpush.msra.mxu0 %v4250
        %4870 = vmatmul.f32.gmra.mxu0 %v4244
        %v4871 = vpop.f32.mrf.mxu0
        %v4872 = vadd.f32 %v4830, %v4871
        %4873 = vmatmul.f32.gmra.mxu0 %v4247
        %v4874 = vpop.f32.mrf.mxu0
        %v4875 = vadd.f32 %v4830, %v4874
        %4876 = vdwg.mxu0
        %4877 = vmatpush.msra.mxu0 %v4622
        %4878 = vmatpush.msra.mxu0 %v4610
        %4879 = vmatpush.msra.mxu0 %v4598
        %4880 = vmatpush.msra.mxu0 %v4586
        %4881 = vmatpush.msra.mxu0 %v4574
        %4882 = vmatpush.msra.mxu0 %v4562
        %4883 = vmatpush.msra.mxu0 %v4550
        %4884 = vmatpush.msra.mxu0 %v4538
        %4885 = vmatpush.msra.mxu0 %v4526
        %4886 = vmatpush.msra.mxu0 %v4514
        %4887 = vmatpush.msra.mxu0 %v4502
        %4888 = vmatpush.msra.mxu0 %v4490
        %4889 = vmatpush.msra.mxu0 %v4478
        %4890 = vmatpush.msra.mxu0 %v4466
        %4891 = vmatpush.msra.mxu0 %v4454
        %4892 = vmatpush.msra.mxu0 %v4442
        %4893 = vmatmul.f32.gmra.mxu0 %v4245
        %v4894 = vpop.f32.mrf.mxu0
        %v4895 = vadd.f32 %v4872, %v4894
        %4896 = vmatmul.f32.gmra.mxu0 %v4248
        %v4897 = vpop.f32.mrf.mxu0
        %v4898 = vadd.f32 %v4875, %v4897
        %4899 = vdwg.mxu0
        %4900 = vmatpush.msra.mxu0 %v4814
        %4901 = vmatpush.msra.mxu0 %v4802
        %4902 = vmatpush.msra.mxu0 %v4790
        %4903 = vmatpush.msra.mxu0 %v4778
        %4904 = vmatpush.msra.mxu0 %v4766
        %4905 = vmatpush.msra.mxu0 %v4754
        %4906 = vmatpush.msra.mxu0 %v4742
        %4907 = vmatpush.msra.mxu0 %v4730
        %4908 = vmatpush.msra.mxu0 %v4718
        %4909 = vmatpush.msra.mxu0 %v4706
        %4910 = vmatpush.msra.mxu0 %v4694
        %4911 = vmatpush.msra.mxu0 %v4682
        %4912 = vmatpush.msra.mxu0 %v4670
        %4913 = vmatpush.msra.mxu0 %v4658
        %4914 = vmatpush.msra.mxu0 %v4646
        %4915 = vmatpush.msra.mxu0 %v4634
        %4916 = vmatmul.f32.gmra.mxu0 %v4246
        %v4917 = vpop.f32.mrf.mxu0
        %v4918 = vadd.f32 %v4895, %v4917
        %4919 = vmatmul.f32.gmra.mxu0 %v4249
        %v4920 = vpop.f32.mrf.mxu0
        %v4921 = vadd.f32 %v4898, %v4920
        %4922 = vdwg.mxu0
        %4923 = vmatpush.msra.mxu0 %v4431
        %4924 = vmatpush.msra.mxu0 %v4419
        %4925 = vmatpush.msra.mxu0 %v4407
        %4926 = vmatpush.msra.mxu0 %v4395
        %4927 = vmatpush.msra.mxu0 %v4383
        %4928 = vmatpush.msra.mxu0 %v4371
        %4929 = vmatpush.msra.mxu0 %v4359
        %4930 = vmatpush.msra.mxu0 %v4347
        %4931 = vmatpush.msra.mxu0 %v4335
        %4932 = vmatpush.msra.mxu0 %v4323
        %4933 = vmatpush.msra.mxu0 %v4311
        %4934 = vmatpush.msra.mxu0 %v4299
        %4935 = vmatpush.msra.mxu0 %v4287
        %4936 = vmatpush.msra.mxu0 %v4275
        %4937 = vmatpush.msra.mxu0 %v4263
        %4938 = vmatpush.msra.mxu0 %v4251
        %4939 = vmatmul.f32.gmra.mxu0 %v4244
        %v4940 = vpop.f32.mrf.mxu0
        %v4941 = vadd.f32 %v4831, %v4940
        %4942 = vmatmul.f32.gmra.mxu0 %v4247
        %v4943 = vpop.f32.mrf.mxu0
        %v4944 = vadd.f32 %v4831, %v4943
        %4945 = vdwg.mxu0
        %4946 = vmatpush.msra.mxu0 %v4623
        %4947 = vmatpush.msra.mxu0 %v4611
        %4948 = vmatpush.msra.mxu0 %v4599
        %4949 = vmatpush.msra.mxu0 %v4587
        %4950 = vmatpush.msra.mxu0 %v4575
        %4951 = vmatpush.msra.mxu0 %v4563
        %4952 = vmatpush.msra.mxu0 %v4551
        %4953 = vmatpush.msra.mxu0 %v4539
        %4954 = vmatpush.msra.mxu0 %v4527
        %4955 = vmatpush.msra.mxu0 %v4515
        %4956 = vmatpush.msra.mxu0 %v4503
        %4957 = vmatpush.msra.mxu0 %v4491
        %4958 = vmatpush.msra.mxu0 %v4479
        %4959 = vmatpush.msra.mxu0 %v4467
        %4960 = vmatpush.msra.mxu0 %v4455
        %4961 = vmatpush.msra.mxu0 %v4443
        %4962 = vmatmul.f32.gmra.mxu0 %v4245
        %v4963 = vpop.f32.mrf.mxu0
        %v4964 = vadd.f32 %v4941, %v4963
        %4965 = vmatmul.f32.gmra.mxu0 %v4248
        %v4966 = vpop.f32.mrf.mxu0
        %v4967 = vadd.f32 %v4944, %v4966
        %4968 = vdwg.mxu0
        %4969 = vmatpush.msra.mxu0 %v4815
        %4970 = vmatpush.msra.mxu0 %v4803
        %4971 = vmatpush.msra.mxu0 %v4791
        %4972 = vmatpush.msra.mxu0 %v4779
        %4973 = vmatpush.msra.mxu0 %v4767
        %4974 = vmatpush.msra.mxu0 %v4755
        %4975 = vmatpush.msra.mxu0 %v4743
        %4976 = vmatpush.msra.mxu0 %v4731
        %4977 = vmatpush.msra.mxu0 %v4719
        %4978 = vmatpush.msra.mxu0 %v4707
        %4979 = vmatpush.msra.mxu0 %v4695
        %4980 = vmatpush.msra.mxu0 %v4683
        %4981 = vmatpush.msra.mxu0 %v4671
        %4982 = vmatpush.msra.mxu0 %v4659
        %4983 = vmatpush.msra.mxu0 %v4647
        %4984 = vmatpush.msra.mxu0 %v4635
        %4985 = vmatmul.f32.gmra.mxu0 %v4246
        %v4986 = vpop.f32.mrf.mxu0
        %v4987 = vadd.f32 %v4964, %v4986
        %4988 = vmatmul.f32.gmra.mxu0 %v4249
        %v4989 = vpop.f32.mrf.mxu0
        %v4990 = vadd.f32 %v4967, %v4989
        %4991 = vdwg.mxu0
        %4992 = vmatpush.msra.mxu0 %v4432
        %4993 = vmatpush.msra.mxu0 %v4420
        %4994 = vmatpush.msra.mxu0 %v4408
        %4995 = vmatpush.msra.mxu0 %v4396
        %4996 = vmatpush.msra.mxu0 %v4384
        %4997 = vmatpush.msra.mxu0 %v4372
        %4998 = vmatpush.msra.mxu0 %v4360
        %4999 = vmatpush.msra.mxu0 %v4348
        %5000 = vmatpush.msra.mxu0 %v4336
        %5001 = vmatpush.msra.mxu0 %v4324
        %5002 = vmatpush.msra.mxu0 %v4312
        %5003 = vmatpush.msra.mxu0 %v4300
        %5004 = vmatpush.msra.mxu0 %v4288
        %5005 = vmatpush.msra.mxu0 %v4276
        %5006 = vmatpush.msra.mxu0 %v4264
        %5007 = vmatpush.msra.mxu0 %v4252
        %5008 = vmatmul.f32.gmra.mxu0 %v4244
        %v5009 = vpop.f32.mrf.mxu0
        %v5010 = vadd.f32 %v4832, %v5009
        %5011 = vmatmul.f32.gmra.mxu0 %v4247
        %v5012 = vpop.f32.mrf.mxu0
        %v5013 = vadd.f32 %v4832, %v5012
        %5014 = vdwg.mxu0
        %5015 = vmatpush.msra.mxu0 %v4624
        %5016 = vmatpush.msra.mxu0 %v4612
        %5017 = vmatpush.msra.mxu0 %v4600
        %5018 = vmatpush.msra.mxu0 %v4588
        %5019 = vmatpush.msra.mxu0 %v4576
        %5020 = vmatpush.msra.mxu0 %v4564
        %5021 = vmatpush.msra.mxu0 %v4552
        %5022 = vmatpush.msra.mxu0 %v4540
        %5023 = vmatpush.msra.mxu0 %v4528
        %5024 = vmatpush.msra.mxu0 %v4516
        %5025 = vmatpush.msra.mxu0 %v4504
        %5026 = vmatpush.msra.mxu0 %v4492
        %5027 = vmatpush.msra.mxu0 %v4480
        %5028 = vmatpush.msra.mxu0 %v4468
        %5029 = vmatpush.msra.mxu0 %v4456
        %5030 = vmatpush.msra.mxu0 %v4444
        %5031 = vmatmul.f32.gmra.mxu0 %v4245
        %v5032 = vpop.f32.mrf.mxu0
        %v5033 = vadd.f32 %v5010, %v5032
        %5034 = vmatmul.f32.gmra.mxu0 %v4248
        %v5035 = vpop.f32.mrf.mxu0
        %v5036 = vadd.f32 %v5013, %v5035
        %5037 = vdwg.mxu0
        %5038 = vmatpush.msra.mxu0 %v4816
        %5039 = vmatpush.msra.mxu0 %v4804
        %5040 = vmatpush.msra.mxu0 %v4792
        %5041 = vmatpush.msra.mxu0 %v4780
        %5042 = vmatpush.msra.mxu0 %v4768
        %5043 = vmatpush.msra.mxu0 %v4756
        %5044 = vmatpush.msra.mxu0 %v4744
        %5045 = vmatpush.msra.mxu0 %v4732
        %5046 = vmatpush.msra.mxu0 %v4720
        %5047 = vmatpush.msra.mxu0 %v4708
        %5048 = vmatpush.msra.mxu0 %v4696
        %5049 = vmatpush.msra.mxu0 %v4684
        %5050 = vmatpush.msra.mxu0 %v4672
        %5051 = vmatpush.msra.mxu0 %v4660
        %5052 = vmatpush.msra.mxu0 %v4648
        %5053 = vmatpush.msra.mxu0 %v4636
        %5054 = vmatmul.f32.gmra.mxu0 %v4246
        %v5055 = vpop.f32.mrf.mxu0
        %v5056 = vadd.f32 %v5033, %v5055
        %5057 = vmatmul.f32.gmra.mxu0 %v4249
        %v5058 = vpop.f32.mrf.mxu0
        %v5059 = vadd.f32 %v5036, %v5058
        %5060 = vdwg.mxu0
        %5061 = vmatpush.msra.mxu0 %v4433
        %5062 = vmatpush.msra.mxu0 %v4421
        %5063 = vmatpush.msra.mxu0 %v4409
        %5064 = vmatpush.msra.mxu0 %v4397
        %5065 = vmatpush.msra.mxu0 %v4385
        %5066 = vmatpush.msra.mxu0 %v4373
        %5067 = vmatpush.msra.mxu0 %v4361
        %5068 = vmatpush.msra.mxu0 %v4349
        %5069 = vmatpush.msra.mxu0 %v4337
        %5070 = vmatpush.msra.mxu0 %v4325
        %5071 = vmatpush.msra.mxu0 %v4313
        %5072 = vmatpush.msra.mxu0 %v4301
        %5073 = vmatpush.msra.mxu0 %v4289
        %5074 = vmatpush.msra.mxu0 %v4277
        %5075 = vmatpush.msra.mxu0 %v4265
        %5076 = vmatpush.msra.mxu0 %v4253
        %5077 = vmatmul.f32.gmra.mxu0 %v4244
        %v5078 = vpop.f32.mrf.mxu0
        %v5079 = vadd.f32 %v4833, %v5078
        %5080 = vmatmul.f32.gmra.mxu0 %v4247
        %v5081 = vpop.f32.mrf.mxu0
        %v5082 = vadd.f32 %v4833, %v5081
        %5083 = vdwg.mxu0
        %5084 = vmatpush.msra.mxu0 %v4625
        %5085 = vmatpush.msra.mxu0 %v4613
        %5086 = vmatpush.msra.mxu0 %v4601
        %5087 = vmatpush.msra.mxu0 %v4589
        %5088 = vmatpush.msra.mxu0 %v4577
        %5089 = vmatpush.msra.mxu0 %v4565
        %5090 = vmatpush.msra.mxu0 %v4553
        %5091 = vmatpush.msra.mxu0 %v4541
        %5092 = vmatpush.msra.mxu0 %v4529
        %5093 = vmatpush.msra.mxu0 %v4517
        %5094 = vmatpush.msra.mxu0 %v4505
        %5095 = vmatpush.msra.mxu0 %v4493
        %5096 = vmatpush.msra.mxu0 %v4481
        %5097 = vmatpush.msra.mxu0 %v4469
        %5098 = vmatpush.msra.mxu0 %v4457
        %5099 = vmatpush.msra.mxu0 %v4445
        %5100 = vmatmul.f32.gmra.mxu0 %v4245
        %v5101 = vpop.f32.mrf.mxu0
        %v5102 = vadd.f32 %v5079, %v5101
        %5103 = vmatmul.f32.gmra.mxu0 %v4248
        %v5104 = vpop.f32.mrf.mxu0
        %v5105 = vadd.f32 %v5082, %v5104
        %5106 = vdwg.mxu0
        %5107 = vmatpush.msra.mxu0 %v4817
        %5108 = vmatpush.msra.mxu0 %v4805
        %5109 = vmatpush.msra.mxu0 %v4793
        %5110 = vmatpush.msra.mxu0 %v4781
        %5111 = vmatpush.msra.mxu0 %v4769
        %5112 = vmatpush.msra.mxu0 %v4757
        %5113 = vmatpush.msra.mxu0 %v4745
        %5114 = vmatpush.msra.mxu0 %v4733
        %5115 = vmatpush.msra.mxu0 %v4721
        %5116 = vmatpush.msra.mxu0 %v4709
        %5117 = vmatpush.msra.mxu0 %v4697
        %5118 = vmatpush.msra.mxu0 %v4685
        %5119 = vmatpush.msra.mxu0 %v4673
        %5120 = vmatpush.msra.mxu0 %v4661
        %5121 = vmatpush.msra.mxu0 %v4649
        %5122 = vmatpush.msra.mxu0 %v4637
        %5123 = vmatmul.f32.gmra.mxu0 %v4246
        %v5124 = vpop.f32.mrf.mxu0
        %v5125 = vadd.f32 %v5102, %v5124
        %5126 = vmatmul.f32.gmra.mxu0 %v4249
        %v5127 = vpop.f32.mrf.mxu0
        %v5128 = vadd.f32 %v5105, %v5127
        %5129 = vdwg.mxu0
        %5130 = vmatpush.msra.mxu0 %v4434
        %5131 = vmatpush.msra.mxu0 %v4422
        %5132 = vmatpush.msra.mxu0 %v4410
        %5133 = vmatpush.msra.mxu0 %v4398
        %5134 = vmatpush.msra.mxu0 %v4386
        %5135 = vmatpush.msra.mxu0 %v4374
        %5136 = vmatpush.msra.mxu0 %v4362
        %5137 = vmatpush.msra.mxu0 %v4350
        %5138 = vmatpush.msra.mxu0 %v4338
        %5139 = vmatpush.msra.mxu0 %v4326
        %5140 = vmatpush.msra.mxu0 %v4314
        %5141 = vmatpush.msra.mxu0 %v4302
        %5142 = vmatpush.msra.mxu0 %v4290
        %5143 = vmatpush.msra.mxu0 %v4278
        %5144 = vmatpush.msra.mxu0 %v4266
        %5145 = vmatpush.msra.mxu0 %v4254
        %5146 = vmatmul.f32.gmra.mxu0 %v4244
        %v5147 = vpop.f32.mrf.mxu0
        %v5148 = vadd.f32 %v4834, %v5147
        %5149 = vmatmul.f32.gmra.mxu0 %v4247
        %v5150 = vpop.f32.mrf.mxu0
        %v5151 = vadd.f32 %v4834, %v5150
        %5152 = vdwg.mxu0
        %5153 = vmatpush.msra.mxu0 %v4626
        %5154 = vmatpush.msra.mxu0 %v4614
        %5155 = vmatpush.msra.mxu0 %v4602
        %5156 = vmatpush.msra.mxu0 %v4590
        %5157 = vmatpush.msra.mxu0 %v4578
        %5158 = vmatpush.msra.mxu0 %v4566
        %5159 = vmatpush.msra.mxu0 %v4554
        %5160 = vmatpush.msra.mxu0 %v4542
        %5161 = vmatpush.msra.mxu0 %v4530
        %5162 = vmatpush.msra.mxu0 %v4518
        %5163 = vmatpush.msra.mxu0 %v4506
        %5164 = vmatpush.msra.mxu0 %v4494
        %5165 = vmatpush.msra.mxu0 %v4482
        %5166 = vmatpush.msra.mxu0 %v4470
        %5167 = vmatpush.msra.mxu0 %v4458
        %5168 = vmatpush.msra.mxu0 %v4446
        %5169 = vmatmul.f32.gmra.mxu0 %v4245
        %v5170 = vpop.f32.mrf.mxu0
        %v5171 = vadd.f32 %v5148, %v5170
        %5172 = vmatmul.f32.gmra.mxu0 %v4248
        %v5173 = vpop.f32.mrf.mxu0
        %v5174 = vadd.f32 %v5151, %v5173
        %5175 = vdwg.mxu0
        %5176 = vmatpush.msra.mxu0 %v4818
        %5177 = vmatpush.msra.mxu0 %v4806
        %5178 = vmatpush.msra.mxu0 %v4794
        %5179 = vmatpush.msra.mxu0 %v4782
        %5180 = vmatpush.msra.mxu0 %v4770
        %5181 = vmatpush.msra.mxu0 %v4758
        %5182 = vmatpush.msra.mxu0 %v4746
        %5183 = vmatpush.msra.mxu0 %v4734
        %5184 = vmatpush.msra.mxu0 %v4722
        %5185 = vmatpush.msra.mxu0 %v4710
        %5186 = vmatpush.msra.mxu0 %v4698
        %5187 = vmatpush.msra.mxu0 %v4686
        %5188 = vmatpush.msra.mxu0 %v4674
        %5189 = vmatpush.msra.mxu0 %v4662
        %5190 = vmatpush.msra.mxu0 %v4650
        %5191 = vmatpush.msra.mxu0 %v4638
        %5192 = vmatmul.f32.gmra.mxu0 %v4246
        %v5193 = vpop.f32.mrf.mxu0
        %v5194 = vadd.f32 %v5171, %v5193
        %5195 = vmatmul.f32.gmra.mxu0 %v4249
        %v5196 = vpop.f32.mrf.mxu0
        %v5197 = vadd.f32 %v5174, %v5196
        %5198 = vdwg.mxu0
        %5199 = vmatpush.msra.mxu0 %v4435
        %5200 = vmatpush.msra.mxu0 %v4423
        %5201 = vmatpush.msra.mxu0 %v4411
        %5202 = vmatpush.msra.mxu0 %v4399
        %5203 = vmatpush.msra.mxu0 %v4387
        %5204 = vmatpush.msra.mxu0 %v4375
        %5205 = vmatpush.msra.mxu0 %v4363
        %5206 = vmatpush.msra.mxu0 %v4351
        %5207 = vmatpush.msra.mxu0 %v4339
        %5208 = vmatpush.msra.mxu0 %v4327
        %5209 = vmatpush.msra.mxu0 %v4315
        %5210 = vmatpush.msra.mxu0 %v4303
        %5211 = vmatpush.msra.mxu0 %v4291
        %5212 = vmatpush.msra.mxu0 %v4279
        %5213 = vmatpush.msra.mxu0 %v4267
        %5214 = vmatpush.msra.mxu0 %v4255
        %5215 = vmatmul.f32.gmra.mxu0 %v4244
        %v5216 = vpop.f32.mrf.mxu0
        %v5217 = vadd.f32 %v4835, %v5216
        %5218 = vmatmul.f32.gmra.mxu0 %v4247
        %v5219 = vpop.f32.mrf.mxu0
        %v5220 = vadd.f32 %v4835, %v5219
        %5221 = vdwg.mxu0
        %5222 = vmatpush.msra.mxu0 %v4627
        %5223 = vmatpush.msra.mxu0 %v4615
        %5224 = vmatpush.msra.mxu0 %v4603
        %5225 = vmatpush.msra.mxu0 %v4591
        %5226 = vmatpush.msra.mxu0 %v4579
        %5227 = vmatpush.msra.mxu0 %v4567
        %5228 = vmatpush.msra.mxu0 %v4555
        %5229 = vmatpush.msra.mxu0 %v4543
        %5230 = vmatpush.msra.mxu0 %v4531
        %5231 = vmatpush.msra.mxu0 %v4519
        %5232 = vmatpush.msra.mxu0 %v4507
        %5233 = vmatpush.msra.mxu0 %v4495
        %5234 = vmatpush.msra.mxu0 %v4483
        %5235 = vmatpush.msra.mxu0 %v4471
        %5236 = vmatpush.msra.mxu0 %v4459
        %5237 = vmatpush.msra.mxu0 %v4447
        %5238 = vmatmul.f32.gmra.mxu0 %v4245
        %v5239 = vpop.f32.mrf.mxu0
        %v5240 = vadd.f32 %v5217, %v5239
        %5241 = vmatmul.f32.gmra.mxu0 %v4248
        %v5242 = vpop.f32.mrf.mxu0
        %v5243 = vadd.f32 %v5220, %v5242
        %5244 = vdwg.mxu0
        %5245 = vmatpush.msra.mxu0 %v4819
        %5246 = vmatpush.msra.mxu0 %v4807
        %5247 = vmatpush.msra.mxu0 %v4795
        %5248 = vmatpush.msra.mxu0 %v4783
        %5249 = vmatpush.msra.mxu0 %v4771
        %5250 = vmatpush.msra.mxu0 %v4759
        %5251 = vmatpush.msra.mxu0 %v4747
        %5252 = vmatpush.msra.mxu0 %v4735
        %5253 = vmatpush.msra.mxu0 %v4723
        %5254 = vmatpush.msra.mxu0 %v4711
        %5255 = vmatpush.msra.mxu0 %v4699
        %5256 = vmatpush.msra.mxu0 %v4687
        %5257 = vmatpush.msra.mxu0 %v4675
        %5258 = vmatpush.msra.mxu0 %v4663
        %5259 = vmatpush.msra.mxu0 %v4651
        %5260 = vmatpush.msra.mxu0 %v4639
        %5261 = vmatmul.f32.gmra.mxu0 %v4246
        %v5262 = vpop.f32.mrf.mxu0
        %v5263 = vadd.f32 %v5240, %v5262
        %5264 = vmatmul.f32.gmra.mxu0 %v4249
        %v5265 = vpop.f32.mrf.mxu0
        %v5266 = vadd.f32 %v5243, %v5265
        %5267 = vdwg.mxu0
        %5268 = vmatpush.msra.mxu0 %v4436
        %5269 = vmatpush.msra.mxu0 %v4424
        %5270 = vmatpush.msra.mxu0 %v4412
        %5271 = vmatpush.msra.mxu0 %v4400
        %5272 = vmatpush.msra.mxu0 %v4388
        %5273 = vmatpush.msra.mxu0 %v4376
        %5274 = vmatpush.msra.mxu0 %v4364
        %5275 = vmatpush.msra.mxu0 %v4352
        %5276 = vmatpush.msra.mxu0 %v4340
        %5277 = vmatpush.msra.mxu0 %v4328
        %5278 = vmatpush.msra.mxu0 %v4316
        %5279 = vmatpush.msra.mxu0 %v4304
        %5280 = vmatpush.msra.mxu0 %v4292
        %5281 = vmatpush.msra.mxu0 %v4280
        %5282 = vmatpush.msra.mxu0 %v4268
        %5283 = vmatpush.msra.mxu0 %v4256
        %5284 = vmatmul.f32.gmra.mxu0 %v4244
        %v5285 = vpop.f32.mrf.mxu0
        %v5286 = vadd.f32 %v4836, %v5285
        %5287 = vmatmul.f32.gmra.mxu0 %v4247
        %v5288 = vpop.f32.mrf.mxu0
        %v5289 = vadd.f32 %v4836, %v5288
        %5290 = vdwg.mxu0
        %5291 = vmatpush.msra.mxu0 %v4628
        %5292 = vmatpush.msra.mxu0 %v4616
        %5293 = vmatpush.msra.mxu0 %v4604
        %5294 = vmatpush.msra.mxu0 %v4592
        %5295 = vmatpush.msra.mxu0 %v4580
        %5296 = vmatpush.msra.mxu0 %v4568
        %5297 = vmatpush.msra.mxu0 %v4556
        %5298 = vmatpush.msra.mxu0 %v4544
        %5299 = vmatpush.msra.mxu0 %v4532
        %5300 = vmatpush.msra.mxu0 %v4520
        %5301 = vmatpush.msra.mxu0 %v4508
        %5302 = vmatpush.msra.mxu0 %v4496
        %5303 = vmatpush.msra.mxu0 %v4484
        %5304 = vmatpush.msra.mxu0 %v4472
        %5305 = vmatpush.msra.mxu0 %v4460
        %5306 = vmatpush.msra.mxu0 %v4448
        %5307 = vmatmul.f32.gmra.mxu0 %v4245
        %v5308 = vpop.f32.mrf.mxu0
        %v5309 = vadd.f32 %v5286, %v5308
        %5310 = vmatmul.f32.gmra.mxu0 %v4248
        %v5311 = vpop.f32.mrf.mxu0
        %v5312 = vadd.f32 %v5289, %v5311
        %5313 = vdwg.mxu0
        %5314 = vmatpush.msra.mxu0 %v4820
        %5315 = vmatpush.msra.mxu0 %v4808
        %5316 = vmatpush.msra.mxu0 %v4796
        %5317 = vmatpush.msra.mxu0 %v4784
        %5318 = vmatpush.msra.mxu0 %v4772
        %5319 = vmatpush.msra.mxu0 %v4760
        %5320 = vmatpush.msra.mxu0 %v4748
        %5321 = vmatpush.msra.mxu0 %v4736
        %5322 = vmatpush.msra.mxu0 %v4724
        %5323 = vmatpush.msra.mxu0 %v4712
        %5324 = vmatpush.msra.mxu0 %v4700
        %5325 = vmatpush.msra.mxu0 %v4688
        %5326 = vmatpush.msra.mxu0 %v4676
        %5327 = vmatpush.msra.mxu0 %v4664
        %5328 = vmatpush.msra.mxu0 %v4652
        %5329 = vmatpush.msra.mxu0 %v4640
        %5330 = vmatmul.f32.gmra.mxu0 %v4246
        %v5331 = vpop.f32.mrf.mxu0
        %v5332 = vadd.f32 %v5309, %v5331
        %5333 = vmatmul.f32.gmra.mxu0 %v4249
        %v5334 = vpop.f32.mrf.mxu0
        %v5335 = vadd.f32 %v5312, %v5334
        %5336 = vdwg.mxu0
        %5337 = vmatpush.msra.mxu0 %v4437
        %5338 = vmatpush.msra.mxu0 %v4425
        %5339 = vmatpush.msra.mxu0 %v4413
        %5340 = vmatpush.msra.mxu0 %v4401
        %5341 = vmatpush.msra.mxu0 %v4389
        %5342 = vmatpush.msra.mxu0 %v4377
        %5343 = vmatpush.msra.mxu0 %v4365
        %5344 = vmatpush.msra.mxu0 %v4353
        %5345 = vmatpush.msra.mxu0 %v4341
        %5346 = vmatpush.msra.mxu0 %v4329
        %5347 = vmatpush.msra.mxu0 %v4317
        %5348 = vmatpush.msra.mxu0 %v4305
        %5349 = vmatpush.msra.mxu0 %v4293
        %5350 = vmatpush.msra.mxu0 %v4281
        %5351 = vmatpush.msra.mxu0 %v4269
        %5352 = vmatpush.msra.mxu0 %v4257
        %5353 = vmatmul.f32.gmra.mxu0 %v4244
        %v5354 = vpop.f32.mrf.mxu0
        %v5355 = vadd.f32 %v4837, %v5354
        %5356 = vmatmul.f32.gmra.mxu0 %v4247
        %v5357 = vpop.f32.mrf.mxu0
        %v5358 = vadd.f32 %v4837, %v5357
        %5359 = vdwg.mxu0
        %5360 = vmatpush.msra.mxu0 %v4629
        %5361 = vmatpush.msra.mxu0 %v4617
        %5362 = vmatpush.msra.mxu0 %v4605
        %5363 = vmatpush.msra.mxu0 %v4593
        %5364 = vmatpush.msra.mxu0 %v4581
        %5365 = vmatpush.msra.mxu0 %v4569
        %5366 = vmatpush.msra.mxu0 %v4557
        %5367 = vmatpush.msra.mxu0 %v4545
        %5368 = vmatpush.msra.mxu0 %v4533
        %5369 = vmatpush.msra.mxu0 %v4521
        %5370 = vmatpush.msra.mxu0 %v4509
        %5371 = vmatpush.msra.mxu0 %v4497
        %5372 = vmatpush.msra.mxu0 %v4485
        %5373 = vmatpush.msra.mxu0 %v4473
        %5374 = vmatpush.msra.mxu0 %v4461
        %5375 = vmatpush.msra.mxu0 %v4449
        %5376 = vmatmul.f32.gmra.mxu0 %v4245
        %v5377 = vpop.f32.mrf.mxu0
        %v5378 = vadd.f32 %v5355, %v5377
        %5379 = vmatmul.f32.gmra.mxu0 %v4248
        %v5380 = vpop.f32.mrf.mxu0
        %v5381 = vadd.f32 %v5358, %v5380
        %5382 = vdwg.mxu0
        %5383 = vmatpush.msra.mxu0 %v4821
        %5384 = vmatpush.msra.mxu0 %v4809
        %5385 = vmatpush.msra.mxu0 %v4797
        %5386 = vmatpush.msra.mxu0 %v4785
        %5387 = vmatpush.msra.mxu0 %v4773
        %5388 = vmatpush.msra.mxu0 %v4761
        %5389 = vmatpush.msra.mxu0 %v4749
        %5390 = vmatpush.msra.mxu0 %v4737
        %5391 = vmatpush.msra.mxu0 %v4725
        %5392 = vmatpush.msra.mxu0 %v4713
        %5393 = vmatpush.msra.mxu0 %v4701
        %5394 = vmatpush.msra.mxu0 %v4689
        %5395 = vmatpush.msra.mxu0 %v4677
        %5396 = vmatpush.msra.mxu0 %v4665
        %5397 = vmatpush.msra.mxu0 %v4653
        %5398 = vmatpush.msra.mxu0 %v4641
        %5399 = vmatmul.f32.gmra.mxu0 %v4246
        %v5400 = vpop.f32.mrf.mxu0
        %v5401 = vadd.f32 %v5378, %v5400
        %5402 = vmatmul.f32.gmra.mxu0 %v4249
        %v5403 = vpop.f32.mrf.mxu0
        %v5404 = vadd.f32 %v5381, %v5403
        %5405 = vdwg.mxu0
        %5406 = vmatpush.msra.mxu0 %v4438
        %5407 = vmatpush.msra.mxu0 %v4426
        %5408 = vmatpush.msra.mxu0 %v4414
        %5409 = vmatpush.msra.mxu0 %v4402
        %5410 = vmatpush.msra.mxu0 %v4390
        %5411 = vmatpush.msra.mxu0 %v4378
        %5412 = vmatpush.msra.mxu0 %v4366
        %5413 = vmatpush.msra.mxu0 %v4354
        %5414 = vmatpush.msra.mxu0 %v4342
        %5415 = vmatpush.msra.mxu0 %v4330
        %5416 = vmatpush.msra.mxu0 %v4318
        %5417 = vmatpush.msra.mxu0 %v4306
        %5418 = vmatpush.msra.mxu0 %v4294
        %5419 = vmatpush.msra.mxu0 %v4282
        %5420 = vmatpush.msra.mxu0 %v4270
        %5421 = vmatpush.msra.mxu0 %v4258
        %5422 = vmatmul.f32.gmra.mxu0 %v4244
        %v5423 = vpop.f32.mrf.mxu0
        %v5424 = vadd.f32 %v4838, %v5423
        %5425 = vmatmul.f32.gmra.mxu0 %v4247
        %v5426 = vpop.f32.mrf.mxu0
        %v5427 = vadd.f32 %v4838, %v5426
        %5428 = vdwg.mxu0
        %5429 = vmatpush.msra.mxu0 %v4630
        %5430 = vmatpush.msra.mxu0 %v4618
        %5431 = vmatpush.msra.mxu0 %v4606
        %5432 = vmatpush.msra.mxu0 %v4594
        %5433 = vmatpush.msra.mxu0 %v4582
        %5434 = vmatpush.msra.mxu0 %v4570
        %5435 = vmatpush.msra.mxu0 %v4558
        %5436 = vmatpush.msra.mxu0 %v4546
        %5437 = vmatpush.msra.mxu0 %v4534
        %5438 = vmatpush.msra.mxu0 %v4522
        %5439 = vmatpush.msra.mxu0 %v4510
        %5440 = vmatpush.msra.mxu0 %v4498
        %5441 = vmatpush.msra.mxu0 %v4486
        %5442 = vmatpush.msra.mxu0 %v4474
        %5443 = vmatpush.msra.mxu0 %v4462
        %5444 = vmatpush.msra.mxu0 %v4450
        %5445 = vmatmul.f32.gmra.mxu0 %v4245
        %v5446 = vpop.f32.mrf.mxu0
        %v5447 = vadd.f32 %v5424, %v5446
        %5448 = vmatmul.f32.gmra.mxu0 %v4248
        %v5449 = vpop.f32.mrf.mxu0
        %v5450 = vadd.f32 %v5427, %v5449
        %5451 = vdwg.mxu0
        %5452 = vmatpush.msra.mxu0 %v4822
        %5453 = vmatpush.msra.mxu0 %v4810
        %5454 = vmatpush.msra.mxu0 %v4798
        %5455 = vmatpush.msra.mxu0 %v4786
        %5456 = vmatpush.msra.mxu0 %v4774
        %5457 = vmatpush.msra.mxu0 %v4762
        %5458 = vmatpush.msra.mxu0 %v4750
        %5459 = vmatpush.msra.mxu0 %v4738
        %5460 = vmatpush.msra.mxu0 %v4726
        %5461 = vmatpush.msra.mxu0 %v4714
        %5462 = vmatpush.msra.mxu0 %v4702
        %5463 = vmatpush.msra.mxu0 %v4690
        %5464 = vmatpush.msra.mxu0 %v4678
        %5465 = vmatpush.msra.mxu0 %v4666
        %5466 = vmatpush.msra.mxu0 %v4654
        %5467 = vmatpush.msra.mxu0 %v4642
        %5468 = vmatmul.f32.gmra.mxu0 %v4246
        %v5469 = vpop.f32.mrf.mxu0
        %v5470 = vadd.f32 %v5447, %v5469
        %5471 = vmatmul.f32.gmra.mxu0 %v4249
        %v5472 = vpop.f32.mrf.mxu0
        %v5473 = vadd.f32 %v5450, %v5472
        %5474 = vdwg.mxu0
        %5475 = vmatpush.msra.mxu0 %v4439
        %5476 = vmatpush.msra.mxu0 %v4427
        %5477 = vmatpush.msra.mxu0 %v4415
        %5478 = vmatpush.msra.mxu0 %v4403
        %5479 = vmatpush.msra.mxu0 %v4391
        %5480 = vmatpush.msra.mxu0 %v4379
        %5481 = vmatpush.msra.mxu0 %v4367
        %5482 = vmatpush.msra.mxu0 %v4355
        %5483 = vmatpush.msra.mxu0 %v4343
        %5484 = vmatpush.msra.mxu0 %v4331
        %5485 = vmatpush.msra.mxu0 %v4319
        %5486 = vmatpush.msra.mxu0 %v4307
        %5487 = vmatpush.msra.mxu0 %v4295
        %5488 = vmatpush.msra.mxu0 %v4283
        %5489 = vmatpush.msra.mxu0 %v4271
        %5490 = vmatpush.msra.mxu0 %v4259
        %5491 = vmatmul.f32.gmra.mxu0 %v4244
        %v5492 = vpop.f32.mrf.mxu0
        %v5493 = vadd.f32 %v4839, %v5492
        %5494 = vmatmul.f32.gmra.mxu0 %v4247
        %v5495 = vpop.f32.mrf.mxu0
        %v5496 = vadd.f32 %v4839, %v5495
        %5497 = vdwg.mxu0
        %5498 = vmatpush.msra.mxu0 %v4631
        %5499 = vmatpush.msra.mxu0 %v4619
        %5500 = vmatpush.msra.mxu0 %v4607
        %5501 = vmatpush.msra.mxu0 %v4595
        %5502 = vmatpush.msra.mxu0 %v4583
        %5503 = vmatpush.msra.mxu0 %v4571
        %5504 = vmatpush.msra.mxu0 %v4559
        %5505 = vmatpush.msra.mxu0 %v4547
        %5506 = vmatpush.msra.mxu0 %v4535
        %5507 = vmatpush.msra.mxu0 %v4523
        %5508 = vmatpush.msra.mxu0 %v4511
        %5509 = vmatpush.msra.mxu0 %v4499
        %5510 = vmatpush.msra.mxu0 %v4487
        %5511 = vmatpush.msra.mxu0 %v4475
        %5512 = vmatpush.msra.mxu0 %v4463
        %5513 = vmatpush.msra.mxu0 %v4451
        %5514 = vmatmul.f32.gmra.mxu0 %v4245
        %v5515 = vpop.f32.mrf.mxu0
        %v5516 = vadd.f32 %v5493, %v5515
        %5517 = vmatmul.f32.gmra.mxu0 %v4248
        %v5518 = vpop.f32.mrf.mxu0
        %v5519 = vadd.f32 %v5496, %v5518
        %5520 = vdwg.mxu0
        %5521 = vmatpush.msra.mxu0 %v4823
        %5522 = vmatpush.msra.mxu0 %v4811
        %5523 = vmatpush.msra.mxu0 %v4799
        %5524 = vmatpush.msra.mxu0 %v4787
        %5525 = vmatpush.msra.mxu0 %v4775
        %5526 = vmatpush.msra.mxu0 %v4763
        %5527 = vmatpush.msra.mxu0 %v4751
        %5528 = vmatpush.msra.mxu0 %v4739
        %5529 = vmatpush.msra.mxu0 %v4727
        %5530 = vmatpush.msra.mxu0 %v4715
        %5531 = vmatpush.msra.mxu0 %v4703
        %5532 = vmatpush.msra.mxu0 %v4691
        %5533 = vmatpush.msra.mxu0 %v4679
        %5534 = vmatpush.msra.mxu0 %v4667
        %5535 = vmatpush.msra.mxu0 %v4655
        %5536 = vmatpush.msra.mxu0 %v4643
        %5537 = vmatmul.f32.gmra.mxu0 %v4246
        %v5538 = vpop.f32.mrf.mxu0
        %v5539 = vadd.f32 %v5516, %v5538
        %5540 = vmatmul.f32.gmra.mxu0 %v4249
        %v5541 = vpop.f32.mrf.mxu0
        %v5542 = vadd.f32 %v5519, %v5541
        %5543 = vdwg.mxu0
        %5544 = vmatpush.msra.mxu0 %v4440
        %5545 = vmatpush.msra.mxu0 %v4428
        %5546 = vmatpush.msra.mxu0 %v4416
        %5547 = vmatpush.msra.mxu0 %v4404
        %5548 = vmatpush.msra.mxu0 %v4392
        %5549 = vmatpush.msra.mxu0 %v4380
        %5550 = vmatpush.msra.mxu0 %v4368
        %5551 = vmatpush.msra.mxu0 %v4356
        %5552 = vmatpush.msra.mxu0 %v4344
        %5553 = vmatpush.msra.mxu0 %v4332
        %5554 = vmatpush.msra.mxu0 %v4320
        %5555 = vmatpush.msra.mxu0 %v4308
        %5556 = vmatpush.msra.mxu0 %v4296
        %5557 = vmatpush.msra.mxu0 %v4284
        %5558 = vmatpush.msra.mxu0 %v4272
        %5559 = vmatpush.msra.mxu0 %v4260
        %5560 = vmatmul.f32.gmra.mxu0 %v4244
        %v5561 = vpop.f32.mrf.mxu0
        %v5562 = vadd.f32 %v4840, %v5561
        %5563 = vmatmul.f32.gmra.mxu0 %v4247
        %v5564 = vpop.f32.mrf.mxu0
        %v5565 = vadd.f32 %v4840, %v5564
        %5566 = vdwg.mxu0
        %5567 = vmatpush.msra.mxu0 %v4632
        %5568 = vmatpush.msra.mxu0 %v4620
        %5569 = vmatpush.msra.mxu0 %v4608
        %5570 = vmatpush.msra.mxu0 %v4596
        %5571 = vmatpush.msra.mxu0 %v4584
        %5572 = vmatpush.msra.mxu0 %v4572
        %5573 = vmatpush.msra.mxu0 %v4560
        %5574 = vmatpush.msra.mxu0 %v4548
        %5575 = vmatpush.msra.mxu0 %v4536
        %5576 = vmatpush.msra.mxu0 %v4524
        %5577 = vmatpush.msra.mxu0 %v4512
        %5578 = vmatpush.msra.mxu0 %v4500
        %5579 = vmatpush.msra.mxu0 %v4488
        %5580 = vmatpush.msra.mxu0 %v4476
        %5581 = vmatpush.msra.mxu0 %v4464
        %5582 = vmatpush.msra.mxu0 %v4452
        %5583 = vmatmul.f32.gmra.mxu0 %v4245
        %v5584 = vpop.f32.mrf.mxu0
        %v5585 = vadd.f32 %v5562, %v5584
        %5586 = vmatmul.f32.gmra.mxu0 %v4248
        %v5587 = vpop.f32.mrf.mxu0
        %v5588 = vadd.f32 %v5565, %v5587
        %5589 = vdwg.mxu0
        %5590 = vmatpush.msra.mxu0 %v4824
        %5591 = vmatpush.msra.mxu0 %v4812
        %5592 = vmatpush.msra.mxu0 %v4800
        %5593 = vmatpush.msra.mxu0 %v4788
        %5594 = vmatpush.msra.mxu0 %v4776
        %5595 = vmatpush.msra.mxu0 %v4764
        %5596 = vmatpush.msra.mxu0 %v4752
        %5597 = vmatpush.msra.mxu0 %v4740
        %5598 = vmatpush.msra.mxu0 %v4728
        %5599 = vmatpush.msra.mxu0 %v4716
        %5600 = vmatpush.msra.mxu0 %v4704
        %5601 = vmatpush.msra.mxu0 %v4692
        %5602 = vmatpush.msra.mxu0 %v4680
        %5603 = vmatpush.msra.mxu0 %v4668
        %5604 = vmatpush.msra.mxu0 %v4656
        %5605 = vmatpush.msra.mxu0 %v4644
        %5606 = vmatmul.f32.gmra.mxu0 %v4246
        %v5607 = vpop.f32.mrf.mxu0
        %v5608 = vadd.f32 %v5585, %v5607
        %5609 = vmatmul.f32.gmra.mxu0 %v4249
        %v5610 = vpop.f32.mrf.mxu0
        %v5611 = vadd.f32 %v5588, %v5610
        %5612 = vdwg.mxu0
        %5613 = vmatpush.msra.mxu0 %v4441
        %5614 = vmatpush.msra.mxu0 %v4429
        %5615 = vmatpush.msra.mxu0 %v4417
        %5616 = vmatpush.msra.mxu0 %v4405
        %5617 = vmatpush.msra.mxu0 %v4393
        %5618 = vmatpush.msra.mxu0 %v4381
        %5619 = vmatpush.msra.mxu0 %v4369
        %5620 = vmatpush.msra.mxu0 %v4357
        %5621 = vmatpush.msra.mxu0 %v4345
        %5622 = vmatpush.msra.mxu0 %v4333
        %5623 = vmatpush.msra.mxu0 %v4321
        %5624 = vmatpush.msra.mxu0 %v4309
        %5625 = vmatpush.msra.mxu0 %v4297
        %5626 = vmatpush.msra.mxu0 %v4285
        %5627 = vmatpush.msra.mxu0 %v4273
        %5628 = vmatpush.msra.mxu0 %v4261
        %5629 = vmatmul.f32.gmra.mxu0 %v4244
        %v5630 = vpop.f32.mrf.mxu0
        %v5631 = vadd.f32 %v4841, %v5630
        %5632 = vmatmul.f32.gmra.mxu0 %v4247
        %v5633 = vpop.f32.mrf.mxu0
        %v5634 = vadd.f32 %v4841, %v5633
        %5635 = vdwg.mxu0
        %5636 = vmatpush.msra.mxu0 %v4633
        %5637 = vmatpush.msra.mxu0 %v4621
        %5638 = vmatpush.msra.mxu0 %v4609
        %5639 = vmatpush.msra.mxu0 %v4597
        %5640 = vmatpush.msra.mxu0 %v4585
        %5641 = vmatpush.msra.mxu0 %v4573
        %5642 = vmatpush.msra.mxu0 %v4561
        %5643 = vmatpush.msra.mxu0 %v4549
        %5644 = vmatpush.msra.mxu0 %v4537
        %5645 = vmatpush.msra.mxu0 %v4525
        %5646 = vmatpush.msra.mxu0 %v4513
        %5647 = vmatpush.msra.mxu0 %v4501
        %5648 = vmatpush.msra.mxu0 %v4489
        %5649 = vmatpush.msra.mxu0 %v4477
        %5650 = vmatpush.msra.mxu0 %v4465
        %5651 = vmatpush.msra.mxu0 %v4453
        %5652 = vmatmul.f32.gmra.mxu0 %v4245
        %v5653 = vpop.f32.mrf.mxu0
        %v5654 = vadd.f32 %v5631, %v5653
        %5655 = vmatmul.f32.gmra.mxu0 %v4248
        %v5656 = vpop.f32.mrf.mxu0
        %v5657 = vadd.f32 %v5634, %v5656
        %5658 = vdwg.mxu0
        %5659 = vmatpush.msra.mxu0 %v4825
        %5660 = vmatpush.msra.mxu0 %v4813
        %5661 = vmatpush.msra.mxu0 %v4801
        %5662 = vmatpush.msra.mxu0 %v4789
        %5663 = vmatpush.msra.mxu0 %v4777
        %5664 = vmatpush.msra.mxu0 %v4765
        %5665 = vmatpush.msra.mxu0 %v4753
        %5666 = vmatpush.msra.mxu0 %v4741
        %5667 = vmatpush.msra.mxu0 %v4729
        %5668 = vmatpush.msra.mxu0 %v4717
        %5669 = vmatpush.msra.mxu0 %v4705
        %5670 = vmatpush.msra.mxu0 %v4693
        %5671 = vmatpush.msra.mxu0 %v4681
        %5672 = vmatpush.msra.mxu0 %v4669
        %5673 = vmatpush.msra.mxu0 %v4657
        %5674 = vmatpush.msra.mxu0 %v4645
        %5675 = vmatmul.f32.gmra.mxu0 %v4246
        %v5676 = vpop.f32.mrf.mxu0
        %v5677 = vadd.f32 %v5654, %v5676
        %5678 = vmatmul.f32.gmra.mxu0 %v4249
        %v5679 = vpop.f32.mrf.mxu0
        %v5680 = vadd.f32 %v5657, %v5679
        %5681 = vdwg.mxu0
        %v5682 = vmax.f32 %v4918, 0.0
        %v5683 = vmax.f32 %v4987, 0.0
        %v5684 = vmax.f32 %v5056, 0.0
        %v5685 = vmax.f32 %v5125, 0.0
        %v5686 = vmax.f32 %v5194, 0.0
        %v5687 = vmax.f32 %v5263, 0.0
        %v5688 = vmax.f32 %v5332, 0.0
        %v5689 = vmax.f32 %v5401, 0.0
        %v5690 = vmax.f32 %v5470, 0.0
        %v5691 = vmax.f32 %v5539, 0.0
        %v5692 = vmax.f32 %v5608, 0.0
        %v5693 = vmax.f32 %v5677, 0.0
        %v5694 = vmax.f32 %v4921, 0.0
        %v5695 = vmax.f32 %v4990, 0.0
        %v5696 = vmax.f32 %v5059, 0.0
        %v5697 = vmax.f32 %v5128, 0.0
        %v5698 = vmax.f32 %v5197, 0.0
        %v5699 = vmax.f32 %v5266, 0.0
        %v5700 = vmax.f32 %v5335, 0.0
        %v5701 = vmax.f32 %v5404, 0.0
        %v5702 = vmax.f32 %v5473, 0.0
        %v5703 = vmax.f32 %v5542, 0.0
        %v5704 = vmax.f32 %v5611, 0.0
        %v5705 = vmax.f32 %v5680, 0.0
        %v5706 = vld [vmem:[%s12] sm:$0xff]
        %v5707 = vld [vmem:[%s12 + $0x8] sm:$0xff]
        %v5708 = vld [vmem:[%s12 + $0x10] sm:$0xff]
        %v5709 = vld [vmem:[%s12 + $0x18] sm:$0xff]
        %v5710 = vld [vmem:[%s12 + $0x20] sm:$0xff]
        %v5711 = vld [vmem:[%s12 + $0x28] sm:$0xff]
        %v5712 = vld [vmem:[%s12 + $0x30] sm:$0xff]
        %v5713 = vld [vmem:[%s12 + $0x38] sm:$0xff]
        %v5714 = vld [vmem:[%s12 + $0x40] sm:$0xff]
        %v5715 = vld [vmem:[%s12 + $0x48] sm:$0xff]
        %v5716 = vld [vmem:[%s12 + $0x50] sm:$0xff]
        %v5717 = vld [vmem:[%s12 + $0x58] sm:$0xff]
        %v5718 = vld [vmem:[%s12 + $0x60] sm:$0xff]
        %v5719 = vld [vmem:[%s12 + $0x68] sm:$0xff]
        %v5720 = vld [vmem:[%s12 + $0x70] sm:$0xff]
        %v5721 = vld [vmem:[%s12 + $0x78] sm:$0xff]
        %v5722 = vld [vmem:[%s12 + $0x80] sm:$0xff]
        %v5723 = vld [vmem:[%s12 + $0x88] sm:$0xff]
        %v5724 = vld [vmem:[%s12 + $0x90] sm:$0xff]
        %v5725 = vld [vmem:[%s12 + $0x98] sm:$0xff]
        %v5726 = vld [vmem:[%s12 + $0xa0] sm:$0xff]
        %v5727 = vld [vmem:[%s12 + $0xa8] sm:$0xff]
        %v5728 = vld [vmem:[%s12 + $0xb0] sm:$0xff]
        %v5729 = vld [vmem:[%s12 + $0xb8] sm:$0xff]
        %v5730 = vld [vmem:[%s12 + $0xc0] sm:$0xff]
        %v5731 = vld [vmem:[%s12 + $0xc8] sm:$0xff]
        %v5732 = vld [vmem:[%s12 + $0xd0] sm:$0xff]
        %v5733 = vld [vmem:[%s12 + $0xd8] sm:$0xff]
        %v5734 = vld [vmem:[%s12 + $0xe0] sm:$0xff]
        %v5735 = vld [vmem:[%s12 + $0xe8] sm:$0xff]
        %v5736 = vld [vmem:[%s12 + $0xf0] sm:$0xff]
        %v5737 = vld [vmem:[%s12 + $0xf8] sm:$0xff]
        %v5738 = vld [vmem:[%s12 + $0x100] sm:$0xff]
        %v5739 = vld [vmem:[%s12 + $0x108] sm:$0xff]
        %v5740 = vld [vmem:[%s12 + $0x110] sm:$0xff]
        %v5741 = vld [vmem:[%s12 + $0x118] sm:$0xff]
        %v5742 = vld [vmem:[%s12 + $0x120] sm:$0xff]
        %v5743 = vld [vmem:[%s12 + $0x128] sm:$0xff]
        %v5744 = vld [vmem:[%s12 + $0x130] sm:$0xff]
        %v5745 = vld [vmem:[%s12 + $0x138] sm:$0xff]
        %v5746 = vld [vmem:[%s12 + $0x140] sm:$0xff]
        %v5747 = vld [vmem:[%s12 + $0x148] sm:$0xff]
        %v5748 = vld [vmem:[%s12 + $0x150] sm:$0xff]
        %v5749 = vld [vmem:[%s12 + $0x158] sm:$0xff]
        %v5750 = vld [vmem:[%s12 + $0x160] sm:$0xff]
        %v5751 = vld [vmem:[%s12 + $0x168] sm:$0xff]
        %v5752 = vld [vmem:[%s12 + $0x170] sm:$0xff]
        %v5753 = vld [vmem:[%s12 + $0x178] sm:$0xff]
        %v5754 = vld [vmem:[%s12 + $0x180] sm:$0xff]
        %v5755 = vld [vmem:[%s12 + $0x188] sm:$0xff]
        %v5756 = vld [vmem:[%s12 + $0x190] sm:$0xff]
        %v5757 = vld [vmem:[%s12 + $0x198] sm:$0xff]
        %v5758 = vld [vmem:[%s12 + $0x1a0] sm:$0xff]
        %v5759 = vld [vmem:[%s12 + $0x1a8] sm:$0xff]
        %v5760 = vld [vmem:[%s12 + $0x1b0] sm:$0xff]
        %v5761 = vld [vmem:[%s12 + $0x1b8] sm:$0xff]
        %v5762 = vld [vmem:[%s12 + $0x1c0] sm:$0xff]
        %v5763 = vld [vmem:[%s12 + $0x1c8] sm:$0xff]
        %v5764 = vld [vmem:[%s12 + $0x1d0] sm:$0xff]
        %v5765 = vld [vmem:[%s12 + $0x1d8] sm:$0xff]
        %v5766 = vld [vmem:[%s12 + $0x1e0] sm:$0xff]
        %v5767 = vld [vmem:[%s12 + $0x1e8] sm:$0xff]
        %v5768 = vld [vmem:[%s12 + $0x1f0] sm:$0xff]
        %v5769 = vld [vmem:[%s12 + $0x1f8] sm:$0xff]
        %v5770 = vld [vmem:[%s12 + $0x200] sm:$0xff]
        %v5771 = vld [vmem:[%s12 + $0x208] sm:$0xff]
        %v5772 = vld [vmem:[%s12 + $0x210] sm:$0xff]
        %v5773 = vld [vmem:[%s12 + $0x218] sm:$0xff]
        %v5774 = vld [vmem:[%s12 + $0x220] sm:$0xff]
        %v5775 = vld [vmem:[%s12 + $0x228] sm:$0xff]
        %v5776 = vld [vmem:[%s12 + $0x230] sm:$0xff]
        %v5777 = vld [vmem:[%s12 + $0x238] sm:$0xff]
        %v5778 = vld [vmem:[%s12 + $0x240] sm:$0xff]
        %v5779 = vld [vmem:[%s12 + $0x248] sm:$0xff]
        %v5780 = vld [vmem:[%s12 + $0x250] sm:$0xff]
        %v5781 = vld [vmem:[%s12 + $0x258] sm:$0xff]
        %v5782 = vld [vmem:[%s12 + $0x260] sm:$0xff]
        %v5783 = vld [vmem:[%s12 + $0x268] sm:$0xff]
        %v5784 = vld [vmem:[%s12 + $0x270] sm:$0xff]
        %v5785 = vld [vmem:[%s12 + $0x278] sm:$0xff]
        %v5786 = vld [vmem:[%s12 + $0x280] sm:$0xff]
        %v5787 = vld [vmem:[%s12 + $0x288] sm:$0xff]
        %v5788 = vld [vmem:[%s12 + $0x290] sm:$0xff]
        %v5789 = vld [vmem:[%s12 + $0x298] sm:$0xff]
        %v5790 = vld [vmem:[%s12 + $0x2a0] sm:$0xff]
        %v5791 = vld [vmem:[%s12 + $0x2a8] sm:$0xff]
        %v5792 = vld [vmem:[%s12 + $0x2b0] sm:$0xff]
        %v5793 = vld [vmem:[%s12 + $0x2b8] sm:$0xff]
        %v5794 = vld [vmem:[%s12 + $0x2c0] sm:$0xff]
        %v5795 = vld [vmem:[%s12 + $0x2c8] sm:$0xff]
        %v5796 = vld [vmem:[%s12 + $0x2d0] sm:$0xff]
        %v5797 = vld [vmem:[%s12 + $0x2d8] sm:$0xff]
        %v5798 = vld [vmem:[%s12 + $0x2e0] sm:$0xff]
        %v5799 = vld [vmem:[%s12 + $0x2e8] sm:$0xff]
        %v5800 = vld [vmem:[%s12 + $0x2f0] sm:$0xff]
        %v5801 = vld [vmem:[%s12 + $0x2f8] sm:$0xff]
        %v5802 = vld [vmem:[%s12 + $0x300] sm:$0xff]
        %v5803 = vld [vmem:[%s12 + $0x308] sm:$0xff]
        %v5804 = vld [vmem:[%s12 + $0x310] sm:$0xff]
        %v5805 = vld [vmem:[%s12 + $0x318] sm:$0xff]
        %v5806 = vld [vmem:[%s12 + $0x320] sm:$0xff]
        %v5807 = vld [vmem:[%s12 + $0x328] sm:$0xff]
        %v5808 = vld [vmem:[%s12 + $0x330] sm:$0xff]
        %v5809 = vld [vmem:[%s12 + $0x338] sm:$0xff]
        %v5810 = vld [vmem:[%s12 + $0x340] sm:$0xff]
        %v5811 = vld [vmem:[%s12 + $0x348] sm:$0xff]
        %v5812 = vld [vmem:[%s12 + $0x350] sm:$0xff]
        %v5813 = vld [vmem:[%s12 + $0x358] sm:$0xff]
        %v5814 = vld [vmem:[%s12 + $0x360] sm:$0xff]
        %v5815 = vld [vmem:[%s12 + $0x368] sm:$0xff]
        %v5816 = vld [vmem:[%s12 + $0x370] sm:$0xff]
        %v5817 = vld [vmem:[%s12 + $0x378] sm:$0xff]
        %v5818 = vld [vmem:[%s12 + $0x380] sm:$0xff]
        %v5819 = vld [vmem:[%s12 + $0x388] sm:$0xff]
        %v5820 = vld [vmem:[%s12 + $0x390] sm:$0xff]
        %v5821 = vld [vmem:[%s12 + $0x398] sm:$0xff]
        %v5822 = vld [vmem:[%s12 + $0x3a0] sm:$0xff]
        %v5823 = vld [vmem:[%s12 + $0x3a8] sm:$0xff]
        %v5824 = vld [vmem:[%s12 + $0x3b0] sm:$0xff]
        %v5825 = vld [vmem:[%s12 + $0x3b8] sm:$0xff]
        %v5826 = vld [vmem:[%s12 + $0x3c0] sm:$0xff]
        %v5827 = vld [vmem:[%s12 + $0x3c8] sm:$0xff]
        %v5828 = vld [vmem:[%s12 + $0x3d0] sm:$0xff]
        %v5829 = vld [vmem:[%s12 + $0x3d8] sm:$0xff]
        %v5830 = vld [vmem:[%s12 + $0x3e0] sm:$0xff]
        %v5831 = vld [vmem:[%s12 + $0x3e8] sm:$0xff]
        %v5832 = vld [vmem:[%s12 + $0x3f0] sm:$0xff]
        %v5833 = vld [vmem:[%s12 + $0x3f8] sm:$0xff]
        %v5834 = vld [vmem:[%s12 + $0x400] sm:$0xff]
        %v5835 = vld [vmem:[%s12 + $0x408] sm:$0xff]
        %v5836 = vld [vmem:[%s12 + $0x410] sm:$0xff]
        %v5837 = vld [vmem:[%s12 + $0x418] sm:$0xff]
        %v5838 = vld [vmem:[%s12 + $0x420] sm:$0xff]
        %v5839 = vld [vmem:[%s12 + $0x428] sm:$0xff]
        %v5840 = vld [vmem:[%s12 + $0x430] sm:$0xff]
        %v5841 = vld [vmem:[%s12 + $0x438] sm:$0xff]
        %v5842 = vld [vmem:[%s12 + $0x440] sm:$0xff]
        %v5843 = vld [vmem:[%s12 + $0x448] sm:$0xff]
        %v5844 = vld [vmem:[%s12 + $0x450] sm:$0xff]
        %v5845 = vld [vmem:[%s12 + $0x458] sm:$0xff]
        %v5846 = vld [vmem:[%s12 + $0x460] sm:$0xff]
        %v5847 = vld [vmem:[%s12 + $0x468] sm:$0xff]
        %v5848 = vld [vmem:[%s12 + $0x470] sm:$0xff]
        %v5849 = vld [vmem:[%s12 + $0x478] sm:$0xff]
        %v5850 = vld [vmem:[%s12 + $0x480] sm:$0xff]
        %v5851 = vld [vmem:[%s12 + $0x488] sm:$0xff]
        %v5852 = vld [vmem:[%s12 + $0x490] sm:$0xff]
        %v5853 = vld [vmem:[%s12 + $0x498] sm:$0xff]
        %v5854 = vld [vmem:[%s12 + $0x4a0] sm:$0xff]
        %v5855 = vld [vmem:[%s12 + $0x4a8] sm:$0xff]
        %v5856 = vld [vmem:[%s12 + $0x4b0] sm:$0xff]
        %v5857 = vld [vmem:[%s12 + $0x4b8] sm:$0xff]
        %v5858 = vld [vmem:[%s12 + $0x4c0] sm:$0xff]
        %v5859 = vld [vmem:[%s12 + $0x4c8] sm:$0xff]
        %v5860 = vld [vmem:[%s12 + $0x4d0] sm:$0xff]
        %v5861 = vld [vmem:[%s12 + $0x4d8] sm:$0xff]
        %v5862 = vld [vmem:[%s12 + $0x4e0] sm:$0xff]
        %v5863 = vld [vmem:[%s12 + $0x4e8] sm:$0xff]
        %v5864 = vld [vmem:[%s12 + $0x4f0] sm:$0xff]
        %v5865 = vld [vmem:[%s12 + $0x4f8] sm:$0xff]
        %v5866 = vld [vmem:[%s12 + $0x500] sm:$0xff]
        %v5867 = vld [vmem:[%s12 + $0x508] sm:$0xff]
        %v5868 = vld [vmem:[%s12 + $0x510] sm:$0xff]
        %v5869 = vld [vmem:[%s12 + $0x518] sm:$0xff]
        %v5870 = vld [vmem:[%s12 + $0x520] sm:$0xff]
        %v5871 = vld [vmem:[%s12 + $0x528] sm:$0xff]
        %v5872 = vld [vmem:[%s12 + $0x530] sm:$0xff]
        %v5873 = vld [vmem:[%s12 + $0x538] sm:$0xff]
        %v5874 = vld [vmem:[%s12 + $0x540] sm:$0xff]
        %v5875 = vld [vmem:[%s12 + $0x548] sm:$0xff]
        %v5876 = vld [vmem:[%s12 + $0x550] sm:$0xff]
        %v5877 = vld [vmem:[%s12 + $0x558] sm:$0xff]
        %v5878 = vld [vmem:[%s12 + $0x560] sm:$0xff]
        %v5879 = vld [vmem:[%s12 + $0x568] sm:$0xff]
        %v5880 = vld [vmem:[%s12 + $0x570] sm:$0xff]
        %v5881 = vld [vmem:[%s12 + $0x578] sm:$0xff]
        %v5882 = vld [vmem:[%s12 + $0x580] sm:$0xff]
        %v5883 = vld [vmem:[%s12 + $0x588] sm:$0xff]
        %v5884 = vld [vmem:[%s12 + $0x590] sm:$0xff]
        %v5885 = vld [vmem:[%s12 + $0x598] sm:$0xff]
        %v5886 = vld [vmem:[%s12 + $0x5a0] sm:$0xff]
        %v5887 = vld [vmem:[%s12 + $0x5a8] sm:$0xff]
        %v5888 = vld [vmem:[%s12 + $0x5b0] sm:$0xff]
        %v5889 = vld [vmem:[%s12 + $0x5b8] sm:$0xff]
        %v5890 = vld [vmem:[%s12 + $0x5c0] sm:$0xff]
        %v5891 = vld [vmem:[%s12 + $0x5c8] sm:$0xff]
        %v5892 = vld [vmem:[%s12 + $0x5d0] sm:$0xff]
        %v5893 = vld [vmem:[%s12 + $0x5d8] sm:$0xff]
        %v5894 = vld [vmem:[%s12 + $0x5e0] sm:$0xff]
        %v5895 = vld [vmem:[%s12 + $0x5e8] sm:$0xff]
        %v5896 = vld [vmem:[%s12 + $0x5f0] sm:$0xff]
        %v5897 = vld [vmem:[%s12 + $0x5f8] sm:$0xff]
        %v5898 = vld [vmem:[%s12 + $0x600] sm:$0xff]
        %v5899 = vld [vmem:[%s12 + $0x608] sm:$0xff]
        %v5900 = vld [vmem:[%s12 + $0x610] sm:$0xff]
        %v5901 = vld [vmem:[%s12 + $0x618] sm:$0xff]
        %v5902 = vld [vmem:[%s12 + $0x620] sm:$0xff]
        %v5903 = vld [vmem:[%s12 + $0x628] sm:$0xff]
        %v5904 = vld [vmem:[%s12 + $0x630] sm:$0xff]
        %v5905 = vld [vmem:[%s12 + $0x638] sm:$0xff]
        %v5906 = vld [vmem:[%s12 + $0x640] sm:$0xff]
        %v5907 = vld [vmem:[%s12 + $0x648] sm:$0xff]
        %v5908 = vld [vmem:[%s12 + $0x650] sm:$0xff]
        %v5909 = vld [vmem:[%s12 + $0x658] sm:$0xff]
        %v5910 = vld [vmem:[%s12 + $0x660] sm:$0xff]
        %v5911 = vld [vmem:[%s12 + $0x668] sm:$0xff]
        %v5912 = vld [vmem:[%s12 + $0x670] sm:$0xff]
        %v5913 = vld [vmem:[%s12 + $0x678] sm:$0xff]
        %v5914 = vld [vmem:[%s12 + $0x680] sm:$0xff]
        %v5915 = vld [vmem:[%s12 + $0x688] sm:$0xff]
        %v5916 = vld [vmem:[%s12 + $0x690] sm:$0xff]
        %v5917 = vld [vmem:[%s12 + $0x698] sm:$0xff]
        %v5918 = vld [vmem:[%s12 + $0x6a0] sm:$0xff]
        %v5919 = vld [vmem:[%s12 + $0x6a8] sm:$0xff]
        %v5920 = vld [vmem:[%s12 + $0x6b0] sm:$0xff]
        %v5921 = vld [vmem:[%s12 + $0x6b8] sm:$0xff]
        %v5922 = vld [vmem:[%s12 + $0x6c0] sm:$0xff]
        %v5923 = vld [vmem:[%s12 + $0x6c8] sm:$0xff]
        %v5924 = vld [vmem:[%s12 + $0x6d0] sm:$0xff]
        %v5925 = vld [vmem:[%s12 + $0x6d8] sm:$0xff]
        %v5926 = vld [vmem:[%s12 + $0x6e0] sm:$0xff]
        %v5927 = vld [vmem:[%s12 + $0x6e8] sm:$0xff]
        %v5928 = vld [vmem:[%s12 + $0x6f0] sm:$0xff]
        %v5929 = vld [vmem:[%s12 + $0x6f8] sm:$0xff]
        %v5930 = vld [vmem:[%s12 + $0x700] sm:$0xff]
        %v5931 = vld [vmem:[%s12 + $0x708] sm:$0xff]
        %v5932 = vld [vmem:[%s12 + $0x710] sm:$0xff]
        %v5933 = vld [vmem:[%s12 + $0x718] sm:$0xff]
        %v5934 = vld [vmem:[%s12 + $0x720] sm:$0xff]
        %v5935 = vld [vmem:[%s12 + $0x728] sm:$0xff]
        %v5936 = vld [vmem:[%s12 + $0x730] sm:$0xff]
        %v5937 = vld [vmem:[%s12 + $0x738] sm:$0xff]
        %v5938 = vld [vmem:[%s12 + $0x740] sm:$0xff]
        %v5939 = vld [vmem:[%s12 + $0x748] sm:$0xff]
        %v5940 = vld [vmem:[%s12 + $0x750] sm:$0xff]
        %v5941 = vld [vmem:[%s12 + $0x758] sm:$0xff]
        %v5942 = vld [vmem:[%s12 + $0x760] sm:$0xff]
        %v5943 = vld [vmem:[%s12 + $0x768] sm:$0xff]
        %v5944 = vld [vmem:[%s12 + $0x770] sm:$0xff]
        %v5945 = vld [vmem:[%s12 + $0x778] sm:$0xff]
        %v5946 = vld [vmem:[%s12 + $0x780] sm:$0xff]
        %v5947 = vld [vmem:[%s12 + $0x788] sm:$0xff]
        %v5948 = vld [vmem:[%s12 + $0x790] sm:$0xff]
        %v5949 = vld [vmem:[%s12 + $0x798] sm:$0xff]
        %v5950 = vld [vmem:[%s12 + $0x7a0] sm:$0xff]
        %v5951 = vld [vmem:[%s12 + $0x7a8] sm:$0xff]
        %v5952 = vld [vmem:[%s12 + $0x7b0] sm:$0xff]
        %v5953 = vld [vmem:[%s12 + $0x7b8] sm:$0xff]
        %v5954 = vld [vmem:[%s12 + $0x7c0] sm:$0xff]
        %v5955 = vld [vmem:[%s12 + $0x7c8] sm:$0xff]
        %v5956 = vld [vmem:[%s12 + $0x7d0] sm:$0xff]
        %v5957 = vld [vmem:[%s12 + $0x7d8] sm:$0xff]
        %v5958 = vld [vmem:[%s12 + $0x7e0] sm:$0xff]
        %v5959 = vld [vmem:[%s12 + $0x7e8] sm:$0xff]
        %v5960 = vld [vmem:[%s12 + $0x7f0] sm:$0xff]
        %v5961 = vld [vmem:[%s12 + $0x7f8] sm:$0xff]
        %v5962 = vld [vmem:[%s12 + $0x800] sm:$0xff]
        %v5963 = vld [vmem:[%s12 + $0x808] sm:$0xff]
        %v5964 = vld [vmem:[%s12 + $0x810] sm:$0xff]
        %v5965 = vld [vmem:[%s12 + $0x818] sm:$0xff]
        %v5966 = vld [vmem:[%s12 + $0x820] sm:$0xff]
        %v5967 = vld [vmem:[%s12 + $0x828] sm:$0xff]
        %v5968 = vld [vmem:[%s12 + $0x830] sm:$0xff]
        %v5969 = vld [vmem:[%s12 + $0x838] sm:$0xff]
        %v5970 = vld [vmem:[%s12 + $0x840] sm:$0xff]
        %v5971 = vld [vmem:[%s12 + $0x848] sm:$0xff]
        %v5972 = vld [vmem:[%s12 + $0x850] sm:$0xff]
        %v5973 = vld [vmem:[%s12 + $0x858] sm:$0xff]
        %v5974 = vld [vmem:[%s12 + $0x860] sm:$0xff]
        %v5975 = vld [vmem:[%s12 + $0x868] sm:$0xff]
        %v5976 = vld [vmem:[%s12 + $0x870] sm:$0xff]
        %v5977 = vld [vmem:[%s12 + $0x878] sm:$0xff]
        %v5978 = vld [vmem:[%s12 + $0x880] sm:$0xff]
        %v5979 = vld [vmem:[%s12 + $0x888] sm:$0xff]
        %v5980 = vld [vmem:[%s12 + $0x890] sm:$0xff]
        %v5981 = vld [vmem:[%s12 + $0x898] sm:$0xff]
        %v5982 = vld [vmem:[%s12 + $0x8a0] sm:$0xff]
        %v5983 = vld [vmem:[%s12 + $0x8a8] sm:$0xff]
        %v5984 = vld [vmem:[%s12 + $0x8b0] sm:$0xff]
        %v5985 = vld [vmem:[%s12 + $0x8b8] sm:$0xff]
        %v5986 = vld [vmem:[%s12 + $0x8c0] sm:$0xff]
        %v5987 = vld [vmem:[%s12 + $0x8c8] sm:$0xff]
        %v5988 = vld [vmem:[%s12 + $0x8d0] sm:$0xff]
        %v5989 = vld [vmem:[%s12 + $0x8d8] sm:$0xff]
        %v5990 = vld [vmem:[%s12 + $0x8e0] sm:$0xff]
        %v5991 = vld [vmem:[%s12 + $0x8e8] sm:$0xff]
        %v5992 = vld [vmem:[%s12 + $0x8f0] sm:$0xff]
        %v5993 = vld [vmem:[%s12 + $0x8f8] sm:$0xff]
        %v5994 = vld [vmem:[%s12 + $0x900] sm:$0xff]
        %v5995 = vld [vmem:[%s12 + $0x908] sm:$0xff]
        %v5996 = vld [vmem:[%s12 + $0x910] sm:$0xff]
        %v5997 = vld [vmem:[%s12 + $0x918] sm:$0xff]
        %v5998 = vld [vmem:[%s12 + $0x920] sm:$0xff]
        %v5999 = vld [vmem:[%s12 + $0x928] sm:$0xff]
        %v6000 = vld [vmem:[%s12 + $0x930] sm:$0xff]
        %v6001 = vld [vmem:[%s12 + $0x938] sm:$0xff]
        %v6002 = vld [vmem:[%s12 + $0x940] sm:$0xff]
        %v6003 = vld [vmem:[%s12 + $0x948] sm:$0xff]
        %v6004 = vld [vmem:[%s12 + $0x950] sm:$0xff]
        %v6005 = vld [vmem:[%s12 + $0x958] sm:$0xff]
        %v6006 = vld [vmem:[%s12 + $0x960] sm:$0xff]
        %v6007 = vld [vmem:[%s12 + $0x968] sm:$0xff]
        %v6008 = vld [vmem:[%s12 + $0x970] sm:$0xff]
        %v6009 = vld [vmem:[%s12 + $0x978] sm:$0xff]
        %v6010 = vld [vmem:[%s12 + $0x980] sm:$0xff]
        %v6011 = vld [vmem:[%s12 + $0x988] sm:$0xff]
        %v6012 = vld [vmem:[%s12 + $0x990] sm:$0xff]
        %v6013 = vld [vmem:[%s12 + $0x998] sm:$0xff]
        %v6014 = vld [vmem:[%s12 + $0x9a0] sm:$0xff]
        %v6015 = vld [vmem:[%s12 + $0x9a8] sm:$0xff]
        %v6016 = vld [vmem:[%s12 + $0x9b0] sm:$0xff]
        %v6017 = vld [vmem:[%s12 + $0x9b8] sm:$0xff]
        %v6018 = vld [vmem:[%s12 + $0x9c0] sm:$0xff]
        %v6019 = vld [vmem:[%s12 + $0x9c8] sm:$0xff]
        %v6020 = vld [vmem:[%s12 + $0x9d0] sm:$0xff]
        %v6021 = vld [vmem:[%s12 + $0x9d8] sm:$0xff]
        %v6022 = vld [vmem:[%s12 + $0x9e0] sm:$0xff]
        %v6023 = vld [vmem:[%s12 + $0x9e8] sm:$0xff]
        %v6024 = vld [vmem:[%s12 + $0x9f0] sm:$0xff]
        %v6025 = vld [vmem:[%s12 + $0x9f8] sm:$0xff]
        %v6026 = vld [vmem:[%s12 + $0xa00] sm:$0xff]
        %v6027 = vld [vmem:[%s12 + $0xa08] sm:$0xff]
        %v6028 = vld [vmem:[%s12 + $0xa10] sm:$0xff]
        %v6029 = vld [vmem:[%s12 + $0xa18] sm:$0xff]
        %v6030 = vld [vmem:[%s12 + $0xa20] sm:$0xff]
        %v6031 = vld [vmem:[%s12 + $0xa28] sm:$0xff]
        %v6032 = vld [vmem:[%s12 + $0xa30] sm:$0xff]
        %v6033 = vld [vmem:[%s12 + $0xa38] sm:$0xff]
        %v6034 = vld [vmem:[%s12 + $0xa40] sm:$0xff]
        %v6035 = vld [vmem:[%s12 + $0xa48] sm:$0xff]
        %v6036 = vld [vmem:[%s12 + $0xa50] sm:$0xff]
        %v6037 = vld [vmem:[%s12 + $0xa58] sm:$0xff]
        %v6038 = vld [vmem:[%s12 + $0xa60] sm:$0xff]
        %v6039 = vld [vmem:[%s12 + $0xa68] sm:$0xff]
        %v6040 = vld [vmem:[%s12 + $0xa70] sm:$0xff]
        %v6041 = vld [vmem:[%s12 + $0xa78] sm:$0xff]
        %v6042 = vld [vmem:[%s12 + $0xa80] sm:$0xff]
        %v6043 = vld [vmem:[%s12 + $0xa88] sm:$0xff]
        %v6044 = vld [vmem:[%s12 + $0xa90] sm:$0xff]
        %v6045 = vld [vmem:[%s12 + $0xa98] sm:$0xff]
        %v6046 = vld [vmem:[%s12 + $0xaa0] sm:$0xff]
        %v6047 = vld [vmem:[%s12 + $0xaa8] sm:$0xff]
        %v6048 = vld [vmem:[%s12 + $0xab0] sm:$0xff]
        %v6049 = vld [vmem:[%s12 + $0xab8] sm:$0xff]
        %v6050 = vld [vmem:[%s12 + $0xac0] sm:$0xff]
        %v6051 = vld [vmem:[%s12 + $0xac8] sm:$0xff]
        %v6052 = vld [vmem:[%s12 + $0xad0] sm:$0xff]
        %v6053 = vld [vmem:[%s12 + $0xad8] sm:$0xff]
        %v6054 = vld [vmem:[%s12 + $0xae0] sm:$0xff]
        %v6055 = vld [vmem:[%s12 + $0xae8] sm:$0xff]
        %v6056 = vld [vmem:[%s12 + $0xaf0] sm:$0xff]
        %v6057 = vld [vmem:[%s12 + $0xaf8] sm:$0xff]
        %v6058 = vld [vmem:[%s12 + $0xb00] sm:$0xff]
        %v6059 = vld [vmem:[%s12 + $0xb08] sm:$0xff]
        %v6060 = vld [vmem:[%s12 + $0xb10] sm:$0xff]
        %v6061 = vld [vmem:[%s12 + $0xb18] sm:$0xff]
        %v6062 = vld [vmem:[%s12 + $0xb20] sm:$0xff]
        %v6063 = vld [vmem:[%s12 + $0xb28] sm:$0xff]
        %v6064 = vld [vmem:[%s12 + $0xb30] sm:$0xff]
        %v6065 = vld [vmem:[%s12 + $0xb38] sm:$0xff]
        %v6066 = vld [vmem:[%s12 + $0xb40] sm:$0xff]
        %v6067 = vld [vmem:[%s12 + $0xb48] sm:$0xff]
        %v6068 = vld [vmem:[%s12 + $0xb50] sm:$0xff]
        %v6069 = vld [vmem:[%s12 + $0xb58] sm:$0xff]
        %v6070 = vld [vmem:[%s12 + $0xb60] sm:$0xff]
        %v6071 = vld [vmem:[%s12 + $0xb68] sm:$0xff]
        %v6072 = vld [vmem:[%s12 + $0xb70] sm:$0xff]
        %v6073 = vld [vmem:[%s12 + $0xb78] sm:$0xff]
        %v6074 = vld [vmem:[%s12 + $0xb80] sm:$0xff]
        %v6075 = vld [vmem:[%s12 + $0xb88] sm:$0xff]
        %v6076 = vld [vmem:[%s12 + $0xb90] sm:$0xff]
        %v6077 = vld [vmem:[%s12 + $0xb98] sm:$0xff]
        %v6078 = vld [vmem:[%s12 + $0xba0] sm:$0xff]
        %v6079 = vld [vmem:[%s12 + $0xba8] sm:$0xff]
        %v6080 = vld [vmem:[%s12 + $0xbb0] sm:$0xff]
        %v6081 = vld [vmem:[%s12 + $0xbb8] sm:$0xff]
        %v6082 = vld [vmem:[%s12 + $0xbc0] sm:$0xff]
        %v6083 = vld [vmem:[%s12 + $0xbc8] sm:$0xff]
        %v6084 = vld [vmem:[%s12 + $0xbd0] sm:$0xff]
        %v6085 = vld [vmem:[%s12 + $0xbd8] sm:$0xff]
        %v6086 = vld [vmem:[%s12 + $0xbe0] sm:$0xff]
        %v6087 = vld [vmem:[%s12 + $0xbe8] sm:$0xff]
        %v6088 = vld [vmem:[%s12 + $0xbf0] sm:$0xff]
        %v6089 = vld [vmem:[%s12 + $0xbf8] sm:$0xff]
        %v6090 = vld [vmem:[%s12 + $0xc00] sm:$0xff]
        %v6091 = vld [vmem:[%s12 + $0xc08] sm:$0xff]
        %v6092 = vld [vmem:[%s12 + $0xc10] sm:$0xff]
        %v6093 = vld [vmem:[%s12 + $0xc18] sm:$0xff]
        %v6094 = vld [vmem:[%s12 + $0xc20] sm:$0xff]
        %v6095 = vld [vmem:[%s12 + $0xc28] sm:$0xff]
        %v6096 = vld [vmem:[%s12 + $0xc30] sm:$0xff]
        %v6097 = vld [vmem:[%s12 + $0xc38] sm:$0xff]
        %v6098 = vld [vmem:[%s12 + $0xc40] sm:$0xff]
        %v6099 = vld [vmem:[%s12 + $0xc48] sm:$0xff]
        %v6100 = vld [vmem:[%s12 + $0xc50] sm:$0xff]
        %v6101 = vld [vmem:[%s12 + $0xc58] sm:$0xff]
        %v6102 = vld [vmem:[%s12 + $0xc60] sm:$0xff]
        %v6103 = vld [vmem:[%s12 + $0xc68] sm:$0xff]
        %v6104 = vld [vmem:[%s12 + $0xc70] sm:$0xff]
        %v6105 = vld [vmem:[%s12 + $0xc78] sm:$0xff]
        %v6106 = vld [vmem:[%s12 + $0xc80] sm:$0xff]
        %v6107 = vld [vmem:[%s12 + $0xc88] sm:$0xff]
        %v6108 = vld [vmem:[%s12 + $0xc90] sm:$0xff]
        %v6109 = vld [vmem:[%s12 + $0xc98] sm:$0xff]
        %v6110 = vld [vmem:[%s12 + $0xca0] sm:$0xff]
        %v6111 = vld [vmem:[%s12 + $0xca8] sm:$0xff]
        %v6112 = vld [vmem:[%s12 + $0xcb0] sm:$0xff]
        %v6113 = vld [vmem:[%s12 + $0xcb8] sm:$0xff]
        %v6114 = vld [vmem:[%s12 + $0xcc0] sm:$0xff]
        %v6115 = vld [vmem:[%s12 + $0xcc8] sm:$0xff]
        %v6116 = vld [vmem:[%s12 + $0xcd0] sm:$0xff]
        %v6117 = vld [vmem:[%s12 + $0xcd8] sm:$0xff]
        %v6118 = vld [vmem:[%s12 + $0xce0] sm:$0xff]
        %v6119 = vld [vmem:[%s12 + $0xce8] sm:$0xff]
        %v6120 = vld [vmem:[%s12 + $0xcf0] sm:$0xff]
        %v6121 = vld [vmem:[%s12 + $0xcf8] sm:$0xff]
        %v6122 = vld [vmem:[%s12 + $0xd00] sm:$0xff]
        %v6123 = vld [vmem:[%s12 + $0xd08] sm:$0xff]
        %v6124 = vld [vmem:[%s12 + $0xd10] sm:$0xff]
        %v6125 = vld [vmem:[%s12 + $0xd18] sm:$0xff]
        %v6126 = vld [vmem:[%s12 + $0xd20] sm:$0xff]
        %v6127 = vld [vmem:[%s12 + $0xd28] sm:$0xff]
        %v6128 = vld [vmem:[%s12 + $0xd30] sm:$0xff]
        %v6129 = vld [vmem:[%s12 + $0xd38] sm:$0xff]
        %v6130 = vld [vmem:[%s12 + $0xd40] sm:$0xff]
        %v6131 = vld [vmem:[%s12 + $0xd48] sm:$0xff]
        %v6132 = vld [vmem:[%s12 + $0xd50] sm:$0xff]
        %v6133 = vld [vmem:[%s12 + $0xd58] sm:$0xff]
        %v6134 = vld [vmem:[%s12 + $0xd60] sm:$0xff]
        %v6135 = vld [vmem:[%s12 + $0xd68] sm:$0xff]
        %v6136 = vld [vmem:[%s12 + $0xd70] sm:$0xff]
        %v6137 = vld [vmem:[%s12 + $0xd78] sm:$0xff]
        %v6138 = vld [vmem:[%s12 + $0xd80] sm:$0xff]
        %v6139 = vld [vmem:[%s12 + $0xd88] sm:$0xff]
        %v6140 = vld [vmem:[%s12 + $0xd90] sm:$0xff]
        %v6141 = vld [vmem:[%s12 + $0xd98] sm:$0xff]
        %v6142 = vld [vmem:[%s12 + $0xda0] sm:$0xff]
        %v6143 = vld [vmem:[%s12 + $0xda8] sm:$0xff]
        %v6144 = vld [vmem:[%s12 + $0xdb0] sm:$0xff]
        %v6145 = vld [vmem:[%s12 + $0xdb8] sm:$0xff]
        %v6146 = vld [vmem:[%s12 + $0xdc0] sm:$0xff]
        %v6147 = vld [vmem:[%s12 + $0xdc8] sm:$0xff]
        %v6148 = vld [vmem:[%s12 + $0xdd0] sm:$0xff]
        %v6149 = vld [vmem:[%s12 + $0xdd8] sm:$0xff]
        %v6150 = vld [vmem:[%s12 + $0xde0] sm:$0xff]
        %v6151 = vld [vmem:[%s12 + $0xde8] sm:$0xff]
        %v6152 = vld [vmem:[%s12 + $0xdf0] sm:$0xff]
        %v6153 = vld [vmem:[%s12 + $0xdf8] sm:$0xff]
        %v6154 = vld [vmem:[%s12 + $0xe00] sm:$0xff]
        %v6155 = vld [vmem:[%s12 + $0xe08] sm:$0xff]
        %v6156 = vld [vmem:[%s12 + $0xe10] sm:$0xff]
        %v6157 = vld [vmem:[%s12 + $0xe18] sm:$0xff]
        %v6158 = vld [vmem:[%s12 + $0xe20] sm:$0xff]
        %v6159 = vld [vmem:[%s12 + $0xe28] sm:$0xff]
        %v6160 = vld [vmem:[%s12 + $0xe30] sm:$0xff]
        %v6161 = vld [vmem:[%s12 + $0xe38] sm:$0xff]
        %v6162 = vld [vmem:[%s12 + $0xe40] sm:$0xff]
        %v6163 = vld [vmem:[%s12 + $0xe48] sm:$0xff]
        %v6164 = vld [vmem:[%s12 + $0xe50] sm:$0xff]
        %v6165 = vld [vmem:[%s12 + $0xe58] sm:$0xff]
        %v6166 = vld [vmem:[%s12 + $0xe60] sm:$0xff]
        %v6167 = vld [vmem:[%s12 + $0xe68] sm:$0xff]
        %v6168 = vld [vmem:[%s12 + $0xe70] sm:$0xff]
        %v6169 = vld [vmem:[%s12 + $0xe78] sm:$0xff]
        %v6170 = vld [vmem:[%s12 + $0xe80] sm:$0xff]
        %v6171 = vld [vmem:[%s12 + $0xe88] sm:$0xff]
        %v6172 = vld [vmem:[%s12 + $0xe90] sm:$0xff]
        %v6173 = vld [vmem:[%s12 + $0xe98] sm:$0xff]
        %v6174 = vld [vmem:[%s12 + $0xea0] sm:$0xff]
        %v6175 = vld [vmem:[%s12 + $0xea8] sm:$0xff]
        %v6176 = vld [vmem:[%s12 + $0xeb0] sm:$0xff]
        %v6177 = vld [vmem:[%s12 + $0xeb8] sm:$0xff]
        %v6178 = vld [vmem:[%s12 + $0xec0] sm:$0xff]
        %v6179 = vld [vmem:[%s12 + $0xec8] sm:$0xff]
        %v6180 = vld [vmem:[%s12 + $0xed0] sm:$0xff]
        %v6181 = vld [vmem:[%s12 + $0xed8] sm:$0xff]
        %v6182 = vld [vmem:[%s12 + $0xee0] sm:$0xff]
        %v6183 = vld [vmem:[%s12 + $0xee8] sm:$0xff]
        %v6184 = vld [vmem:[%s12 + $0xef0] sm:$0xff]
        %v6185 = vld [vmem:[%s12 + $0xef8] sm:$0xff]
        %v6186 = vld [vmem:[%s12 + $0xf00] sm:$0xff]
        %v6187 = vld [vmem:[%s12 + $0xf08] sm:$0xff]
        %v6188 = vld [vmem:[%s12 + $0xf10] sm:$0xff]
        %v6189 = vld [vmem:[%s12 + $0xf18] sm:$0xff]
        %v6190 = vld [vmem:[%s12 + $0xf20] sm:$0xff]
        %v6191 = vld [vmem:[%s12 + $0xf28] sm:$0xff]
        %v6192 = vld [vmem:[%s12 + $0xf30] sm:$0xff]
        %v6193 = vld [vmem:[%s12 + $0xf38] sm:$0xff]
        %v6194 = vld [vmem:[%s12 + $0xf40] sm:$0xff]
        %v6195 = vld [vmem:[%s12 + $0xf48] sm:$0xff]
        %v6196 = vld [vmem:[%s12 + $0xf50] sm:$0xff]
        %v6197 = vld [vmem:[%s12 + $0xf58] sm:$0xff]
        %v6198 = vld [vmem:[%s12 + $0xf60] sm:$0xff]
        %v6199 = vld [vmem:[%s12 + $0xf68] sm:$0xff]
        %v6200 = vld [vmem:[%s12 + $0xf70] sm:$0xff]
        %v6201 = vld [vmem:[%s12 + $0xf78] sm:$0xff]
        %v6202 = vld [vmem:[%s12 + $0xf80] sm:$0xff]
        %v6203 = vld [vmem:[%s12 + $0xf88] sm:$0xff]
        %v6204 = vld [vmem:[%s12 + $0xf90] sm:$0xff]
        %v6205 = vld [vmem:[%s12 + $0xf98] sm:$0xff]
        %v6206 = vld [vmem:[%s12 + $0xfa0] sm:$0xff]
        %v6207 = vld [vmem:[%s12 + $0xfa8] sm:$0xff]
        %v6208 = vld [vmem:[%s12 + $0xfb0] sm:$0xff]
        %v6209 = vld [vmem:[%s12 + $0xfb8] sm:$0xff]
        %v6210 = vld [vmem:[%s12 + $0xfc0] sm:$0xff]
        %v6211 = vld [vmem:[%s12 + $0xfc8] sm:$0xff]
        %v6212 = vld [vmem:[%s12 + $0xfd0] sm:$0xff]
        %v6213 = vld [vmem:[%s12 + $0xfd8] sm:$0xff]
        %v6214 = vld [vmem:[%s12 + $0xfe0] sm:$0xff]
        %v6215 = vld [vmem:[%s12 + $0xfe8] sm:$0xff]
        %v6216 = vld [vmem:[%s12 + $0xff0] sm:$0xff]
        %v6217 = vld [vmem:[%s12 + $0xff8] sm:$0xff]
        %v6218 = vld [vmem:[%s12 + $0x1000] sm:$0xff]
        %v6219 = vld [vmem:[%s12 + $0x1008] sm:$0xff]
        %v6220 = vld [vmem:[%s12 + $0x1010] sm:$0xff]
        %v6221 = vld [vmem:[%s12 + $0x1018] sm:$0xff]
        %v6222 = vld [vmem:[%s12 + $0x1020] sm:$0xff]
        %v6223 = vld [vmem:[%s12 + $0x1028] sm:$0xff]
        %v6224 = vld [vmem:[%s12 + $0x1030] sm:$0xff]
        %v6225 = vld [vmem:[%s12 + $0x1038] sm:$0xff]
        %v6226 = vld [vmem:[%s12 + $0x1040] sm:$0xff]
        %v6227 = vld [vmem:[%s12 + $0x1048] sm:$0xff]
        %v6228 = vld [vmem:[%s12 + $0x1050] sm:$0xff]
        %v6229 = vld [vmem:[%s12 + $0x1058] sm:$0xff]
        %v6230 = vld [vmem:[%s12 + $0x1060] sm:$0xff]
        %v6231 = vld [vmem:[%s12 + $0x1068] sm:$0xff]
        %v6232 = vld [vmem:[%s12 + $0x1070] sm:$0xff]
        %v6233 = vld [vmem:[%s12 + $0x1078] sm:$0xff]
        %v6234 = vld [vmem:[%s12 + $0x1080] sm:$0xff]
        %v6235 = vld [vmem:[%s12 + $0x1088] sm:$0xff]
        %v6236 = vld [vmem:[%s12 + $0x1090] sm:$0xff]
        %v6237 = vld [vmem:[%s12 + $0x1098] sm:$0xff]
        %v6238 = vld [vmem:[%s12 + $0x10a0] sm:$0xff]
        %v6239 = vld [vmem:[%s12 + $0x10a8] sm:$0xff]
        %v6240 = vld [vmem:[%s12 + $0x10b0] sm:$0xff]
        %v6241 = vld [vmem:[%s12 + $0x10b8] sm:$0xff]
        %v6242 = vld [vmem:[%s12 + $0x10c0] sm:$0xff]
        %v6243 = vld [vmem:[%s12 + $0x10c8] sm:$0xff]
        %v6244 = vld [vmem:[%s12 + $0x10d0] sm:$0xff]
        %v6245 = vld [vmem:[%s12 + $0x10d8] sm:$0xff]
        %v6246 = vld [vmem:[%s12 + $0x10e0] sm:$0xff]
        %v6247 = vld [vmem:[%s12 + $0x10e8] sm:$0xff]
        %v6248 = vld [vmem:[%s12 + $0x10f0] sm:$0xff]
        %v6249 = vld [vmem:[%s12 + $0x10f8] sm:$0xff]
        %v6250 = vld [vmem:[%s12 + $0x1100] sm:$0xff]
        %v6251 = vld [vmem:[%s12 + $0x1108] sm:$0xff]
        %v6252 = vld [vmem:[%s12 + $0x1110] sm:$0xff]
        %v6253 = vld [vmem:[%s12 + $0x1118] sm:$0xff]
        %v6254 = vld [vmem:[%s12 + $0x1120] sm:$0xff]
        %v6255 = vld [vmem:[%s12 + $0x1128] sm:$0xff]
        %v6256 = vld [vmem:[%s12 + $0x1130] sm:$0xff]
        %v6257 = vld [vmem:[%s12 + $0x1138] sm:$0xff]
        %v6258 = vld [vmem:[%s12 + $0x1140] sm:$0xff]
        %v6259 = vld [vmem:[%s12 + $0x1148] sm:$0xff]
        %v6260 = vld [vmem:[%s12 + $0x1150] sm:$0xff]
        %v6261 = vld [vmem:[%s12 + $0x1158] sm:$0xff]
        %v6262 = vld [vmem:[%s12 + $0x1160] sm:$0xff]
        %v6263 = vld [vmem:[%s12 + $0x1168] sm:$0xff]
        %v6264 = vld [vmem:[%s12 + $0x1170] sm:$0xff]
        %v6265 = vld [vmem:[%s12 + $0x1178] sm:$0xff]
        %v6266 = vld [vmem:[%s12 + $0x1180] sm:$0xff]
        %v6267 = vld [vmem:[%s12 + $0x1188] sm:$0xff]
        %v6268 = vld [vmem:[%s12 + $0x1190] sm:$0xff]
        %v6269 = vld [vmem:[%s12 + $0x1198] sm:$0xff]
        %v6270 = vld [vmem:[%s12 + $0x11a0] sm:$0xff]
        %v6271 = vld [vmem:[%s12 + $0x11a8] sm:$0xff]
        %v6272 = vld [vmem:[%s12 + $0x11b0] sm:$0xff]
        %v6273 = vld [vmem:[%s12 + $0x11b8] sm:$0xff]
        %v6274 = vld [vmem:[%s12 + $0x11c0] sm:$0xff]
        %v6275 = vld [vmem:[%s12 + $0x11c8] sm:$0xff]
        %v6276 = vld [vmem:[%s12 + $0x11d0] sm:$0xff]
        %v6277 = vld [vmem:[%s12 + $0x11d8] sm:$0xff]
        %v6278 = vld [vmem:[%s12 + $0x11e0] sm:$0xff]
        %v6279 = vld [vmem:[%s12 + $0x11e8] sm:$0xff]
        %v6280 = vld [vmem:[%s12 + $0x11f0] sm:$0xff]
        %v6281 = vld [vmem:[%s12 + $0x11f8] sm:$0xff]
        %v6282 = vld [vmem:[#allocation14] sm:$0x7]
        %v6284 = vperm.slane %v6282, 0
        %v6285 = vperm.slane %v6282, 1
        %v6286 = vperm.slane %v6282, 2
        %6290 = vmatpush.msra.mxu0 %v5751
        %6291 = vmatpush.msra.mxu0 %v5748
        %6292 = vmatpush.msra.mxu0 %v5745
        %6293 = vmatpush.msra.mxu0 %v5742
        %6294 = vmatpush.msra.mxu0 %v5739
        %6295 = vmatpush.msra.mxu0 %v5736
        %6296 = vmatpush.msra.mxu0 %v5733
        %6297 = vmatpush.msra.mxu0 %v5730
        %6298 = vmatpush.msra.mxu0 %v5727
        %6299 = vmatpush.msra.mxu0 %v5724
        %6300 = vmatpush.msra.mxu0 %v5721
        %6301 = vmatpush.msra.mxu0 %v5718
        %6302 = vmatpush.msra.mxu0 %v5715
        %6303 = vmatpush.msra.mxu0 %v5712
        %6304 = vmatpush.msra.mxu0 %v5709
        %6305 = vmatpush.msra.mxu0 %v5706
        %6306 = vmatmul.f32.gmra.mxu0 %v5682
        %v6307 = vpop.f32.mrf.mxu0
        %v6308 = vadd.f32 %v6284, %v6307
        %6309 = vmatmul.f32.gmra.mxu0 %v5694
        %v6310 = vpop.f32.mrf.mxu0
        %v6311 = vadd.f32 %v6284, %v6310
        %6312 = vdwg.mxu0
        %6313 = vmatpush.msra.mxu0 %v5799
        %6314 = vmatpush.msra.mxu0 %v5796
        %6315 = vmatpush.msra.mxu0 %v5793
        %6316 = vmatpush.msra.mxu0 %v5790
        %6317 = vmatpush.msra.mxu0 %v5787
        %6318 = vmatpush.msra.mxu0 %v5784
        %6319 = vmatpush.msra.mxu0 %v5781
        %6320 = vmatpush.msra.mxu0 %v5778
        %6321 = vmatpush.msra.mxu0 %v5775
        %6322 = vmatpush.msra.mxu0 %v5772
        %6323 = vmatpush.msra.mxu0 %v5769
        %6324 = vmatpush.msra.mxu0 %v5766
        %6325 = vmatpush.msra.mxu0 %v5763
        %6326 = vmatpush.msra.mxu0 %v5760
        %6327 = vmatpush.msra.mxu0 %v5757
        %6328 = vmatpush.msra.mxu0 %v5754
        %6329 = vmatmul.f32.gmra.mxu0 %v5683
        %v6330 = vpop.f32.mrf.mxu0
        %v6331 = vadd.f32 %v6308, %v6330
        %6332 = vmatmul.f32.gmra.mxu0 %v5695
        %v6333 = vpop.f32.mrf.mxu0
        %v6334 = vadd.f32 %v6311, %v6333
        %6335 = vdwg.mxu0
        %6336 = vmatpush.msra.mxu0 %v5847
        %6337 = vmatpush.msra.mxu0 %v5844
        %6338 = vmatpush.msra.mxu0 %v5841
        %6339 = vmatpush.msra.mxu0 %v5838
        %6340 = vmatpush.msra.mxu0 %v5835
        %6341 = vmatpush.msra.mxu0 %v5832
        %6342 = vmatpush.msra.mxu0 %v5829
        %6343 = vmatpush.msra.mxu0 %v5826
        %6344 = vmatpush.msra.mxu0 %v5823
        %6345 = vmatpush.msra.mxu0 %v5820
        %6346 = vmatpush.msra.mxu0 %v5817
        %6347 = vmatpush.msra.mxu0 %v5814
        %6348 = vmatpush.msra.mxu0 %v5811
        %6349 = vmatpush.msra.mxu0 %v5808
        %6350 = vmatpush.msra.mxu0 %v5805
        %6351 = vmatpush.msra.mxu0 %v5802
        %6352 = vmatmul.f32.gmra.mxu0 %v5684
        %v6353 = vpop.f32.mrf.mxu0
        %v6354 = vadd.f32 %v6331, %v6353
        %6355 = vmatmul.f32.gmra.mxu0 %v5696
        %v6356 = vpop.f32.mrf.mxu0
        %v6357 = vadd.f32 %v6334, %v6356
        %6358 = vdwg.mxu0
        %6359 = vmatpush.msra.mxu0 %v5895
        %6360 = vmatpush.msra.mxu0 %v5892
        %6361 = vmatpush.msra.mxu0 %v5889
        %6362 = vmatpush.msra.mxu0 %v5886
        %6363 = vmatpush.msra.mxu0 %v5883
        %6364 = vmatpush.msra.mxu0 %v5880
        %6365 = vmatpush.msra.mxu0 %v5877
        %6366 = vmatpush.msra.mxu0 %v5874
        %6367 = vmatpush.msra.mxu0 %v5871
        %6368 = vmatpush.msra.mxu0 %v5868
        %6369 = vmatpush.msra.mxu0 %v5865
        %6370 = vmatpush.msra.mxu0 %v5862
        %6371 = vmatpush.msra.mxu0 %v5859
        %6372 = vmatpush.msra.mxu0 %v5856
        %6373 = vmatpush.msra.mxu0 %v5853
        %6374 = vmatpush.msra.mxu0 %v5850
        %6375 = vmatmul.f32.gmra.mxu0 %v5685
        %v6376 = vpop.f32.mrf.mxu0
        %v6377 = vadd.f32 %v6354, %v6376
        %6378 = vmatmul.f32.gmra.mxu0 %v5697
        %v6379 = vpop.f32.mrf.mxu0
        %v6380 = vadd.f32 %v6357, %v6379
        %6381 = vdwg.mxu0
        %6382 = vmatpush.msra.mxu0 %v5943
        %6383 = vmatpush.msra.mxu0 %v5940
        %6384 = vmatpush.msra.mxu0 %v5937
        %6385 = vmatpush.msra.mxu0 %v5934
        %6386 = vmatpush.msra.mxu0 %v5931
        %6387 = vmatpush.msra.mxu0 %v5928
        %6388 = vmatpush.msra.mxu0 %v5925
        %6389 = vmatpush.msra.mxu0 %v5922
        %6390 = vmatpush.msra.mxu0 %v5919
        %6391 = vmatpush.msra.mxu0 %v5916
        %6392 = vmatpush.msra.mxu0 %v5913
        %6393 = vmatpush.msra.mxu0 %v5910
        %6394 = vmatpush.msra.mxu0 %v5907
        %6395 = vmatpush.msra.mxu0 %v5904
        %6396 = vmatpush.msra.mxu0 %v5901
        %6397 = vmatpush.msra.mxu0 %v5898
        %6398 = vmatmul.f32.gmra.mxu0 %v5686
        %v6399 = vpop.f32.mrf.mxu0
        %v6400 = vadd.f32 %v6377, %v6399
        %6401 = vmatmul.f32.gmra.mxu0 %v5698
        %v6402 = vpop.f32.mrf.mxu0
        %v6403 = vadd.f32 %v6380, %v6402
        %6404 = vdwg.mxu0
        %6405 = vmatpush.msra.mxu0 %v5991
        %6406 = vmatpush.msra.mxu0 %v5988
        %6407 = vmatpush.msra.mxu0 %v5985
        %6408 = vmatpush.msra.mxu0 %v5982
        %6409 = vmatpush.msra.mxu0 %v5979
        %6410 = vmatpush.msra.mxu0 %v5976
        %6411 = vmatpush.msra.mxu0 %v5973
        %6412 = vmatpush.msra.mxu0 %v5970
        %6413 = vmatpush.msra.mxu0 %v5967
        %6414 = vmatpush.msra.mxu0 %v5964
        %6415 = vmatpush.msra.mxu0 %v5961
        %6416 = vmatpush.msra.mxu0 %v5958
        %6417 = vmatpush.msra.mxu0 %v5955
        %6418 = vmatpush.msra.mxu0 %v5952
        %6419 = vmatpush.msra.mxu0 %v5949
        %6420 = vmatpush.msra.mxu0 %v5946
        %6421 = vmatmul.f32.gmra.mxu0 %v5687
        %v6422 = vpop.f32.mrf.mxu0
        %v6423 = vadd.f32 %v6400, %v6422
        %6424 = vmatmul.f32.gmra.mxu0 %v5699
        %v6425 = vpop.f32.mrf.mxu0
        %v6426 = vadd.f32 %v6403, %v6425
        %6427 = vdwg.mxu0
        %6428 = vmatpush.msra.mxu0 %v6039
        %6429 = vmatpush.msra.mxu0 %v6036
        %6430 = vmatpush.msra.mxu0 %v6033
        %6431 = vmatpush.msra.mxu0 %v6030
        %6432 = vmatpush.msra.mxu0 %v6027
        %6433 = vmatpush.msra.mxu0 %v6024
        %6434 = vmatpush.msra.mxu0 %v6021
        %6435 = vmatpush.msra.mxu0 %v6018
        %6436 = vmatpush.msra.mxu0 %v6015
        %6437 = vmatpush.msra.mxu0 %v6012
        %6438 = vmatpush.msra.mxu0 %v6009
        %6439 = vmatpush.msra.mxu0 %v6006
        %6440 = vmatpush.msra.mxu0 %v6003
        %6441 = vmatpush.msra.mxu0 %v6000
        %6442 = vmatpush.msra.mxu0 %v5997
        %6443 = vmatpush.msra.mxu0 %v5994
        %6444 = vmatmul.f32.gmra.mxu0 %v5688
        %v6445 = vpop.f32.mrf.mxu0
        %v6446 = vadd.f32 %v6423, %v6445
        %6447 = vmatmul.f32.gmra.mxu0 %v5700
        %v6448 = vpop.f32.mrf.mxu0
        %v6449 = vadd.f32 %v6426, %v6448
        %6450 = vdwg.mxu0
        %6451 = vmatpush.msra.mxu0 %v6087
        %6452 = vmatpush.msra.mxu0 %v6084
        %6453 = vmatpush.msra.mxu0 %v6081
        %6454 = vmatpush.msra.mxu0 %v6078
        %6455 = vmatpush.msra.mxu0 %v6075
        %6456 = vmatpush.msra.mxu0 %v6072
        %6457 = vmatpush.msra.mxu0 %v6069
        %6458 = vmatpush.msra.mxu0 %v6066
        %6459 = vmatpush.msra.mxu0 %v6063
        %6460 = vmatpush.msra.mxu0 %v6060
        %6461 = vmatpush.msra.mxu0 %v6057
        %6462 = vmatpush.msra.mxu0 %v6054
        %6463 = vmatpush.msra.mxu0 %v6051
        %6464 = vmatpush.msra.mxu0 %v6048
        %6465 = vmatpush.msra.mxu0 %v6045
        %6466 = vmatpush.msra.mxu0 %v6042
        %6467 = vmatmul.f32.gmra.mxu0 %v5689
        %v6468 = vpop.f32.mrf.mxu0
        %v6469 = vadd.f32 %v6446, %v6468
        %6470 = vmatmul.f32.gmra.mxu0 %v5701
        %v6471 = vpop.f32.mrf.mxu0
        %v6472 = vadd.f32 %v6449, %v6471
        %6473 = vdwg.mxu0
        %6474 = vmatpush.msra.mxu0 %v6135
        %6475 = vmatpush.msra.mxu0 %v6132
        %6476 = vmatpush.msra.mxu0 %v6129
        %6477 = vmatpush.msra.mxu0 %v6126
        %6478 = vmatpush.msra.mxu0 %v6123
        %6479 = vmatpush.msra.mxu0 %v6120
        %6480 = vmatpush.msra.mxu0 %v6117
        %6481 = vmatpush.msra.mxu0 %v6114
        %6482 = vmatpush.msra.mxu0 %v6111
        %6483 = vmatpush.msra.mxu0 %v6108
        %6484 = vmatpush.msra.mxu0 %v6105
        %6485 = vmatpush.msra.mxu0 %v6102
        %6486 = vmatpush.msra.mxu0 %v6099
        %6487 = vmatpush.msra.mxu0 %v6096
        %6488 = vmatpush.msra.mxu0 %v6093
        %6489 = vmatpush.msra.mxu0 %v6090
        %6490 = vmatmul.f32.gmra.mxu0 %v5690
        %v6491 = vpop.f32.mrf.mxu0
        %v6492 = vadd.f32 %v6469, %v6491
        %6493 = vmatmul.f32.gmra.mxu0 %v5702
        %v6494 = vpop.f32.mrf.mxu0
        %v6495 = vadd.f32 %v6472, %v6494
        %6496 = vdwg.mxu0
        %6497 = vmatpush.msra.mxu0 %v6183
        %6498 = vmatpush.msra.mxu0 %v6180
        %6499 = vmatpush.msra.mxu0 %v6177
        %6500 = vmatpush.msra.mxu0 %v6174
        %6501 = vmatpush.msra.mxu0 %v6171
        %6502 = vmatpush.msra.mxu0 %v6168
        %6503 = vmatpush.msra.mxu0 %v6165
        %6504 = vmatpush.msra.mxu0 %v6162
        %6505 = vmatpush.msra.mxu0 %v6159
        %6506 = vmatpush.msra.mxu0 %v6156
        %6507 = vmatpush.msra.mxu0 %v6153
        %6508 = vmatpush.msra.mxu0 %v6150
        %6509 = vmatpush.msra.mxu0 %v6147
        %6510 = vmatpush.msra.mxu0 %v6144
        %6511 = vmatpush.msra.mxu0 %v6141
        %6512 = vmatpush.msra.mxu0 %v6138
        %6513 = vmatmul.f32.gmra.mxu0 %v5691
        %v6514 = vpop.f32.mrf.mxu0
        %v6515 = vadd.f32 %v6492, %v6514
        %6516 = vmatmul.f32.gmra.mxu0 %v5703
        %v6517 = vpop.f32.mrf.mxu0
        %v6518 = vadd.f32 %v6495, %v6517
        %6519 = vdwg.mxu0
        %6520 = vmatpush.msra.mxu0 %v6231
        %6521 = vmatpush.msra.mxu0 %v6228
        %6522 = vmatpush.msra.mxu0 %v6225
        %6523 = vmatpush.msra.mxu0 %v6222
        %6524 = vmatpush.msra.mxu0 %v6219
        %6525 = vmatpush.msra.mxu0 %v6216
        %6526 = vmatpush.msra.mxu0 %v6213
        %6527 = vmatpush.msra.mxu0 %v6210
        %6528 = vmatpush.msra.mxu0 %v6207
        %6529 = vmatpush.msra.mxu0 %v6204
        %6530 = vmatpush.msra.mxu0 %v6201
        %6531 = vmatpush.msra.mxu0 %v6198
        %6532 = vmatpush.msra.mxu0 %v6195
        %6533 = vmatpush.msra.mxu0 %v6192
        %6534 = vmatpush.msra.mxu0 %v6189
        %6535 = vmatpush.msra.mxu0 %v6186
        %6536 = vmatmul.f32.gmra.mxu0 %v5692
        %v6537 = vpop.f32.mrf.mxu0
        %v6538 = vadd.f32 %v6515, %v6537
        %6539 = vmatmul.f32.gmra.mxu0 %v5704
        %v6540 = vpop.f32.mrf.mxu0
        %v6541 = vadd.f32 %v6518, %v6540
        %6542 = vdwg.mxu0
        %6543 = vmatpush.msra.mxu0 %v6279
        %6544 = vmatpush.msra.mxu0 %v6276
        %6545 = vmatpush.msra.mxu0 %v6273
        %6546 = vmatpush.msra.mxu0 %v6270
        %6547 = vmatpush.msra.mxu0 %v6267
        %6548 = vmatpush.msra.mxu0 %v6264
        %6549 = vmatpush.msra.mxu0 %v6261
        %6550 = vmatpush.msra.mxu0 %v6258
        %6551 = vmatpush.msra.mxu0 %v6255
        %6552 = vmatpush.msra.mxu0 %v6252
        %6553 = vmatpush.msra.mxu0 %v6249
        %6554 = vmatpush.msra.mxu0 %v6246
        %6555 = vmatpush.msra.mxu0 %v6243
        %6556 = vmatpush.msra.mxu0 %v6240
        %6557 = vmatpush.msra.mxu0 %v6237
        %6558 = vmatpush.msra.mxu0 %v6234
        %6559 = vmatmul.f32.gmra.mxu0 %v5693
        %v6560 = vpop.f32.mrf.mxu0
        %v6561 = vadd.f32 %v6538, %v6560
        %6562 = vmatmul.f32.gmra.mxu0 %v5705
        %v6563 = vpop.f32.mrf.mxu0
        %v6564 = vadd.f32 %v6541, %v6563
        %6565 = vdwg.mxu0
        %6566 = vmatpush.msra.mxu0 %v5752
        %6567 = vmatpush.msra.mxu0 %v5749
        %6568 = vmatpush.msra.mxu0 %v5746
        %6569 = vmatpush.msra.mxu0 %v5743
        %6570 = vmatpush.msra.mxu0 %v5740
        %6571 = vmatpush.msra.mxu0 %v5737
        %6572 = vmatpush.msra.mxu0 %v5734
        %6573 = vmatpush.msra.mxu0 %v5731
        %6574 = vmatpush.msra.mxu0 %v5728
        %6575 = vmatpush.msra.mxu0 %v5725
        %6576 = vmatpush.msra.mxu0 %v5722
        %6577 = vmatpush.msra.mxu0 %v5719
        %6578 = vmatpush.msra.mxu0 %v5716
        %6579 = vmatpush.msra.mxu0 %v5713
        %6580 = vmatpush.msra.mxu0 %v5710
        %6581 = vmatpush.msra.mxu0 %v5707
        %6582 = vmatmul.f32.gmra.mxu0 %v5682
        %v6583 = vpop.f32.mrf.mxu0
        %v6584 = vadd.f32 %v6285, %v6583
        %6585 = vmatmul.f32.gmra.mxu0 %v5694
        %v6586 = vpop.f32.mrf.mxu0
        %v6587 = vadd.f32 %v6285, %v6586
        %6588 = vdwg.mxu0
        %6589 = vmatpush.msra.mxu0 %v5800
        %6590 = vmatpush.msra.mxu0 %v5797
        %6591 = vmatpush.msra.mxu0 %v5794
        %6592 = vmatpush.msra.mxu0 %v5791
        %6593 = vmatpush.msra.mxu0 %v5788
        %6594 = vmatpush.msra.mxu0 %v5785
        %6595 = vmatpush.msra.mxu0 %v5782
        %6596 = vmatpush.msra.mxu0 %v5779
        %6597 = vmatpush.msra.mxu0 %v5776
        %6598 = vmatpush.msra.mxu0 %v5773
        %6599 = vmatpush.msra.mxu0 %v5770
        %6600 = vmatpush.msra.mxu0 %v5767
        %6601 = vmatpush.msra.mxu0 %v5764
        %6602 = vmatpush.msra.mxu0 %v5761
        %6603 = vmatpush.msra.mxu0 %v5758
        %6604 = vmatpush.msra.mxu0 %v5755
        %6605 = vmatmul.f32.gmra.mxu0 %v5683
        %v6606 = vpop.f32.mrf.mxu0
        %v6607 = vadd.f32 %v6584, %v6606
        %6608 = vmatmul.f32.gmra.mxu0 %v5695
        %v6609 = vpop.f32.mrf.mxu0
        %v6610 = vadd.f32 %v6587, %v6609
        %6611 = vdwg.mxu0
        %6612 = vmatpush.msra.mxu0 %v5848
        %6613 = vmatpush.msra.mxu0 %v5845
        %6614 = vmatpush.msra.mxu0 %v5842
        %6615 = vmatpush.msra.mxu0 %v5839
        %6616 = vmatpush.msra.mxu0 %v5836
        %6617 = vmatpush.msra.mxu0 %v5833
        %6618 = vmatpush.msra.mxu0 %v5830
        %6619 = vmatpush.msra.mxu0 %v5827
        %6620 = vmatpush.msra.mxu0 %v5824
        %6621 = vmatpush.msra.mxu0 %v5821
        %6622 = vmatpush.msra.mxu0 %v5818
        %6623 = vmatpush.msra.mxu0 %v5815
        %6624 = vmatpush.msra.mxu0 %v5812
        %6625 = vmatpush.msra.mxu0 %v5809
        %6626 = vmatpush.msra.mxu0 %v5806
        %6627 = vmatpush.msra.mxu0 %v5803
        %6628 = vmatmul.f32.gmra.mxu0 %v5684
        %v6629 = vpop.f32.mrf.mxu0
        %v6630 = vadd.f32 %v6607, %v6629
        %6631 = vmatmul.f32.gmra.mxu0 %v5696
        %v6632 = vpop.f32.mrf.mxu0
        %v6633 = vadd.f32 %v6610, %v6632
        %6634 = vdwg.mxu0
        %6635 = vmatpush.msra.mxu0 %v5896
        %6636 = vmatpush.msra.mxu0 %v5893
        %6637 = vmatpush.msra.mxu0 %v5890
        %6638 = vmatpush.msra.mxu0 %v5887
        %6639 = vmatpush.msra.mxu0 %v5884
        %6640 = vmatpush.msra.mxu0 %v5881
        %6641 = vmatpush.msra.mxu0 %v5878
        %6642 = vmatpush.msra.mxu0 %v5875
        %6643 = vmatpush.msra.mxu0 %v5872
        %6644 = vmatpush.msra.mxu0 %v5869
        %6645 = vmatpush.msra.mxu0 %v5866
        %6646 = vmatpush.msra.mxu0 %v5863
        %6647 = vmatpush.msra.mxu0 %v5860
        %6648 = vmatpush.msra.mxu0 %v5857
        %6649 = vmatpush.msra.mxu0 %v5854
        %6650 = vmatpush.msra.mxu0 %v5851
        %6651 = vmatmul.f32.gmra.mxu0 %v5685
        %v6652 = vpop.f32.mrf.mxu0
        %v6653 = vadd.f32 %v6630, %v6652
        %6654 = vmatmul.f32.gmra.mxu0 %v5697
        %v6655 = vpop.f32.mrf.mxu0
        %v6656 = vadd.f32 %v6633, %v6655
        %6657 = vdwg.mxu0
        %6658 = vmatpush.msra.mxu0 %v5944
        %6659 = vmatpush.msra.mxu0 %v5941
        %6660 = vmatpush.msra.mxu0 %v5938
        %6661 = vmatpush.msra.mxu0 %v5935
        %6662 = vmatpush.msra.mxu0 %v5932
        %6663 = vmatpush.msra.mxu0 %v5929
        %6664 = vmatpush.msra.mxu0 %v5926
        %6665 = vmatpush.msra.mxu0 %v5923
        %6666 = vmatpush.msra.mxu0 %v5920
        %6667 = vmatpush.msra.mxu0 %v5917
        %6668 = vmatpush.msra.mxu0 %v5914
        %6669 = vmatpush.msra.mxu0 %v5911
        %6670 = vmatpush.msra.mxu0 %v5908
        %6671 = vmatpush.msra.mxu0 %v5905
        %6672 = vmatpush.msra.mxu0 %v5902
        %6673 = vmatpush.msra.mxu0 %v5899
        %6674 = vmatmul.f32.gmra.mxu0 %v5686
        %v6675 = vpop.f32.mrf.mxu0
        %v6676 = vadd.f32 %v6653, %v6675
        %6677 = vmatmul.f32.gmra.mxu0 %v5698
        %v6678 = vpop.f32.mrf.mxu0
        %v6679 = vadd.f32 %v6656, %v6678
        %6680 = vdwg.mxu0
        %6681 = vmatpush.msra.mxu0 %v5992
        %6682 = vmatpush.msra.mxu0 %v5989
        %6683 = vmatpush.msra.mxu0 %v5986
        %6684 = vmatpush.msra.mxu0 %v5983
        %6685 = vmatpush.msra.mxu0 %v5980
        %6686 = vmatpush.msra.mxu0 %v5977
        %6687 = vmatpush.msra.mxu0 %v5974
        %6688 = vmatpush.msra.mxu0 %v5971
        %6689 = vmatpush.msra.mxu0 %v5968
        %6690 = vmatpush.msra.mxu0 %v5965
        %6691 = vmatpush.msra.mxu0 %v5962
        %6692 = vmatpush.msra.mxu0 %v5959
        %6693 = vmatpush.msra.mxu0 %v5956
        %6694 = vmatpush.msra.mxu0 %v5953
        %6695 = vmatpush.msra.mxu0 %v5950
        %6696 = vmatpush.msra.mxu0 %v5947
        %6697 = vmatmul.f32.gmra.mxu0 %v5687
        %v6698 = vpop.f32.mrf.mxu0
        %v6699 = vadd.f32 %v6676, %v6698
        %6700 = vmatmul.f32.gmra.mxu0 %v5699
        %v6701 = vpop.f32.mrf.mxu0
        %v6702 = vadd.f32 %v6679, %v6701
        %6703 = vdwg.mxu0
        %6704 = vmatpush.msra.mxu0 %v6040
        %6705 = vmatpush.msra.mxu0 %v6037
        %6706 = vmatpush.msra.mxu0 %v6034
        %6707 = vmatpush.msra.mxu0 %v6031
        %6708 = vmatpush.msra.mxu0 %v6028
        %6709 = vmatpush.msra.mxu0 %v6025
        %6710 = vmatpush.msra.mxu0 %v6022
        %6711 = vmatpush.msra.mxu0 %v6019
        %6712 = vmatpush.msra.mxu0 %v6016
        %6713 = vmatpush.msra.mxu0 %v6013
        %6714 = vmatpush.msra.mxu0 %v6010
        %6715 = vmatpush.msra.mxu0 %v6007
        %6716 = vmatpush.msra.mxu0 %v6004
        %6717 = vmatpush.msra.mxu0 %v6001
        %6718 = vmatpush.msra.mxu0 %v5998
        %6719 = vmatpush.msra.mxu0 %v5995
        %6720 = vmatmul.f32.gmra.mxu0 %v5688
        %v6721 = vpop.f32.mrf.mxu0
        %v6722 = vadd.f32 %v6699, %v6721
        %6723 = vmatmul.f32.gmra.mxu0 %v5700
        %v6724 = vpop.f32.mrf.mxu0
        %v6725 = vadd.f32 %v6702, %v6724
        %6726 = vdwg.mxu0
        %6727 = vmatpush.msra.mxu0 %v6088
        %6728 = vmatpush.msra.mxu0 %v6085
        %6729 = vmatpush.msra.mxu0 %v6082
        %6730 = vmatpush.msra.mxu0 %v6079
        %6731 = vmatpush.msra.mxu0 %v6076
        %6732 = vmatpush.msra.mxu0 %v6073
        %6733 = vmatpush.msra.mxu0 %v6070
        %6734 = vmatpush.msra.mxu0 %v6067
        %6735 = vmatpush.msra.mxu0 %v6064
        %6736 = vmatpush.msra.mxu0 %v6061
        %6737 = vmatpush.msra.mxu0 %v6058
        %6738 = vmatpush.msra.mxu0 %v6055
        %6739 = vmatpush.msra.mxu0 %v6052
        %6740 = vmatpush.msra.mxu0 %v6049
        %6741 = vmatpush.msra.mxu0 %v6046
        %6742 = vmatpush.msra.mxu0 %v6043
        %6743 = vmatmul.f32.gmra.mxu0 %v5689
        %v6744 = vpop.f32.mrf.mxu0
        %v6745 = vadd.f32 %v6722, %v6744
        %6746 = vmatmul.f32.gmra.mxu0 %v5701
        %v6747 = vpop.f32.mrf.mxu0
        %v6748 = vadd.f32 %v6725, %v6747
        %6749 = vdwg.mxu0
        %6750 = vmatpush.msra.mxu0 %v6136
        %6751 = vmatpush.msra.mxu0 %v6133
        %6752 = vmatpush.msra.mxu0 %v6130
        %6753 = vmatpush.msra.mxu0 %v6127
        %6754 = vmatpush.msra.mxu0 %v6124
        %6755 = vmatpush.msra.mxu0 %v6121
        %6756 = vmatpush.msra.mxu0 %v6118
        %6757 = vmatpush.msra.mxu0 %v6115
        %6758 = vmatpush.msra.mxu0 %v6112
        %6759 = vmatpush.msra.mxu0 %v6109
        %6760 = vmatpush.msra.mxu0 %v6106
        %6761 = vmatpush.msra.mxu0 %v6103
        %6762 = vmatpush.msra.mxu0 %v6100
        %6763 = vmatpush.msra.mxu0 %v6097
        %6764 = vmatpush.msra.mxu0 %v6094
        %6765 = vmatpush.msra.mxu0 %v6091
        %6766 = vmatmul.f32.gmra.mxu0 %v5690
        %v6767 = vpop.f32.mrf.mxu0
        %v6768 = vadd.f32 %v6745, %v6767
        %6769 = vmatmul.f32.gmra.mxu0 %v5702
        %v6770 = vpop.f32.mrf.mxu0
        %v6771 = vadd.f32 %v6748, %v6770
        %6772 = vdwg.mxu0
        %6773 = vmatpush.msra.mxu0 %v6184
        %6774 = vmatpush.msra.mxu0 %v6181
        %6775 = vmatpush.msra.mxu0 %v6178
        %6776 = vmatpush.msra.mxu0 %v6175
        %6777 = vmatpush.msra.mxu0 %v6172
        %6778 = vmatpush.msra.mxu0 %v6169
        %6779 = vmatpush.msra.mxu0 %v6166
        %6780 = vmatpush.msra.mxu0 %v6163
        %6781 = vmatpush.msra.mxu0 %v6160
        %6782 = vmatpush.msra.mxu0 %v6157
        %6783 = vmatpush.msra.mxu0 %v6154
        %6784 = vmatpush.msra.mxu0 %v6151
        %6785 = vmatpush.msra.mxu0 %v6148
        %6786 = vmatpush.msra.mxu0 %v6145
        %6787 = vmatpush.msra.mxu0 %v6142
        %6788 = vmatpush.msra.mxu0 %v6139
        %6789 = vmatmul.f32.gmra.mxu0 %v5691
        %v6790 = vpop.f32.mrf.mxu0
        %v6791 = vadd.f32 %v6768, %v6790
        %6792 = vmatmul.f32.gmra.mxu0 %v5703
        %v6793 = vpop.f32.mrf.mxu0
        %v6794 = vadd.f32 %v6771, %v6793
        %6795 = vdwg.mxu0
        %6796 = vmatpush.msra.mxu0 %v6232
        %6797 = vmatpush.msra.mxu0 %v6229
        %6798 = vmatpush.msra.mxu0 %v6226
        %6799 = vmatpush.msra.mxu0 %v6223
        %6800 = vmatpush.msra.mxu0 %v6220
        %6801 = vmatpush.msra.mxu0 %v6217
        %6802 = vmatpush.msra.mxu0 %v6214
        %6803 = vmatpush.msra.mxu0 %v6211
        %6804 = vmatpush.msra.mxu0 %v6208
        %6805 = vmatpush.msra.mxu0 %v6205
        %6806 = vmatpush.msra.mxu0 %v6202
        %6807 = vmatpush.msra.mxu0 %v6199
        %6808 = vmatpush.msra.mxu0 %v6196
        %6809 = vmatpush.msra.mxu0 %v6193
        %6810 = vmatpush.msra.mxu0 %v6190
        %6811 = vmatpush.msra.mxu0 %v6187
        %6812 = vmatmul.f32.gmra.mxu0 %v5692
        %v6813 = vpop.f32.mrf.mxu0
        %v6814 = vadd.f32 %v6791, %v6813
        %6815 = vmatmul.f32.gmra.mxu0 %v5704
        %v6816 = vpop.f32.mrf.mxu0
        %v6817 = vadd.f32 %v6794, %v6816
        %6818 = vdwg.mxu0
        %6819 = vmatpush.msra.mxu0 %v6280
        %6820 = vmatpush.msra.mxu0 %v6277
        %6821 = vmatpush.msra.mxu0 %v6274
        %6822 = vmatpush.msra.mxu0 %v6271
        %6823 = vmatpush.msra.mxu0 %v6268
        %6824 = vmatpush.msra.mxu0 %v6265
        %6825 = vmatpush.msra.mxu0 %v6262
        %6826 = vmatpush.msra.mxu0 %v6259
        %6827 = vmatpush.msra.mxu0 %v6256
        %6828 = vmatpush.msra.mxu0 %v6253
        %6829 = vmatpush.msra.mxu0 %v6250
        %6830 = vmatpush.msra.mxu0 %v6247
        %6831 = vmatpush.msra.mxu0 %v6244
        %6832 = vmatpush.msra.mxu0 %v6241
        %6833 = vmatpush.msra.mxu0 %v6238
        %6834 = vmatpush.msra.mxu0 %v6235
        %6835 = vmatmul.f32.gmra.mxu0 %v5693
        %v6836 = vpop.f32.mrf.mxu0
        %v6837 = vadd.f32 %v6814, %v6836
        %6838 = vmatmul.f32.gmra.mxu0 %v5705
        %v6839 = vpop.f32.mrf.mxu0
        %v6840 = vadd.f32 %v6817, %v6839
        %6841 = vdwg.mxu0
        %6842 = vmatpush.msra.mxu0 %v5753
        %6843 = vmatpush.msra.mxu0 %v5750
        %6844 = vmatpush.msra.mxu0 %v5747
        %6845 = vmatpush.msra.mxu0 %v5744
        %6846 = vmatpush.msra.mxu0 %v5741
        %6847 = vmatpush.msra.mxu0 %v5738
        %6848 = vmatpush.msra.mxu0 %v5735
        %6849 = vmatpush.msra.mxu0 %v5732
        %6850 = vmatpush.msra.mxu0 %v5729
        %6851 = vmatpush.msra.mxu0 %v5726
        %6852 = vmatpush.msra.mxu0 %v5723
        %6853 = vmatpush.msra.mxu0 %v5720
        %6854 = vmatpush.msra.mxu0 %v5717
        %6855 = vmatpush.msra.mxu0 %v5714
        %6856 = vmatpush.msra.mxu0 %v5711
        %6857 = vmatpush.msra.mxu0 %v5708
        %6858 = vmatmul.f32.gmra.mxu0 %v5682
        %v6859 = vpop.f32.mrf.mxu0
        %v6860 = vadd.f32 %v6286, %v6859
        %6861 = vmatmul.f32.gmra.mxu0 %v5694
        %v6862 = vpop.f32.mrf.mxu0
        %v6863 = vadd.f32 %v6286, %v6862
        %6864 = vdwg.mxu0
        %6865 = vmatpush.msra.mxu0 %v5801
        %6866 = vmatpush.msra.mxu0 %v5798
        %6867 = vmatpush.msra.mxu0 %v5795
        %6868 = vmatpush.msra.mxu0 %v5792
        %6869 = vmatpush.msra.mxu0 %v5789
        %6870 = vmatpush.msra.mxu0 %v5786
        %6871 = vmatpush.msra.mxu0 %v5783
        %6872 = vmatpush.msra.mxu0 %v5780
        %6873 = vmatpush.msra.mxu0 %v5777
        %6874 = vmatpush.msra.mxu0 %v5774
        %6875 = vmatpush.msra.mxu0 %v5771
        %6876 = vmatpush.msra.mxu0 %v5768
        %6877 = vmatpush.msra.mxu0 %v5765
        %6878 = vmatpush.msra.mxu0 %v5762
        %6879 = vmatpush.msra.mxu0 %v5759
        %6880 = vmatpush.msra.mxu0 %v5756
        %6881 = vmatmul.f32.gmra.mxu0 %v5683
        %v6882 = vpop.f32.mrf.mxu0
        %v6883 = vadd.f32 %v6860, %v6882
        %6884 = vmatmul.f32.gmra.mxu0 %v5695
        %v6885 = vpop.f32.mrf.mxu0
        %v6886 = vadd.f32 %v6863, %v6885
        %6887 = vdwg.mxu0
        %6888 = vmatpush.msra.mxu0 %v5849
        %6889 = vmatpush.msra.mxu0 %v5846
        %6890 = vmatpush.msra.mxu0 %v5843
        %6891 = vmatpush.msra.mxu0 %v5840
        %6892 = vmatpush.msra.mxu0 %v5837
        %6893 = vmatpush.msra.mxu0 %v5834
        %6894 = vmatpush.msra.mxu0 %v5831
        %6895 = vmatpush.msra.mxu0 %v5828
        %6896 = vmatpush.msra.mxu0 %v5825
        %6897 = vmatpush.msra.mxu0 %v5822
        %6898 = vmatpush.msra.mxu0 %v5819
        %6899 = vmatpush.msra.mxu0 %v5816
        %6900 = vmatpush.msra.mxu0 %v5813
        %6901 = vmatpush.msra.mxu0 %v5810
        %6902 = vmatpush.msra.mxu0 %v5807
        %6903 = vmatpush.msra.mxu0 %v5804
        %6904 = vmatmul.f32.gmra.mxu0 %v5684
        %v6905 = vpop.f32.mrf.mxu0
        %v6906 = vadd.f32 %v6883, %v6905
        %6907 = vmatmul.f32.gmra.mxu0 %v5696
        %v6908 = vpop.f32.mrf.mxu0
        %v6909 = vadd.f32 %v6886, %v6908
        %6910 = vdwg.mxu0
        %6911 = vmatpush.msra.mxu0 %v5897
        %6912 = vmatpush.msra.mxu0 %v5894
        %6913 = vmatpush.msra.mxu0 %v5891
        %6914 = vmatpush.msra.mxu0 %v5888
        %6915 = vmatpush.msra.mxu0 %v5885
        %6916 = vmatpush.msra.mxu0 %v5882
        %6917 = vmatpush.msra.mxu0 %v5879
        %6918 = vmatpush.msra.mxu0 %v5876
        %6919 = vmatpush.msra.mxu0 %v5873
        %6920 = vmatpush.msra.mxu0 %v5870
        %6921 = vmatpush.msra.mxu0 %v5867
        %6922 = vmatpush.msra.mxu0 %v5864
        %6923 = vmatpush.msra.mxu0 %v5861
        %6924 = vmatpush.msra.mxu0 %v5858
        %6925 = vmatpush.msra.mxu0 %v5855
        %6926 = vmatpush.msra.mxu0 %v5852
        %6927 = vmatmul.f32.gmra.mxu0 %v5685
        %v6928 = vpop.f32.mrf.mxu0
        %v6929 = vadd.f32 %v6906, %v6928
        %6930 = vmatmul.f32.gmra.mxu0 %v5697
        %v6931 = vpop.f32.mrf.mxu0
        %v6932 = vadd.f32 %v6909, %v6931
        %6933 = vdwg.mxu0
        %6934 = vmatpush.msra.mxu0 %v5945
        %6935 = vmatpush.msra.mxu0 %v5942
        %6936 = vmatpush.msra.mxu0 %v5939
        %6937 = vmatpush.msra.mxu0 %v5936
        %6938 = vmatpush.msra.mxu0 %v5933
        %6939 = vmatpush.msra.mxu0 %v5930
        %6940 = vmatpush.msra.mxu0 %v5927
        %6941 = vmatpush.msra.mxu0 %v5924
        %6942 = vmatpush.msra.mxu0 %v5921
        %6943 = vmatpush.msra.mxu0 %v5918
        %6944 = vmatpush.msra.mxu0 %v5915
        %6945 = vmatpush.msra.mxu0 %v5912
        %6946 = vmatpush.msra.mxu0 %v5909
        %6947 = vmatpush.msra.mxu0 %v5906
        %6948 = vmatpush.msra.mxu0 %v5903
        %6949 = vmatpush.msra.mxu0 %v5900
        %6950 = vmatmul.f32.gmra.mxu0 %v5686
        %v6951 = vpop.f32.mrf.mxu0
        %v6952 = vadd.f32 %v6929, %v6951
        %6953 = vmatmul.f32.gmra.mxu0 %v5698
        %v6954 = vpop.f32.mrf.mxu0
        %v6955 = vadd.f32 %v6932, %v6954
        %6956 = vdwg.mxu0
        %6957 = vmatpush.msra.mxu0 %v5993
        %6958 = vmatpush.msra.mxu0 %v5990
        %6959 = vmatpush.msra.mxu0 %v5987
        %6960 = vmatpush.msra.mxu0 %v5984
        %6961 = vmatpush.msra.mxu0 %v5981
        %6962 = vmatpush.msra.mxu0 %v5978
        %6963 = vmatpush.msra.mxu0 %v5975
        %6964 = vmatpush.msra.mxu0 %v5972
        %6965 = vmatpush.msra.mxu0 %v5969
        %6966 = vmatpush.msra.mxu0 %v5966
        %6967 = vmatpush.msra.mxu0 %v5963
        %6968 = vmatpush.msra.mxu0 %v5960
        %6969 = vmatpush.msra.mxu0 %v5957
        %6970 = vmatpush.msra.mxu0 %v5954
        %6971 = vmatpush.msra.mxu0 %v5951
        %6972 = vmatpush.msra.mxu0 %v5948
        %6973 = vmatmul.f32.gmra.mxu0 %v5687
        %v6974 = vpop.f32.mrf.mxu0
        %v6975 = vadd.f32 %v6952, %v6974
        %6976 = vmatmul.f32.gmra.mxu0 %v5699
        %v6977 = vpop.f32.mrf.mxu0
        %v6978 = vadd.f32 %v6955, %v6977
        %6979 = vdwg.mxu0
        %6980 = vmatpush.msra.mxu0 %v6041
        %6981 = vmatpush.msra.mxu0 %v6038
        %6982 = vmatpush.msra.mxu0 %v6035
        %6983 = vmatpush.msra.mxu0 %v6032
        %6984 = vmatpush.msra.mxu0 %v6029
        %6985 = vmatpush.msra.mxu0 %v6026
        %6986 = vmatpush.msra.mxu0 %v6023
        %6987 = vmatpush.msra.mxu0 %v6020
        %6988 = vmatpush.msra.mxu0 %v6017
        %6989 = vmatpush.msra.mxu0 %v6014
        %6990 = vmatpush.msra.mxu0 %v6011
        %6991 = vmatpush.msra.mxu0 %v6008
        %6992 = vmatpush.msra.mxu0 %v6005
        %6993 = vmatpush.msra.mxu0 %v6002
        %6994 = vmatpush.msra.mxu0 %v5999
        %6995 = vmatpush.msra.mxu0 %v5996
        %6996 = vmatmul.f32.gmra.mxu0 %v5688
        %v6997 = vpop.f32.mrf.mxu0
        %v6998 = vadd.f32 %v6975, %v6997
        %6999 = vmatmul.f32.gmra.mxu0 %v5700
        %v7000 = vpop.f32.mrf.mxu0
        %v7001 = vadd.f32 %v6978, %v7000
        %7002 = vdwg.mxu0
        %7003 = vmatpush.msra.mxu0 %v6089
        %7004 = vmatpush.msra.mxu0 %v6086
        %7005 = vmatpush.msra.mxu0 %v6083
        %7006 = vmatpush.msra.mxu0 %v6080
        %7007 = vmatpush.msra.mxu0 %v6077
        %7008 = vmatpush.msra.mxu0 %v6074
        %7009 = vmatpush.msra.mxu0 %v6071
        %7010 = vmatpush.msra.mxu0 %v6068
        %7011 = vmatpush.msra.mxu0 %v6065
        %7012 = vmatpush.msra.mxu0 %v6062
        %7013 = vmatpush.msra.mxu0 %v6059
        %7014 = vmatpush.msra.mxu0 %v6056
        %7015 = vmatpush.msra.mxu0 %v6053
        %7016 = vmatpush.msra.mxu0 %v6050
        %7017 = vmatpush.msra.mxu0 %v6047
        %7018 = vmatpush.msra.mxu0 %v6044
        %7019 = vmatmul.f32.gmra.mxu0 %v5689
        %v7020 = vpop.f32.mrf.mxu0
        %v7021 = vadd.f32 %v6998, %v7020
        %7022 = vmatmul.f32.gmra.mxu0 %v5701
        %v7023 = vpop.f32.mrf.mxu0
        %v7024 = vadd.f32 %v7001, %v7023
        %7025 = vdwg.mxu0
        %7026 = vmatpush.msra.mxu0 %v6137
        %7027 = vmatpush.msra.mxu0 %v6134
        %7028 = vmatpush.msra.mxu0 %v6131
        %7029 = vmatpush.msra.mxu0 %v6128
        %7030 = vmatpush.msra.mxu0 %v6125
        %7031 = vmatpush.msra.mxu0 %v6122
        %7032 = vmatpush.msra.mxu0 %v6119
        %7033 = vmatpush.msra.mxu0 %v6116
        %7034 = vmatpush.msra.mxu0 %v6113
        %7035 = vmatpush.msra.mxu0 %v6110
        %7036 = vmatpush.msra.mxu0 %v6107
        %7037 = vmatpush.msra.mxu0 %v6104
        %7038 = vmatpush.msra.mxu0 %v6101
        %7039 = vmatpush.msra.mxu0 %v6098
        %7040 = vmatpush.msra.mxu0 %v6095
        %7041 = vmatpush.msra.mxu0 %v6092
        %7042 = vmatmul.f32.gmra.mxu0 %v5690
        %v7043 = vpop.f32.mrf.mxu0
        %v7044 = vadd.f32 %v7021, %v7043
        %7045 = vmatmul.f32.gmra.mxu0 %v5702
        %v7046 = vpop.f32.mrf.mxu0
        %v7047 = vadd.f32 %v7024, %v7046
        %7048 = vdwg.mxu0
        %7049 = vmatpush.msra.mxu0 %v6185
        %7050 = vmatpush.msra.mxu0 %v6182
        %7051 = vmatpush.msra.mxu0 %v6179
        %7052 = vmatpush.msra.mxu0 %v6176
        %7053 = vmatpush.msra.mxu0 %v6173
        %7054 = vmatpush.msra.mxu0 %v6170
        %7055 = vmatpush.msra.mxu0 %v6167
        %7056 = vmatpush.msra.mxu0 %v6164
        %7057 = vmatpush.msra.mxu0 %v6161
        %7058 = vmatpush.msra.mxu0 %v6158
        %7059 = vmatpush.msra.mxu0 %v6155
        %7060 = vmatpush.msra.mxu0 %v6152
        %7061 = vmatpush.msra.mxu0 %v6149
        %7062 = vmatpush.msra.mxu0 %v6146
        %7063 = vmatpush.msra.mxu0 %v6143
        %7064 = vmatpush.msra.mxu0 %v6140
        %7065 = vmatmul.f32.gmra.mxu0 %v5691
        %v7066 = vpop.f32.mrf.mxu0
        %v7067 = vadd.f32 %v7044, %v7066
        %7068 = vmatmul.f32.gmra.mxu0 %v5703
        %v7069 = vpop.f32.mrf.mxu0
        %v7070 = vadd.f32 %v7047, %v7069
        %7071 = vdwg.mxu0
        %7072 = vmatpush.msra.mxu0 %v6233
        %7073 = vmatpush.msra.mxu0 %v6230
        %7074 = vmatpush.msra.mxu0 %v6227
        %7075 = vmatpush.msra.mxu0 %v6224
        %7076 = vmatpush.msra.mxu0 %v6221
        %7077 = vmatpush.msra.mxu0 %v6218
        %7078 = vmatpush.msra.mxu0 %v6215
        %7079 = vmatpush.msra.mxu0 %v6212
        %7080 = vmatpush.msra.mxu0 %v6209
        %7081 = vmatpush.msra.mxu0 %v6206
        %7082 = vmatpush.msra.mxu0 %v6203
        %7083 = vmatpush.msra.mxu0 %v6200
        %7084 = vmatpush.msra.mxu0 %v6197
        %7085 = vmatpush.msra.mxu0 %v6194
        %7086 = vmatpush.msra.mxu0 %v6191
        %7087 = vmatpush.msra.mxu0 %v6188
        %7088 = vmatmul.f32.gmra.mxu0 %v5692
        %v7089 = vpop.f32.mrf.mxu0
        %v7090 = vadd.f32 %v7067, %v7089
        %7091 = vmatmul.f32.gmra.mxu0 %v5704
        %v7092 = vpop.f32.mrf.mxu0
        %v7093 = vadd.f32 %v7070, %v7092
        %7094 = vdwg.mxu0
        %7095 = vmatpush.msra.mxu0 %v6281
        %7096 = vmatpush.msra.mxu0 %v6278
        %7097 = vmatpush.msra.mxu0 %v6275
        %7098 = vmatpush.msra.mxu0 %v6272
        %7099 = vmatpush.msra.mxu0 %v6269
        %7100 = vmatpush.msra.mxu0 %v6266
        %7101 = vmatpush.msra.mxu0 %v6263
        %7102 = vmatpush.msra.mxu0 %v6260
        %7103 = vmatpush.msra.mxu0 %v6257
        %7104 = vmatpush.msra.mxu0 %v6254
        %7105 = vmatpush.msra.mxu0 %v6251
        %7106 = vmatpush.msra.mxu0 %v6248
        %7107 = vmatpush.msra.mxu0 %v6245
        %7108 = vmatpush.msra.mxu0 %v6242
        %7109 = vmatpush.msra.mxu0 %v6239
        %7110 = vmatpush.msra.mxu0 %v6236
        %7111 = vmatmul.f32.gmra.mxu0 %v5693
        %v7112 = vpop.f32.mrf.mxu0
        %v7113 = vadd.f32 %v7090, %v7112
        %7114 = vmatmul.f32.gmra.mxu0 %v5705
        %v7115 = vpop.f32.mrf.mxu0
        %v7116 = vadd.f32 %v7093, %v7115
        %7117 = vdwg.mxu0
        %v7118 = vadd.f32 %v4156, %v6561
        %v7119 = vadd.f32 %v4157, %v6837
        %v7120 = vadd.f32 %v4158, %v7113
        %v7121 = vadd.f32 %v4159, %v6564
        %v7122 = vadd.f32 %v4160, %v6840
        %v7123 = vadd.f32 %v4161, %v7116
        %7124 = vst [vmem:[%s591] sm:$0xff] %v7118
        %7125 = vst [vmem:[%s591 + $0x8] sm:$0xff] %v7119
        %7126 = vst [vmem:[%s591 + $0x10] sm:$0xff] %v7120
        %7127 = vst [vmem:[%s591 + $0x18] sm:$0xff] %v7121
        %7128 = vst [vmem:[%s591 + $0x20] sm:$0xff] %v7122
        %7129 = vst [vmem:[%s591 + $0x28] sm:$0xff] %v7123
        %s7130 = sand.u32 %s342, 1
        %s7131 = scalar_lea.sflag [#allocation4], %s7130
        %s7132 = sand.u32 %s342, 1
        %s7133 = smul.addr %s7132, 48
        %s7134 = scalar_lea.vmem [#allocation16], %s7133
        // Predicated region
        $region109: #{block_forward.1} parent=75 // pred_check
          %p7135 = pneg %p352
        $region110: #{block_forward.1} parent=75 // pred_check_branch
          %7137 = sbr.rel (%p7135) target = $region112
        $region111: #{block_forward.1} parent=75 // pred_region
          %7139 = vsyncadd %s7131, 0
          %s7140 = smul.addr %s35, 6
          %s7141 = smul.addr %s7140, 8
          %s7142 = scalar_lea.hbm %s14, %s7141
          %s7143 = sshll.u32 %s7134, 4
          %s7144 = int_to_ptr.vmem [resolvable:$true] %s7143
          %s7145 = sshll.u32 %s7142, 4
          %s7146 = int_to_ptr.hbm [resolvable:$true] %s7145
          %7151 = dma.vmem_to_hbm [thread:$0]  %s7144, 768, %s7146, %s7131, 384, 384, 24
        $region112: #{block_forward.1} parent=75 // pred_fallthru
          _
      $region76: #{block_forward.1} parent=5 // pred_fallthru
        _
      %p7152 = scmp.le.s32.totalorder 2, %s30
      // Predicated region
      $region113: #{block_forward.1} parent=5 // pred_check
        %p7153 = pneg %p7152
      $region114: #{block_forward.1} parent=5 // pred_check_branch
        %7155 = sbr.rel (%p7153) target = $region116
      $region115: #{block_forward.1} parent=5 // pred_region
        %s7156 = ssub.s32 %s30, 2
        // Predicated region
        $region117: #{block_forward.1} parent=115 // pred_check
          %p7157 = pneg %p358
        $region118: #{block_forward.1} parent=115 // pred_check_branch
          %7159 = sbr.rel (%p7157) target = $region120
        $region119: #{block_forward.1} parent=115 // pred_region
          %s7160 = sand.u32 %s343, 1
          %s7161 = scalar_lea.sflag [#allocation4], %s7160
          %s7162 = sand.u32 %s343, 1
          %s7163 = smul.addr %s7162, 48
          %s7164 = scalar_lea.vmem [#allocation16], %s7163
          %7166 = dma.done %s7161, 768
        $region120: #{block_forward.1} parent=115 // pred_fallthru
          _
      $region116: #{block_forward.1} parent=5 // pred_fallthru
        _
    $region6: #{block_forward.1} parent=1 // loop_footer
      %s34 = sadd.s32 1, %s30
    $region7: #{block_forward.1} parent=1 // loop_footer_branch
      %29 = sbr.rel target = $region3
    $region8: #{block_forward.1} parent=1 // loop_exit
      _
    %7167 = vsyncpa [#allocation3], 1
    %s7168 = scalar_lea.sflag [#allocation3], 1
    %7169 = vsyncpa %s7168, 1
    %7170 = vsyncpa [#allocation6], 1
    %7171 = vsyncpa [#allocation9], 1
    %7172 = vsyncpa [#allocation12], 1
    %7173 = vsyncpa [#allocation15], 1
    %7174 = vsyncpa [#allocation4], 1
    %s7175 = scalar_lea.sflag [#allocation4], 1
    %7176 = vsyncpa %s7175, 1

</llo_original>
